<compile_context>
chip_gen: v6e
topology: v6e:2x2x1
jax: 0.10.0
libtpu: 0.0.40
codegen_flags: <defaults>
</compile_context>

<pallas_src>
import math

import jax
import jax.numpy as jnp
from jax import lax
from jax.experimental import pallas as pl
from jax.experimental.pallas import tpu as pltpu

# ----------------------------- hyperparameters ------------------------------
BATCH = 2            # batch_size
TIME = 8             # time_size = 256 in the torch module
HIDDEN = 128         # transformer_size = 1024
HEADS = 4            # num_attention_heads = 64
HEAD_DIM = HIDDEN // HEADS
FFN = HIDDEN         # ffn_hidden_size = transformer_size
HALF = HIDDEN // 2   # transformer_size / 2
IN_FEAT = 208        # 100*2 input features + 4*2 zero padding (fixed by module)
N_LAYERS = 12        # 12 encoder layers, 12 decoder layers
ACTOR_H1 = 256
ACTOR_H2 = 128
N_ACTIONS = 11
HEAD_PAD = 128       # lane-dense padded width of the fused actor+critic output
LN_EPS = 1e-5
WDTYPE = jnp.bfloat16   # weight storage / matmul-operand dtype (f32 accumulate)


# --------------------------- in-kernel math helpers --------------------------
def _mm(x, w):
    """Matmul with bf16 operands and f32 accumulation on the MXU."""
    return jnp.dot(x.astype(WDTYPE), w.astype(WDTYPE),
                   preferred_element_type=jnp.float32)


def _ln(x, g, b):
    """LayerNorm in f32 (fused into the consuming kernel)."""
    mu = jnp.mean(x, axis=-1, keepdims=True)
    var = jnp.mean(jnp.square(x - mu), axis=-1, keepdims=True)
    return (x - mu) * lax.rsqrt(var + LN_EPS) * g + b


def _gelu(x):
    # tanh-approximate GELU (TE MLP default activation)
    c = math.sqrt(2.0 / math.pi)
    return 0.5 * x * (1.0 + jnp.tanh(c * (x + 0.044715 * x * x * x)))


def _attn_heads(q, k, v, wo, bias):
    """Multi-head attention fused with the output projection.

    q: (B*Tq, H), k/v: (B*Tk, H) f32; wo: (H, H) bf16; bias: (B,Tq,Tk) or None.
    Returns sum_h softmax(Q_h K_h^T * scale + bias) V_h @ wo_h  as (B*Tq, H) f32.
    Per-head loop is unrolled at trace time (HEADS=4); the concat of head
    outputs is replaced by accumulating per-head output-projection partials.
    """
    tq = q.shape[0] // BATCH
    tk = k.shape[0] // BATCH
    scale = 1.0 / math.sqrt(HEAD_DIM)
    out = None
    for hd in range(HEADS):
        lo = hd * HEAD_DIM
        qh = q[:, lo:lo + HEAD_DIM].reshape(BATCH, tq, HEAD_DIM)
        kh = k[:, lo:lo + HEAD_DIM].reshape(BATCH, tk, HEAD_DIM)
        vh = v[:, lo:lo + HEAD_DIM].reshape(BATCH, tk, HEAD_DIM)
        s = jnp.einsum("bqd,bkd->bqk", qh.astype(WDTYPE), kh.astype(WDTYPE),
                       preferred_element_type=jnp.float32) * scale
        if bias is not None:
            s = s + bias
        m = jnp.max(s, axis=-1, keepdims=True)
        p = jnp.exp(s - m)
        p = p * pl.reciprocal(jnp.sum(p, axis=-1, keepdims=True), approx=True)
        oh = jnp.einsum("bqk,bkd->bqd", p.astype(WDTYPE), vh.astype(WDTYPE),
                        preferred_element_type=jnp.float32)
        oh = oh.reshape(BATCH * tq, HEAD_DIM)
        contrib = _mm(oh, wo[lo:lo + HEAD_DIM, :])
        out = contrib if out is None else out + contrib
    return out


# ------------------------------ Pallas kernels -------------------------------
def _encoder_stack_kernel(xin_ref, emb_w, emb_b, pos_ref,
                          g1, b1, wqkv, bqkv, wo, bo,
                          g2, b2, w1, fb1, w2, fb2,
                          x0_ref, o_ref, h_scr):
    l = pl.program_id(0)

    # Fused state_embedding + positional encoding (+ identity dropout) on the
    # first grid step; the embedded input is also emitted (needed by decoder).
    @pl.when(l == 0)
    def _():
        x0 = _mm(xin_ref[...], emb_w[...]) + emb_b[...] + pos_ref[...]
        x0_ref[...] = x0.astype(x0_ref.dtype)
        h_scr[...] = x0

    h = h_scr[...]

    # pre-LN self-attention (fused LN + QKV + attention + out-proj + residual)
    y = _ln(h, g1[0], b1[0])
    qkv = _mm(y, wqkv[0]) + bqkv[0]
    attn = _attn_heads(qkv[:, :HIDDEN], qkv[:, HIDDEN:2 * HIDDEN],
                       qkv[:, 2 * HIDDEN:], wo[0], None)
    h = h + attn + bo[0]

    # pre-LN MLP
    y = _ln(h, g2[0], b2[0])
    y = _gelu(_mm(y, w1[0]) + fb1[0])
    h = h + _mm(y, w2[0]) + fb2[0]

    h_scr[...] = h

    @pl.when(l == pl.num_programs(0) - 1)
    def _():
        o_ref[...] = h.astype(o_ref.dtype)


def _decoder_stack_kernel(x_ref, enc_ref, bias_ref,
                          g1, b1, wqkv, bqkv, wos, bos,
                          gi, bi, wqc, bqc, wkvc, bkvc, woc, boc,
                          g2, b2, w1, fb1, w2, fb2,
                          o_ref, h_scr):
    l = pl.program_id(0)

    @pl.when(l == 0)
    def _():
        h_scr[...] = x_ref[...]

    h = h_scr[...]
    enc = enc_ref[...]
    bias = bias_ref[...]

    # pre-LN self-attention with key-padding bias
    y = _ln(h, g1[0], b1[0])
    qkv = _mm(y, wqkv[0]) + bqkv[0]
    attn = _attn_heads(qkv[:, :HIDDEN], qkv[:, HIDDEN:2 * HIDDEN],
                       qkv[:, 2 * HIDDEN:], wos[0], bias)
    h = h + attn + bos[0]

    # pre-LN cross-attention against the (VMEM-resident) encoder output
    y = _ln(h, gi[0], bi[0])
    q = _mm(y, wqc[0]) + bqc[0]
    kv = _mm(enc, wkvc[0]) + bkvc[0]
    attn = _attn_heads(q, kv[:, :HIDDEN], kv[:, HIDDEN:], woc[0], None)
    h = h + attn + boc[0]

    # pre-LN MLP
    y = _ln(h, g2[0], b2[0])
    y = _gelu(_mm(y, w1[0]) + fb1[0])
    h = h + _mm(y, w2[0]) + fb2[0]

    h_scr[...] = h

    @pl.when(l == pl.num_programs(0) - 1)
    def _():
        o_ref[...] = h.astype(o_ref.dtype)


def _heads_kernel(dec_ref, env_ref, sw, sb, tw, tb, a1w, a1b, a2w, a2b,
                  hw, hb, o_ref):
    # state_layer + transformer_output_layer + actor_layer_1 + actor_layer_2 +
    # fused actor_layer_3 / critic_layer_1 (+ actor softmax), all ReLU-activated
    # (dropout identity at inference).  The concat(state, transformer) is folded
    # into actor_layer_1 by splitting its weight rows; the (B*T,128)->(B,T*128)
    # reshape is replaced by an accumulation over T of per-timestep matmuls.
    state = jnp.maximum(_mm(env_ref[...], sw[...]) + sb[...], 0.0)   # (BT, HALF)
    trans = jnp.maximum(_mm(dec_ref[...], tw[...]) + tb[...], 0.0)   # (BT, HALF)
    a1 = a1w[...]
    h1 = _mm(state, a1[:HALF, :]) + _mm(trans, a1[HALF:, :]) + a1b[...]
    h1 = jnp.maximum(h1, 0.0)
    # torch applies ReLU after the (B, T*128) reshape; ReLU is elementwise so
    # fusing it here is numerically identical.
    h2 = jnp.maximum(_mm(h1, a2w[...]) + a2b[...], 0.0)              # (BT, 128)
    h3 = h2.reshape(BATCH, TIME, ACTOR_H2)

    # fused actor_layer_3 + critic_layer_1, lane-padded to 128:
    # columns 0..10 = softmax(actor logits), column 11 = critic value, rest 0.
    acc = jnp.zeros((BATCH, HEAD_PAD), jnp.float32)
    for t in range(TIME):
        acc = acc + _mm(h3[:, t, :], hw[t * ACTOR_H2:(t + 1) * ACTOR_H2, :])
    y = acc + hb[...]                                                # (B, 128)
    col = lax.broadcasted_iota(jnp.int32, y.shape, 1)
    logits = jnp.where(col < N_ACTIONS, y, -1e30)
    m = jnp.max(logits, axis=-1, keepdims=True)
    e = jnp.exp(logits - m)
    p = e / jnp.sum(e, axis=-1, keepdims=True)                       # exact softmax
    o_ref[...] = jnp.where(col == N_ACTIONS, y, p).astype(o_ref.dtype)


# ------------------------------- call wrappers -------------------------------
def _per_layer_spec(shape):
    return pl.BlockSpec((1,) + shape, lambda l: (l, 0, 0))


def _resident_spec(shape):
    n = len(shape)
    return pl.BlockSpec(shape, lambda l: (0,) * n)


def encoder_stack(padded2d, top, p):
    bt = padded2d.shape[0]
    res = _resident_spec
    return pl.pallas_call(
        _encoder_stack_kernel,
        out_shape=(jax.ShapeDtypeStruct((bt, HIDDEN), jnp.float32),   # embedded input
                   jax.ShapeDtypeStruct((bt, HIDDEN), jnp.float32)),  # encoder output
        grid=(N_LAYERS,),
        in_specs=[
            res((bt, IN_FEAT)), res((IN_FEAT, HIDDEN)),
            res((1, HIDDEN)), res((bt, HIDDEN)),                                 # embed
            _per_layer_spec((1, HIDDEN)), _per_layer_spec((1, HIDDEN)),          # ln1
            _per_layer_spec((HIDDEN, 3 * HIDDEN)), _per_layer_spec((1, 3 * HIDDEN)),
            _per_layer_spec((HIDDEN, HIDDEN)), _per_layer_spec((1, HIDDEN)),     # wo
            _per_layer_spec((1, HIDDEN)), _per_layer_spec((1, HIDDEN)),          # ln2
            _per_layer_spec((HIDDEN, FFN)), _per_layer_spec((1, FFN)),           # fc1
            _per_layer_spec((FFN, HIDDEN)), _per_layer_spec((1, HIDDEN)),        # fc2
        ],
        out_specs=(res((bt, HIDDEN)), res((bt, HIDDEN))),
        scratch_shapes=[pltpu.VMEM((bt, HIDDEN), jnp.float32)],
        compiler_params=pltpu.CompilerParams(dimension_semantics=("arbitrary",)),
    )(padded2d, top["emb_w"], top["emb_b"], top["pos_full"],
      p["ln1_g"], p["ln1_b"], p["wqkv"], p["bqkv"], p["wo"], p["bo"],
      p["ln2_g"], p["ln2_b"], p["fc1_w"], p["fc1_b"], p["fc2_w"], p["fc2_b"])


def decoder_stack(x2d, enc2d, self_bias, p):
    bt = x2d.shape[0]
    return pl.pallas_call(
        _decoder_stack_kernel,
        out_shape=jax.ShapeDtypeStruct((bt, HIDDEN), jnp.float32),
        grid=(N_LAYERS,),
        in_specs=[
            _resident_spec((bt, HIDDEN)),
            _resident_spec((bt, HIDDEN)),
            _resident_spec((BATCH, TIME, TIME)),
            _per_layer_spec((1, HIDDEN)), _per_layer_spec((1, HIDDEN)),          # ln1
            _per_layer_spec((HIDDEN, 3 * HIDDEN)), _per_layer_spec((1, 3 * HIDDEN)),
            _per_layer_spec((HIDDEN, HIDDEN)), _per_layer_spec((1, HIDDEN)),     # wo_s
            _per_layer_spec((1, HIDDEN)), _per_layer_spec((1, HIDDEN)),          # ln_inter
            _per_layer_spec((HIDDEN, HIDDEN)), _per_layer_spec((1, HIDDEN)),     # wq_c
            _per_layer_spec((HIDDEN, 2 * HIDDEN)), _per_layer_spec((1, 2 * HIDDEN)),
            _per_layer_spec((HIDDEN, HIDDEN)), _per_layer_spec((1, HIDDEN)),     # wo_c
            _per_layer_spec((1, HIDDEN)), _per_layer_spec((1, HIDDEN)),          # ln2
            _per_layer_spec((HIDDEN, FFN)), _per_layer_spec((1, FFN)),           # fc1
            _per_layer_spec((FFN, HIDDEN)), _per_layer_spec((1, HIDDEN)),        # fc2
        ],
        out_specs=_resident_spec((bt, HIDDEN)),
        scratch_shapes=[pltpu.VMEM((bt, HIDDEN), jnp.float32)],
        compiler_params=pltpu.CompilerParams(dimension_semantics=("arbitrary",)),
    )(x2d, enc2d, self_bias,
      p["ln1_g"], p["ln1_b"], p["wqkv"], p["bqkv"], p["wo_s"], p["bo_s"],
      p["lni_g"], p["lni_b"], p["wq_c"], p["bq_c"], p["wkv_c"], p["bkv_c"],
      p["wo_c"], p["bo_c"], p["ln2_g"], p["ln2_b"],
      p["fc1_w"], p["fc1_b"], p["fc2_w"], p["fc2_b"])


def heads(dec2d, env2d, p):
    bt = dec2d.shape[0]
    full = lambda s: pl.BlockSpec(s, lambda i: (0,) * len(s))
    return pl.pallas_call(
        _heads_kernel,
        out_shape=jax.ShapeDtypeStruct((BATCH, HEAD_PAD), jnp.float32),
        grid=(1,),
        in_specs=[full((bt, HIDDEN)), full((bt, 3)),
                  full((3, HALF)), full((1, HALF)),
                  full((HIDDEN, HALF)), full((1, HALF)),
                  full((HIDDEN, ACTOR_H1)), full((1, ACTOR_H1)),
                  full((ACTOR_H1, ACTOR_H2)), full((1, ACTOR_H2)),
                  full((TIME * ACTOR_H2, HEAD_PAD)), full((1, HEAD_PAD))],
        out_specs=full((BATCH, HEAD_PAD)),
    )(dec2d, env2d, p["state_w"], p["state_b"], p["to_w"], p["to_b"],
      p["a1_w"], p["a1_b"], p["a2_w"], p["a2_b"], p["head_w"], p["head_b"])


# ------------------------------- parameters ----------------------------------
def _dense(key, fin, fout, dtype=WDTYPE):
    w = (0.02 * jax.random.normal(key, (fin, fout), jnp.float32)).astype(dtype)
    b = jnp.zeros((1, fout), jnp.float32)
    return w, b


def _stacked_dense(key, fin, fout):
    w = (0.02 * jax.random.normal(key, (N_LAYERS, fin, fout), jnp.float32)).astype(WDTYPE)
    b = jnp.zeros((N_LAYERS, 1, fout), jnp.float32)
    return w, b


def _stacked_ln():
    return (jnp.ones((N_LAYERS, 1, HIDDEN), jnp.float32),
            jnp.zeros((N_LAYERS, 1, HIDDEN), jnp.float32))


def _encoder_stack_params(key):
    ks = jax.random.split(key, 4)
    ln1_g, ln1_b = _stacked_ln()
    ln2_g, ln2_b = _stacked_ln()
    wqkv, bqkv = _stacked_dense(ks[0], HIDDEN, 3 * HIDDEN)
    wo, bo = _stacked_dense(ks[1], HIDDEN, HIDDEN)
    fc1_w, fc1_b = _stacked_dense(ks[2], HIDDEN, FFN)
    fc2_w, fc2_b = _stacked_dense(ks[3], FFN, HIDDEN)
    return dict(ln1_g=ln1_g, ln1_b=ln1_b, wqkv=wqkv, bqkv=bqkv, wo=wo, bo=bo,
                ln2_g=ln2_g, ln2_b=ln2_b, fc1_w=fc1_w, fc1_b=fc1_b,
                fc2_w=fc2_w, fc2_b=fc2_b)


def _decoder_stack_params(key):
    ks = jax.random.split(key, 7)
    ln1_g, ln1_b = _stacked_ln()
    lni_g, lni_b = _stacked_ln()
    ln2_g, ln2_b = _stacked_ln()
    wqkv, bqkv = _stacked_dense(ks[0], HIDDEN, 3 * HIDDEN)
    wo_s, bo_s = _stacked_dense(ks[1], HIDDEN, HIDDEN)
    wq_c, bq_c = _stacked_dense(ks[2], HIDDEN, HIDDEN)
    wkv_c, bkv_c = _stacked_dense(ks[3], HIDDEN, 2 * HIDDEN)
    wo_c, bo_c = _stacked_dense(ks[4], HIDDEN, HIDDEN)
    fc1_w, fc1_b = _stacked_dense(ks[5], HIDDEN, FFN)
    fc2_w, fc2_b = _stacked_dense(ks[6], FFN, HIDDEN)
    return dict(ln1_g=ln1_g, ln1_b=ln1_b, wqkv=wqkv, bqkv=bqkv, wo_s=wo_s, bo_s=bo_s,
                lni_g=lni_g, lni_b=lni_b, wq_c=wq_c, bq_c=bq_c, wkv_c=wkv_c,
                bkv_c=bkv_c, wo_c=wo_c, bo_c=bo_c,
                ln2_g=ln2_g, ln2_b=ln2_b, fc1_w=fc1_w, fc1_b=fc1_b,
                fc2_w=fc2_w, fc2_b=fc2_b)


def _positional_encoding(T, C):
    # positional_encodings.PositionalEncoding1D: interleaved sin/cos per channel
    channels = int(math.ceil(C / 2) * 2)
    inv_freq = 1.0 / (10000.0 ** (jnp.arange(0, channels, 2, dtype=jnp.float32) / channels))
    pos = jnp.arange(T, dtype=jnp.float32)
    sin_inp = pos[:, None] * inv_freq[None, :]
    emb = jnp.stack([jnp.sin(sin_inp), jnp.cos(sin_inp)], axis=-1).reshape(T, channels)
    return emb[:, :C]


def init_params(key):
    ks = jax.random.split(key, 9)
    emb_w, emb_b = _dense(ks[0], IN_FEAT, HIDDEN)               # state_embedding
    state_w, state_b = _dense(ks[1], 3, HALF)                   # state_layer
    to_w, to_b = _dense(ks[2], HIDDEN, HALF)                    # transformer_output_layer
    a1_w, a1_b = _dense(ks[3], HIDDEN, ACTOR_H1)                # actor_layer_1
    a2_w, a2_b = _dense(ks[4], ACTOR_H1, ACTOR_H2)              # actor_layer_2
    a3_w, a3_b = _dense(ks[5], ACTOR_H2 * TIME, N_ACTIONS, dtype=jnp.float32)
    c_w, c_b = _dense(ks[6], ACTOR_H2 * TIME, 1, dtype=jnp.float32)

    # fused + lane-padded actor/critic head: cols 0..10 actor logits, col 11 critic
    head_w = jnp.zeros((ACTOR_H2 * TIME, HEAD_PAD), jnp.float32)
    head_w = head_w.at[:, :N_ACTIONS].set(a3_w)
    head_w = head_w.at[:, N_ACTIONS].set(c_w[:, 0])
    head_b = jnp.zeros((1, HEAD_PAD), jnp.float32)
    head_b = head_b.at[:, :N_ACTIONS].set(a3_b)
    head_b = head_b.at[:, N_ACTIONS].set(c_b[:, 0])

    pos = _positional_encoding(TIME, HIDDEN)
    return dict(emb_w=emb_w, emb_b=emb_b, state_w=state_w, state_b=state_b,
                to_w=to_w, to_b=to_b, a1_w=a1_w, a1_b=a1_b, a2_w=a2_w, a2_b=a2_b,
                head_w=head_w.astype(WDTYPE), head_b=head_b,
                pos_full=jnp.tile(pos, (BATCH, 1)),             # (B*T, H)
                enc=_encoder_stack_params(ks[7]),
                dec=_decoder_stack_params(ks[8]))


# --------------------------------- forward -----------------------------------
def forward(params, mask, input_tuple, env_state):
    B, T = BATCH, TIME
    padding = jnp.zeros((B, T, 4, 2), jnp.float32)              # self.padding
    padded = jnp.concatenate([input_tuple, padding], axis=2).reshape(B * T, IN_FEAT)
    padded_mask = jnp.concatenate([mask, padding], axis=2)      # (B, T, 104, 2)

    # decoder self-attention key-padding bias, shared by every head (no per-head
    # zero-bias materialization).
    # TODO(synk): TE's decoder self_attn_mask_type default / (B,T,104,2) mask
    # semantics are ambiguous; reduced here to a per-key-position padding bias.
    valid = jnp.any(padded_mask != 0, axis=(2, 3))              # (B, T)
    self_bias = jnp.broadcast_to(
        jnp.where(valid, 0.0, -1e9)[:, None, :], (B, T, T))

    # fused embedding + 12 encoder layers (returns embedded input + enc output),
    # then 12 fused decoder layers (first decoder layer consumes the embedded
    # input, like the torch module)
    x2d, enc2d = encoder_stack(padded, params, params["enc"])
    dec2d = decoder_stack(x2d, enc2d, self_bias, params["dec"])

    # fused heads: state/transformer features + actor/critic output + softmax
    out = heads(dec2d, env_state.reshape(B * T, 3), params)     # (B, 128)
    actor_output = out[:, :N_ACTIONS]
    critic_output = out[:, N_ACTIONS:N_ACTIONS + 1]
    return actor_output, critic_output


# ----------------------------------- main ------------------------------------
if __name__ == "__main__":
    key = jax.random.PRNGKey(0)
    k_params, k_mask, k_in, k_env = jax.random.split(key, 4)

    params = init_params(k_params)
    # input_tuple / mask: (B, T, 100, 2) so that cat with (B,T,4,2) padding -> 208
    input_tuple = jax.random.normal(k_in, (BATCH, TIME, 100, 2), jnp.float32)
    mask = (jax.random.uniform(k_mask, (BATCH, TIME, 100, 2)) > 0.1).astype(jnp.float32)
    env_state = jax.random.normal(k_env, (BATCH, TIME, 3), jnp.float32)

    actor, critic = jax.jit(forward)(params, mask, input_tuple, env_state)
    jax.block_until_ready((actor, critic))

    assert actor.shape == (BATCH, N_ACTIONS)
    assert critic.shape == (BATCH, 1)
    assert bool(jnp.all(jnp.abs(jnp.sum(actor, axis=1) - 1.0) < 1e-4))
    print("KERNEL_OK")
</pallas_src>

<mosaic_0001>
module attributes {stable_mosaic.version = 11 : i64} {
  func.func @_encoder_stack_kernel(%arg0: i32, %arg1: memref<16x208xf32, #tpu.memory_space<vmem>>, %arg2: memref<208x128xbf16, #tpu.memory_space<vmem>>, %arg3: memref<1x128xf32, #tpu.memory_space<vmem>>, %arg4: memref<16x128xf32, #tpu.memory_space<vmem>>, %arg5: memref<1x1x128xf32, #tpu.memory_space<vmem>>, %arg6: memref<1x1x128xf32, #tpu.memory_space<vmem>>, %arg7: memref<1x128x384xbf16, #tpu.memory_space<vmem>>, %arg8: memref<1x1x384xf32, #tpu.memory_space<vmem>>, %arg9: memref<1x128x128xbf16, #tpu.memory_space<vmem>>, %arg10: memref<1x1x128xf32, #tpu.memory_space<vmem>>, %arg11: memref<1x1x128xf32, #tpu.memory_space<vmem>>, %arg12: memref<1x1x128xf32, #tpu.memory_space<vmem>>, %arg13: memref<1x128x128xbf16, #tpu.memory_space<vmem>>, %arg14: memref<1x1x128xf32, #tpu.memory_space<vmem>>, %arg15: memref<1x128x128xbf16, #tpu.memory_space<vmem>>, %arg16: memref<1x1x128xf32, #tpu.memory_space<vmem>>, %arg17: memref<16x128xf32, #tpu.memory_space<vmem>>, %arg18: memref<16x128xf32, #tpu.memory_space<vmem>>, %arg19: memref<16x128xf32, #tpu.memory_space<vmem>>) attributes {dimension_semantics = [#tpu.dimension_semantics<arbitrary>], iteration_bounds = array<i64: 12>, scalar_prefetch = 0 : i64, scratch_operands = 1 : i64, tpu.core_type = #tpu.core_type<tc>, window_params = [{pipeline_mode = #tpu.pipeline_mode<synchronous>, transform_indices = @transform_0, window_bounds = array<i64: 16, 208>}, {pipeline_mode = #tpu.pipeline_mode<synchronous>, transform_indices = @transform_1, window_bounds = array<i64: 208, 128>}, {pipeline_mode = #tpu.pipeline_mode<synchronous>, transform_indices = @transform_2, window_bounds = array<i64: 1, 128>}, {pipeline_mode = #tpu.pipeline_mode<synchronous>, transform_indices = @transform_3, window_bounds = array<i64: 16, 128>}, {transform_indices = @transform_4, window_bounds = array<i64: 1, 1, 128>}, {transform_indices = @transform_5, window_bounds = array<i64: 1, 1, 128>}, {transform_indices = @transform_6, window_bounds = array<i64: 1, 128, 384>}, {transform_indices = @transform_7, window_bounds = array<i64: 1, 1, 384>}, {transform_indices = @transform_8, window_bounds = array<i64: 1, 128, 128>}, {transform_indices = @transform_9, window_bounds = array<i64: 1, 1, 128>}, {transform_indices = @transform_10, window_bounds = array<i64: 1, 1, 128>}, {transform_indices = @transform_11, window_bounds = array<i64: 1, 1, 128>}, {transform_indices = @transform_12, window_bounds = array<i64: 1, 128, 128>}, {transform_indices = @transform_13, window_bounds = array<i64: 1, 1, 128>}, {transform_indices = @transform_14, window_bounds = array<i64: 1, 128, 128>}, {transform_indices = @transform_15, window_bounds = array<i64: 1, 1, 128>}, {pipeline_mode = #tpu.pipeline_mode<synchronous>, transform_indices = @transform_16, window_bounds = array<i64: 16, 128>}, {pipeline_mode = #tpu.pipeline_mode<synchronous>, transform_indices = @transform_17, window_bounds = array<i64: 16, 128>}]} {
    %c0_i32 = arith.constant 0 : i32
    %0 = arith.cmpi eq, %arg0, %c0_i32 : i32
    %1 = arith.extui %0 : i1 to i32
    %c0_i32_0 = arith.constant 0 : i32
    %2 = arith.cmpi ne, %1, %c0_i32_0 : i32
    scf.if %2 {
      %c0_81 = arith.constant 0 : index
      %c0_82 = arith.constant 0 : index
      %223 = vector.load %arg1[%c0_81, %c0_82] : memref<16x208xf32, #tpu.memory_space<vmem>>, vector<16x208xf32>
      %c0_83 = arith.constant 0 : index
      %c0_84 = arith.constant 0 : index
      %224 = vector.load %arg2[%c0_83, %c0_84] : memref<208x128xbf16, #tpu.memory_space<vmem>>, vector<208x128xbf16>
      %225 = arith.truncf %223 : vector<16x208xf32> to vector<16x208xbf16>
      %cst_85 = arith.constant dense<0.000000e+00> : vector<16x128xf32>
      %226 = tpu.matmul %225, %224, %cst_85 {dimension_numbers = #tpu.dot_dimension_numbers<[1], [0], [0], [1], [0, 0, 1, 1], [], []>} : vector<16x208xbf16>, vector<208x128xbf16>, vector<16x128xf32> -> vector<16x128xf32>
      %c0_86 = arith.constant 0 : index
      %c0_87 = arith.constant 0 : index
      %227 = vector.load %arg3[%c0_86, %c0_87] : memref<1x128xf32, #tpu.memory_space<vmem>>, vector<1x128xf32>
      %228 = vector.broadcast %227 : vector<1x128xf32> to vector<16x128xf32>
      %229 = arith.addf %226, %228 : vector<16x128xf32>
      %c0_88 = arith.constant 0 : index
      %c0_89 = arith.constant 0 : index
      %230 = vector.load %arg4[%c0_88, %c0_89] : memref<16x128xf32, #tpu.memory_space<vmem>>, vector<16x128xf32>
      %231 = arith.addf %229, %230 : vector<16x128xf32>
      %c0_90 = arith.constant 0 : index
      %c0_91 = arith.constant 0 : index
      %232 = vector.load %arg17[%c0_90, %c0_91] : memref<16x128xf32, #tpu.memory_space<vmem>>, vector<16x128xf32>
      tpu.vector_store %arg17[%c0_90, %c0_91], %231 {strides = array<i32>} : memref<16x128xf32, #tpu.memory_space<vmem>>, vector<16x128xf32>,
      %c0_92 = arith.constant 0 : index
      %c0_93 = arith.constant 0 : index
      %233 = vector.load %arg19[%c0_92, %c0_93] : memref<16x128xf32, #tpu.memory_space<vmem>>, vector<16x128xf32>
      tpu.vector_store %arg19[%c0_92, %c0_93], %231 {strides = array<i32>} : memref<16x128xf32, #tpu.memory_space<vmem>>, vector<16x128xf32>,
    } else {
    }
    %c0 = arith.constant 0 : index
    %c0_1 = arith.constant 0 : index
    %3 = vector.load %arg19[%c0, %c0_1] : memref<16x128xf32, #tpu.memory_space<vmem>>, vector<16x128xf32>
    %c0_2 = arith.constant 0 : index
    %c0_3 = arith.constant 0 : index
    %c0_4 = arith.constant 0 : index
    %4 = vector.load %arg5[%c0_2, %c0_3, %c0_4] : memref<1x1x128xf32, #tpu.memory_space<vmem>>, vector<1x1x128xf32>
    %5 = vector.shape_cast %4 : vector<1x1x128xf32> to vector<1x128xf32>
    %c0_5 = arith.constant 0 : index
    %c0_6 = arith.constant 0 : index
    %c0_7 = arith.constant 0 : index
    %6 = vector.load %arg6[%c0_5, %c0_6, %c0_7] : memref<1x1x128xf32, #tpu.memory_space<vmem>>, vector<1x1x128xf32>
    %7 = vector.shape_cast %6 : vector<1x1x128xf32> to vector<1x128xf32>
    %cst = arith.constant dense<0.000000e+00> : vector<16xf32>
    %8 = vector.multi_reduction <add>, %3, %cst [1] : vector<16x128xf32> to vector<16xf32>
    %9 = vector.shape_cast %8 : vector<16xf32> to vector<16x1xf32>
    %cst_8 = arith.constant 1.280000e+02 : f32
    %10 = vector.broadcast %cst_8 : f32 to vector<16x1xf32>
    %11 = arith.divf %9, %10 : vector<16x1xf32>
    %12 = vector.broadcast %11 : vector<16x1xf32> to vector<16x128xf32>
    %13 = arith.subf %3, %12 : vector<16x128xf32>
    %14 = arith.mulf %13, %13 : vector<16x128xf32>
    %cst_9 = arith.constant dense<0.000000e+00> : vector<16xf32>
    %15 = vector.multi_reduction <add>, %14, %cst_9 [1] : vector<16x128xf32> to vector<16xf32>
    %16 = vector.shape_cast %15 : vector<16xf32> to vector<16x1xf32>
    %cst_10 = arith.constant 1.280000e+02 : f32
    %17 = vector.broadcast %cst_10 : f32 to vector<16x1xf32>
    %18 = arith.divf %16, %17 : vector<16x1xf32>
    %19 = vector.broadcast %11 : vector<16x1xf32> to vector<16x128xf32>
    %20 = arith.subf %3, %19 : vector<16x128xf32>
    %cst_11 = arith.constant 9.99999974E-6 : f32
    %21 = vector.broadcast %cst_11 : f32 to vector<16x1xf32>
    %22 = arith.addf %18, %21 : vector<16x1xf32>
    %23 = math.rsqrt %22 : vector<16x1xf32>
    %24 = vector.broadcast %23 : vector<16x1xf32> to vector<16x128xf32>
    %25 = arith.mulf %20, %24 : vector<16x128xf32>
    %26 = vector.broadcast %5 : vector<1x128xf32> to vector<16x128xf32>
    %27 = arith.mulf %25, %26 : vector<16x128xf32>
    %28 = vector.broadcast %7 : vector<1x128xf32> to vector<16x128xf32>
    %29 = arith.addf %27, %28 : vector<16x128xf32>
    %c0_12 = arith.constant 0 : index
    %c0_13 = arith.constant 0 : index
    %c0_14 = arith.constant 0 : index
    %30 = vector.load %arg7[%c0_12, %c0_13, %c0_14] : memref<1x128x384xbf16, #tpu.memory_space<vmem>>, vector<1x128x384xbf16>
    %31 = vector.shape_cast %30 : vector<1x128x384xbf16> to vector<128x384xbf16>
    %32 = arith.truncf %29 : vector<16x128xf32> to vector<16x128xbf16>
    %cst_15 = arith.constant dense<0.000000e+00> : vector<16x384xf32>
    %33 = tpu.matmul %32, %31, %cst_15 {dimension_numbers = #tpu.dot_dimension_numbers<[1], [0], [0], [1], [0, 0, 1, 1], [], []>} : vector<16x128xbf16>, vector<128x384xbf16>, vector<16x384xf32> -> vector<16x384xf32>
    %c0_16 = arith.constant 0 : index
    %c0_17 = arith.constant 0 : index
    %c0_18 = arith.constant 0 : index
    %34 = vector.load %arg8[%c0_16, %c0_17, %c0_18] : memref<1x1x384xf32, #tpu.memory_space<vmem>>, vector<1x1x384xf32>
    %35 = vector.shape_cast %34 : vector<1x1x384xf32> to vector<1x384xf32>
    %36 = vector.broadcast %35 : vector<1x384xf32> to vector<16x384xf32>
    %37 = arith.addf %33, %36 : vector<16x384xf32>
    %38 = vector.extract_strided_slice %37 {offsets = [0, 0], sizes = [16, 128], strides = [1, 1]} : vector<16x384xf32> to vector<16x128xf32>
    %39 = vector.extract_strided_slice %37 {offsets = [0, 128], sizes = [16, 128], strides = [1, 1]} : vector<16x384xf32> to vector<16x128xf32>
    %40 = vector.extract_strided_slice %37 {offsets = [0, 256], sizes = [16, 128], strides = [1, 1]} : vector<16x384xf32> to vector<16x128xf32>
    %c0_19 = arith.constant 0 : index
    %c0_20 = arith.constant 0 : index
    %c0_21 = arith.constant 0 : index
    %41 = vector.load %arg9[%c0_19, %c0_20, %c0_21] : memref<1x128x128xbf16, #tpu.memory_space<vmem>>, vector<1x128x128xbf16>
    %42 = vector.shape_cast %41 : vector<1x128x128xbf16> to vector<128x128xbf16>
    %43 = vector.extract_strided_slice %38 {offsets = [0, 0], sizes = [16, 32], strides = [1, 1]} : vector<16x128xf32> to vector<16x32xf32>
    %44 = vector.shape_cast %43 : vector<16x32xf32> to vector<2x8x32xf32>
    %45 = vector.extract_strided_slice %39 {offsets = [0, 0], sizes = [16, 32], strides = [1, 1]} : vector<16x128xf32> to vector<16x32xf32>
    %46 = vector.shape_cast %45 : vector<16x32xf32> to vector<2x8x32xf32>
    %47 = vector.extract_strided_slice %40 {offsets = [0, 0], sizes = [16, 32], strides = [1, 1]} : vector<16x128xf32> to vector<16x32xf32>
    %48 = vector.shape_cast %47 : vector<16x32xf32> to vector<2x8x32xf32>
    %49 = arith.truncf %44 : vector<2x8x32xf32> to vector<2x8x32xbf16>
    %50 = arith.truncf %46 : vector<2x8x32xf32> to vector<2x8x32xbf16>
    "tpu.trace_start"() <{level = 10 : i32, message = "bqd,bkd->bqk"}> : () -> ()
    %cst_22 = arith.constant dense<0.000000e+00> : vector<2x8x8xf32>
    %51 = tpu.matmul %49, %50, %cst_22 {dimension_numbers = #tpu.dot_dimension_numbers<[2], [2], [1], [1], [0, 0, 0, 1, 1, 1], [0], [0]>} : vector<2x8x32xbf16>, vector<2x8x32xbf16>, vector<2x8x8xf32> -> vector<2x8x8xf32>
    "tpu.trace_stop"() : () -> ()
    %cst_23 = arith.constant 0.176776692 : f32
    %52 = vector.broadcast %cst_23 : f32 to vector<2x8x8xf32>
    %53 = arith.mulf %51, %52 : vector<2x8x8xf32>
    %cst_24 = arith.constant dense<0xFF800000> : vector<2x8xf32>
    %54 = vector.multi_reduction <maximumf>, %53, %cst_24 [2] : vector<2x8x8xf32> to vector<2x8xf32>
    %55 = vector.shape_cast %54 : vector<2x8xf32> to vector<2x8x1xf32>
    %56 = vector.broadcast %55 : vector<2x8x1xf32> to vector<2x8x8xf32>
    %57 = arith.subf %53, %56 : vector<2x8x8xf32>
    %58 = math.exp %57 : vector<2x8x8xf32>
    %cst_25 = arith.constant dense<0.000000e+00> : vector<2x8xf32>
    %59 = vector.multi_reduction <add>, %58, %cst_25 [2] : vector<2x8x8xf32> to vector<2x8xf32>
    %60 = vector.shape_cast %59 : vector<2x8xf32> to vector<2x8x1xf32>
    %61 = tpu.reciprocal %60 {approx = true} : vector<2x8x1xf32> -> vector<2x8x1xf32>
    %62 = vector.broadcast %61 : vector<2x8x1xf32> to vector<2x8x8xf32>
    %63 = arith.mulf %58, %62 : vector<2x8x8xf32>
    %64 = arith.truncf %63 : vector<2x8x8xf32> to vector<2x8x8xbf16>
    %65 = arith.truncf %48 : vector<2x8x32xf32> to vector<2x8x32xbf16>
    "tpu.trace_start"() <{level = 10 : i32, message = "bqk,bkd->bqd"}> : () -> ()
    %cst_26 = arith.constant dense<0.000000e+00> : vector<2x8x32xf32>
    %66 = tpu.matmul %64, %65, %cst_26 {dimension_numbers = #tpu.dot_dimension_numbers<[2], [1], [1], [2], [0, 0, 0, 1, 1, 2], [0], [0]>} : vector<2x8x8xbf16>, vector<2x8x32xbf16>, vector<2x8x32xf32> -> vector<2x8x32xf32>
    "tpu.trace_stop"() : () -> ()
    %67 = vector.shape_cast %66 : vector<2x8x32xf32> to vector<16x32xf32>
    %68 = vector.extract_strided_slice %42 {offsets = [0, 0], sizes = [32, 128], strides = [1, 1]} : vector<128x128xbf16> to vector<32x128xbf16>
    %69 = arith.truncf %67 : vector<16x32xf32> to vector<16x32xbf16>
    %cst_27 = arith.constant dense<0.000000e+00> : vector<16x128xf32>
    %70 = tpu.matmul %69, %68, %cst_27 {dimension_numbers = #tpu.dot_dimension_numbers<[1], [0], [0], [1], [0, 0, 1, 1], [], []>} : vector<16x32xbf16>, vector<32x128xbf16>, vector<16x128xf32> -> vector<16x128xf32>
    %71 = vector.extract_strided_slice %38 {offsets = [0, 32], sizes = [16, 32], strides = [1, 1]} : vector<16x128xf32> to vector<16x32xf32>
    %72 = vector.shape_cast %71 : vector<16x32xf32> to vector<2x8x32xf32>
    %73 = vector.extract_strided_slice %39 {offsets = [0, 32], sizes = [16, 32], strides = [1, 1]} : vector<16x128xf32> to vector<16x32xf32>
    %74 = vector.shape_cast %73 : vector<16x32xf32> to vector<2x8x32xf32>
    %75 = vector.extract_strided_slice %40 {offsets = [0, 32], sizes = [16, 32], strides = [1, 1]} : vector<16x128xf32> to vector<16x32xf32>
    %76 = vector.shape_cast %75 : vector<16x32xf32> to vector<2x8x32xf32>
    %77 = arith.truncf %72 : vector<2x8x32xf32> to vector<2x8x32xbf16>
    %78 = arith.truncf %74 : vector<2x8x32xf32> to vector<2x8x32xbf16>
    "tpu.trace_start"() <{level = 10 : i32, message = "bqd,bkd->bqk"}> : () -> ()
    %cst_28 = arith.constant dense<0.000000e+00> : vector<2x8x8xf32>
    %79 = tpu.matmul %77, %78, %cst_28 {dimension_numbers = #tpu.dot_dimension_numbers<[2], [2], [1], [1], [0, 0, 0, 1, 1, 1], [0], [0]>} : vector<2x8x32xbf16>, vector<2x8x32xbf16>, vector<2x8x8xf32> -> vector<2x8x8xf32>
    "tpu.trace_stop"() : () -> ()
    %cst_29 = arith.constant 0.176776692 : f32
    %80 = vector.broadcast %cst_29 : f32 to vector<2x8x8xf32>
    %81 = arith.mulf %79, %80 : vector<2x8x8xf32>
    %cst_30 = arith.constant dense<0xFF800000> : vector<2x8xf32>
    %82 = vector.multi_reduction <maximumf>, %81, %cst_30 [2] : vector<2x8x8xf32> to vector<2x8xf32>
    %83 = vector.shape_cast %82 : vector<2x8xf32> to vector<2x8x1xf32>
    %84 = vector.broadcast %83 : vector<2x8x1xf32> to vector<2x8x8xf32>
    %85 = arith.subf %81, %84 : vector<2x8x8xf32>
    %86 = math.exp %85 : vector<2x8x8xf32>
    %cst_31 = arith.constant dense<0.000000e+00> : vector<2x8xf32>
    %87 = vector.multi_reduction <add>, %86, %cst_31 [2] : vector<2x8x8xf32> to vector<2x8xf32>
    %88 = vector.shape_cast %87 : vector<2x8xf32> to vector<2x8x1xf32>
    %89 = tpu.reciprocal %88 {approx = true} : vector<2x8x1xf32> -> vector<2x8x1xf32>
    %90 = vector.broadcast %89 : vector<2x8x1xf32> to vector<2x8x8xf32>
    %91 = arith.mulf %86, %90 : vector<2x8x8xf32>
    %92 = arith.truncf %91 : vector<2x8x8xf32> to vector<2x8x8xbf16>
    %93 = arith.truncf %76 : vector<2x8x32xf32> to vector<2x8x32xbf16>
    "tpu.trace_start"() <{level = 10 : i32, message = "bqk,bkd->bqd"}> : () -> ()
    %cst_32 = arith.constant dense<0.000000e+00> : vector<2x8x32xf32>
    %94 = tpu.matmul %92, %93, %cst_32 {dimension_numbers = #tpu.dot_dimension_numbers<[2], [1], [1], [2], [0, 0, 0, 1, 1, 2], [0], [0]>} : vector<2x8x8xbf16>, vector<2x8x32xbf16>, vector<2x8x32xf32> -> vector<2x8x32xf32>
    "tpu.trace_stop"() : () -> ()
    %95 = vector.shape_cast %94 : vector<2x8x32xf32> to vector<16x32xf32>
    %96 = vector.extract_strided_slice %42 {offsets = [32, 0], sizes = [32, 128], strides = [1, 1]} : vector<128x128xbf16> to vector<32x128xbf16>
    %97 = arith.truncf %95 : vector<16x32xf32> to vector<16x32xbf16>
    %cst_33 = arith.constant dense<0.000000e+00> : vector<16x128xf32>
    %98 = tpu.matmul %97, %96, %cst_33 {dimension_numbers = #tpu.dot_dimension_numbers<[1], [0], [0], [1], [0, 0, 1, 1], [], []>} : vector<16x32xbf16>, vector<32x128xbf16>, vector<16x128xf32> -> vector<16x128xf32>
    %99 = arith.addf %70, %98 : vector<16x128xf32>
    %100 = vector.extract_strided_slice %38 {offsets = [0, 64], sizes = [16, 32], strides = [1, 1]} : vector<16x128xf32> to vector<16x32xf32>
    %101 = vector.shape_cast %100 : vector<16x32xf32> to vector<2x8x32xf32>
    %102 = vector.extract_strided_slice %39 {offsets = [0, 64], sizes = [16, 32], strides = [1, 1]} : vector<16x128xf32> to vector<16x32xf32>
    %103 = vector.shape_cast %102 : vector<16x32xf32> to vector<2x8x32xf32>
    %104 = vector.extract_strided_slice %40 {offsets = [0, 64], sizes = [16, 32], strides = [1, 1]} : vector<16x128xf32> to vector<16x32xf32>
    %105 = vector.shape_cast %104 : vector<16x32xf32> to vector<2x8x32xf32>
    %106 = arith.truncf %101 : vector<2x8x32xf32> to vector<2x8x32xbf16>
    %107 = arith.truncf %103 : vector<2x8x32xf32> to vector<2x8x32xbf16>
    "tpu.trace_start"() <{level = 10 : i32, message = "bqd,bkd->bqk"}> : () -> ()
    %cst_34 = arith.constant dense<0.000000e+00> : vector<2x8x8xf32>
    %108 = tpu.matmul %106, %107, %cst_34 {dimension_numbers = #tpu.dot_dimension_numbers<[2], [2], [1], [1], [0, 0, 0, 1, 1, 1], [0], [0]>} : vector<2x8x32xbf16>, vector<2x8x32xbf16>, vector<2x8x8xf32> -> vector<2x8x8xf32>
    "tpu.trace_stop"() : () -> ()
    %cst_35 = arith.constant 0.176776692 : f32
    %109 = vector.broadcast %cst_35 : f32 to vector<2x8x8xf32>
    %110 = arith.mulf %108, %109 : vector<2x8x8xf32>
    %cst_36 = arith.constant dense<0xFF800000> : vector<2x8xf32>
    %111 = vector.multi_reduction <maximumf>, %110, %cst_36 [2] : vector<2x8x8xf32> to vector<2x8xf32>
    %112 = vector.shape_cast %111 : vector<2x8xf32> to vector<2x8x1xf32>
    %113 = vector.broadcast %112 : vector<2x8x1xf32> to vector<2x8x8xf32>
    %114 = arith.subf %110, %113 : vector<2x8x8xf32>
    %115 = math.exp %114 : vector<2x8x8xf32>
    %cst_37 = arith.constant dense<0.000000e+00> : vector<2x8xf32>
    %116 = vector.multi_reduction <add>, %115, %cst_37 [2] : vector<2x8x8xf32> to vector<2x8xf32>
    %117 = vector.shape_cast %116 : vector<2x8xf32> to vector<2x8x1xf32>
    %118 = tpu.reciprocal %117 {approx = true} : vector<2x8x1xf32> -> vector<2x8x1xf32>
    %119 = vector.broadcast %118 : vector<2x8x1xf32> to vector<2x8x8xf32>
    %120 = arith.mulf %115, %119 : vector<2x8x8xf32>
    %121 = arith.truncf %120 : vector<2x8x8xf32> to vector<2x8x8xbf16>
    %122 = arith.truncf %105 : vector<2x8x32xf32> to vector<2x8x32xbf16>
    "tpu.trace_start"() <{level = 10 : i32, message = "bqk,bkd->bqd"}> : () -> ()
    %cst_38 = arith.constant dense<0.000000e+00> : vector<2x8x32xf32>
    %123 = tpu.matmul %121, %122, %cst_38 {dimension_numbers = #tpu.dot_dimension_numbers<[2], [1], [1], [2], [0, 0, 0, 1, 1, 2], [0], [0]>} : vector<2x8x8xbf16>, vector<2x8x32xbf16>, vector<2x8x32xf32> -> vector<2x8x32xf32>
    "tpu.trace_stop"() : () -> ()
    %124 = vector.shape_cast %123 : vector<2x8x32xf32> to vector<16x32xf32>
    %125 = vector.extract_strided_slice %42 {offsets = [64, 0], sizes = [32, 128], strides = [1, 1]} : vector<128x128xbf16> to vector<32x128xbf16>
    %126 = arith.truncf %124 : vector<16x32xf32> to vector<16x32xbf16>
    %cst_39 = arith.constant dense<0.000000e+00> : vector<16x128xf32>
    %127 = tpu.matmul %126, %125, %cst_39 {dimension_numbers = #tpu.dot_dimension_numbers<[1], [0], [0], [1], [0, 0, 1, 1], [], []>} : vector<16x32xbf16>, vector<32x128xbf16>, vector<16x128xf32> -> vector<16x128xf32>
    %128 = arith.addf %99, %127 : vector<16x128xf32>
    %129 = vector.extract_strided_slice %38 {offsets = [0, 96], sizes = [16, 32], strides = [1, 1]} : vector<16x128xf32> to vector<16x32xf32>
    %130 = vector.shape_cast %129 : vector<16x32xf32> to vector<2x8x32xf32>
    %131 = vector.extract_strided_slice %39 {offsets = [0, 96], sizes = [16, 32], strides = [1, 1]} : vector<16x128xf32> to vector<16x32xf32>
    %132 = vector.shape_cast %131 : vector<16x32xf32> to vector<2x8x32xf32>
    %133 = vector.extract_strided_slice %40 {offsets = [0, 96], sizes = [16, 32], strides = [1, 1]} : vector<16x128xf32> to vector<16x32xf32>
    %134 = vector.shape_cast %133 : vector<16x32xf32> to vector<2x8x32xf32>
    %135 = arith.truncf %130 : vector<2x8x32xf32> to vector<2x8x32xbf16>
    %136 = arith.truncf %132 : vector<2x8x32xf32> to vector<2x8x32xbf16>
    "tpu.trace_start"() <{level = 10 : i32, message = "bqd,bkd->bqk"}> : () -> ()
    %cst_40 = arith.constant dense<0.000000e+00> : vector<2x8x8xf32>
    %137 = tpu.matmul %135, %136, %cst_40 {dimension_numbers = #tpu.dot_dimension_numbers<[2], [2], [1], [1], [0, 0, 0, 1, 1, 1], [0], [0]>} : vector<2x8x32xbf16>, vector<2x8x32xbf16>, vector<2x8x8xf32> -> vector<2x8x8xf32>
    "tpu.trace_stop"() : () -> ()
    %cst_41 = arith.constant 0.176776692 : f32
    %138 = vector.broadcast %cst_41 : f32 to vector<2x8x8xf32>
    %139 = arith.mulf %137, %138 : vector<2x8x8xf32>
    %cst_42 = arith.constant dense<0xFF800000> : vector<2x8xf32>
    %140 = vector.multi_reduction <maximumf>, %139, %cst_42 [2] : vector<2x8x8xf32> to vector<2x8xf32>
    %141 = vector.shape_cast %140 : vector<2x8xf32> to vector<2x8x1xf32>
    %142 = vector.broadcast %141 : vector<2x8x1xf32> to vector<2x8x8xf32>
    %143 = arith.subf %139, %142 : vector<2x8x8xf32>
    %144 = math.exp %143 : vector<2x8x8xf32>
    %cst_43 = arith.constant dense<0.000000e+00> : vector<2x8xf32>
    %145 = vector.multi_reduction <add>, %144, %cst_43 [2] : vector<2x8x8xf32> to vector<2x8xf32>
    %146 = vector.shape_cast %145 : vector<2x8xf32> to vector<2x8x1xf32>
    %147 = tpu.reciprocal %146 {approx = true} : vector<2x8x1xf32> -> vector<2x8x1xf32>
    %148 = vector.broadcast %147 : vector<2x8x1xf32> to vector<2x8x8xf32>
    %149 = arith.mulf %144, %148 : vector<2x8x8xf32>
    %150 = arith.truncf %149 : vector<2x8x8xf32> to vector<2x8x8xbf16>
    %151 = arith.truncf %134 : vector<2x8x32xf32> to vector<2x8x32xbf16>
    "tpu.trace_start"() <{level = 10 : i32, message = "bqk,bkd->bqd"}> : () -> ()
    %cst_44 = arith.constant dense<0.000000e+00> : vector<2x8x32xf32>
    %152 = tpu.matmul %150, %151, %cst_44 {dimension_numbers = #tpu.dot_dimension_numbers<[2], [1], [1], [2], [0, 0, 0, 1, 1, 2], [0], [0]>} : vector<2x8x8xbf16>, vector<2x8x32xbf16>, vector<2x8x32xf32> -> vector<2x8x32xf32>
    "tpu.trace_stop"() : () -> ()
    %153 = vector.shape_cast %152 : vector<2x8x32xf32> to vector<16x32xf32>
    %154 = vector.extract_strided_slice %42 {offsets = [96, 0], sizes = [32, 128], strides = [1, 1]} : vector<128x128xbf16> to vector<32x128xbf16>
    %155 = arith.truncf %153 : vector<16x32xf32> to vector<16x32xbf16>
    %cst_45 = arith.constant dense<0.000000e+00> : vector<16x128xf32>
    %156 = tpu.matmul %155, %154, %cst_45 {dimension_numbers = #tpu.dot_dimension_numbers<[1], [0], [0], [1], [0, 0, 1, 1], [], []>} : vector<16x32xbf16>, vector<32x128xbf16>, vector<16x128xf32> -> vector<16x128xf32>
    %157 = arith.addf %128, %156 : vector<16x128xf32>
    %158 = arith.addf %3, %157 : vector<16x128xf32>
    %c0_46 = arith.constant 0 : index
    %c0_47 = arith.constant 0 : index
    %c0_48 = arith.constant 0 : index
    %159 = vector.load %arg10[%c0_46, %c0_47, %c0_48] : memref<1x1x128xf32, #tpu.memory_space<vmem>>, vector<1x1x128xf32>
    %160 = vector.shape_cast %159 : vector<1x1x128xf32> to vector<1x128xf32>
    %161 = vector.broadcast %160 : vector<1x128xf32> to vector<16x128xf32>
    %162 = arith.addf %158, %161 : vector<16x128xf32>
    %c0_49 = arith.constant 0 : index
    %c0_50 = arith.constant 0 : index
    %c0_51 = arith.constant 0 : index
    %163 = vector.load %arg11[%c0_49, %c0_50, %c0_51] : memref<1x1x128xf32, #tpu.memory_space<vmem>>, vector<1x1x128xf32>
    %164 = vector.shape_cast %163 : vector<1x1x128xf32> to vector<1x128xf32>
    %c0_52 = arith.constant 0 : index
    %c0_53 = arith.constant 0 : index
    %c0_54 = arith.constant 0 : index
    %165 = vector.load %arg12[%c0_52, %c0_53, %c0_54] : memref<1x1x128xf32, #tpu.memory_space<vmem>>, vector<1x1x128xf32>
    %166 = vector.shape_cast %165 : vector<1x1x128xf32> to vector<1x128xf32>
    %cst_55 = arith.constant dense<0.000000e+00> : vector<16xf32>
    %167 = vector.multi_reduction <add>, %162, %cst_55 [1] : vector<16x128xf32> to vector<16xf32>
    %168 = vector.shape_cast %167 : vector<16xf32> to vector<16x1xf32>
    %cst_56 = arith.constant 1.280000e+02 : f32
    %169 = vector.broadcast %cst_56 : f32 to vector<16x1xf32>
    %170 = arith.divf %168, %169 : vector<16x1xf32>
    %171 = vector.broadcast %170 : vector<16x1xf32> to vector<16x128xf32>
    %172 = arith.subf %162, %171 : vector<16x128xf32>
    %173 = arith.mulf %172, %172 : vector<16x128xf32>
    %cst_57 = arith.constant dense<0.000000e+00> : vector<16xf32>
    %174 = vector.multi_reduction <add>, %173, %cst_57 [1] : vector<16x128xf32> to vector<16xf32>
    %175 = vector.shape_cast %174 : vector<16xf32> to vector<16x1xf32>
    %cst_58 = arith.constant 1.280000e+02 : f32
    %176 = vector.broadcast %cst_58 : f32 to vector<16x1xf32>
    %177 = arith.divf %175, %176 : vector<16x1xf32>
    %178 = vector.broadcast %170 : vector<16x1xf32> to vector<16x128xf32>
    %179 = arith.subf %162, %178 : vector<16x128xf32>
    %cst_59 = arith.constant 9.99999974E-6 : f32
    %180 = vector.broadcast %cst_59 : f32 to vector<16x1xf32>
    %181 = arith.addf %177, %180 : vector<16x1xf32>
    %182 = math.rsqrt %181 : vector<16x1xf32>
    %183 = vector.broadcast %182 : vector<16x1xf32> to vector<16x128xf32>
    %184 = arith.mulf %179, %183 : vector<16x128xf32>
    %185 = vector.broadcast %164 : vector<1x128xf32> to vector<16x128xf32>
    %186 = arith.mulf %184, %185 : vector<16x128xf32>
    %187 = vector.broadcast %166 : vector<1x128xf32> to vector<16x128xf32>
    %188 = arith.addf %186, %187 : vector<16x128xf32>
    %c0_60 = arith.constant 0 : index
    %c0_61 = arith.constant 0 : index
    %c0_62 = arith.constant 0 : index
    %189 = vector.load %arg13[%c0_60, %c0_61, %c0_62] : memref<1x128x128xbf16, #tpu.memory_space<vmem>>, vector<1x128x128xbf16>
    %190 = vector.shape_cast %189 : vector<1x128x128xbf16> to vector<128x128xbf16>
    %191 = arith.truncf %188 : vector<16x128xf32> to vector<16x128xbf16>
    %cst_63 = arith.constant dense<0.000000e+00> : vector<16x128xf32>
    %192 = tpu.matmul %191, %190, %cst_63 {dimension_numbers = #tpu.dot_dimension_numbers<[1], [0], [0], [1], [0, 0, 1, 1], [], []>} : vector<16x128xbf16>, vector<128x128xbf16>, vector<16x128xf32> -> vector<16x128xf32>
    %c0_64 = arith.constant 0 : index
    %c0_65 = arith.constant 0 : index
    %c0_66 = arith.constant 0 : index
    %193 = vector.load %arg14[%c0_64, %c0_65, %c0_66] : memref<1x1x128xf32, #tpu.memory_space<vmem>>, vector<1x1x128xf32>
    %194 = vector.shape_cast %193 : vector<1x1x128xf32> to vector<1x128xf32>
    %195 = vector.broadcast %194 : vector<1x128xf32> to vector<16x128xf32>
    %196 = arith.addf %192, %195 : vector<16x128xf32>
    %cst_67 = arith.constant 5.000000e-01 : f32
    %197 = vector.broadcast %cst_67 : f32 to vector<16x128xf32>
    %198 = arith.mulf %197, %196 : vector<16x128xf32>
    %cst_68 = arith.constant 4.471500e-02 : f32
    %199 = vector.broadcast %cst_68 : f32 to vector<16x128xf32>
    %200 = arith.mulf %199, %196 : vector<16x128xf32>
    %201 = arith.mulf %200, %196 : vector<16x128xf32>
    %202 = arith.mulf %201, %196 : vector<16x128xf32>
    %203 = arith.addf %196, %202 : vector<16x128xf32>
    %cst_69 = arith.constant 0.797884583 : f32
    %204 = vector.broadcast %cst_69 : f32 to vector<16x128xf32>
    %205 = arith.mulf %204, %203 : vector<16x128xf32>
    %206 = math.tanh %205 : vector<16x128xf32>
    %cst_70 = arith.constant 1.000000e+00 : f32
    %207 = vector.broadcast %cst_70 : f32 to vector<16x128xf32>
    %208 = arith.addf %207, %206 : vector<16x128xf32>
    %209 = arith.mulf %198, %208 : vector<16x128xf32>
    %c0_71 = arith.constant 0 : index
    %c0_72 = arith.constant 0 : index
    %c0_73 = arith.constant 0 : index
    %210 = vector.load %arg15[%c0_71, %c0_72, %c0_73] : memref<1x128x128xbf16, #tpu.memory_space<vmem>>, vector<1x128x128xbf16>
    %211 = vector.shape_cast %210 : vector<1x128x128xbf16> to vector<128x128xbf16>
    %212 = arith.truncf %209 : vector<16x128xf32> to vector<16x128xbf16>
    %cst_74 = arith.constant dense<0.000000e+00> : vector<16x128xf32>
    %213 = tpu.matmul %212, %211, %cst_74 {dimension_numbers = #tpu.dot_dimension_numbers<[1], [0], [0], [1], [0, 0, 1, 1], [], []>} : vector<16x128xbf16>, vector<128x128xbf16>, vector<16x128xf32> -> vector<16x128xf32>
    %214 = arith.addf %162, %213 : vector<16x128xf32>
    %c0_75 = arith.constant 0 : index
    %c0_76 = arith.constant 0 : index
    %c0_77 = arith.constant 0 : index
    %215 = vector.load %arg16[%c0_75, %c0_76, %c0_77] : memref<1x1x128xf32, #tpu.memory_space<vmem>>, vector<1x1x128xf32>
    %216 = vector.shape_cast %215 : vector<1x1x128xf32> to vector<1x128xf32>
    %217 = vector.broadcast %216 : vector<1x128xf32> to vector<16x128xf32>
    %218 = arith.addf %214, %217 : vector<16x128xf32>
    %c0_78 = arith.constant 0 : index
    %c0_79 = arith.constant 0 : index
    %219 = vector.load %arg19[%c0_78, %c0_79] : memref<16x128xf32, #tpu.memory_space<vmem>>, vector<16x128xf32>
    tpu.vector_store %arg19[%c0_78, %c0_79], %218 {strides = array<i32>} : memref<16x128xf32, #tpu.memory_space<vmem>>, vector<16x128xf32>,
    %c11_i32 = arith.constant 11 : i32
    %220 = arith.cmpi eq, %arg0, %c11_i32 : i32
    %221 = arith.extui %220 : i1 to i32
    %c0_i32_80 = arith.constant 0 : i32
    %222 = arith.cmpi ne, %221, %c0_i32_80 : i32
    scf.if %222 {
      %c0_81 = arith.constant 0 : index
      %c0_82 = arith.constant 0 : index
      %223 = vector.load %arg18[%c0_81, %c0_82] : memref<16x128xf32, #tpu.memory_space<vmem>>, vector<16x128xf32>
      tpu.vector_store %arg18[%c0_81, %c0_82], %218 {strides = array<i32>} : memref<16x128xf32, #tpu.memory_space<vmem>>, vector<16x128xf32>,
    } else {
    }
    return
  }
  func.func @transform_0(%arg0: i32) -> (i32, i32) {
    %c0_i32 = arith.constant 0 : i32
    %c0_i32_0 = arith.constant 0 : i32
    %c0_i32_1 = arith.constant 0 : i32
    return %c0_i32, %c0_i32_0 : i32, i32
  }
  func.func @transform_1(%arg0: i32) -> (i32, i32) {
    %c0_i32 = arith.constant 0 : i32
    %c0_i32_0 = arith.constant 0 : i32
    %c0_i32_1 = arith.constant 0 : i32
    return %c0_i32, %c0_i32_0 : i32, i32
  }
  func.func @transform_2(%arg0: i32) -> (i32, i32) {
    %c0_i32 = arith.constant 0 : i32
    %c0_i32_0 = arith.constant 0 : i32
    %c0_i32_1 = arith.constant 0 : i32
    return %c0_i32, %c0_i32_0 : i32, i32
  }
  func.func @transform_3(%arg0: i32) -> (i32, i32) {
    %c0_i32 = arith.constant 0 : i32
    %c0_i32_0 = arith.constant 0 : i32
    %c0_i32_1 = arith.constant 0 : i32
    return %c0_i32, %c0_i32_0 : i32, i32
  }
  func.func @transform_4(%arg0: i32) -> (i32, i32, i32) {
    %c0_i32 = arith.constant 0 : i32
    %c0_i32_0 = arith.constant 0 : i32
    %c0_i32_1 = arith.constant 0 : i32
    return %arg0, %c0_i32, %c0_i32_0 : i32, i32, i32
  }
  func.func @transform_5(%arg0: i32) -> (i32, i32, i32) {
    %c0_i32 = arith.constant 0 : i32
    %c0_i32_0 = arith.constant 0 : i32
    %c0_i32_1 = arith.constant 0 : i32
    return %arg0, %c0_i32, %c0_i32_0 : i32, i32, i32
  }
  func.func @transform_6(%arg0: i32) -> (i32, i32, i32) {
    %c0_i32 = arith.constant 0 : i32
    %c0_i32_0 = arith.constant 0 : i32
    %c0_i32_1 = arith.constant 0 : i32
    return %arg0, %c0_i32, %c0_i32_0 : i32, i32, i32
  }
  func.func @transform_7(%arg0: i32) -> (i32, i32, i32) {
    %c0_i32 = arith.constant 0 : i32
    %c0_i32_0 = arith.constant 0 : i32
    %c0_i32_1 = arith.constant 0 : i32
    return %arg0, %c0_i32, %c0_i32_0 : i32, i32, i32
  }
  func.func @transform_8(%arg0: i32) -> (i32, i32, i32) {
    %c0_i32 = arith.constant 0 : i32
    %c0_i32_0 = arith.constant 0 : i32
    %c0_i32_1 = arith.constant 0 : i32
    return %arg0, %c0_i32, %c0_i32_0 : i32, i32, i32
  }
  func.func @transform_9(%arg0: i32) -> (i32, i32, i32) {
    %c0_i32 = arith.constant 0 : i32
    %c0_i32_0 = arith.constant 0 : i32
    %c0_i32_1 = arith.constant 0 : i32
    return %arg0, %c0_i32, %c0_i32_0 : i32, i32, i32
  }
  func.func @transform_10(%arg0: i32) -> (i32, i32, i32) {
    %c0_i32 = arith.constant 0 : i32
    %c0_i32_0 = arith.constant 0 : i32
    %c0_i32_1 = arith.constant 0 : i32
    return %arg0, %c0_i32, %c0_i32_0 : i32, i32, i32
  }
  func.func @transform_11(%arg0: i32) -> (i32, i32, i32) {
    %c0_i32 = arith.constant 0 : i32
    %c0_i32_0 = arith.constant 0 : i32
    %c0_i32_1 = arith.constant 0 : i32
    return %arg0, %c0_i32, %c0_i32_0 : i32, i32, i32
  }
  func.func @transform_12(%arg0: i32) -> (i32, i32, i32) {
    %c0_i32 = arith.constant 0 : i32
    %c0_i32_0 = arith.constant 0 : i32
    %c0_i32_1 = arith.constant 0 : i32
    return %arg0, %c0_i32, %c0_i32_0 : i32, i32, i32
  }
  func.func @transform_13(%arg0: i32) -> (i32, i32, i32) {
    %c0_i32 = arith.constant 0 : i32
    %c0_i32_0 = arith.constant 0 : i32
    %c0_i32_1 = arith.constant 0 : i32
    return %arg0, %c0_i32, %c0_i32_0 : i32, i32, i32
  }
  func.func @transform_14(%arg0: i32) -> (i32, i32, i32) {
    %c0_i32 = arith.constant 0 : i32
    %c0_i32_0 = arith.constant 0 : i32
    %c0_i32_1 = arith.constant 0 : i32
    return %arg0, %c0_i32, %c0_i32_0 : i32, i32, i32
  }
  func.func @transform_15(%arg0: i32) -> (i32, i32, i32) {
    %c0_i32 = arith.constant 0 : i32
    %c0_i32_0 = arith.constant 0 : i32
    %c0_i32_1 = arith.constant 0 : i32
    return %arg0, %c0_i32, %c0_i32_0 : i32, i32, i32
  }
  func.func @transform_16(%arg0: i32) -> (i32, i32) {
    %c0_i32 = arith.constant 0 : i32
    %c0_i32_0 = arith.constant 0 : i32
    %c0_i32_1 = arith.constant 0 : i32
    return %c0_i32, %c0_i32_0 : i32, i32
  }
  func.func @transform_17(%arg0: i32) -> (i32, i32) {
    %c0_i32 = arith.constant 0 : i32
    %c0_i32_0 = arith.constant 0 : i32
    %c0_i32_1 = arith.constant 0 : i32
    return %c0_i32, %c0_i32_0 : i32, i32
  }
}

module attributes {stable_mosaic.version = 11 : i64} {
  func.func @_decoder_stack_kernel(%arg0: i32, %arg1: memref<16x128xf32, #tpu.memory_space<vmem>>, %arg2: memref<16x128xf32, #tpu.memory_space<vmem>>, %arg3: memref<2x8x8xf32, #tpu.memory_space<vmem>>, %arg4: memref<1x1x128xf32, #tpu.memory_space<vmem>>, %arg5: memref<1x1x128xf32, #tpu.memory_space<vmem>>, %arg6: memref<1x128x384xbf16, #tpu.memory_space<vmem>>, %arg7: memref<1x1x384xf32, #tpu.memory_space<vmem>>, %arg8: memref<1x128x128xbf16, #tpu.memory_space<vmem>>, %arg9: memref<1x1x128xf32, #tpu.memory_space<vmem>>, %arg10: memref<1x1x128xf32, #tpu.memory_space<vmem>>, %arg11: memref<1x1x128xf32, #tpu.memory_space<vmem>>, %arg12: memref<1x128x128xbf16, #tpu.memory_space<vmem>>, %arg13: memref<1x1x128xf32, #tpu.memory_space<vmem>>, %arg14: memref<1x128x256xbf16, #tpu.memory_space<vmem>>, %arg15: memref<1x1x256xf32, #tpu.memory_space<vmem>>, %arg16: memref<1x128x128xbf16, #tpu.memory_space<vmem>>, %arg17: memref<1x1x128xf32, #tpu.memory_space<vmem>>, %arg18: memref<1x1x128xf32, #tpu.memory_space<vmem>>, %arg19: memref<1x1x128xf32, #tpu.memory_space<vmem>>, %arg20: memref<1x128x128xbf16, #tpu.memory_space<vmem>>, %arg21: memref<1x1x128xf32, #tpu.memory_space<vmem>>, %arg22: memref<1x128x128xbf16, #tpu.memory_space<vmem>>, %arg23: memref<1x1x128xf32, #tpu.memory_space<vmem>>, %arg24: memref<16x128xf32, #tpu.memory_space<vmem>>, %arg25: memref<16x128xf32, #tpu.memory_space<vmem>>) attributes {dimension_semantics = [#tpu.dimension_semantics<arbitrary>], iteration_bounds = array<i64: 12>, scalar_prefetch = 0 : i64, scratch_operands = 1 : i64, tpu.core_type = #tpu.core_type<tc>, window_params = [{pipeline_mode = #tpu.pipeline_mode<synchronous>, transform_indices = @transform_0, window_bounds = array<i64: 16, 128>}, {pipeline_mode = #tpu.pipeline_mode<synchronous>, transform_indices = @transform_1, window_bounds = array<i64: 16, 128>}, {pipeline_mode = #tpu.pipeline_mode<synchronous>, transform_indices = @transform_2, window_bounds = array<i64: 2, 8, 8>}, {transform_indices = @transform_3, window_bounds = array<i64: 1, 1, 128>}, {transform_indices = @transform_4, window_bounds = array<i64: 1, 1, 128>}, {transform_indices = @transform_5, window_bounds = array<i64: 1, 128, 384>}, {transform_indices = @transform_6, window_bounds = array<i64: 1, 1, 384>}, {transform_indices = @transform_7, window_bounds = array<i64: 1, 128, 128>}, {transform_indices = @transform_8, window_bounds = array<i64: 1, 1, 128>}, {transform_indices = @transform_9, window_bounds = array<i64: 1, 1, 128>}, {transform_indices = @transform_10, window_bounds = array<i64: 1, 1, 128>}, {transform_indices = @transform_11, window_bounds = array<i64: 1, 128, 128>}, {transform_indices = @transform_12, window_bounds = array<i64: 1, 1, 128>}, {transform_indices = @transform_13, window_bounds = array<i64: 1, 128, 256>}, {transform_indices = @transform_14, window_bounds = array<i64: 1, 1, 256>}, {transform_indices = @transform_15, window_bounds = array<i64: 1, 128, 128>}, {transform_indices = @transform_16, window_bounds = array<i64: 1, 1, 128>}, {transform_indices = @transform_17, window_bounds = array<i64: 1, 1, 128>}, {transform_indices = @transform_18, window_bounds = array<i64: 1, 1, 128>}, {transform_indices = @transform_19, window_bounds = array<i64: 1, 128, 128>}, {transform_indices = @transform_20, window_bounds = array<i64: 1, 1, 128>}, {transform_indices = @transform_21, window_bounds = array<i64: 1, 128, 128>}, {transform_indices = @transform_22, window_bounds = array<i64: 1, 1, 128>}, {pipeline_mode = #tpu.pipeline_mode<synchronous>, transform_indices = @transform_23, window_bounds = array<i64: 16, 128>}]} {
    %c0_i32 = arith.constant 0 : i32
    %0 = arith.cmpi eq, %arg0, %c0_i32 : i32
    %1 = arith.extui %0 : i1 to i32
    %c0_i32_0 = arith.constant 0 : i32
    %2 = arith.cmpi ne, %1, %c0_i32_0 : i32
    scf.if %2 {
      %c0_141 = arith.constant 0 : index
      %c0_142 = arith.constant 0 : index
      %396 = vector.load %arg1[%c0_141, %c0_142] : memref<16x128xf32, #tpu.memory_space<vmem>>, vector<16x128xf32>
      %c0_143 = arith.constant 0 : index
      %c0_144 = arith.constant 0 : index
      %397 = vector.load %arg25[%c0_143, %c0_144] : memref<16x128xf32, #tpu.memory_space<vmem>>, vector<16x128xf32>
      tpu.vector_store %arg25[%c0_143, %c0_144], %396 {strides = array<i32>} : memref<16x128xf32, #tpu.memory_space<vmem>>, vector<16x128xf32>,
    } else {
    }
    %c0 = arith.constant 0 : index
    %c0_1 = arith.constant 0 : index
    %3 = vector.load %arg25[%c0, %c0_1] : memref<16x128xf32, #tpu.memory_space<vmem>>, vector<16x128xf32>
    %c0_2 = arith.constant 0 : index
    %c0_3 = arith.constant 0 : index
    %4 = vector.load %arg2[%c0_2, %c0_3] : memref<16x128xf32, #tpu.memory_space<vmem>>, vector<16x128xf32>
    %c0_4 = arith.constant 0 : index
    %c0_5 = arith.constant 0 : index
    %c0_6 = arith.constant 0 : index
    %5 = vector.load %arg3[%c0_4, %c0_5, %c0_6] : memref<2x8x8xf32, #tpu.memory_space<vmem>>, vector<2x8x8xf32>
    %6 = vector.shape_cast %5 : vector<2x8x8xf32> to vector<2x8x8xf32>
    %c0_7 = arith.constant 0 : index
    %c0_8 = arith.constant 0 : index
    %c0_9 = arith.constant 0 : index
    %7 = vector.load %arg4[%c0_7, %c0_8, %c0_9] : memref<1x1x128xf32, #tpu.memory_space<vmem>>, vector<1x1x128xf32>
    %8 = vector.shape_cast %7 : vector<1x1x128xf32> to vector<1x128xf32>
    %c0_10 = arith.constant 0 : index
    %c0_11 = arith.constant 0 : index
    %c0_12 = arith.constant 0 : index
    %9 = vector.load %arg5[%c0_10, %c0_11, %c0_12] : memref<1x1x128xf32, #tpu.memory_space<vmem>>, vector<1x1x128xf32>
    %10 = vector.shape_cast %9 : vector<1x1x128xf32> to vector<1x128xf32>
    %cst = arith.constant dense<0.000000e+00> : vector<16xf32>
    %11 = vector.multi_reduction <add>, %3, %cst [1] : vector<16x128xf32> to vector<16xf32>
    %12 = vector.shape_cast %11 : vector<16xf32> to vector<16x1xf32>
    %cst_13 = arith.constant 1.280000e+02 : f32
    %13 = vector.broadcast %cst_13 : f32 to vector<16x1xf32>
    %14 = arith.divf %12, %13 : vector<16x1xf32>
    %15 = vector.broadcast %14 : vector<16x1xf32> to vector<16x128xf32>
    %16 = arith.subf %3, %15 : vector<16x128xf32>
    %17 = arith.mulf %16, %16 : vector<16x128xf32>
    %cst_14 = arith.constant dense<0.000000e+00> : vector<16xf32>
    %18 = vector.multi_reduction <add>, %17, %cst_14 [1] : vector<16x128xf32> to vector<16xf32>
    %19 = vector.shape_cast %18 : vector<16xf32> to vector<16x1xf32>
    %cst_15 = arith.constant 1.280000e+02 : f32
    %20 = vector.broadcast %cst_15 : f32 to vector<16x1xf32>
    %21 = arith.divf %19, %20 : vector<16x1xf32>
    %22 = vector.broadcast %14 : vector<16x1xf32> to vector<16x128xf32>
    %23 = arith.subf %3, %22 : vector<16x128xf32>
    %cst_16 = arith.constant 9.99999974E-6 : f32
    %24 = vector.broadcast %cst_16 : f32 to vector<16x1xf32>
    %25 = arith.addf %21, %24 : vector<16x1xf32>
    %26 = math.rsqrt %25 : vector<16x1xf32>
    %27 = vector.broadcast %26 : vector<16x1xf32> to vector<16x128xf32>
    %28 = arith.mulf %23, %27 : vector<16x128xf32>
    %29 = vector.broadcast %8 : vector<1x128xf32> to vector<16x128xf32>
    %30 = arith.mulf %28, %29 : vector<16x128xf32>
    %31 = vector.broadcast %10 : vector<1x128xf32> to vector<16x128xf32>
    %32 = arith.addf %30, %31 : vector<16x128xf32>
    %c0_17 = arith.constant 0 : index
    %c0_18 = arith.constant 0 : index
    %c0_19 = arith.constant 0 : index
    %33 = vector.load %arg6[%c0_17, %c0_18, %c0_19] : memref<1x128x384xbf16, #tpu.memory_space<vmem>>, vector<1x128x384xbf16>
    %34 = vector.shape_cast %33 : vector<1x128x384xbf16> to vector<128x384xbf16>
    %35 = arith.truncf %32 : vector<16x128xf32> to vector<16x128xbf16>
    %cst_20 = arith.constant dense<0.000000e+00> : vector<16x384xf32>
    %36 = tpu.matmul %35, %34, %cst_20 {dimension_numbers = #tpu.dot_dimension_numbers<[1], [0], [0], [1], [0, 0, 1, 1], [], []>} : vector<16x128xbf16>, vector<128x384xbf16>, vector<16x384xf32> -> vector<16x384xf32>
    %c0_21 = arith.constant 0 : index
    %c0_22 = arith.constant 0 : index
    %c0_23 = arith.constant 0 : index
    %37 = vector.load %arg7[%c0_21, %c0_22, %c0_23] : memref<1x1x384xf32, #tpu.memory_space<vmem>>, vector<1x1x384xf32>
    %38 = vector.shape_cast %37 : vector<1x1x384xf32> to vector<1x384xf32>
    %39 = vector.broadcast %38 : vector<1x384xf32> to vector<16x384xf32>
    %40 = arith.addf %36, %39 : vector<16x384xf32>
    %41 = vector.extract_strided_slice %40 {offsets = [0, 0], sizes = [16, 128], strides = [1, 1]} : vector<16x384xf32> to vector<16x128xf32>
    %42 = vector.extract_strided_slice %40 {offsets = [0, 128], sizes = [16, 128], strides = [1, 1]} : vector<16x384xf32> to vector<16x128xf32>
    %43 = vector.extract_strided_slice %40 {offsets = [0, 256], sizes = [16, 128], strides = [1, 1]} : vector<16x384xf32> to vector<16x128xf32>
    %c0_24 = arith.constant 0 : index
    %c0_25 = arith.constant 0 : index
    %c0_26 = arith.constant 0 : index
    %44 = vector.load %arg8[%c0_24, %c0_25, %c0_26] : memref<1x128x128xbf16, #tpu.memory_space<vmem>>, vector<1x128x128xbf16>
    %45 = vector.shape_cast %44 : vector<1x128x128xbf16> to vector<128x128xbf16>
    %46 = vector.extract_strided_slice %41 {offsets = [0, 0], sizes = [16, 32], strides = [1, 1]} : vector<16x128xf32> to vector<16x32xf32>
    %47 = vector.shape_cast %46 : vector<16x32xf32> to vector<2x8x32xf32>
    %48 = vector.extract_strided_slice %42 {offsets = [0, 0], sizes = [16, 32], strides = [1, 1]} : vector<16x128xf32> to vector<16x32xf32>
    %49 = vector.shape_cast %48 : vector<16x32xf32> to vector<2x8x32xf32>
    %50 = vector.extract_strided_slice %43 {offsets = [0, 0], sizes = [16, 32], strides = [1, 1]} : vector<16x128xf32> to vector<16x32xf32>
    %51 = vector.shape_cast %50 : vector<16x32xf32> to vector<2x8x32xf32>
    %52 = arith.truncf %47 : vector<2x8x32xf32> to vector<2x8x32xbf16>
    %53 = arith.truncf %49 : vector<2x8x32xf32> to vector<2x8x32xbf16>
    "tpu.trace_start"() <{level = 10 : i32, message = "bqd,bkd->bqk"}> : () -> ()
    %cst_27 = arith.constant dense<0.000000e+00> : vector<2x8x8xf32>
    %54 = tpu.matmul %52, %53, %cst_27 {dimension_numbers = #tpu.dot_dimension_numbers<[2], [2], [1], [1], [0, 0, 0, 1, 1, 1], [0], [0]>} : vector<2x8x32xbf16>, vector<2x8x32xbf16>, vector<2x8x8xf32> -> vector<2x8x8xf32>
    "tpu.trace_stop"() : () -> ()
    %cst_28 = arith.constant 0.176776692 : f32
    %55 = vector.broadcast %cst_28 : f32 to vector<2x8x8xf32>
    %56 = arith.mulf %54, %55 : vector<2x8x8xf32>
    %57 = arith.addf %56, %6 : vector<2x8x8xf32>
    %cst_29 = arith.constant dense<0xFF800000> : vector<2x8xf32>
    %58 = vector.multi_reduction <maximumf>, %57, %cst_29 [2] : vector<2x8x8xf32> to vector<2x8xf32>
    %59 = vector.shape_cast %58 : vector<2x8xf32> to vector<2x8x1xf32>
    %60 = vector.broadcast %59 : vector<2x8x1xf32> to vector<2x8x8xf32>
    %61 = arith.subf %57, %60 : vector<2x8x8xf32>
    %62 = math.exp %61 : vector<2x8x8xf32>
    %cst_30 = arith.constant dense<0.000000e+00> : vector<2x8xf32>
    %63 = vector.multi_reduction <add>, %62, %cst_30 [2] : vector<2x8x8xf32> to vector<2x8xf32>
    %64 = vector.shape_cast %63 : vector<2x8xf32> to vector<2x8x1xf32>
    %65 = tpu.reciprocal %64 {approx = true} : vector<2x8x1xf32> -> vector<2x8x1xf32>
    %66 = vector.broadcast %65 : vector<2x8x1xf32> to vector<2x8x8xf32>
    %67 = arith.mulf %62, %66 : vector<2x8x8xf32>
    %68 = arith.truncf %67 : vector<2x8x8xf32> to vector<2x8x8xbf16>
    %69 = arith.truncf %51 : vector<2x8x32xf32> to vector<2x8x32xbf16>
    "tpu.trace_start"() <{level = 10 : i32, message = "bqk,bkd->bqd"}> : () -> ()
    %cst_31 = arith.constant dense<0.000000e+00> : vector<2x8x32xf32>
    %70 = tpu.matmul %68, %69, %cst_31 {dimension_numbers = #tpu.dot_dimension_numbers<[2], [1], [1], [2], [0, 0, 0, 1, 1, 2], [0], [0]>} : vector<2x8x8xbf16>, vector<2x8x32xbf16>, vector<2x8x32xf32> -> vector<2x8x32xf32>
    "tpu.trace_stop"() : () -> ()
    %71 = vector.shape_cast %70 : vector<2x8x32xf32> to vector<16x32xf32>
    %72 = vector.extract_strided_slice %45 {offsets = [0, 0], sizes = [32, 128], strides = [1, 1]} : vector<128x128xbf16> to vector<32x128xbf16>
    %73 = arith.truncf %71 : vector<16x32xf32> to vector<16x32xbf16>
    %cst_32 = arith.constant dense<0.000000e+00> : vector<16x128xf32>
    %74 = tpu.matmul %73, %72, %cst_32 {dimension_numbers = #tpu.dot_dimension_numbers<[1], [0], [0], [1], [0, 0, 1, 1], [], []>} : vector<16x32xbf16>, vector<32x128xbf16>, vector<16x128xf32> -> vector<16x128xf32>
    %75 = vector.extract_strided_slice %41 {offsets = [0, 32], sizes = [16, 32], strides = [1, 1]} : vector<16x128xf32> to vector<16x32xf32>
    %76 = vector.shape_cast %75 : vector<16x32xf32> to vector<2x8x32xf32>
    %77 = vector.extract_strided_slice %42 {offsets = [0, 32], sizes = [16, 32], strides = [1, 1]} : vector<16x128xf32> to vector<16x32xf32>
    %78 = vector.shape_cast %77 : vector<16x32xf32> to vector<2x8x32xf32>
    %79 = vector.extract_strided_slice %43 {offsets = [0, 32], sizes = [16, 32], strides = [1, 1]} : vector<16x128xf32> to vector<16x32xf32>
    %80 = vector.shape_cast %79 : vector<16x32xf32> to vector<2x8x32xf32>
    %81 = arith.truncf %76 : vector<2x8x32xf32> to vector<2x8x32xbf16>
    %82 = arith.truncf %78 : vector<2x8x32xf32> to vector<2x8x32xbf16>
    "tpu.trace_start"() <{level = 10 : i32, message = "bqd,bkd->bqk"}> : () -> ()
    %cst_33 = arith.constant dense<0.000000e+00> : vector<2x8x8xf32>
    %83 = tpu.matmul %81, %82, %cst_33 {dimension_numbers = #tpu.dot_dimension_numbers<[2], [2], [1], [1], [0, 0, 0, 1, 1, 1], [0], [0]>} : vector<2x8x32xbf16>, vector<2x8x32xbf16>, vector<2x8x8xf32> -> vector<2x8x8xf32>
    "tpu.trace_stop"() : () -> ()
    %cst_34 = arith.constant 0.176776692 : f32
    %84 = vector.broadcast %cst_34 : f32 to vector<2x8x8xf32>
    %85 = arith.mulf %83, %84 : vector<2x8x8xf32>
    %86 = arith.addf %85, %6 : vector<2x8x8xf32>
    %cst_35 = arith.constant dense<0xFF800000> : vector<2x8xf32>
    %87 = vector.multi_reduction <maximumf>, %86, %cst_35 [2] : vector<2x8x8xf32> to vector<2x8xf32>
    %88 = vector.shape_cast %87 : vector<2x8xf32> to vector<2x8x1xf32>
    %89 = vector.broadcast %88 : vector<2x8x1xf32> to vector<2x8x8xf32>
    %90 = arith.subf %86, %89 : vector<2x8x8xf32>
    %91 = math.exp %90 : vector<2x8x8xf32>
    %cst_36 = arith.constant dense<0.000000e+00> : vector<2x8xf32>
    %92 = vector.multi_reduction <add>, %91, %cst_36 [2] : vector<2x8x8xf32> to vector<2x8xf32>
    %93 = vector.shape_cast %92 : vector<2x8xf32> to vector<2x8x1xf32>
    %94 = tpu.reciprocal %93 {approx = true} : vector<2x8x1xf32> -> vector<2x8x1xf32>
    %95 = vector.broadcast %94 : vector<2x8x1xf32> to vector<2x8x8xf32>
    %96 = arith.mulf %91, %95 : vector<2x8x8xf32>
    %97 = arith.truncf %96 : vector<2x8x8xf32> to vector<2x8x8xbf16>
    %98 = arith.truncf %80 : vector<2x8x32xf32> to vector<2x8x32xbf16>
    "tpu.trace_start"() <{level = 10 : i32, message = "bqk,bkd->bqd"}> : () -> ()
    %cst_37 = arith.constant dense<0.000000e+00> : vector<2x8x32xf32>
    %99 = tpu.matmul %97, %98, %cst_37 {dimension_numbers = #tpu.dot_dimension_numbers<[2], [1], [1], [2], [0, 0, 0, 1, 1, 2], [0], [0]>} : vector<2x8x8xbf16>, vector<2x8x32xbf16>, vector<2x8x32xf32> -> vector<2x8x32xf32>
    "tpu.trace_stop"() : () -> ()
    %100 = vector.shape_cast %99 : vector<2x8x32xf32> to vector<16x32xf32>
    %101 = vector.extract_strided_slice %45 {offsets = [32, 0], sizes = [32, 128], strides = [1, 1]} : vector<128x128xbf16> to vector<32x128xbf16>
    %102 = arith.truncf %100 : vector<16x32xf32> to vector<16x32xbf16>
    %cst_38 = arith.constant dense<0.000000e+00> : vector<16x128xf32>
    %103 = tpu.matmul %102, %101, %cst_38 {dimension_numbers = #tpu.dot_dimension_numbers<[1], [0], [0], [1], [0, 0, 1, 1], [], []>} : vector<16x32xbf16>, vector<32x128xbf16>, vector<16x128xf32> -> vector<16x128xf32>
    %104 = arith.addf %74, %103 : vector<16x128xf32>
    %105 = vector.extract_strided_slice %41 {offsets = [0, 64], sizes = [16, 32], strides = [1, 1]} : vector<16x128xf32> to vector<16x32xf32>
    %106 = vector.shape_cast %105 : vector<16x32xf32> to vector<2x8x32xf32>
    %107 = vector.extract_strided_slice %42 {offsets = [0, 64], sizes = [16, 32], strides = [1, 1]} : vector<16x128xf32> to vector<16x32xf32>
    %108 = vector.shape_cast %107 : vector<16x32xf32> to vector<2x8x32xf32>
    %109 = vector.extract_strided_slice %43 {offsets = [0, 64], sizes = [16, 32], strides = [1, 1]} : vector<16x128xf32> to vector<16x32xf32>
    %110 = vector.shape_cast %109 : vector<16x32xf32> to vector<2x8x32xf32>
    %111 = arith.truncf %106 : vector<2x8x32xf32> to vector<2x8x32xbf16>
    %112 = arith.truncf %108 : vector<2x8x32xf32> to vector<2x8x32xbf16>
    "tpu.trace_start"() <{level = 10 : i32, message = "bqd,bkd->bqk"}> : () -> ()
    %cst_39 = arith.constant dense<0.000000e+00> : vector<2x8x8xf32>
    %113 = tpu.matmul %111, %112, %cst_39 {dimension_numbers = #tpu.dot_dimension_numbers<[2], [2], [1], [1], [0, 0, 0, 1, 1, 1], [0], [0]>} : vector<2x8x32xbf16>, vector<2x8x32xbf16>, vector<2x8x8xf32> -> vector<2x8x8xf32>
    "tpu.trace_stop"() : () -> ()
    %cst_40 = arith.constant 0.176776692 : f32
    %114 = vector.broadcast %cst_40 : f32 to vector<2x8x8xf32>
    %115 = arith.mulf %113, %114 : vector<2x8x8xf32>
    %116 = arith.addf %115, %6 : vector<2x8x8xf32>
    %cst_41 = arith.constant dense<0xFF800000> : vector<2x8xf32>
    %117 = vector.multi_reduction <maximumf>, %116, %cst_41 [2] : vector<2x8x8xf32> to vector<2x8xf32>
    %118 = vector.shape_cast %117 : vector<2x8xf32> to vector<2x8x1xf32>
    %119 = vector.broadcast %118 : vector<2x8x1xf32> to vector<2x8x8xf32>
    %120 = arith.subf %116, %119 : vector<2x8x8xf32>
    %121 = math.exp %120 : vector<2x8x8xf32>
    %cst_42 = arith.constant dense<0.000000e+00> : vector<2x8xf32>
    %122 = vector.multi_reduction <add>, %121, %cst_42 [2] : vector<2x8x8xf32> to vector<2x8xf32>
    %123 = vector.shape_cast %122 : vector<2x8xf32> to vector<2x8x1xf32>
    %124 = tpu.reciprocal %123 {approx = true} : vector<2x8x1xf32> -> vector<2x8x1xf32>
    %125 = vector.broadcast %124 : vector<2x8x1xf32> to vector<2x8x8xf32>
    %126 = arith.mulf %121, %125 : vector<2x8x8xf32>
    %127 = arith.truncf %126 : vector<2x8x8xf32> to vector<2x8x8xbf16>
    %128 = arith.truncf %110 : vector<2x8x32xf32> to vector<2x8x32xbf16>
    "tpu.trace_start"() <{level = 10 : i32, message = "bqk,bkd->bqd"}> : () -> ()
    %cst_43 = arith.constant dense<0.000000e+00> : vector<2x8x32xf32>
    %129 = tpu.matmul %127, %128, %cst_43 {dimension_numbers = #tpu.dot_dimension_numbers<[2], [1], [1], [2], [0, 0, 0, 1, 1, 2], [0], [0]>} : vector<2x8x8xbf16>, vector<2x8x32xbf16>, vector<2x8x32xf32> -> vector<2x8x32xf32>
    "tpu.trace_stop"() : () -> ()
    %130 = vector.shape_cast %129 : vector<2x8x32xf32> to vector<16x32xf32>
    %131 = vector.extract_strided_slice %45 {offsets = [64, 0], sizes = [32, 128], strides = [1, 1]} : vector<128x128xbf16> to vector<32x128xbf16>
    %132 = arith.truncf %130 : vector<16x32xf32> to vector<16x32xbf16>
    %cst_44 = arith.constant dense<0.000000e+00> : vector<16x128xf32>
    %133 = tpu.matmul %132, %131, %cst_44 {dimension_numbers = #tpu.dot_dimension_numbers<[1], [0], [0], [1], [0, 0, 1, 1], [], []>} : vector<16x32xbf16>, vector<32x128xbf16>, vector<16x128xf32> -> vector<16x128xf32>
    %134 = arith.addf %104, %133 : vector<16x128xf32>
    %135 = vector.extract_strided_slice %41 {offsets = [0, 96], sizes = [16, 32], strides = [1, 1]} : vector<16x128xf32> to vector<16x32xf32>
    %136 = vector.shape_cast %135 : vector<16x32xf32> to vector<2x8x32xf32>
    %137 = vector.extract_strided_slice %42 {offsets = [0, 96], sizes = [16, 32], strides = [1, 1]} : vector<16x128xf32> to vector<16x32xf32>
    %138 = vector.shape_cast %137 : vector<16x32xf32> to vector<2x8x32xf32>
    %139 = vector.extract_strided_slice %43 {offsets = [0, 96], sizes = [16, 32], strides = [1, 1]} : vector<16x128xf32> to vector<16x32xf32>
    %140 = vector.shape_cast %139 : vector<16x32xf32> to vector<2x8x32xf32>
    %141 = arith.truncf %136 : vector<2x8x32xf32> to vector<2x8x32xbf16>
    %142 = arith.truncf %138 : vector<2x8x32xf32> to vector<2x8x32xbf16>
    "tpu.trace_start"() <{level = 10 : i32, message = "bqd,bkd->bqk"}> : () -> ()
    %cst_45 = arith.constant dense<0.000000e+00> : vector<2x8x8xf32>
    %143 = tpu.matmul %141, %142, %cst_45 {dimension_numbers = #tpu.dot_dimension_numbers<[2], [2], [1], [1], [0, 0, 0, 1, 1, 1], [0], [0]>} : vector<2x8x32xbf16>, vector<2x8x32xbf16>, vector<2x8x8xf32> -> vector<2x8x8xf32>
    "tpu.trace_stop"() : () -> ()
    %cst_46 = arith.constant 0.176776692 : f32
    %144 = vector.broadcast %cst_46 : f32 to vector<2x8x8xf32>
    %145 = arith.mulf %143, %144 : vector<2x8x8xf32>
    %146 = arith.addf %145, %6 : vector<2x8x8xf32>
    %cst_47 = arith.constant dense<0xFF800000> : vector<2x8xf32>
    %147 = vector.multi_reduction <maximumf>, %146, %cst_47 [2] : vector<2x8x8xf32> to vector<2x8xf32>
    %148 = vector.shape_cast %147 : vector<2x8xf32> to vector<2x8x1xf32>
    %149 = vector.broadcast %148 : vector<2x8x1xf32> to vector<2x8x8xf32>
    %150 = arith.subf %146, %149 : vector<2x8x8xf32>
    %151 = math.exp %150 : vector<2x8x8xf32>
    %cst_48 = arith.constant dense<0.000000e+00> : vector<2x8xf32>
    %152 = vector.multi_reduction <add>, %151, %cst_48 [2] : vector<2x8x8xf32> to vector<2x8xf32>
    %153 = vector.shape_cast %152 : vector<2x8xf32> to vector<2x8x1xf32>
    %154 = tpu.reciprocal %153 {approx = true} : vector<2x8x1xf32> -> vector<2x8x1xf32>
    %155 = vector.broadcast %154 : vector<2x8x1xf32> to vector<2x8x8xf32>
    %156 = arith.mulf %151, %155 : vector<2x8x8xf32>
    %157 = arith.truncf %156 : vector<2x8x8xf32> to vector<2x8x8xbf16>
    %158 = arith.truncf %140 : vector<2x8x32xf32> to vector<2x8x32xbf16>
    "tpu.trace_start"() <{level = 10 : i32, message = "bqk,bkd->bqd"}> : () -> ()
    %cst_49 = arith.constant dense<0.000000e+00> : vector<2x8x32xf32>
    %159 = tpu.matmul %157, %158, %cst_49 {dimension_numbers = #tpu.dot_dimension_numbers<[2], [1], [1], [2], [0, 0, 0, 1, 1, 2], [0], [0]>} : vector<2x8x8xbf16>, vector<2x8x32xbf16>, vector<2x8x32xf32> -> vector<2x8x32xf32>
    "tpu.trace_stop"() : () -> ()
    %160 = vector.shape_cast %159 : vector<2x8x32xf32> to vector<16x32xf32>
    %161 = vector.extract_strided_slice %45 {offsets = [96, 0], sizes = [32, 128], strides = [1, 1]} : vector<128x128xbf16> to vector<32x128xbf16>
    %162 = arith.truncf %160 : vector<16x32xf32> to vector<16x32xbf16>
    %cst_50 = arith.constant dense<0.000000e+00> : vector<16x128xf32>
    %163 = tpu.matmul %162, %161, %cst_50 {dimension_numbers = #tpu.dot_dimension_numbers<[1], [0], [0], [1], [0, 0, 1, 1], [], []>} : vector<16x32xbf16>, vector<32x128xbf16>, vector<16x128xf32> -> vector<16x128xf32>
    %164 = arith.addf %134, %163 : vector<16x128xf32>
    %165 = arith.addf %3, %164 : vector<16x128xf32>
    %c0_51 = arith.constant 0 : index
    %c0_52 = arith.constant 0 : index
    %c0_53 = arith.constant 0 : index
    %166 = vector.load %arg9[%c0_51, %c0_52, %c0_53] : memref<1x1x128xf32, #tpu.memory_space<vmem>>, vector<1x1x128xf32>
    %167 = vector.shape_cast %166 : vector<1x1x128xf32> to vector<1x128xf32>
    %168 = vector.broadcast %167 : vector<1x128xf32> to vector<16x128xf32>
    %169 = arith.addf %165, %168 : vector<16x128xf32>
    %c0_54 = arith.constant 0 : index
    %c0_55 = arith.constant 0 : index
    %c0_56 = arith.constant 0 : index
    %170 = vector.load %arg10[%c0_54, %c0_55, %c0_56] : memref<1x1x128xf32, #tpu.memory_space<vmem>>, vector<1x1x128xf32>
    %171 = vector.shape_cast %170 : vector<1x1x128xf32> to vector<1x128xf32>
    %c0_57 = arith.constant 0 : index
    %c0_58 = arith.constant 0 : index
    %c0_59 = arith.constant 0 : index
    %172 = vector.load %arg11[%c0_57, %c0_58, %c0_59] : memref<1x1x128xf32, #tpu.memory_space<vmem>>, vector<1x1x128xf32>
    %173 = vector.shape_cast %172 : vector<1x1x128xf32> to vector<1x128xf32>
    %cst_60 = arith.constant dense<0.000000e+00> : vector<16xf32>
    %174 = vector.multi_reduction <add>, %169, %cst_60 [1] : vector<16x128xf32> to vector<16xf32>
    %175 = vector.shape_cast %174 : vector<16xf32> to vector<16x1xf32>
    %cst_61 = arith.constant 1.280000e+02 : f32
    %176 = vector.broadcast %cst_61 : f32 to vector<16x1xf32>
    %177 = arith.divf %175, %176 : vector<16x1xf32>
    %178 = vector.broadcast %177 : vector<16x1xf32> to vector<16x128xf32>
    %179 = arith.subf %169, %178 : vector<16x128xf32>
    %180 = arith.mulf %179, %179 : vector<16x128xf32>
    %cst_62 = arith.constant dense<0.000000e+00> : vector<16xf32>
    %181 = vector.multi_reduction <add>, %180, %cst_62 [1] : vector<16x128xf32> to vector<16xf32>
    %182 = vector.shape_cast %181 : vector<16xf32> to vector<16x1xf32>
    %cst_63 = arith.constant 1.280000e+02 : f32
    %183 = vector.broadcast %cst_63 : f32 to vector<16x1xf32>
    %184 = arith.divf %182, %183 : vector<16x1xf32>
    %185 = vector.broadcast %177 : vector<16x1xf32> to vector<16x128xf32>
    %186 = arith.subf %169, %185 : vector<16x128xf32>
    %cst_64 = arith.constant 9.99999974E-6 : f32
    %187 = vector.broadcast %cst_64 : f32 to vector<16x1xf32>
    %188 = arith.addf %184, %187 : vector<16x1xf32>
    %189 = math.rsqrt %188 : vector<16x1xf32>
    %190 = vector.broadcast %189 : vector<16x1xf32> to vector<16x128xf32>
    %191 = arith.mulf %186, %190 : vector<16x128xf32>
    %192 = vector.broadcast %171 : vector<1x128xf32> to vector<16x128xf32>
    %193 = arith.mulf %191, %192 : vector<16x128xf32>
    %194 = vector.broadcast %173 : vector<1x128xf32> to vector<16x128xf32>
    %195 = arith.addf %193, %194 : vector<16x128xf32>
    %c0_65 = arith.constant 0 : index
    %c0_66 = arith.constant 0 : index
    %c0_67 = arith.constant 0 : index
    %196 = vector.load %arg12[%c0_65, %c0_66, %c0_67] : memref<1x128x128xbf16, #tpu.memory_space<vmem>>, vector<1x128x128xbf16>
    %197 = vector.shape_cast %196 : vector<1x128x128xbf16> to vector<128x128xbf16>
    %198 = arith.truncf %195 : vector<16x128xf32> to vector<16x128xbf16>
    %cst_68 = arith.constant dense<0.000000e+00> : vector<16x128xf32>
    %199 = tpu.matmul %198, %197, %cst_68 {dimension_numbers = #tpu.dot_dimension_numbers<[1], [0], [0], [1], [0, 0, 1, 1], [], []>} : vector<16x128xbf16>, vector<128x128xbf16>, vector<16x128xf32> -> vector<16x128xf32>
    %c0_69 = arith.constant 0 : index
    %c0_70 = arith.constant 0 : index
    %c0_71 = arith.constant 0 : index
    %200 = vector.load %arg13[%c0_69, %c0_70, %c0_71] : memref<1x1x128xf32, #tpu.memory_space<vmem>>, vector<1x1x128xf32>
    %201 = vector.shape_cast %200 : vector<1x1x128xf32> to vector<1x128xf32>
    %202 = vector.broadcast %201 : vector<1x128xf32> to vector<16x128xf32>
    %203 = arith.addf %199, %202 : vector<16x128xf32>
    %c0_72 = arith.constant 0 : index
    %c0_73 = arith.constant 0 : index
    %c0_74 = arith.constant 0 : index
    %204 = vector.load %arg14[%c0_72, %c0_73, %c0_74] : memref<1x128x256xbf16, #tpu.memory_space<vmem>>, vector<1x128x256xbf16>
    %205 = vector.shape_cast %204 : vector<1x128x256xbf16> to vector<128x256xbf16>
    %206 = arith.truncf %4 : vector<16x128xf32> to vector<16x128xbf16>
    %cst_75 = arith.constant dense<0.000000e+00> : vector<16x256xf32>
    %207 = tpu.matmul %206, %205, %cst_75 {dimension_numbers = #tpu.dot_dimension_numbers<[1], [0], [0], [1], [0, 0, 1, 1], [], []>} : vector<16x128xbf16>, vector<128x256xbf16>, vector<16x256xf32> -> vector<16x256xf32>
    %c0_76 = arith.constant 0 : index
    %c0_77 = arith.constant 0 : index
    %c0_78 = arith.constant 0 : index
    %208 = vector.load %arg15[%c0_76, %c0_77, %c0_78] : memref<1x1x256xf32, #tpu.memory_space<vmem>>, vector<1x1x256xf32>
    %209 = vector.shape_cast %208 : vector<1x1x256xf32> to vector<1x256xf32>
    %210 = vector.broadcast %209 : vector<1x256xf32> to vector<16x256xf32>
    %211 = arith.addf %207, %210 : vector<16x256xf32>
    %212 = vector.extract_strided_slice %211 {offsets = [0, 0], sizes = [16, 128], strides = [1, 1]} : vector<16x256xf32> to vector<16x128xf32>
    %213 = vector.extract_strided_slice %211 {offsets = [0, 128], sizes = [16, 128], strides = [1, 1]} : vector<16x256xf32> to vector<16x128xf32>
    %c0_79 = arith.constant 0 : index
    %c0_80 = arith.constant 0 : index
    %c0_81 = arith.constant 0 : index
    %214 = vector.load %arg16[%c0_79, %c0_80, %c0_81] : memref<1x128x128xbf16, #tpu.memory_space<vmem>>, vector<1x128x128xbf16>
    %215 = vector.shape_cast %214 : vector<1x128x128xbf16> to vector<128x128xbf16>
    %216 = vector.extract_strided_slice %203 {offsets = [0, 0], sizes = [16, 32], strides = [1, 1]} : vector<16x128xf32> to vector<16x32xf32>
    %217 = vector.shape_cast %216 : vector<16x32xf32> to vector<2x8x32xf32>
    %218 = vector.extract_strided_slice %212 {offsets = [0, 0], sizes = [16, 32], strides = [1, 1]} : vector<16x128xf32> to vector<16x32xf32>
    %219 = vector.shape_cast %218 : vector<16x32xf32> to vector<2x8x32xf32>
    %220 = vector.extract_strided_slice %213 {offsets = [0, 0], sizes = [16, 32], strides = [1, 1]} : vector<16x128xf32> to vector<16x32xf32>
    %221 = vector.shape_cast %220 : vector<16x32xf32> to vector<2x8x32xf32>
    %222 = arith.truncf %217 : vector<2x8x32xf32> to vector<2x8x32xbf16>
    %223 = arith.truncf %219 : vector<2x8x32xf32> to vector<2x8x32xbf16>
    "tpu.trace_start"() <{level = 10 : i32, message = "bqd,bkd->bqk"}> : () -> ()
    %cst_82 = arith.constant dense<0.000000e+00> : vector<2x8x8xf32>
    %224 = tpu.matmul %222, %223, %cst_82 {dimension_numbers = #tpu.dot_dimension_numbers<[2], [2], [1], [1], [0, 0, 0, 1, 1, 1], [0], [0]>} : vector<2x8x32xbf16>, vector<2x8x32xbf16>, vector<2x8x8xf32> -> vector<2x8x8xf32>
    "tpu.trace_stop"() : () -> ()
    %cst_83 = arith.constant 0.176776692 : f32
    %225 = vector.broadcast %cst_83 : f32 to vector<2x8x8xf32>
    %226 = arith.mulf %224, %225 : vector<2x8x8xf32>
    %cst_84 = arith.constant dense<0xFF800000> : vector<2x8xf32>
    %227 = vector.multi_reduction <maximumf>, %226, %cst_84 [2] : vector<2x8x8xf32> to vector<2x8xf32>
    %228 = vector.shape_cast %227 : vector<2x8xf32> to vector<2x8x1xf32>
    %229 = vector.broadcast %228 : vector<2x8x1xf32> to vector<2x8x8xf32>
    %230 = arith.subf %226, %229 : vector<2x8x8xf32>
    %231 = math.exp %230 : vector<2x8x8xf32>
    %cst_85 = arith.constant dense<0.000000e+00> : vector<2x8xf32>
    %232 = vector.multi_reduction <add>, %231, %cst_85 [2] : vector<2x8x8xf32> to vector<2x8xf32>
    %233 = vector.shape_cast %232 : vector<2x8xf32> to vector<2x8x1xf32>
    %234 = tpu.reciprocal %233 {approx = true} : vector<2x8x1xf32> -> vector<2x8x1xf32>
    %235 = vector.broadcast %234 : vector<2x8x1xf32> to vector<2x8x8xf32>
    %236 = arith.mulf %231, %235 : vector<2x8x8xf32>
    %237 = arith.truncf %236 : vector<2x8x8xf32> to vector<2x8x8xbf16>
    %238 = arith.truncf %221 : vector<2x8x32xf32> to vector<2x8x32xbf16>
    "tpu.trace_start"() <{level = 10 : i32, message = "bqk,bkd->bqd"}> : () -> ()
    %cst_86 = arith.constant dense<0.000000e+00> : vector<2x8x32xf32>
    %239 = tpu.matmul %237, %238, %cst_86 {dimension_numbers = #tpu.dot_dimension_numbers<[2], [1], [1], [2], [0, 0, 0, 1, 1, 2], [0], [0]>} : vector<2x8x8xbf16>, vector<2x8x32xbf16>, vector<2x8x32xf32> -> vector<2x8x32xf32>
    "tpu.trace_stop"() : () -> ()
    %240 = vector.shape_cast %239 : vector<2x8x32xf32> to vector<16x32xf32>
    %241 = vector.extract_strided_slice %215 {offsets = [0, 0], sizes = [32, 128], strides = [1, 1]} : vector<128x128xbf16> to vector<32x128xbf16>
    %242 = arith.truncf %240 : vector<16x32xf32> to vector<16x32xbf16>
    %cst_87 = arith.constant dense<0.000000e+00> : vector<16x128xf32>
    %243 = tpu.matmul %242, %241, %cst_87 {dimension_numbers = #tpu.dot_dimension_numbers<[1], [0], [0], [1], [0, 0, 1, 1], [], []>} : vector<16x32xbf16>, vector<32x128xbf16>, vector<16x128xf32> -> vector<16x128xf32>
    %244 = vector.extract_strided_slice %203 {offsets = [0, 32], sizes = [16, 32], strides = [1, 1]} : vector<16x128xf32> to vector<16x32xf32>
    %245 = vector.shape_cast %244 : vector<16x32xf32> to vector<2x8x32xf32>
    %246 = vector.extract_strided_slice %212 {offsets = [0, 32], sizes = [16, 32], strides = [1, 1]} : vector<16x128xf32> to vector<16x32xf32>
    %247 = vector.shape_cast %246 : vector<16x32xf32> to vector<2x8x32xf32>
    %248 = vector.extract_strided_slice %213 {offsets = [0, 32], sizes = [16, 32], strides = [1, 1]} : vector<16x128xf32> to vector<16x32xf32>
    %249 = vector.shape_cast %248 : vector<16x32xf32> to vector<2x8x32xf32>
    %250 = arith.truncf %245 : vector<2x8x32xf32> to vector<2x8x32xbf16>
    %251 = arith.truncf %247 : vector<2x8x32xf32> to vector<2x8x32xbf16>
    "tpu.trace_start"() <{level = 10 : i32, message = "bqd,bkd->bqk"}> : () -> ()
    %cst_88 = arith.constant dense<0.000000e+00> : vector<2x8x8xf32>
    %252 = tpu.matmul %250, %251, %cst_88 {dimension_numbers = #tpu.dot_dimension_numbers<[2], [2], [1], [1], [0, 0, 0, 1, 1, 1], [0], [0]>} : vector<2x8x32xbf16>, vector<2x8x32xbf16>, vector<2x8x8xf32> -> vector<2x8x8xf32>
    "tpu.trace_stop"() : () -> ()
    %cst_89 = arith.constant 0.176776692 : f32
    %253 = vector.broadcast %cst_89 : f32 to vector<2x8x8xf32>
    %254 = arith.mulf %252, %253 : vector<2x8x8xf32>
    %cst_90 = arith.constant dense<0xFF800000> : vector<2x8xf32>
    %255 = vector.multi_reduction <maximumf>, %254, %cst_90 [2] : vector<2x8x8xf32> to vector<2x8xf32>
    %256 = vector.shape_cast %255 : vector<2x8xf32> to vector<2x8x1xf32>
    %257 = vector.broadcast %256 : vector<2x8x1xf32> to vector<2x8x8xf32>
    %258 = arith.subf %254, %257 : vector<2x8x8xf32>
    %259 = math.exp %258 : vector<2x8x8xf32>
    %cst_91 = arith.constant dense<0.000000e+00> : vector<2x8xf32>
    %260 = vector.multi_reduction <add>, %259, %cst_91 [2] : vector<2x8x8xf32> to vector<2x8xf32>
    %261 = vector.shape_cast %260 : vector<2x8xf32> to vector<2x8x1xf32>
    %262 = tpu.reciprocal %261 {approx = true} : vector<2x8x1xf32> -> vector<2x8x1xf32>
    %263 = vector.broadcast %262 : vector<2x8x1xf32> to vector<2x8x8xf32>
    %264 = arith.mulf %259, %263 : vector<2x8x8xf32>
    %265 = arith.truncf %264 : vector<2x8x8xf32> to vector<2x8x8xbf16>
    %266 = arith.truncf %249 : vector<2x8x32xf32> to vector<2x8x32xbf16>
    "tpu.trace_start"() <{level = 10 : i32, message = "bqk,bkd->bqd"}> : () -> ()
    %cst_92 = arith.constant dense<0.000000e+00> : vector<2x8x32xf32>
    %267 = tpu.matmul %265, %266, %cst_92 {dimension_numbers = #tpu.dot_dimension_numbers<[2], [1], [1], [2], [0, 0, 0, 1, 1, 2], [0], [0]>} : vector<2x8x8xbf16>, vector<2x8x32xbf16>, vector<2x8x32xf32> -> vector<2x8x32xf32>
    "tpu.trace_stop"() : () -> ()
    %268 = vector.shape_cast %267 : vector<2x8x32xf32> to vector<16x32xf32>
    %269 = vector.extract_strided_slice %215 {offsets = [32, 0], sizes = [32, 128], strides = [1, 1]} : vector<128x128xbf16> to vector<32x128xbf16>
    %270 = arith.truncf %268 : vector<16x32xf32> to vector<16x32xbf16>
    %cst_93 = arith.constant dense<0.000000e+00> : vector<16x128xf32>
    %271 = tpu.matmul %270, %269, %cst_93 {dimension_numbers = #tpu.dot_dimension_numbers<[1], [0], [0], [1], [0, 0, 1, 1], [], []>} : vector<16x32xbf16>, vector<32x128xbf16>, vector<16x128xf32> -> vector<16x128xf32>
    %272 = arith.addf %243, %271 : vector<16x128xf32>
    %273 = vector.extract_strided_slice %203 {offsets = [0, 64], sizes = [16, 32], strides = [1, 1]} : vector<16x128xf32> to vector<16x32xf32>
    %274 = vector.shape_cast %273 : vector<16x32xf32> to vector<2x8x32xf32>
    %275 = vector.extract_strided_slice %212 {offsets = [0, 64], sizes = [16, 32], strides = [1, 1]} : vector<16x128xf32> to vector<16x32xf32>
    %276 = vector.shape_cast %275 : vector<16x32xf32> to vector<2x8x32xf32>
    %277 = vector.extract_strided_slice %213 {offsets = [0, 64], sizes = [16, 32], strides = [1, 1]} : vector<16x128xf32> to vector<16x32xf32>
    %278 = vector.shape_cast %277 : vector<16x32xf32> to vector<2x8x32xf32>
    %279 = arith.truncf %274 : vector<2x8x32xf32> to vector<2x8x32xbf16>
    %280 = arith.truncf %276 : vector<2x8x32xf32> to vector<2x8x32xbf16>
    "tpu.trace_start"() <{level = 10 : i32, message = "bqd,bkd->bqk"}> : () -> ()
    %cst_94 = arith.constant dense<0.000000e+00> : vector<2x8x8xf32>
    %281 = tpu.matmul %279, %280, %cst_94 {dimension_numbers = #tpu.dot_dimension_numbers<[2], [2], [1], [1], [0, 0, 0, 1, 1, 1], [0], [0]>} : vector<2x8x32xbf16>, vector<2x8x32xbf16>, vector<2x8x8xf32> -> vector<2x8x8xf32>
    "tpu.trace_stop"() : () -> ()
    %cst_95 = arith.constant 0.176776692 : f32
    %282 = vector.broadcast %cst_95 : f32 to vector<2x8x8xf32>
    %283 = arith.mulf %281, %282 : vector<2x8x8xf32>
    %cst_96 = arith.constant dense<0xFF800000> : vector<2x8xf32>
    %284 = vector.multi_reduction <maximumf>, %283, %cst_96 [2] : vector<2x8x8xf32> to vector<2x8xf32>
    %285 = vector.shape_cast %284 : vector<2x8xf32> to vector<2x8x1xf32>
    %286 = vector.broadcast %285 : vector<2x8x1xf32> to vector<2x8x8xf32>
    %287 = arith.subf %283, %286 : vector<2x8x8xf32>
    %288 = math.exp %287 : vector<2x8x8xf32>
    %cst_97 = arith.constant dense<0.000000e+00> : vector<2x8xf32>
    %289 = vector.multi_reduction <add>, %288, %cst_97 [2] : vector<2x8x8xf32> to vector<2x8xf32>
    %290 = vector.shape_cast %289 : vector<2x8xf32> to vector<2x8x1xf32>
    %291 = tpu.reciprocal %290 {approx = true} : vector<2x8x1xf32> -> vector<2x8x1xf32>
    %292 = vector.broadcast %291 : vector<2x8x1xf32> to vector<2x8x8xf32>
    %293 = arith.mulf %288, %292 : vector<2x8x8xf32>
    %294 = arith.truncf %293 : vector<2x8x8xf32> to vector<2x8x8xbf16>
    %295 = arith.truncf %278 : vector<2x8x32xf32> to vector<2x8x32xbf16>
    "tpu.trace_start"() <{level = 10 : i32, message = "bqk,bkd->bqd"}> : () -> ()
    %cst_98 = arith.constant dense<0.000000e+00> : vector<2x8x32xf32>
    %296 = tpu.matmul %294, %295, %cst_98 {dimension_numbers = #tpu.dot_dimension_numbers<[2], [1], [1], [2], [0, 0, 0, 1, 1, 2], [0], [0]>} : vector<2x8x8xbf16>, vector<2x8x32xbf16>, vector<2x8x32xf32> -> vector<2x8x32xf32>
    "tpu.trace_stop"() : () -> ()
    %297 = vector.shape_cast %296 : vector<2x8x32xf32> to vector<16x32xf32>
    %298 = vector.extract_strided_slice %215 {offsets = [64, 0], sizes = [32, 128], strides = [1, 1]} : vector<128x128xbf16> to vector<32x128xbf16>
    %299 = arith.truncf %297 : vector<16x32xf32> to vector<16x32xbf16>
    %cst_99 = arith.constant dense<0.000000e+00> : vector<16x128xf32>
    %300 = tpu.matmul %299, %298, %cst_99 {dimension_numbers = #tpu.dot_dimension_numbers<[1], [0], [0], [1], [0, 0, 1, 1], [], []>} : vector<16x32xbf16>, vector<32x128xbf16>, vector<16x128xf32> -> vector<16x128xf32>
    %301 = arith.addf %272, %300 : vector<16x128xf32>
    %302 = vector.extract_strided_slice %203 {offsets = [0, 96], sizes = [16, 32], strides = [1, 1]} : vector<16x128xf32> to vector<16x32xf32>
    %303 = vector.shape_cast %302 : vector<16x32xf32> to vector<2x8x32xf32>
    %304 = vector.extract_strided_slice %212 {offsets = [0, 96], sizes = [16, 32], strides = [1, 1]} : vector<16x128xf32> to vector<16x32xf32>
    %305 = vector.shape_cast %304 : vector<16x32xf32> to vector<2x8x32xf32>
    %306 = vector.extract_strided_slice %213 {offsets = [0, 96], sizes = [16, 32], strides = [1, 1]} : vector<16x128xf32> to vector<16x32xf32>
    %307 = vector.shape_cast %306 : vector<16x32xf32> to vector<2x8x32xf32>
    %308 = arith.truncf %303 : vector<2x8x32xf32> to vector<2x8x32xbf16>
    %309 = arith.truncf %305 : vector<2x8x32xf32> to vector<2x8x32xbf16>
    "tpu.trace_start"() <{level = 10 : i32, message = "bqd,bkd->bqk"}> : () -> ()
    %cst_100 = arith.constant dense<0.000000e+00> : vector<2x8x8xf32>
    %310 = tpu.matmul %308, %309, %cst_100 {dimension_numbers = #tpu.dot_dimension_numbers<[2], [2], [1], [1], [0, 0, 0, 1, 1, 1], [0], [0]>} : vector<2x8x32xbf16>, vector<2x8x32xbf16>, vector<2x8x8xf32> -> vector<2x8x8xf32>
    "tpu.trace_stop"() : () -> ()
    %cst_101 = arith.constant 0.176776692 : f32
    %311 = vector.broadcast %cst_101 : f32 to vector<2x8x8xf32>
    %312 = arith.mulf %310, %311 : vector<2x8x8xf32>
    %cst_102 = arith.constant dense<0xFF800000> : vector<2x8xf32>
    %313 = vector.multi_reduction <maximumf>, %312, %cst_102 [2] : vector<2x8x8xf32> to vector<2x8xf32>
    %314 = vector.shape_cast %313 : vector<2x8xf32> to vector<2x8x1xf32>
    %315 = vector.broadcast %314 : vector<2x8x1xf32> to vector<2x8x8xf32>
    %316 = arith.subf %312, %315 : vector<2x8x8xf32>
    %317 = math.exp %316 : vector<2x8x8xf32>
    %cst_103 = arith.constant dense<0.000000e+00> : vector<2x8xf32>
    %318 = vector.multi_reduction <add>, %317, %cst_103 [2] : vector<2x8x8xf32> to vector<2x8xf32>
    %319 = vector.shape_cast %318 : vector<2x8xf32> to vector<2x8x1xf32>
    %320 = tpu.reciprocal %319 {approx = true} : vector<2x8x1xf32> -> vector<2x8x1xf32>
    %321 = vector.broadcast %320 : vector<2x8x1xf32> to vector<2x8x8xf32>
    %322 = arith.mulf %317, %321 : vector<2x8x8xf32>
    %323 = arith.truncf %322 : vector<2x8x8xf32> to vector<2x8x8xbf16>
    %324 = arith.truncf %307 : vector<2x8x32xf32> to vector<2x8x32xbf16>
    "tpu.trace_start"() <{level = 10 : i32, message = "bqk,bkd->bqd"}> : () -> ()
    %cst_104 = arith.constant dense<0.000000e+00> : vector<2x8x32xf32>
    %325 = tpu.matmul %323, %324, %cst_104 {dimension_numbers = #tpu.dot_dimension_numbers<[2], [1], [1], [2], [0, 0, 0, 1, 1, 2], [0], [0]>} : vector<2x8x8xbf16>, vector<2x8x32xbf16>, vector<2x8x32xf32> -> vector<2x8x32xf32>
    "tpu.trace_stop"() : () -> ()
    %326 = vector.shape_cast %325 : vector<2x8x32xf32> to vector<16x32xf32>
    %327 = vector.extract_strided_slice %215 {offsets = [96, 0], sizes = [32, 128], strides = [1, 1]} : vector<128x128xbf16> to vector<32x128xbf16>
    %328 = arith.truncf %326 : vector<16x32xf32> to vector<16x32xbf16>
    %cst_105 = arith.constant dense<0.000000e+00> : vector<16x128xf32>
    %329 = tpu.matmul %328, %327, %cst_105 {dimension_numbers = #tpu.dot_dimension_numbers<[1], [0], [0], [1], [0, 0, 1, 1], [], []>} : vector<16x32xbf16>, vector<32x128xbf16>, vector<16x128xf32> -> vector<16x128xf32>
    %330 = arith.addf %301, %329 : vector<16x128xf32>
    %331 = arith.addf %169, %330 : vector<16x128xf32>
    %c0_106 = arith.constant 0 : index
    %c0_107 = arith.constant 0 : index
    %c0_108 = arith.constant 0 : index
    %332 = vector.load %arg17[%c0_106, %c0_107, %c0_108] : memref<1x1x128xf32, #tpu.memory_space<vmem>>, vector<1x1x128xf32>
    %333 = vector.shape_cast %332 : vector<1x1x128xf32> to vector<1x128xf32>
    %334 = vector.broadcast %333 : vector<1x128xf32> to vector<16x128xf32>
    %335 = arith.addf %331, %334 : vector<16x128xf32>
    %c0_109 = arith.constant 0 : index
    %c0_110 = arith.constant 0 : index
    %c0_111 = arith.constant 0 : index
    %336 = vector.load %arg18[%c0_109, %c0_110, %c0_111] : memref<1x1x128xf32, #tpu.memory_space<vmem>>, vector<1x1x128xf32>
    %337 = vector.shape_cast %336 : vector<1x1x128xf32> to vector<1x128xf32>
    %c0_112 = arith.constant 0 : index
    %c0_113 = arith.constant 0 : index
    %c0_114 = arith.constant 0 : index
    %338 = vector.load %arg19[%c0_112, %c0_113, %c0_114] : memref<1x1x128xf32, #tpu.memory_space<vmem>>, vector<1x1x128xf32>
    %339 = vector.shape_cast %338 : vector<1x1x128xf32> to vector<1x128xf32>
    %cst_115 = arith.constant dense<0.000000e+00> : vector<16xf32>
    %340 = vector.multi_reduction <add>, %335, %cst_115 [1] : vector<16x128xf32> to vector<16xf32>
    %341 = vector.shape_cast %340 : vector<16xf32> to vector<16x1xf32>
    %cst_116 = arith.constant 1.280000e+02 : f32
    %342 = vector.broadcast %cst_116 : f32 to vector<16x1xf32>
    %343 = arith.divf %341, %342 : vector<16x1xf32>
    %344 = vector.broadcast %343 : vector<16x1xf32> to vector<16x128xf32>
    %345 = arith.subf %335, %344 : vector<16x128xf32>
    %346 = arith.mulf %345, %345 : vector<16x128xf32>
    %cst_117 = arith.constant dense<0.000000e+00> : vector<16xf32>
    %347 = vector.multi_reduction <add>, %346, %cst_117 [1] : vector<16x128xf32> to vector<16xf32>
    %348 = vector.shape_cast %347 : vector<16xf32> to vector<16x1xf32>
    %cst_118 = arith.constant 1.280000e+02 : f32
    %349 = vector.broadcast %cst_118 : f32 to vector<16x1xf32>
    %350 = arith.divf %348, %349 : vector<16x1xf32>
    %351 = vector.broadcast %343 : vector<16x1xf32> to vector<16x128xf32>
    %352 = arith.subf %335, %351 : vector<16x128xf32>
    %cst_119 = arith.constant 9.99999974E-6 : f32
    %353 = vector.broadcast %cst_119 : f32 to vector<16x1xf32>
    %354 = arith.addf %350, %353 : vector<16x1xf32>
    %355 = math.rsqrt %354 : vector<16x1xf32>
    %356 = vector.broadcast %355 : vector<16x1xf32> to vector<16x128xf32>
    %357 = arith.mulf %352, %356 : vector<16x128xf32>
    %358 = vector.broadcast %337 : vector<1x128xf32> to vector<16x128xf32>
    %359 = arith.mulf %357, %358 : vector<16x128xf32>
    %360 = vector.broadcast %339 : vector<1x128xf32> to vector<16x128xf32>
    %361 = arith.addf %359, %360 : vector<16x128xf32>
    %c0_120 = arith.constant 0 : index
    %c0_121 = arith.constant 0 : index
    %c0_122 = arith.constant 0 : index
    %362 = vector.load %arg20[%c0_120, %c0_121, %c0_122] : memref<1x128x128xbf16, #tpu.memory_space<vmem>>, vector<1x128x128xbf16>
    %363 = vector.shape_cast %362 : vector<1x128x128xbf16> to vector<128x128xbf16>
    %364 = arith.truncf %361 : vector<16x128xf32> to vector<16x128xbf16>
    %cst_123 = arith.constant dense<0.000000e+00> : vector<16x128xf32>
    %365 = tpu.matmul %364, %363, %cst_123 {dimension_numbers = #tpu.dot_dimension_numbers<[1], [0], [0], [1], [0, 0, 1, 1], [], []>} : vector<16x128xbf16>, vector<128x128xbf16>, vector<16x128xf32> -> vector<16x128xf32>
    %c0_124 = arith.constant 0 : index
    %c0_125 = arith.constant 0 : index
    %c0_126 = arith.constant 0 : index
    %366 = vector.load %arg21[%c0_124, %c0_125, %c0_126] : memref<1x1x128xf32, #tpu.memory_space<vmem>>, vector<1x1x128xf32>
    %367 = vector.shape_cast %366 : vector<1x1x128xf32> to vector<1x128xf32>
    %368 = vector.broadcast %367 : vector<1x128xf32> to vector<16x128xf32>
    %369 = arith.addf %365, %368 : vector<16x128xf32>
    %cst_127 = arith.constant 5.000000e-01 : f32
    %370 = vector.broadcast %cst_127 : f32 to vector<16x128xf32>
    %371 = arith.mulf %370, %369 : vector<16x128xf32>
    %cst_128 = arith.constant 4.471500e-02 : f32
    %372 = vector.broadcast %cst_128 : f32 to vector<16x128xf32>
    %373 = arith.mulf %372, %369 : vector<16x128xf32>
    %374 = arith.mulf %373, %369 : vector<16x128xf32>
    %375 = arith.mulf %374, %369 : vector<16x128xf32>
    %376 = arith.addf %369, %375 : vector<16x128xf32>
    %cst_129 = arith.constant 0.797884583 : f32
    %377 = vector.broadcast %cst_129 : f32 to vector<16x128xf32>
    %378 = arith.mulf %377, %376 : vector<16x128xf32>
    %379 = math.tanh %378 : vector<16x128xf32>
    %cst_130 = arith.constant 1.000000e+00 : f32
    %380 = vector.broadcast %cst_130 : f32 to vector<16x128xf32>
    %381 = arith.addf %380, %379 : vector<16x128xf32>
    %382 = arith.mulf %371, %381 : vector<16x128xf32>
    %c0_131 = arith.constant 0 : index
    %c0_132 = arith.constant 0 : index
    %c0_133 = arith.constant 0 : index
    %383 = vector.load %arg22[%c0_131, %c0_132, %c0_133] : memref<1x128x128xbf16, #tpu.memory_space<vmem>>, vector<1x128x128xbf16>
    %384 = vector.shape_cast %383 : vector<1x128x128xbf16> to vector<128x128xbf16>
    %385 = arith.truncf %382 : vector<16x128xf32> to vector<16x128xbf16>
    %cst_134 = arith.constant dense<0.000000e+00> : vector<16x128xf32>
    %386 = tpu.matmul %385, %384, %cst_134 {dimension_numbers = #tpu.dot_dimension_numbers<[1], [0], [0], [1], [0, 0, 1, 1], [], []>} : vector<16x128xbf16>, vector<128x128xbf16>, vector<16x128xf32> -> vector<16x128xf32>
    %387 = arith.addf %335, %386 : vector<16x128xf32>
    %c0_135 = arith.constant 0 : index
    %c0_136 = arith.constant 0 : index
    %c0_137 = arith.constant 0 : index
    %388 = vector.load %arg23[%c0_135, %c0_136, %c0_137] : memref<1x1x128xf32, #tpu.memory_space<vmem>>, vector<1x1x128xf32>
    %389 = vector.shape_cast %388 : vector<1x1x128xf32> to vector<1x128xf32>
    %390 = vector.broadcast %389 : vector<1x128xf32> to vector<16x128xf32>
    %391 = arith.addf %387, %390 : vector<16x128xf32>
    %c0_138 = arith.constant 0 : index
    %c0_139 = arith.constant 0 : index
    %392 = vector.load %arg25[%c0_138, %c0_139] : memref<16x128xf32, #tpu.memory_space<vmem>>, vector<16x128xf32>
    tpu.vector_store %arg25[%c0_138, %c0_139], %391 {strides = array<i32>} : memref<16x128xf32, #tpu.memory_space<vmem>>, vector<16x128xf32>,
    %c11_i32 = arith.constant 11 : i32
    %393 = arith.cmpi eq, %arg0, %c11_i32 : i32
    %394 = arith.extui %393 : i1 to i32
    %c0_i32_140 = arith.constant 0 : i32
    %395 = arith.cmpi ne, %394, %c0_i32_140 : i32
    scf.if %395 {
      %c0_141 = arith.constant 0 : index
      %c0_142 = arith.constant 0 : index
      %396 = vector.load %arg24[%c0_141, %c0_142] : memref<16x128xf32, #tpu.memory_space<vmem>>, vector<16x128xf32>
      tpu.vector_store %arg24[%c0_141, %c0_142], %391 {strides = array<i32>} : memref<16x128xf32, #tpu.memory_space<vmem>>, vector<16x128xf32>,
    } else {
    }
    return
  }
  func.func @transform_0(%arg0: i32) -> (i32, i32) {
    %c0_i32 = arith.constant 0 : i32
    %c0_i32_0 = arith.constant 0 : i32
    %c0_i32_1 = arith.constant 0 : i32
    return %c0_i32, %c0_i32_0 : i32, i32
  }
  func.func @transform_1(%arg0: i32) -> (i32, i32) {
    %c0_i32 = arith.constant 0 : i32
    %c0_i32_0 = arith.constant 0 : i32
    %c0_i32_1 = arith.constant 0 : i32
    return %c0_i32, %c0_i32_0 : i32, i32
  }
  func.func @transform_2(%arg0: i32) -> (i32, i32, i32) {
    %c0_i32 = arith.constant 0 : i32
    %c0_i32_0 = arith.constant 0 : i32
    %c0_i32_1 = arith.constant 0 : i32
    %c0_i32_2 = arith.constant 0 : i32
    return %c0_i32, %c0_i32_0, %c0_i32_1 : i32, i32, i32
  }
  func.func @transform_3(%arg0: i32) -> (i32, i32, i32) {
    %c0_i32 = arith.constant 0 : i32
    %c0_i32_0 = arith.constant 0 : i32
    %c0_i32_1 = arith.constant 0 : i32
    return %arg0, %c0_i32, %c0_i32_0 : i32, i32, i32
  }
  func.func @transform_4(%arg0: i32) -> (i32, i32, i32) {
    %c0_i32 = arith.constant 0 : i32
    %c0_i32_0 = arith.constant 0 : i32
    %c0_i32_1 = arith.constant 0 : i32
    return %arg0, %c0_i32, %c0_i32_0 : i32, i32, i32
  }
  func.func @transform_5(%arg0: i32) -> (i32, i32, i32) {
    %c0_i32 = arith.constant 0 : i32
    %c0_i32_0 = arith.constant 0 : i32
    %c0_i32_1 = arith.constant 0 : i32
    return %arg0, %c0_i32, %c0_i32_0 : i32, i32, i32
  }
  func.func @transform_6(%arg0: i32) -> (i32, i32, i32) {
    %c0_i32 = arith.constant 0 : i32
    %c0_i32_0 = arith.constant 0 : i32
    %c0_i32_1 = arith.constant 0 : i32
    return %arg0, %c0_i32, %c0_i32_0 : i32, i32, i32
  }
  func.func @transform_7(%arg0: i32) -> (i32, i32, i32) {
    %c0_i32 = arith.constant 0 : i32
    %c0_i32_0 = arith.constant 0 : i32
    %c0_i32_1 = arith.constant 0 : i32
    return %arg0, %c0_i32, %c0_i32_0 : i32, i32, i32
  }
  func.func @transform_8(%arg0: i32) -> (i32, i32, i32) {
    %c0_i32 = arith.constant 0 : i32
    %c0_i32_0 = arith.constant 0 : i32
    %c0_i32_1 = arith.constant 0 : i32
    return %arg0, %c0_i32, %c0_i32_0 : i32, i32, i32
  }
  func.func @transform_9(%arg0: i32) -> (i32, i32, i32) {
    %c0_i32 = arith.constant 0 : i32
    %c0_i32_0 = arith.constant 0 : i32
    %c0_i32_1 = arith.constant 0 : i32
    return %arg0, %c0_i32, %c0_i32_0 : i32, i32, i32
  }
  func.func @transform_10(%arg0: i32) -> (i32, i32, i32) {
    %c0_i32 = arith.constant 0 : i32
    %c0_i32_0 = arith.constant 0 : i32
    %c0_i32_1 = arith.constant 0 : i32
    return %arg0, %c0_i32, %c0_i32_0 : i32, i32, i32
  }
  func.func @transform_11(%arg0: i32) -> (i32, i32, i32) {
    %c0_i32 = arith.constant 0 : i32
    %c0_i32_0 = arith.constant 0 : i32
    %c0_i32_1 = arith.constant 0 : i32
    return %arg0, %c0_i32, %c0_i32_0 : i32, i32, i32
  }
  func.func @transform_12(%arg0: i32) -> (i32, i32, i32) {
    %c0_i32 = arith.constant 0 : i32
    %c0_i32_0 = arith.constant 0 : i32
    %c0_i32_1 = arith.constant 0 : i32
    return %arg0, %c0_i32, %c0_i32_0 : i32, i32, i32
  }
  func.func @transform_13(%arg0: i32) -> (i32, i32, i32) {
    %c0_i32 = arith.constant 0 : i32
    %c0_i32_0 = arith.constant 0 : i32
    %c0_i32_1 = arith.constant 0 : i32
    return %arg0, %c0_i32, %c0_i32_0 : i32, i32, i32
  }
  func.func @transform_14(%arg0: i32) -> (i32, i32, i32) {
    %c0_i32 = arith.constant 0 : i32
    %c0_i32_0 = arith.constant 0 : i32
    %c0_i32_1 = arith.constant 0 : i32
    return %arg0, %c0_i32, %c0_i32_0 : i32, i32, i32
  }
  func.func @transform_15(%arg0: i32) -> (i32, i32, i32) {
    %c0_i32 = arith.constant 0 : i32
    %c0_i32_0 = arith.constant 0 : i32
    %c0_i32_1 = arith.constant 0 : i32
    return %arg0, %c0_i32, %c0_i32_0 : i32, i32, i32
  }
  func.func @transform_16(%arg0: i32) -> (i32, i32, i32) {
    %c0_i32 = arith.constant 0 : i32
    %c0_i32_0 = arith.constant 0 : i32
    %c0_i32_1 = arith.constant 0 : i32
    return %arg0, %c0_i32, %c0_i32_0 : i32, i32, i32
  }
  func.func @transform_17(%arg0: i32) -> (i32, i32, i32) {
    %c0_i32 = arith.constant 0 : i32
    %c0_i32_0 = arith.constant 0 : i32
    %c0_i32_1 = arith.constant 0 : i32
    return %arg0, %c0_i32, %c0_i32_0 : i32, i32, i32
  }
  func.func @transform_18(%arg0: i32) -> (i32, i32, i32) {
    %c0_i32 = arith.constant 0 : i32
    %c0_i32_0 = arith.constant 0 : i32
    %c0_i32_1 = arith.constant 0 : i32
    return %arg0, %c0_i32, %c0_i32_0 : i32, i32, i32
  }
  func.func @transform_19(%arg0: i32) -> (i32, i32, i32) {
    %c0_i32 = arith.constant 0 : i32
    %c0_i32_0 = arith.constant 0 : i32
    %c0_i32_1 = arith.constant 0 : i32
    return %arg0, %c0_i32, %c0_i32_0 : i32, i32, i32
  }
  func.func @transform_20(%arg0: i32) -> (i32, i32, i32) {
    %c0_i32 = arith.constant 0 : i32
    %c0_i32_0 = arith.constant 0 : i32
    %c0_i32_1 = arith.constant 0 : i32
    return %arg0, %c0_i32, %c0_i32_0 : i32, i32, i32
  }
  func.func @transform_21(%arg0: i32) -> (i32, i32, i32) {
    %c0_i32 = arith.constant 0 : i32
    %c0_i32_0 = arith.constant 0 : i32
    %c0_i32_1 = arith.constant 0 : i32
    return %arg0, %c0_i32, %c0_i32_0 : i32, i32, i32
  }
  func.func @transform_22(%arg0: i32) -> (i32, i32, i32) {
    %c0_i32 = arith.constant 0 : i32
    %c0_i32_0 = arith.constant 0 : i32
    %c0_i32_1 = arith.constant 0 : i32
    return %arg0, %c0_i32, %c0_i32_0 : i32, i32, i32
  }
  func.func @transform_23(%arg0: i32) -> (i32, i32) {
    %c0_i32 = arith.constant 0 : i32
    %c0_i32_0 = arith.constant 0 : i32
    %c0_i32_1 = arith.constant 0 : i32
    return %c0_i32, %c0_i32_0 : i32, i32
  }
}

module attributes {stable_mosaic.version = 11 : i64} {
  func.func @_heads_kernel(%arg0: i32, %arg1: memref<16x128xf32, #tpu.memory_space<vmem>>, %arg2: memref<16x3xf32, #tpu.memory_space<vmem>>, %arg3: memref<3x64xbf16, #tpu.memory_space<vmem>>, %arg4: memref<1x64xf32, #tpu.memory_space<vmem>>, %arg5: memref<128x64xbf16, #tpu.memory_space<vmem>>, %arg6: memref<1x64xf32, #tpu.memory_space<vmem>>, %arg7: memref<128x256xbf16, #tpu.memory_space<vmem>>, %arg8: memref<1x256xf32, #tpu.memory_space<vmem>>, %arg9: memref<256x128xbf16, #tpu.memory_space<vmem>>, %arg10: memref<1x128xf32, #tpu.memory_space<vmem>>, %arg11: memref<1024x128xbf16, #tpu.memory_space<vmem>>, %arg12: memref<1x128xf32, #tpu.memory_space<vmem>>, %arg13: memref<2x128xf32, #tpu.memory_space<vmem>>) attributes {dimension_semantics = [#tpu.dimension_semantics<arbitrary>], iteration_bounds = array<i64: 1>, scalar_prefetch = 0 : i64, scratch_operands = 0 : i64, tpu.core_type = #tpu.core_type<tc>, window_params = [{pipeline_mode = #tpu.pipeline_mode<synchronous>, transform_indices = @transform_0, window_bounds = array<i64: 16, 128>}, {pipeline_mode = #tpu.pipeline_mode<synchronous>, transform_indices = @transform_1, window_bounds = array<i64: 16, 3>}, {pipeline_mode = #tpu.pipeline_mode<synchronous>, transform_indices = @transform_2, window_bounds = array<i64: 3, 64>}, {pipeline_mode = #tpu.pipeline_mode<synchronous>, transform_indices = @transform_3, window_bounds = array<i64: 1, 64>}, {pipeline_mode = #tpu.pipeline_mode<synchronous>, transform_indices = @transform_4, window_bounds = array<i64: 128, 64>}, {pipeline_mode = #tpu.pipeline_mode<synchronous>, transform_indices = @transform_5, window_bounds = array<i64: 1, 64>}, {pipeline_mode = #tpu.pipeline_mode<synchronous>, transform_indices = @transform_6, window_bounds = array<i64: 128, 256>}, {pipeline_mode = #tpu.pipeline_mode<synchronous>, transform_indices = @transform_7, window_bounds = array<i64: 1, 256>}, {pipeline_mode = #tpu.pipeline_mode<synchronous>, transform_indices = @transform_8, window_bounds = array<i64: 256, 128>}, {pipeline_mode = #tpu.pipeline_mode<synchronous>, transform_indices = @transform_9, window_bounds = array<i64: 1, 128>}, {pipeline_mode = #tpu.pipeline_mode<synchronous>, transform_indices = @transform_10, window_bounds = array<i64: 1024, 128>}, {pipeline_mode = #tpu.pipeline_mode<synchronous>, transform_indices = @transform_11, window_bounds = array<i64: 1, 128>}, {pipeline_mode = #tpu.pipeline_mode<synchronous>, transform_indices = @transform_12, window_bounds = array<i64: 2, 128>}]} {
    %c0 = arith.constant 0 : index
    %c0_0 = arith.constant 0 : index
    %0 = vector.load %arg2[%c0, %c0_0] : memref<16x3xf32, #tpu.memory_space<vmem>>, vector<16x3xf32>
    %c0_1 = arith.constant 0 : index
    %c0_2 = arith.constant 0 : index
    %1 = vector.load %arg3[%c0_1, %c0_2] : memref<3x64xbf16, #tpu.memory_space<vmem>>, vector<3x64xbf16>
    %2 = arith.truncf %0 : vector<16x3xf32> to vector<16x3xbf16>
    %cst = arith.constant dense<0.000000e+00> : vector<16x64xf32>
    %3 = tpu.matmul %2, %1, %cst {dimension_numbers = #tpu.dot_dimension_numbers<[1], [0], [0], [1], [0, 0, 1, 1], [], []>} : vector<16x3xbf16>, vector<3x64xbf16>, vector<16x64xf32> -> vector<16x64xf32>
    %c0_3 = arith.constant 0 : index
    %c0_4 = arith.constant 0 : index
    %4 = vector.load %arg4[%c0_3, %c0_4] : memref<1x64xf32, #tpu.memory_space<vmem>>, vector<1x64xf32>
    %5 = vector.broadcast %4 : vector<1x64xf32> to vector<16x64xf32>
    %6 = arith.addf %3, %5 : vector<16x64xf32>
    %cst_5 = arith.constant 0.000000e+00 : f32
    %7 = vector.broadcast %cst_5 : f32 to vector<16x64xf32>
    %8 = arith.maximumf %6, %7 : vector<16x64xf32>
    %c0_6 = arith.constant 0 : index
    %c0_7 = arith.constant 0 : index
    %9 = vector.load %arg1[%c0_6, %c0_7] : memref<16x128xf32, #tpu.memory_space<vmem>>, vector<16x128xf32>
    %c0_8 = arith.constant 0 : index
    %c0_9 = arith.constant 0 : index
    %10 = vector.load %arg5[%c0_8, %c0_9] : memref<128x64xbf16, #tpu.memory_space<vmem>>, vector<128x64xbf16>
    %11 = arith.truncf %9 : vector<16x128xf32> to vector<16x128xbf16>
    %cst_10 = arith.constant dense<0.000000e+00> : vector<16x64xf32>
    %12 = tpu.matmul %11, %10, %cst_10 {dimension_numbers = #tpu.dot_dimension_numbers<[1], [0], [0], [1], [0, 0, 1, 1], [], []>} : vector<16x128xbf16>, vector<128x64xbf16>, vector<16x64xf32> -> vector<16x64xf32>
    %c0_11 = arith.constant 0 : index
    %c0_12 = arith.constant 0 : index
    %13 = vector.load %arg6[%c0_11, %c0_12] : memref<1x64xf32, #tpu.memory_space<vmem>>, vector<1x64xf32>
    %14 = vector.broadcast %13 : vector<1x64xf32> to vector<16x64xf32>
    %15 = arith.addf %12, %14 : vector<16x64xf32>
    %cst_13 = arith.constant 0.000000e+00 : f32
    %16 = vector.broadcast %cst_13 : f32 to vector<16x64xf32>
    %17 = arith.maximumf %15, %16 : vector<16x64xf32>
    %c0_14 = arith.constant 0 : index
    %c0_15 = arith.constant 0 : index
    %18 = vector.load %arg7[%c0_14, %c0_15] : memref<128x256xbf16, #tpu.memory_space<vmem>>, vector<128x256xbf16>
    %19 = vector.extract_strided_slice %18 {offsets = [0, 0], sizes = [64, 256], strides = [1, 1]} : vector<128x256xbf16> to vector<64x256xbf16>
    %20 = arith.truncf %8 : vector<16x64xf32> to vector<16x64xbf16>
    %cst_16 = arith.constant dense<0.000000e+00> : vector<16x256xf32>
    %21 = tpu.matmul %20, %19, %cst_16 {dimension_numbers = #tpu.dot_dimension_numbers<[1], [0], [0], [1], [0, 0, 1, 1], [], []>} : vector<16x64xbf16>, vector<64x256xbf16>, vector<16x256xf32> -> vector<16x256xf32>
    %22 = vector.extract_strided_slice %18 {offsets = [64, 0], sizes = [64, 256], strides = [1, 1]} : vector<128x256xbf16> to vector<64x256xbf16>
    %23 = arith.truncf %17 : vector<16x64xf32> to vector<16x64xbf16>
    %cst_17 = arith.constant dense<0.000000e+00> : vector<16x256xf32>
    %24 = tpu.matmul %23, %22, %cst_17 {dimension_numbers = #tpu.dot_dimension_numbers<[1], [0], [0], [1], [0, 0, 1, 1], [], []>} : vector<16x64xbf16>, vector<64x256xbf16>, vector<16x256xf32> -> vector<16x256xf32>
    %25 = arith.addf %21, %24 : vector<16x256xf32>
    %c0_18 = arith.constant 0 : index
    %c0_19 = arith.constant 0 : index
    %26 = vector.load %arg8[%c0_18, %c0_19] : memref<1x256xf32, #tpu.memory_space<vmem>>, vector<1x256xf32>
    %27 = vector.broadcast %26 : vector<1x256xf32> to vector<16x256xf32>
    %28 = arith.addf %25, %27 : vector<16x256xf32>
    %cst_20 = arith.constant 0.000000e+00 : f32
    %29 = vector.broadcast %cst_20 : f32 to vector<16x256xf32>
    %30 = arith.maximumf %28, %29 : vector<16x256xf32>
    %c0_21 = arith.constant 0 : index
    %c0_22 = arith.constant 0 : index
    %31 = vector.load %arg9[%c0_21, %c0_22] : memref<256x128xbf16, #tpu.memory_space<vmem>>, vector<256x128xbf16>
    %32 = arith.truncf %30 : vector<16x256xf32> to vector<16x256xbf16>
    %cst_23 = arith.constant dense<0.000000e+00> : vector<16x128xf32>
    %33 = tpu.matmul %32, %31, %cst_23 {dimension_numbers = #tpu.dot_dimension_numbers<[1], [0], [0], [1], [0, 0, 1, 1], [], []>} : vector<16x256xbf16>, vector<256x128xbf16>, vector<16x128xf32> -> vector<16x128xf32>
    %c0_24 = arith.constant 0 : index
    %c0_25 = arith.constant 0 : index
    %34 = vector.load %arg10[%c0_24, %c0_25] : memref<1x128xf32, #tpu.memory_space<vmem>>, vector<1x128xf32>
    %35 = vector.broadcast %34 : vector<1x128xf32> to vector<16x128xf32>
    %36 = arith.addf %33, %35 : vector<16x128xf32>
    %cst_26 = arith.constant 0.000000e+00 : f32
    %37 = vector.broadcast %cst_26 : f32 to vector<16x128xf32>
    %38 = arith.maximumf %36, %37 : vector<16x128xf32>
    %39 = vector.shape_cast %38 : vector<16x128xf32> to vector<2x8x128xf32>
    %cst_27 = arith.constant 0.000000e+00 : f32
    %40 = vector.broadcast %cst_27 : f32 to vector<2x128xf32>
    %41 = vector.extract_strided_slice %39 {offsets = [0, 0, 0], sizes = [2, 1, 128], strides = [1, 1, 1]} : vector<2x8x128xf32> to vector<2x1x128xf32>
    %42 = vector.shape_cast %41 : vector<2x1x128xf32> to vector<2x128xf32>
    %c0_28 = arith.constant 0 : index
    %c0_29 = arith.constant 0 : index
    %43 = vector.load %arg11[%c0_28, %c0_29] : memref<1024x128xbf16, #tpu.memory_space<vmem>>, vector<128x128xbf16>
    %44 = arith.truncf %42 : vector<2x128xf32> to vector<2x128xbf16>
    %cst_30 = arith.constant dense<0.000000e+00> : vector<2x128xf32>
    %45 = tpu.matmul %44, %43, %cst_30 {dimension_numbers = #tpu.dot_dimension_numbers<[1], [0], [0], [1], [0, 0, 1, 1], [], []>} : vector<2x128xbf16>, vector<128x128xbf16>, vector<2x128xf32> -> vector<2x128xf32>
    %46 = arith.addf %40, %45 : vector<2x128xf32>
    %47 = vector.extract_strided_slice %39 {offsets = [0, 1, 0], sizes = [2, 1, 128], strides = [1, 1, 1]} : vector<2x8x128xf32> to vector<2x1x128xf32>
    %48 = vector.shape_cast %47 : vector<2x1x128xf32> to vector<2x128xf32>
    %c128 = arith.constant 128 : index
    %c0_31 = arith.constant 0 : index
    %49 = vector.load %arg11[%c128, %c0_31] : memref<1024x128xbf16, #tpu.memory_space<vmem>>, vector<128x128xbf16>
    %50 = arith.truncf %48 : vector<2x128xf32> to vector<2x128xbf16>
    %cst_32 = arith.constant dense<0.000000e+00> : vector<2x128xf32>
    %51 = tpu.matmul %50, %49, %cst_32 {dimension_numbers = #tpu.dot_dimension_numbers<[1], [0], [0], [1], [0, 0, 1, 1], [], []>} : vector<2x128xbf16>, vector<128x128xbf16>, vector<2x128xf32> -> vector<2x128xf32>
    %52 = arith.addf %46, %51 : vector<2x128xf32>
    %53 = vector.extract_strided_slice %39 {offsets = [0, 2, 0], sizes = [2, 1, 128], strides = [1, 1, 1]} : vector<2x8x128xf32> to vector<2x1x128xf32>
    %54 = vector.shape_cast %53 : vector<2x1x128xf32> to vector<2x128xf32>
    %c256 = arith.constant 256 : index
    %c0_33 = arith.constant 0 : index
    %55 = vector.load %arg11[%c256, %c0_33] : memref<1024x128xbf16, #tpu.memory_space<vmem>>, vector<128x128xbf16>
    %56 = arith.truncf %54 : vector<2x128xf32> to vector<2x128xbf16>
    %cst_34 = arith.constant dense<0.000000e+00> : vector<2x128xf32>
    %57 = tpu.matmul %56, %55, %cst_34 {dimension_numbers = #tpu.dot_dimension_numbers<[1], [0], [0], [1], [0, 0, 1, 1], [], []>} : vector<2x128xbf16>, vector<128x128xbf16>, vector<2x128xf32> -> vector<2x128xf32>
    %58 = arith.addf %52, %57 : vector<2x128xf32>
    %59 = vector.extract_strided_slice %39 {offsets = [0, 3, 0], sizes = [2, 1, 128], strides = [1, 1, 1]} : vector<2x8x128xf32> to vector<2x1x128xf32>
    %60 = vector.shape_cast %59 : vector<2x1x128xf32> to vector<2x128xf32>
    %c384 = arith.constant 384 : index
    %c0_35 = arith.constant 0 : index
    %61 = vector.load %arg11[%c384, %c0_35] : memref<1024x128xbf16, #tpu.memory_space<vmem>>, vector<128x128xbf16>
    %62 = arith.truncf %60 : vector<2x128xf32> to vector<2x128xbf16>
    %cst_36 = arith.constant dense<0.000000e+00> : vector<2x128xf32>
    %63 = tpu.matmul %62, %61, %cst_36 {dimension_numbers = #tpu.dot_dimension_numbers<[1], [0], [0], [1], [0, 0, 1, 1], [], []>} : vector<2x128xbf16>, vector<128x128xbf16>, vector<2x128xf32> -> vector<2x128xf32>
    %64 = arith.addf %58, %63 : vector<2x128xf32>
    %65 = vector.extract_strided_slice %39 {offsets = [0, 4, 0], sizes = [2, 1, 128], strides = [1, 1, 1]} : vector<2x8x128xf32> to vector<2x1x128xf32>
    %66 = vector.shape_cast %65 : vector<2x1x128xf32> to vector<2x128xf32>
    %c512 = arith.constant 512 : index
    %c0_37 = arith.constant 0 : index
    %67 = vector.load %arg11[%c512, %c0_37] : memref<1024x128xbf16, #tpu.memory_space<vmem>>, vector<128x128xbf16>
    %68 = arith.truncf %66 : vector<2x128xf32> to vector<2x128xbf16>
    %cst_38 = arith.constant dense<0.000000e+00> : vector<2x128xf32>
    %69 = tpu.matmul %68, %67, %cst_38 {dimension_numbers = #tpu.dot_dimension_numbers<[1], [0], [0], [1], [0, 0, 1, 1], [], []>} : vector<2x128xbf16>, vector<128x128xbf16>, vector<2x128xf32> -> vector<2x128xf32>
    %70 = arith.addf %64, %69 : vector<2x128xf32>
    %71 = vector.extract_strided_slice %39 {offsets = [0, 5, 0], sizes = [2, 1, 128], strides = [1, 1, 1]} : vector<2x8x128xf32> to vector<2x1x128xf32>
    %72 = vector.shape_cast %71 : vector<2x1x128xf32> to vector<2x128xf32>
    %c640 = arith.constant 640 : index
    %c0_39 = arith.constant 0 : index
    %73 = vector.load %arg11[%c640, %c0_39] : memref<1024x128xbf16, #tpu.memory_space<vmem>>, vector<128x128xbf16>
    %74 = arith.truncf %72 : vector<2x128xf32> to vector<2x128xbf16>
    %cst_40 = arith.constant dense<0.000000e+00> : vector<2x128xf32>
    %75 = tpu.matmul %74, %73, %cst_40 {dimension_numbers = #tpu.dot_dimension_numbers<[1], [0], [0], [1], [0, 0, 1, 1], [], []>} : vector<2x128xbf16>, vector<128x128xbf16>, vector<2x128xf32> -> vector<2x128xf32>
    %76 = arith.addf %70, %75 : vector<2x128xf32>
    %77 = vector.extract_strided_slice %39 {offsets = [0, 6, 0], sizes = [2, 1, 128], strides = [1, 1, 1]} : vector<2x8x128xf32> to vector<2x1x128xf32>
    %78 = vector.shape_cast %77 : vector<2x1x128xf32> to vector<2x128xf32>
    %c768 = arith.constant 768 : index
    %c0_41 = arith.constant 0 : index
    %79 = vector.load %arg11[%c768, %c0_41] : memref<1024x128xbf16, #tpu.memory_space<vmem>>, vector<128x128xbf16>
    %80 = arith.truncf %78 : vector<2x128xf32> to vector<2x128xbf16>
    %cst_42 = arith.constant dense<0.000000e+00> : vector<2x128xf32>
    %81 = tpu.matmul %80, %79, %cst_42 {dimension_numbers = #tpu.dot_dimension_numbers<[1], [0], [0], [1], [0, 0, 1, 1], [], []>} : vector<2x128xbf16>, vector<128x128xbf16>, vector<2x128xf32> -> vector<2x128xf32>
    %82 = arith.addf %76, %81 : vector<2x128xf32>
    %83 = vector.extract_strided_slice %39 {offsets = [0, 7, 0], sizes = [2, 1, 128], strides = [1, 1, 1]} : vector<2x8x128xf32> to vector<2x1x128xf32>
    %84 = vector.shape_cast %83 : vector<2x1x128xf32> to vector<2x128xf32>
    %c896 = arith.constant 896 : index
    %c0_43 = arith.constant 0 : index
    %85 = vector.load %arg11[%c896, %c0_43] : memref<1024x128xbf16, #tpu.memory_space<vmem>>, vector<128x128xbf16>
    %86 = arith.truncf %84 : vector<2x128xf32> to vector<2x128xbf16>
    %cst_44 = arith.constant dense<0.000000e+00> : vector<2x128xf32>
    %87 = tpu.matmul %86, %85, %cst_44 {dimension_numbers = #tpu.dot_dimension_numbers<[1], [0], [0], [1], [0, 0, 1, 1], [], []>} : vector<2x128xbf16>, vector<128x128xbf16>, vector<2x128xf32> -> vector<2x128xf32>
    %88 = arith.addf %82, %87 : vector<2x128xf32>
    %c0_45 = arith.constant 0 : index
    %c0_46 = arith.constant 0 : index
    %89 = vector.load %arg12[%c0_45, %c0_46] : memref<1x128xf32, #tpu.memory_space<vmem>>, vector<1x128xf32>
    %90 = vector.broadcast %89 : vector<1x128xf32> to vector<2x128xf32>
    %91 = arith.addf %88, %90 : vector<2x128xf32>
    %92 = tpu.iota {dimensions = array<i32: 1>} : vector<2x128xi32>
    %c11_i32 = arith.constant 11 : i32
    %93 = vector.broadcast %c11_i32 : i32 to vector<2x128xi32>
    %94 = arith.cmpi slt, %92, %93 : vector<2x128xi32>
    %cst_47 = arith.constant -1.000000e+30 : f32
    %95 = vector.broadcast %cst_47 : f32 to vector<2x128xf32>
    %96 = arith.select %94, %91, %95 : vector<2x128xi1>, vector<2x128xf32>
    %cst_48 = arith.constant dense<0xFF800000> : vector<2xf32>
    %97 = vector.multi_reduction <maximumf>, %96, %cst_48 [1] : vector<2x128xf32> to vector<2xf32>
    %98 = vector.shape_cast %97 : vector<2xf32> to vector<2x1xf32>
    %99 = vector.broadcast %98 : vector<2x1xf32> to vector<2x128xf32>
    %100 = arith.subf %96, %99 : vector<2x128xf32>
    %101 = math.exp %100 : vector<2x128xf32>
    %cst_49 = arith.constant dense<0.000000e+00> : vector<2xf32>
    %102 = vector.multi_reduction <add>, %101, %cst_49 [1] : vector<2x128xf32> to vector<2xf32>
    %103 = vector.shape_cast %102 : vector<2xf32> to vector<2x1xf32>
    %104 = vector.broadcast %103 : vector<2x1xf32> to vector<2x128xf32>
    %105 = arith.divf %101, %104 : vector<2x128xf32>
    %c11_i32_50 = arith.constant 11 : i32
    %106 = vector.broadcast %c11_i32_50 : i32 to vector<2x128xi32>
    %107 = arith.cmpi eq, %92, %106 : vector<2x128xi32>
    %108 = arith.select %107, %91, %105 : vector<2x128xi1>, vector<2x128xf32>
    %c0_51 = arith.constant 0 : index
    %c0_52 = arith.constant 0 : index
    %109 = vector.load %arg13[%c0_51, %c0_52] : memref<2x128xf32, #tpu.memory_space<vmem>>, vector<2x128xf32>
    tpu.vector_store %arg13[%c0_51, %c0_52], %108 {strides = array<i32>} : memref<2x128xf32, #tpu.memory_space<vmem>>, vector<2x128xf32>,
    return
  }
  func.func @transform_0(%arg0: i32) -> (i32, i32) {
    %c0_i32 = arith.constant 0 : i32
    %c0_i32_0 = arith.constant 0 : i32
    %c0_i32_1 = arith.constant 0 : i32
    return %c0_i32, %c0_i32_0 : i32, i32
  }
  func.func @transform_1(%arg0: i32) -> (i32, i32) {
    %c0_i32 = arith.constant 0 : i32
    %c0_i32_0 = arith.constant 0 : i32
    %c0_i32_1 = arith.constant 0 : i32
    return %c0_i32, %c0_i32_0 : i32, i32
  }
  func.func @transform_2(%arg0: i32) -> (i32, i32) {
    %c0_i32 = arith.constant 0 : i32
    %c0_i32_0 = arith.constant 0 : i32
    %c0_i32_1 = arith.constant 0 : i32
    return %c0_i32, %c0_i32_0 : i32, i32
  }
  func.func @transform_3(%arg0: i32) -> (i32, i32) {
    %c0_i32 = arith.constant 0 : i32
    %c0_i32_0 = arith.constant 0 : i32
    %c0_i32_1 = arith.constant 0 : i32
    return %c0_i32, %c0_i32_0 : i32, i32
  }
  func.func @transform_4(%arg0: i32) -> (i32, i32) {
    %c0_i32 = arith.constant 0 : i32
    %c0_i32_0 = arith.constant 0 : i32
    %c0_i32_1 = arith.constant 0 : i32
    return %c0_i32, %c0_i32_0 : i32, i32
  }
  func.func @transform_5(%arg0: i32) -> (i32, i32) {
    %c0_i32 = arith.constant 0 : i32
    %c0_i32_0 = arith.constant 0 : i32
    %c0_i32_1 = arith.constant 0 : i32
    return %c0_i32, %c0_i32_0 : i32, i32
  }
  func.func @transform_6(%arg0: i32) -> (i32, i32) {
    %c0_i32 = arith.constant 0 : i32
    %c0_i32_0 = arith.constant 0 : i32
    %c0_i32_1 = arith.constant 0 : i32
    return %c0_i32, %c0_i32_0 : i32, i32
  }
  func.func @transform_7(%arg0: i32) -> (i32, i32) {
    %c0_i32 = arith.constant 0 : i32
    %c0_i32_0 = arith.constant 0 : i32
    %c0_i32_1 = arith.constant 0 : i32
    return %c0_i32, %c0_i32_0 : i32, i32
  }
  func.func @transform_8(%arg0: i32) -> (i32, i32) {
    %c0_i32 = arith.constant 0 : i32
    %c0_i32_0 = arith.constant 0 : i32
    %c0_i32_1 = arith.constant 0 : i32
    return %c0_i32, %c0_i32_0 : i32, i32
  }
  func.func @transform_9(%arg0: i32) -> (i32, i32) {
    %c0_i32 = arith.constant 0 : i32
    %c0_i32_0 = arith.constant 0 : i32
    %c0_i32_1 = arith.constant 0 : i32
    return %c0_i32, %c0_i32_0 : i32, i32
  }
  func.func @transform_10(%arg0: i32) -> (i32, i32) {
    %c0_i32 = arith.constant 0 : i32
    %c0_i32_0 = arith.constant 0 : i32
    %c0_i32_1 = arith.constant 0 : i32
    return %c0_i32, %c0_i32_0 : i32, i32
  }
  func.func @transform_11(%arg0: i32) -> (i32, i32) {
    %c0_i32 = arith.constant 0 : i32
    %c0_i32_0 = arith.constant 0 : i32
    %c0_i32_1 = arith.constant 0 : i32
    return %c0_i32, %c0_i32_0 : i32, i32
  }
  func.func @transform_12(%arg0: i32) -> (i32, i32) {
    %c0_i32 = arith.constant 0 : i32
    %c0_i32_0 = arith.constant 0 : i32
    %c0_i32_1 = arith.constant 0 : i32
    return %c0_i32, %c0_i32_0 : i32, i32
  }
}

</mosaic_0001>

<llo_original>
// kernel: forward.3
$region0: #{forward.3}
  #allocation0 [shape = 'u32[]', space=smem, size = 0x4, offset = 0x4, fixed_abs, tag = 'smem constant byte address 0x4 - core index']
  #allocation1 [shape = 'u32[144,128]{1,0:T(1,128)}', space=vmem, size = 0x12000, scoped, tag = 'internal scratch']
  #allocation2 [shape = 'f32[16,128]{1,0:T(8,128)}', space=vmem, size = 0x2000, scoped, tag = 'scratch operand']
  %s0 = inlined_call_operand.vmem [shape: f32[16,208], index: 0, kind: input, shape index: {}]
  %s1 = inlined_call_operand.hbm [shape: bf16[208,128], index: 1, kind: input, shape index: {}]
  %s2 = inlined_call_operand.hbm [shape: f32[1,128], index: 2, kind: input, shape index: {}]
  %s3 = inlined_call_operand.hbm [shape: f32[16,128], index: 3, kind: input, shape index: {}]
  %s4 = inlined_call_operand.hbm [shape: f32[12,1,128], index: 4, kind: input, shape index: {}]
  %s5 = inlined_call_operand.hbm [shape: f32[12,1,128], index: 5, kind: input, shape index: {}]
  %s6 = inlined_call_operand.hbm [shape: bf16[12,128,384], index: 6, kind: input, shape index: {}]
  %s7 = inlined_call_operand.hbm [shape: f32[12,1,384], index: 7, kind: input, shape index: {}]
  %s8 = inlined_call_operand.vmem [shape: bf16[12,128,128], index: 8, kind: input, shape index: {}]
  %s9 = inlined_call_operand.hbm [shape: f32[12,1,128], index: 9, kind: input, shape index: {}]
  %s10 = inlined_call_operand.hbm [shape: f32[12,1,128], index: 10, kind: input, shape index: {}]
  %s11 = inlined_call_operand.hbm [shape: f32[12,1,128], index: 11, kind: input, shape index: {}]
  %s12 = inlined_call_operand.vmem [shape: bf16[12,128,128], index: 12, kind: input, shape index: {}]
  %s13 = inlined_call_operand.hbm [shape: f32[12,1,128], index: 13, kind: input, shape index: {}]
  %s14 = inlined_call_operand.hbm [shape: bf16[12,128,128], index: 14, kind: input, shape index: {}]
  %s15 = inlined_call_operand.hbm [shape: f32[12,1,128], index: 15, kind: input, shape index: {}]
  %s16 = inlined_call_operand.vmem [shape: f32[16,128], index: 16, kind: output, shape index: {0}]
  %s17 = inlined_call_operand.vmem [shape: f32[16,128], index: 17, kind: output, shape index: {1}]
  %18 = xla_tuple %s16, %s17
  %s19 = sld [smem:[#allocation0]]
  $region165: #{forward.3} parent=0
    _
  %s21 = ssub.s32 1, %s19
  %s22 = scalar_select 0, %s21, %s19
  $region1: #{forward.3} parent=0
    #allocation3 [shape = 'u8[53248]{0}', space=vmem, size = 0xd000, scoped, tag = 'input window, operand 1, single buffered']
    #allocation4 [shape = 's32[2]{0}', space=sflag, size = 0x8, scoped, tag = 'scoped memory for forward.3']
    #allocation5 [shape = 'u8[512]{0}', space=vmem, size = 0x400, scoped, tag = 'input window, operand 2, single buffered']
    #allocation6 [shape = 's32[1]{0}', space=sflag, size = 0x4, scoped, tag = 'scoped memory for forward.3']
    #allocation7 [shape = 'u8[8192]{0}', space=vmem, size = 0x2000, scoped, tag = 'input window, operand 3, single buffered']
    #allocation8 [shape = 'u8[1024]{0}', space=vmem, size = 0x400, scoped, tag = 'input window, operand 4']
    #allocation9 [shape = 's32[2]{0}', space=sflag, size = 0x8, scoped, tag = 'scoped memory for forward.3']
    #allocation10 [shape = 'u8[1024]{0}', space=vmem, size = 0x400, scoped, tag = 'input window, operand 5']
    #allocation11 [shape = 'u8[196608]{0}', space=vmem, size = 0x30000, scoped, tag = 'input window, operand 6']
    #allocation12 [shape = 's32[2]{0}', space=sflag, size = 0x8, scoped, tag = 'scoped memory for forward.3']
    #allocation13 [shape = 'u8[3072]{0}', space=vmem, size = 0xc00, scoped, tag = 'input window, operand 7']
    #allocation14 [shape = 'u8[1024]{0}', space=vmem, size = 0x400, scoped, tag = 'input window, operand 9']
    #allocation15 [shape = 's32[2]{0}', space=sflag, size = 0x8, scoped, tag = 'scoped memory for forward.3']
    #allocation16 [shape = 'u8[1024]{0}', space=vmem, size = 0x400, scoped, tag = 'input window, operand 10']
    #allocation17 [shape = 'u8[1024]{0}', space=vmem, size = 0x400, scoped, tag = 'input window, operand 11']
    #allocation18 [shape = 's32[2]{0}', space=sflag, size = 0x8, scoped, tag = 'scoped memory for forward.3']
    #allocation19 [shape = 'u8[1024]{0}', space=vmem, size = 0x400, scoped, tag = 'input window, operand 13']
    #allocation20 [shape = 'u8[65536]{0}', space=vmem, size = 0x10000, scoped, tag = 'input window, operand 14']
    #allocation21 [shape = 's32[2]{0}', space=sflag, size = 0x8, scoped, tag = 'scoped memory for forward.3']
    #allocation22 [shape = 'u8[1024]{0}', space=vmem, size = 0x400, scoped, tag = 'input window, operand 15']
    %23 = vsyncpa [#allocation4], 0
    %24 = vsyncpa [#allocation6], 0
    %25 = vsyncpa [#allocation9], 0
    %s26 = scalar_lea.sflag [#allocation9], 1
    %27 = vsyncpa %s26, 0
    %28 = vsyncpa [#allocation12], 0
    %s29 = scalar_lea.sflag [#allocation12], 1
    %30 = vsyncpa %s29, 0
    %31 = vsyncpa [#allocation15], 0
    %s32 = scalar_lea.sflag [#allocation15], 1
    %33 = vsyncpa %s32, 0
    %34 = vsyncpa [#allocation18], 0
    %s35 = scalar_lea.sflag [#allocation18], 1
    %36 = vsyncpa %s35, 0
    %37 = vsyncpa [#allocation21], 0
    %s38 = scalar_lea.sflag [#allocation21], 1
    %39 = vsyncpa %s38, 0
    loop: start=0, step=1, limit=14
    $region2: #{forward.3} parent=1 // loop_pre_header
      _
    $region3: #{forward.3} parent=1 // loop_header
      %s41 = sphi 0, %s45
      %p42 = scmp.ge.s32.totalorder %s41, 14
      %s49 = sphi 0, %s49
      %s51 = sphi 0, %s49
      %s52 = sphi 0, %s51
      %s66 = sphi 0, %s52
      %s70 = sphi 0, %s70
      %s72 = sphi 0, %s70
      %s73 = sphi 0, %s72
      %s87 = sphi 0, %s73
      %s91 = sphi 0, %s91
      %s93 = sphi 0, %s91
      %s94 = sphi 0, %s93
      %s108 = sphi 0, %s94
      %s112 = sphi 0, %s112
      %s114 = sphi 0, %s112
      %s115 = sphi 0, %s114
      %s129 = sphi 0, %s115
      %s135 = sphi 0, %s137
      %s138 = sphi 0, %s135
      %s139 = sphi 0, %s138
      %s155 = sphi 0, %s139
      %s161 = sphi 0, %s163
      %s164 = sphi 0, %s161
      %s165 = sphi 0, %s164
      %s181 = sphi 0, %s165
      %s187 = sphi 0, %s189
      %s190 = sphi 0, %s187
      %s191 = sphi 0, %s190
      %s207 = sphi 0, %s191
      %s213 = sphi 0, %s215
      %s216 = sphi 0, %s213
      %s217 = sphi 0, %s216
      %s233 = sphi 0, %s217
      %s239 = sphi 0, %s241
      %s242 = sphi 0, %s239
      %s243 = sphi 0, %s242
      %s259 = sphi 0, %s243
      %s265 = sphi 0, %s267
      %s268 = sphi 0, %s265
      %s269 = sphi 0, %s268
      %s285 = sphi 0, %s269
      %s291 = sphi 0, %s293
      %s294 = sphi 0, %s291
      %s295 = sphi 0, %s294
      %s311 = sphi 0, %s295
      %s317 = sphi 0, %s319
      %s320 = sphi 0, %s317
      %s321 = sphi 0, %s320
      %s337 = sphi 0, %s321
      %s343 = sphi 0, %s345
      %s346 = sphi 0, %s343
      %s347 = sphi 0, %s346
      %s363 = sphi 0, %s347
      %s369 = sphi 0, %s371
      %s372 = sphi 0, %s369
      %s373 = sphi 0, %s372
      %s389 = sphi 0, %s373
      %s395 = sphi 0, %s397
      %s398 = sphi 0, %s395
      %s399 = sphi 0, %s398
      %s415 = sphi 0, %s399
      %s421 = sphi 0, %s423
      %s424 = sphi 0, %s421
      %s425 = sphi 0, %s424
      %s441 = sphi 0, %s425
      %s445 = sphi 0, %s445
      %s447 = sphi 0, %s445
      %s448 = sphi 0, %s447
      %s462 = sphi 0, %s448
      %s466 = sphi 0, %s466
      %s468 = sphi 0, %s466
      %s469 = sphi 0, %s468
      %s483 = sphi 0, %s469
    $region4: #{forward.3} parent=1 // loop_header_branch
      %44 = sbr.rel (%p42) target = $region8
    $region5: #{forward.3} parent=1 // loop_body
      %s46 = ssub.s32 %s41, 1
      %s47 = ssub.s32 %s41, 2
      %s48 = sadd.s32 %s41, 1
      %s50 = sadd.s32 %s49, 1
      %p53 = scmp.eq.s32.totalorder %s41, 11
      %p54 = scmp.ne.s32.totalorder %s49, %s51
      %p55 = scmp.eq.s32.totalorder %s41, 0
      %p56 = por %p54, %p55
      %p57 = scmp.ne.s32.totalorder %s49, %s51
      %p58 = scmp.eq.s32.totalorder %s46, 11
      %p59 = por %p57, %p58
      %p60 = scmp.ne.s32.totalorder %s51, %s52
      %p61 = scmp.eq.s32.totalorder %s46, 0
      %p62 = por %p60, %p61
      %p63 = scmp.ne.s32.totalorder %s51, %s52
      %p64 = scmp.eq.s32.totalorder %s47, 11
      %p65 = por %p63, %p64
      %p67 = scmp.ne.s32.totalorder %s52, %s66
      %p68 = scmp.eq.s32.totalorder %s47, 0
      %p69 = por %p67, %p68
      %s71 = sadd.s32 %s70, 1
      %p74 = scmp.eq.s32.totalorder %s41, 11
      %p75 = scmp.ne.s32.totalorder %s70, %s72
      %p76 = scmp.eq.s32.totalorder %s41, 0
      %p77 = por %p75, %p76
      %p78 = scmp.ne.s32.totalorder %s70, %s72
      %p79 = scmp.eq.s32.totalorder %s46, 11
      %p80 = por %p78, %p79
      %p81 = scmp.ne.s32.totalorder %s72, %s73
      %p82 = scmp.eq.s32.totalorder %s46, 0
      %p83 = por %p81, %p82
      %p84 = scmp.ne.s32.totalorder %s72, %s73
      %p85 = scmp.eq.s32.totalorder %s47, 11
      %p86 = por %p84, %p85
      %p88 = scmp.ne.s32.totalorder %s73, %s87
      %p89 = scmp.eq.s32.totalorder %s47, 0
      %p90 = por %p88, %p89
      %s92 = sadd.s32 %s91, 1
      %p95 = scmp.eq.s32.totalorder %s41, 11
      %p96 = scmp.ne.s32.totalorder %s91, %s93
      %p97 = scmp.eq.s32.totalorder %s41, 0
      %p98 = por %p96, %p97
      %p99 = scmp.ne.s32.totalorder %s91, %s93
      %p100 = scmp.eq.s32.totalorder %s46, 11
      %p101 = por %p99, %p100
      %p102 = scmp.ne.s32.totalorder %s93, %s94
      %p103 = scmp.eq.s32.totalorder %s46, 0
      %p104 = por %p102, %p103
      %p105 = scmp.ne.s32.totalorder %s93, %s94
      %p106 = scmp.eq.s32.totalorder %s47, 11
      %p107 = por %p105, %p106
      %p109 = scmp.ne.s32.totalorder %s94, %s108
      %p110 = scmp.eq.s32.totalorder %s47, 0
      %p111 = por %p109, %p110
      %s113 = sadd.s32 %s112, 1
      %p116 = scmp.eq.s32.totalorder %s41, 11
      %p117 = scmp.ne.s32.totalorder %s112, %s114
      %p118 = scmp.eq.s32.totalorder %s41, 0
      %p119 = por %p117, %p118
      %p120 = scmp.ne.s32.totalorder %s112, %s114
      %p121 = scmp.eq.s32.totalorder %s46, 11
      %p122 = por %p120, %p121
      %p123 = scmp.ne.s32.totalorder %s114, %s115
      %p124 = scmp.eq.s32.totalorder %s46, 0
      %p125 = por %p123, %p124
      %p126 = scmp.ne.s32.totalorder %s114, %s115
      %p127 = scmp.eq.s32.totalorder %s47, 11
      %p128 = por %p126, %p127
      %p130 = scmp.ne.s32.totalorder %s115, %s129
      %p131 = scmp.eq.s32.totalorder %s47, 0
      %p132 = por %p130, %p131
      %s133 = ssub.s32 %s41, %s48
      %p134 = scmp.eq.s32.totalorder %s133, 0
      %s136 = sadd.s32 %s135, 1
      %s137 = scalar_select %p134, %s135, %s136
      %p140 = pneg %p134
      %p141 = scmp.eq.s32.totalorder %s41, 11
      %p142 = por %p140, %p141
      %p143 = scmp.ne.s32.totalorder %s135, %s138
      %p144 = scmp.eq.s32.totalorder %s41, 0
      %p145 = por %p143, %p144
      %p146 = scmp.ne.s32.totalorder %s135, %s138
      %p147 = scmp.eq.s32.totalorder %s46, 11
      %p148 = por %p146, %p147
      %p149 = scmp.ne.s32.totalorder %s138, %s139
      %p150 = scmp.eq.s32.totalorder %s46, 0
      %p151 = por %p149, %p150
      %p152 = scmp.ne.s32.totalorder %s138, %s139
      %p153 = scmp.eq.s32.totalorder %s47, 11
      %p154 = por %p152, %p153
      %p156 = scmp.ne.s32.totalorder %s139, %s155
      %p157 = scmp.eq.s32.totalorder %s47, 0
      %p158 = por %p156, %p157
      %s159 = ssub.s32 %s41, %s48
      %p160 = scmp.eq.s32.totalorder %s159, 0
      %s162 = sadd.s32 %s161, 1
      %s163 = scalar_select %p160, %s161, %s162
      %p166 = pneg %p160
      %p167 = scmp.eq.s32.totalorder %s41, 11
      %p168 = por %p166, %p167
      %p169 = scmp.ne.s32.totalorder %s161, %s164
      %p170 = scmp.eq.s32.totalorder %s41, 0
      %p171 = por %p169, %p170
      %p172 = scmp.ne.s32.totalorder %s161, %s164
      %p173 = scmp.eq.s32.totalorder %s46, 11
      %p174 = por %p172, %p173
      %p175 = scmp.ne.s32.totalorder %s164, %s165
      %p176 = scmp.eq.s32.totalorder %s46, 0
      %p177 = por %p175, %p176
      %p178 = scmp.ne.s32.totalorder %s164, %s165
      %p179 = scmp.eq.s32.totalorder %s47, 11
      %p180 = por %p178, %p179
      %p182 = scmp.ne.s32.totalorder %s165, %s181
      %p183 = scmp.eq.s32.totalorder %s47, 0
      %p184 = por %p182, %p183
      %s185 = ssub.s32 %s41, %s48
      %p186 = scmp.eq.s32.totalorder %s185, 0
      %s188 = sadd.s32 %s187, 1
      %s189 = scalar_select %p186, %s187, %s188
      %p192 = pneg %p186
      %p193 = scmp.eq.s32.totalorder %s41, 11
      %p194 = por %p192, %p193
      %p195 = scmp.ne.s32.totalorder %s187, %s190
      %p196 = scmp.eq.s32.totalorder %s41, 0
      %p197 = por %p195, %p196
      %p198 = scmp.ne.s32.totalorder %s187, %s190
      %p199 = scmp.eq.s32.totalorder %s46, 11
      %p200 = por %p198, %p199
      %p201 = scmp.ne.s32.totalorder %s190, %s191
      %p202 = scmp.eq.s32.totalorder %s46, 0
      %p203 = por %p201, %p202
      %p204 = scmp.ne.s32.totalorder %s190, %s191
      %p205 = scmp.eq.s32.totalorder %s47, 11
      %p206 = por %p204, %p205
      %p208 = scmp.ne.s32.totalorder %s191, %s207
      %p209 = scmp.eq.s32.totalorder %s47, 0
      %p210 = por %p208, %p209
      %s211 = ssub.s32 %s41, %s48
      %p212 = scmp.eq.s32.totalorder %s211, 0
      %s214 = sadd.s32 %s213, 1
      %s215 = scalar_select %p212, %s213, %s214
      %p218 = pneg %p212
      %p219 = scmp.eq.s32.totalorder %s41, 11
      %p220 = por %p218, %p219
      %p221 = scmp.ne.s32.totalorder %s213, %s216
      %p222 = scmp.eq.s32.totalorder %s41, 0
      %p223 = por %p221, %p222
      %p224 = scmp.ne.s32.totalorder %s213, %s216
      %p225 = scmp.eq.s32.totalorder %s46, 11
      %p226 = por %p224, %p225
      %p227 = scmp.ne.s32.totalorder %s216, %s217
      %p228 = scmp.eq.s32.totalorder %s46, 0
      %p229 = por %p227, %p228
      %p230 = scmp.ne.s32.totalorder %s216, %s217
      %p231 = scmp.eq.s32.totalorder %s47, 11
      %p232 = por %p230, %p231
      %p234 = scmp.ne.s32.totalorder %s217, %s233
      %p235 = scmp.eq.s32.totalorder %s47, 0
      %p236 = por %p234, %p235
      %s237 = ssub.s32 %s41, %s48
      %p238 = scmp.eq.s32.totalorder %s237, 0
      %s240 = sadd.s32 %s239, 1
      %s241 = scalar_select %p238, %s239, %s240
      %p244 = pneg %p238
      %p245 = scmp.eq.s32.totalorder %s41, 11
      %p246 = por %p244, %p245
      %p247 = scmp.ne.s32.totalorder %s239, %s242
      %p248 = scmp.eq.s32.totalorder %s41, 0
      %p249 = por %p247, %p248
      %p250 = scmp.ne.s32.totalorder %s239, %s242
      %p251 = scmp.eq.s32.totalorder %s46, 11
      %p252 = por %p250, %p251
      %p253 = scmp.ne.s32.totalorder %s242, %s243
      %p254 = scmp.eq.s32.totalorder %s46, 0
      %p255 = por %p253, %p254
      %p256 = scmp.ne.s32.totalorder %s242, %s243
      %p257 = scmp.eq.s32.totalorder %s47, 11
      %p258 = por %p256, %p257
      %p260 = scmp.ne.s32.totalorder %s243, %s259
      %p261 = scmp.eq.s32.totalorder %s47, 0
      %p262 = por %p260, %p261
      %s263 = ssub.s32 %s41, %s48
      %p264 = scmp.eq.s32.totalorder %s263, 0
      %s266 = sadd.s32 %s265, 1
      %s267 = scalar_select %p264, %s265, %s266
      %p270 = pneg %p264
      %p271 = scmp.eq.s32.totalorder %s41, 11
      %p272 = por %p270, %p271
      %p273 = scmp.ne.s32.totalorder %s265, %s268
      %p274 = scmp.eq.s32.totalorder %s41, 0
      %p275 = por %p273, %p274
      %p276 = scmp.ne.s32.totalorder %s265, %s268
      %p277 = scmp.eq.s32.totalorder %s46, 11
      %p278 = por %p276, %p277
      %p279 = scmp.ne.s32.totalorder %s268, %s269
      %p280 = scmp.eq.s32.totalorder %s46, 0
      %p281 = por %p279, %p280
      %p282 = scmp.ne.s32.totalorder %s268, %s269
      %p283 = scmp.eq.s32.totalorder %s47, 11
      %p284 = por %p282, %p283
      %p286 = scmp.ne.s32.totalorder %s269, %s285
      %p287 = scmp.eq.s32.totalorder %s47, 0
      %p288 = por %p286, %p287
      %s289 = ssub.s32 %s41, %s48
      %p290 = scmp.eq.s32.totalorder %s289, 0
      %s292 = sadd.s32 %s291, 1
      %s293 = scalar_select %p290, %s291, %s292
      %p296 = pneg %p290
      %p297 = scmp.eq.s32.totalorder %s41, 11
      %p298 = por %p296, %p297
      %p299 = scmp.ne.s32.totalorder %s291, %s294
      %p300 = scmp.eq.s32.totalorder %s41, 0
      %p301 = por %p299, %p300
      %p302 = scmp.ne.s32.totalorder %s291, %s294
      %p303 = scmp.eq.s32.totalorder %s46, 11
      %p304 = por %p302, %p303
      %p305 = scmp.ne.s32.totalorder %s294, %s295
      %p306 = scmp.eq.s32.totalorder %s46, 0
      %p307 = por %p305, %p306
      %p308 = scmp.ne.s32.totalorder %s294, %s295
      %p309 = scmp.eq.s32.totalorder %s47, 11
      %p310 = por %p308, %p309
      %p312 = scmp.ne.s32.totalorder %s295, %s311
      %p313 = scmp.eq.s32.totalorder %s47, 0
      %p314 = por %p312, %p313
      %s315 = ssub.s32 %s41, %s48
      %p316 = scmp.eq.s32.totalorder %s315, 0
      %s318 = sadd.s32 %s317, 1
      %s319 = scalar_select %p316, %s317, %s318
      %p322 = pneg %p316
      %p323 = scmp.eq.s32.totalorder %s41, 11
      %p324 = por %p322, %p323
      %p325 = scmp.ne.s32.totalorder %s317, %s320
      %p326 = scmp.eq.s32.totalorder %s41, 0
      %p327 = por %p325, %p326
      %p328 = scmp.ne.s32.totalorder %s317, %s320
      %p329 = scmp.eq.s32.totalorder %s46, 11
      %p330 = por %p328, %p329
      %p331 = scmp.ne.s32.totalorder %s320, %s321
      %p332 = scmp.eq.s32.totalorder %s46, 0
      %p333 = por %p331, %p332
      %p334 = scmp.ne.s32.totalorder %s320, %s321
      %p335 = scmp.eq.s32.totalorder %s47, 11
      %p336 = por %p334, %p335
      %p338 = scmp.ne.s32.totalorder %s321, %s337
      %p339 = scmp.eq.s32.totalorder %s47, 0
      %p340 = por %p338, %p339
      %s341 = ssub.s32 %s41, %s48
      %p342 = scmp.eq.s32.totalorder %s341, 0
      %s344 = sadd.s32 %s343, 1
      %s345 = scalar_select %p342, %s343, %s344
      %p348 = pneg %p342
      %p349 = scmp.eq.s32.totalorder %s41, 11
      %p350 = por %p348, %p349
      %p351 = scmp.ne.s32.totalorder %s343, %s346
      %p352 = scmp.eq.s32.totalorder %s41, 0
      %p353 = por %p351, %p352
      %p354 = scmp.ne.s32.totalorder %s343, %s346
      %p355 = scmp.eq.s32.totalorder %s46, 11
      %p356 = por %p354, %p355
      %p357 = scmp.ne.s32.totalorder %s346, %s347
      %p358 = scmp.eq.s32.totalorder %s46, 0
      %p359 = por %p357, %p358
      %p360 = scmp.ne.s32.totalorder %s346, %s347
      %p361 = scmp.eq.s32.totalorder %s47, 11
      %p362 = por %p360, %p361
      %p364 = scmp.ne.s32.totalorder %s347, %s363
      %p365 = scmp.eq.s32.totalorder %s47, 0
      %p366 = por %p364, %p365
      %s367 = ssub.s32 %s41, %s48
      %p368 = scmp.eq.s32.totalorder %s367, 0
      %s370 = sadd.s32 %s369, 1
      %s371 = scalar_select %p368, %s369, %s370
      %p374 = pneg %p368
      %p375 = scmp.eq.s32.totalorder %s41, 11
      %p376 = por %p374, %p375
      %p377 = scmp.ne.s32.totalorder %s369, %s372
      %p378 = scmp.eq.s32.totalorder %s41, 0
      %p379 = por %p377, %p378
      %p380 = scmp.ne.s32.totalorder %s369, %s372
      %p381 = scmp.eq.s32.totalorder %s46, 11
      %p382 = por %p380, %p381
      %p383 = scmp.ne.s32.totalorder %s372, %s373
      %p384 = scmp.eq.s32.totalorder %s46, 0
      %p385 = por %p383, %p384
      %p386 = scmp.ne.s32.totalorder %s372, %s373
      %p387 = scmp.eq.s32.totalorder %s47, 11
      %p388 = por %p386, %p387
      %p390 = scmp.ne.s32.totalorder %s373, %s389
      %p391 = scmp.eq.s32.totalorder %s47, 0
      %p392 = por %p390, %p391
      %s393 = ssub.s32 %s41, %s48
      %p394 = scmp.eq.s32.totalorder %s393, 0
      %s396 = sadd.s32 %s395, 1
      %s397 = scalar_select %p394, %s395, %s396
      %p400 = pneg %p394
      %p401 = scmp.eq.s32.totalorder %s41, 11
      %p402 = por %p400, %p401
      %p403 = scmp.ne.s32.totalorder %s395, %s398
      %p404 = scmp.eq.s32.totalorder %s41, 0
      %p405 = por %p403, %p404
      %p406 = scmp.ne.s32.totalorder %s395, %s398
      %p407 = scmp.eq.s32.totalorder %s46, 11
      %p408 = por %p406, %p407
      %p409 = scmp.ne.s32.totalorder %s398, %s399
      %p410 = scmp.eq.s32.totalorder %s46, 0
      %p411 = por %p409, %p410
      %p412 = scmp.ne.s32.totalorder %s398, %s399
      %p413 = scmp.eq.s32.totalorder %s47, 11
      %p414 = por %p412, %p413
      %p416 = scmp.ne.s32.totalorder %s399, %s415
      %p417 = scmp.eq.s32.totalorder %s47, 0
      %p418 = por %p416, %p417
      %s419 = ssub.s32 %s41, %s48
      %p420 = scmp.eq.s32.totalorder %s419, 0
      %s422 = sadd.s32 %s421, 1
      %s423 = scalar_select %p420, %s421, %s422
      %p426 = pneg %p420
      %p427 = scmp.eq.s32.totalorder %s41, 11
      %p428 = por %p426, %p427
      %p429 = scmp.ne.s32.totalorder %s421, %s424
      %p430 = scmp.eq.s32.totalorder %s41, 0
      %p431 = por %p429, %p430
      %p432 = scmp.ne.s32.totalorder %s421, %s424
      %p433 = scmp.eq.s32.totalorder %s46, 11
      %p434 = por %p432, %p433
      %p435 = scmp.ne.s32.totalorder %s424, %s425
      %p436 = scmp.eq.s32.totalorder %s46, 0
      %p437 = por %p435, %p436
      %p438 = scmp.ne.s32.totalorder %s424, %s425
      %p439 = scmp.eq.s32.totalorder %s47, 11
      %p440 = por %p438, %p439
      %p442 = scmp.ne.s32.totalorder %s425, %s441
      %p443 = scmp.eq.s32.totalorder %s47, 0
      %p444 = por %p442, %p443
      %s446 = sadd.s32 %s445, 1
      %p449 = scmp.eq.s32.totalorder %s41, 11
      %p450 = scmp.ne.s32.totalorder %s445, %s447
      %p451 = scmp.eq.s32.totalorder %s41, 0
      %p452 = por %p450, %p451
      %p453 = scmp.ne.s32.totalorder %s445, %s447
      %p454 = scmp.eq.s32.totalorder %s46, 11
      %p455 = por %p453, %p454
      %p456 = scmp.ne.s32.totalorder %s447, %s448
      %p457 = scmp.eq.s32.totalorder %s46, 0
      %p458 = por %p456, %p457
      %p459 = scmp.ne.s32.totalorder %s447, %s448
      %p460 = scmp.eq.s32.totalorder %s47, 11
      %p461 = por %p459, %p460
      %p463 = scmp.ne.s32.totalorder %s448, %s462
      %p464 = scmp.eq.s32.totalorder %s47, 0
      %p465 = por %p463, %p464
      %s467 = sadd.s32 %s466, 1
      %p470 = scmp.eq.s32.totalorder %s41, 11
      %p471 = scmp.ne.s32.totalorder %s466, %s468
      %p472 = scmp.eq.s32.totalorder %s41, 0
      %p473 = por %p471, %p472
      %p474 = scmp.ne.s32.totalorder %s466, %s468
      %p475 = scmp.eq.s32.totalorder %s46, 11
      %p476 = por %p474, %p475
      %p477 = scmp.ne.s32.totalorder %s468, %s469
      %p478 = scmp.eq.s32.totalorder %s46, 0
      %p479 = por %p477, %p478
      %p480 = scmp.ne.s32.totalorder %s468, %s469
      %p481 = scmp.eq.s32.totalorder %s47, 11
      %p482 = por %p480, %p481
      %p484 = scmp.ne.s32.totalorder %s469, %s483
      %p485 = scmp.eq.s32.totalorder %s47, 0
      %p486 = por %p484, %p485
      %p487 = scmp.le.s32.totalorder 1, %s41
      %p488 = scmp.lt.s32.totalorder %s41, 13
      %p489 = pnand %p487, %p488
      %p490 = pneg %p489
      // Predicated region
      $region9: #{forward.3} parent=5 // pred_check
        _
      $region10: #{forward.3} parent=5 // pred_check_branch
        %492 = sbr.rel (%p489) target = $region12
      $region11: #{forward.3} parent=5 // pred_region
        %s493 = ssub.s32 %s41, 1
        // Predicated region
        $region13: #{forward.3} parent=11 // pred_check
          %p494 = pneg %p62
        $region14: #{forward.3} parent=11 // pred_check_branch
          %496 = sbr.rel (%p494) target = $region16
        $region15: #{forward.3} parent=11 // pred_region
          _
        $region16: #{forward.3} parent=11 // pred_fallthru
          _
        // Predicated region
        $region17: #{forward.3} parent=11 // pred_check
          %p497 = pneg %p83
        $region18: #{forward.3} parent=11 // pred_check_branch
          %499 = sbr.rel (%p497) target = $region20
        $region19: #{forward.3} parent=11 // pred_region
          %s501 = ssub.s32 1664, 1664
          %502 = vsyncadd [#allocation4], %s501
          %s503 = sshll.u32 [#allocation3], 4
          %s504 = int_to_ptr.vmem [resolvable:$true] %s503
          %509 = dma.hbm_to_vmem [thread:$0]  %s1, 1664, %s504, [#allocation4], 64, 64, 4
        $region20: #{forward.3} parent=11 // pred_fallthru
          _
        // Predicated region
        $region21: #{forward.3} parent=11 // pred_check
          %p510 = pneg %p104
        $region22: #{forward.3} parent=11 // pred_check_branch
          %512 = sbr.rel (%p510) target = $region24
        $region23: #{forward.3} parent=11 // pred_region
          %s514 = ssub.s32 16, 16
          %515 = vsyncadd [#allocation6], %s514
          %s517 = sshll.u32 [#allocation5], 4
          %s518 = int_to_ptr.vmem [resolvable:$true] %s517
          %520 = dma.hbm_to_vmem [thread:$0]  %s2, 16, %s518, [#allocation6]
        $region24: #{forward.3} parent=11 // pred_fallthru
          _
        // Predicated region
        $region25: #{forward.3} parent=11 // pred_check
          %p521 = pneg %p125
        $region26: #{forward.3} parent=11 // pred_check_branch
          %523 = sbr.rel (%p521) target = $region28
        $region27: #{forward.3} parent=11 // pred_region
          %s525 = ssub.s32 256, 256
          %526 = vsyncadd [#allocation6], %s525
          %s527 = sshll.u32 [#allocation7], 4
          %s528 = int_to_ptr.vmem [resolvable:$true] %s527
          %533 = dma.hbm_to_vmem [thread:$0]  %s3, 256, %s528, [#allocation6], 128, 128, 8
        $region28: #{forward.3} parent=11 // pred_fallthru
          _
      $region12: #{forward.3} parent=5 // pred_fallthru
        _
      %p534 = scmp.lt.s32.totalorder %s41, 12
      // Predicated region
      $region29: #{forward.3} parent=5 // pred_check
        %p535 = pneg %p534
      $region30: #{forward.3} parent=5 // pred_check_branch
        %537 = sbr.rel (%p535) target = $region32
      $region31: #{forward.3} parent=5 // pred_region
        // Predicated region
        $region33: #{forward.3} parent=31 // pred_check
          %p538 = pneg %p145
        $region34: #{forward.3} parent=31 // pred_check_branch
          %540 = sbr.rel (%p538) target = $region36
        $region35: #{forward.3} parent=31 // pred_region
          %s541 = sand.u32 %s41, 1
          %s542 = scalar_lea.sflag [#allocation9], %s541
          %s543 = sand.u32 %s135, 1
          %s544 = scalar_lea.vmem [#allocation8], %s543
          %s546 = ssub.s32 16, 16
          %547 = vsyncadd %s542, %s546
          %s548 = smul.addr %s41, 16
          %s549 = scalar_lea.hbm %s4, %s548
          %s551 = sshll.u32 %s544, 4
          %s552 = int_to_ptr.vmem [resolvable:$true] %s551
          %554 = dma.hbm_to_vmem [thread:$0]  %s549, 16, %s552, %s542
        $region36: #{forward.3} parent=31 // pred_fallthru
          _
        // Predicated region
        $region37: #{forward.3} parent=31 // pred_check
          %p555 = pneg %p171
        $region38: #{forward.3} parent=31 // pred_check_branch
          %557 = sbr.rel (%p555) target = $region40
        $region39: #{forward.3} parent=31 // pred_region
          %s558 = sand.u32 %s41, 1
          %s559 = scalar_lea.sflag [#allocation9], %s558
          %s560 = sand.u32 %s161, 1
          %s561 = scalar_lea.vmem [#allocation10], %s560
          %s563 = ssub.s32 16, 16
          %564 = vsyncadd %s559, %s563
          %s565 = smul.addr %s41, 16
          %s566 = scalar_lea.hbm %s5, %s565
          %s568 = sshll.u32 %s561, 4
          %s569 = int_to_ptr.vmem [resolvable:$true] %s568
          %571 = dma.hbm_to_vmem [thread:$0]  %s566, 16, %s569, %s559
        $region40: #{forward.3} parent=31 // pred_fallthru
          _
        // Predicated region
        $region41: #{forward.3} parent=31 // pred_check
          %p572 = pneg %p197
        $region42: #{forward.3} parent=31 // pred_check_branch
          %574 = sbr.rel (%p572) target = $region44
        $region43: #{forward.3} parent=31 // pred_region
          %s575 = sand.u32 %s41, 1
          %s576 = scalar_lea.sflag [#allocation12], %s575
          %s577 = sand.u32 %s187, 1
          %s578 = smul.addr %s577, 192
          %s579 = scalar_lea.vmem [#allocation11], %s578
          %s581 = ssub.s32 3072, 3072
          %582 = vsyncadd %s576, %s581
          %s583 = smul.addr %s41, 48
          %s584 = smul.addr %s583, 64
          %s585 = scalar_lea.hbm %s6, %s584
          %s586 = sshll.u32 %s579, 4
          %s587 = int_to_ptr.vmem [resolvable:$true] %s586
          %592 = dma.hbm_to_vmem [thread:$0]  %s585, 3072, %s587, %s576, 192, 192, 12
        $region44: #{forward.3} parent=31 // pred_fallthru
          _
        // Predicated region
        $region45: #{forward.3} parent=31 // pred_check
          %p593 = pneg %p223
        $region46: #{forward.3} parent=31 // pred_check_branch
          %595 = sbr.rel (%p593) target = $region48
        $region47: #{forward.3} parent=31 // pred_region
          %s596 = sand.u32 %s41, 1
          %s597 = scalar_lea.sflag [#allocation12], %s596
          %s598 = sand.u32 %s213, 1
          %s599 = smul.addr %s598, 3
          %s600 = scalar_lea.vmem [#allocation13], %s599
          %s602 = ssub.s32 48, 48
          %603 = vsyncadd %s597, %s602
          %s604 = smul.addr %s41, 3
          %s605 = smul.addr %s604, 16
          %s606 = scalar_lea.hbm %s7, %s605
          %s608 = sshll.u32 %s600, 4
          %s609 = int_to_ptr.vmem [resolvable:$true] %s608
          %611 = dma.hbm_to_vmem [thread:$0]  %s606, 48, %s609, %s597
        $region48: #{forward.3} parent=31 // pred_fallthru
          _
        // Predicated region
        $region49: #{forward.3} parent=31 // pred_check
          %p612 = pneg %p249
        $region50: #{forward.3} parent=31 // pred_check_branch
          %614 = sbr.rel (%p612) target = $region52
        $region51: #{forward.3} parent=31 // pred_region
          %p615 = scmp.lt.s32.totalorder %s41, 11
          %s616 = scalar_select %p615, %s41, 11
          %s617 = smul.addr %s616, 16
          %s618 = smul.addr %s617, 4
          %s619 = scalar_lea.vmem %s8, %s618
        $region52: #{forward.3} parent=31 // pred_fallthru
          _
        // Predicated region
        $region53: #{forward.3} parent=31 // pred_check
          %p620 = pneg %p275
        $region54: #{forward.3} parent=31 // pred_check_branch
          %622 = sbr.rel (%p620) target = $region56
        $region55: #{forward.3} parent=31 // pred_region
          %s623 = sand.u32 %s41, 1
          %s624 = scalar_lea.sflag [#allocation15], %s623
          %s625 = sand.u32 %s265, 1
          %s626 = scalar_lea.vmem [#allocation14], %s625
          %s628 = ssub.s32 16, 16
          %629 = vsyncadd %s624, %s628
          %s630 = smul.addr %s41, 16
          %s631 = scalar_lea.hbm %s9, %s630
          %s633 = sshll.u32 %s626, 4
          %s634 = int_to_ptr.vmem [resolvable:$true] %s633
          %636 = dma.hbm_to_vmem [thread:$0]  %s631, 16, %s634, %s624
        $region56: #{forward.3} parent=31 // pred_fallthru
          _
        // Predicated region
        $region57: #{forward.3} parent=31 // pred_check
          %p637 = pneg %p301
        $region58: #{forward.3} parent=31 // pred_check_branch
          %639 = sbr.rel (%p637) target = $region60
        $region59: #{forward.3} parent=31 // pred_region
          %s640 = sand.u32 %s41, 1
          %s641 = scalar_lea.sflag [#allocation15], %s640
          %s642 = sand.u32 %s291, 1
          %s643 = scalar_lea.vmem [#allocation16], %s642
          %s645 = ssub.s32 16, 16
          %646 = vsyncadd %s641, %s645
          %s647 = smul.addr %s41, 16
          %s648 = scalar_lea.hbm %s10, %s647
          %s650 = sshll.u32 %s643, 4
          %s651 = int_to_ptr.vmem [resolvable:$true] %s650
          %653 = dma.hbm_to_vmem [thread:$0]  %s648, 16, %s651, %s641
        $region60: #{forward.3} parent=31 // pred_fallthru
          _
        // Predicated region
        $region61: #{forward.3} parent=31 // pred_check
          %p654 = pneg %p327
        $region62: #{forward.3} parent=31 // pred_check_branch
          %656 = sbr.rel (%p654) target = $region64
        $region63: #{forward.3} parent=31 // pred_region
          %s657 = sand.u32 %s41, 1
          %s658 = scalar_lea.sflag [#allocation18], %s657
          %s659 = sand.u32 %s317, 1
          %s660 = scalar_lea.vmem [#allocation17], %s659
          %s662 = ssub.s32 16, 16
          %663 = vsyncadd %s658, %s662
          %s664 = smul.addr %s41, 16
          %s665 = scalar_lea.hbm %s11, %s664
          %s667 = sshll.u32 %s660, 4
          %s668 = int_to_ptr.vmem [resolvable:$true] %s667
          %670 = dma.hbm_to_vmem [thread:$0]  %s665, 16, %s668, %s658
        $region64: #{forward.3} parent=31 // pred_fallthru
          _
        // Predicated region
        $region65: #{forward.3} parent=31 // pred_check
          %p671 = pneg %p353
        $region66: #{forward.3} parent=31 // pred_check_branch
          %673 = sbr.rel (%p671) target = $region68
        $region67: #{forward.3} parent=31 // pred_region
          %p674 = scmp.lt.s32.totalorder %s41, 11
          %s675 = scalar_select %p674, %s41, 11
          %s676 = smul.addr %s675, 16
          %s677 = smul.addr %s676, 4
          %s678 = scalar_lea.vmem %s12, %s677
        $region68: #{forward.3} parent=31 // pred_fallthru
          _
        // Predicated region
        $region69: #{forward.3} parent=31 // pred_check
          %p679 = pneg %p379
        $region70: #{forward.3} parent=31 // pred_check_branch
          %681 = sbr.rel (%p679) target = $region72
        $region71: #{forward.3} parent=31 // pred_region
          %s682 = sand.u32 %s41, 1
          %s683 = scalar_lea.sflag [#allocation18], %s682
          %s684 = sand.u32 %s369, 1
          %s685 = scalar_lea.vmem [#allocation19], %s684
          %s687 = ssub.s32 16, 16
          %688 = vsyncadd %s683, %s687
          %s689 = smul.addr %s41, 16
          %s690 = scalar_lea.hbm %s13, %s689
          %s692 = sshll.u32 %s685, 4
          %s693 = int_to_ptr.vmem [resolvable:$true] %s692
          %695 = dma.hbm_to_vmem [thread:$0]  %s690, 16, %s693, %s683
        $region72: #{forward.3} parent=31 // pred_fallthru
          _
        // Predicated region
        $region73: #{forward.3} parent=31 // pred_check
          %p696 = pneg %p405
        $region74: #{forward.3} parent=31 // pred_check_branch
          %698 = sbr.rel (%p696) target = $region76
        $region75: #{forward.3} parent=31 // pred_region
          %s699 = sand.u32 %s41, 1
          %s700 = scalar_lea.sflag [#allocation21], %s699
          %s701 = sand.u32 %s395, 1
          %s702 = smul.addr %s701, 64
          %s703 = scalar_lea.vmem [#allocation20], %s702
          %s705 = ssub.s32 1024, 1024
          %706 = vsyncadd %s700, %s705
          %s707 = smul.addr %s41, 16
          %s708 = smul.addr %s707, 64
          %s709 = scalar_lea.hbm %s14, %s708
          %s710 = sshll.u32 %s703, 4
          %s711 = int_to_ptr.vmem [resolvable:$true] %s710
          %716 = dma.hbm_to_vmem [thread:$0]  %s709, 1024, %s711, %s700, 64, 64, 4
        $region76: #{forward.3} parent=31 // pred_fallthru
          _
        // Predicated region
        $region77: #{forward.3} parent=31 // pred_check
          %p717 = pneg %p431
        $region78: #{forward.3} parent=31 // pred_check_branch
          %719 = sbr.rel (%p717) target = $region80
        $region79: #{forward.3} parent=31 // pred_region
          %s720 = sand.u32 %s41, 1
          %s721 = scalar_lea.sflag [#allocation21], %s720
          %s722 = sand.u32 %s421, 1
          %s723 = scalar_lea.vmem [#allocation22], %s722
          %s725 = ssub.s32 16, 16
          %726 = vsyncadd %s721, %s725
          %s727 = smul.addr %s41, 16
          %s728 = scalar_lea.hbm %s15, %s727
          %s730 = sshll.u32 %s723, 4
          %s731 = int_to_ptr.vmem [resolvable:$true] %s730
          %733 = dma.hbm_to_vmem [thread:$0]  %s728, 16, %s731, %s721
        $region80: #{forward.3} parent=31 // pred_fallthru
          _
      $region32: #{forward.3} parent=5 // pred_fallthru
        _
      %p734 = scmp.le.s32.totalorder 1, %s41
      %p735 = scmp.lt.s32.totalorder %s41, 13
      %p736 = pnand %p734, %p735
      %p737 = pneg %p736
      // Predicated region
      $region81: #{forward.3} parent=5 // pred_check
        _
      $region82: #{forward.3} parent=5 // pred_check_branch
        %739 = sbr.rel (%p736) target = $region84
      $region83: #{forward.3} parent=5 // pred_region
        %s740 = ssub.s32 %s41, 1
        // Predicated region
        $region85: #{forward.3} parent=83 // pred_check
          %p741 = pneg %p83
        $region86: #{forward.3} parent=83 // pred_check_branch
          %743 = sbr.rel (%p741) target = $region88
        $region87: #{forward.3} parent=83 // pred_region
          %744 = dma.done [#allocation4], 1664
        $region88: #{forward.3} parent=83 // pred_fallthru
          _
        // Predicated region
        $region89: #{forward.3} parent=83 // pred_check
          %p745 = pneg %p104
        $region90: #{forward.3} parent=83 // pred_check_branch
          %747 = sbr.rel (%p745) target = $region92
        $region91: #{forward.3} parent=83 // pred_region
          %748 = dma.done [#allocation6], 16
        $region92: #{forward.3} parent=83 // pred_fallthru
          _
        // Predicated region
        $region93: #{forward.3} parent=83 // pred_check
          %p749 = pneg %p125
        $region94: #{forward.3} parent=83 // pred_check_branch
          %751 = sbr.rel (%p749) target = $region96
        $region95: #{forward.3} parent=83 // pred_region
          %752 = dma.done [#allocation6], 256
        $region96: #{forward.3} parent=83 // pred_fallthru
          _
        %s753 = sand.u32 %s46, 1
        %s754 = scalar_lea.sflag [#allocation9], %s753
        %s755 = sand.u32 %s138, 1
        %s756 = scalar_lea.vmem [#allocation8], %s755
        // Predicated region
        $region97: #{forward.3} parent=83 // pred_check
          %p757 = pneg %p151
        $region98: #{forward.3} parent=83 // pred_check_branch
          %759 = sbr.rel (%p757) target = $region100
        $region99: #{forward.3} parent=83 // pred_region
          %760 = dma.done %s754, 16
        $region100: #{forward.3} parent=83 // pred_fallthru
          _
        %s761 = sand.u32 %s46, 1
        %s762 = scalar_lea.sflag [#allocation9], %s761
        %s763 = sand.u32 %s164, 1
        %s764 = scalar_lea.vmem [#allocation10], %s763
        // Predicated region
        $region101: #{forward.3} parent=83 // pred_check
          %p765 = pneg %p177
        $region102: #{forward.3} parent=83 // pred_check_branch
          %767 = sbr.rel (%p765) target = $region104
        $region103: #{forward.3} parent=83 // pred_region
          %768 = dma.done %s762, 16
        $region104: #{forward.3} parent=83 // pred_fallthru
          _
        %s769 = sand.u32 %s46, 1
        %s770 = scalar_lea.sflag [#allocation12], %s769
        %s771 = sand.u32 %s190, 1
        %s772 = smul.addr %s771, 192
        %s773 = scalar_lea.vmem [#allocation11], %s772
        // Predicated region
        $region105: #{forward.3} parent=83 // pred_check
          %p774 = pneg %p203
        $region106: #{forward.3} parent=83 // pred_check_branch
          %776 = sbr.rel (%p774) target = $region108
        $region107: #{forward.3} parent=83 // pred_region
          %777 = dma.done %s770, 3072
        $region108: #{forward.3} parent=83 // pred_fallthru
          _
        %s778 = sand.u32 %s46, 1
        %s779 = scalar_lea.sflag [#allocation12], %s778
        %s780 = sand.u32 %s216, 1
        %s781 = smul.addr %s780, 3
        %s782 = scalar_lea.vmem [#allocation13], %s781
        // Predicated region
        $region109: #{forward.3} parent=83 // pred_check
          %p783 = pneg %p229
        $region110: #{forward.3} parent=83 // pred_check_branch
          %785 = sbr.rel (%p783) target = $region112
        $region111: #{forward.3} parent=83 // pred_region
          %786 = dma.done %s779, 48
        $region112: #{forward.3} parent=83 // pred_fallthru
          _
        %s787 = sand.u32 %s46, 1
        %s788 = scalar_lea.sflag [#allocation15], %s787
        %s789 = sand.u32 %s268, 1
        %s790 = scalar_lea.vmem [#allocation14], %s789
        // Predicated region
        $region113: #{forward.3} parent=83 // pred_check
          %p791 = pneg %p281
        $region114: #{forward.3} parent=83 // pred_check_branch
          %793 = sbr.rel (%p791) target = $region116
        $region115: #{forward.3} parent=83 // pred_region
          %794 = dma.done %s788, 16
        $region116: #{forward.3} parent=83 // pred_fallthru
          _
        %s795 = sand.u32 %s46, 1
        %s796 = scalar_lea.sflag [#allocation15], %s795
        %s797 = sand.u32 %s294, 1
        %s798 = scalar_lea.vmem [#allocation16], %s797
        // Predicated region
        $region117: #{forward.3} parent=83 // pred_check
          %p799 = pneg %p307
        $region118: #{forward.3} parent=83 // pred_check_branch
          %801 = sbr.rel (%p799) target = $region120
        $region119: #{forward.3} parent=83 // pred_region
          %802 = dma.done %s796, 16
        $region120: #{forward.3} parent=83 // pred_fallthru
          _
        %s803 = sand.u32 %s46, 1
        %s804 = scalar_lea.sflag [#allocation18], %s803
        %s805 = sand.u32 %s320, 1
        %s806 = scalar_lea.vmem [#allocation17], %s805
        // Predicated region
        $region121: #{forward.3} parent=83 // pred_check
          %p807 = pneg %p333
        $region122: #{forward.3} parent=83 // pred_check_branch
          %809 = sbr.rel (%p807) target = $region124
        $region123: #{forward.3} parent=83 // pred_region
          %810 = dma.done %s804, 16
        $region124: #{forward.3} parent=83 // pred_fallthru
          _
        %s811 = sand.u32 %s46, 1
        %s812 = scalar_lea.sflag [#allocation18], %s811
        %s813 = sand.u32 %s372, 1
        %s814 = scalar_lea.vmem [#allocation19], %s813
        // Predicated region
        $region125: #{forward.3} parent=83 // pred_check
          %p815 = pneg %p385
        $region126: #{forward.3} parent=83 // pred_check_branch
          %817 = sbr.rel (%p815) target = $region128
        $region127: #{forward.3} parent=83 // pred_region
          %818 = dma.done %s812, 16
        $region128: #{forward.3} parent=83 // pred_fallthru
          _
        %s819 = sand.u32 %s46, 1
        %s820 = scalar_lea.sflag [#allocation21], %s819
        %s821 = sand.u32 %s398, 1
        %s822 = smul.addr %s821, 64
        %s823 = scalar_lea.vmem [#allocation20], %s822
        // Predicated region
        $region129: #{forward.3} parent=83 // pred_check
          %p824 = pneg %p411
        $region130: #{forward.3} parent=83 // pred_check_branch
          %826 = sbr.rel (%p824) target = $region132
        $region131: #{forward.3} parent=83 // pred_region
          %827 = dma.done %s820, 1024
        $region132: #{forward.3} parent=83 // pred_fallthru
          _
        %s828 = sand.u32 %s46, 1
        %s829 = scalar_lea.sflag [#allocation21], %s828
        %s830 = sand.u32 %s424, 1
        %s831 = scalar_lea.vmem [#allocation22], %s830
        // Predicated region
        $region133: #{forward.3} parent=83 // pred_check
          %p832 = pneg %p437
        $region134: #{forward.3} parent=83 // pred_check_branch
          %834 = sbr.rel (%p832) target = $region136
        $region135: #{forward.3} parent=83 // pred_region
          %835 = dma.done %s829, 16
        $region136: #{forward.3} parent=83 // pred_fallthru
          _
        %p836 = pneg %p62
        %p837 = pneg %p59
        %p838 = pneg %p83
        %p839 = pneg %p80
        %p840 = pneg %p104
        %p841 = pneg %p101
        %p842 = pneg %p125
        %p843 = pneg %p122
        %s844 = sand.u32 %s46, 1
        %s845 = scalar_lea.sflag [#allocation9], %s844
        %s846 = sand.u32 %s138, 1
        %s847 = scalar_lea.vmem [#allocation8], %s846
        %p848 = pneg %p151
        %p849 = pneg %p148
        %s850 = sand.u32 %s46, 1
        %s851 = scalar_lea.sflag [#allocation9], %s850
        %s852 = sand.u32 %s164, 1
        %s853 = scalar_lea.vmem [#allocation10], %s852
        %p854 = pneg %p177
        %p855 = pneg %p174
        %s856 = sand.u32 %s46, 1
        %s857 = scalar_lea.sflag [#allocation12], %s856
        %s858 = sand.u32 %s190, 1
        %s859 = smul.addr %s858, 192
        %s860 = scalar_lea.vmem [#allocation11], %s859
        %p861 = pneg %p203
        %p862 = pneg %p200
        %s863 = sand.u32 %s46, 1
        %s864 = scalar_lea.sflag [#allocation12], %s863
        %s865 = sand.u32 %s216, 1
        %s866 = smul.addr %s865, 3
        %s867 = scalar_lea.vmem [#allocation13], %s866
        %p868 = pneg %p229
        %p869 = pneg %p226
        %p870 = scmp.lt.s32.totalorder %s46, 11
        %s871 = scalar_select %p870, %s46, 11
        %s872 = smul.addr %s871, 16
        %s873 = smul.addr %s872, 4
        %s874 = scalar_lea.vmem %s8, %s873
        %p875 = pneg %p255
        %p876 = pneg %p252
        %s877 = sand.u32 %s46, 1
        %s878 = scalar_lea.sflag [#allocation15], %s877
        %s879 = sand.u32 %s268, 1
        %s880 = scalar_lea.vmem [#allocation14], %s879
        %p881 = pneg %p281
        %p882 = pneg %p278
        %s883 = sand.u32 %s46, 1
        %s884 = scalar_lea.sflag [#allocation15], %s883
        %s885 = sand.u32 %s294, 1
        %s886 = scalar_lea.vmem [#allocation16], %s885
        %p887 = pneg %p307
        %p888 = pneg %p304
        %s889 = sand.u32 %s46, 1
        %s890 = scalar_lea.sflag [#allocation18], %s889
        %s891 = sand.u32 %s320, 1
        %s892 = scalar_lea.vmem [#allocation17], %s891
        %p893 = pneg %p333
        %p894 = pneg %p330
        %p895 = scmp.lt.s32.totalorder %s46, 11
        %s896 = scalar_select %p895, %s46, 11
        %s897 = smul.addr %s896, 16
        %s898 = smul.addr %s897, 4
        %s899 = scalar_lea.vmem %s12, %s898
        %p900 = pneg %p359
        %p901 = pneg %p356
        %s902 = sand.u32 %s46, 1
        %s903 = scalar_lea.sflag [#allocation18], %s902
        %s904 = sand.u32 %s372, 1
        %s905 = scalar_lea.vmem [#allocation19], %s904
        %p906 = pneg %p385
        %p907 = pneg %p382
        %s908 = sand.u32 %s46, 1
        %s909 = scalar_lea.sflag [#allocation21], %s908
        %s910 = sand.u32 %s398, 1
        %s911 = smul.addr %s910, 64
        %s912 = scalar_lea.vmem [#allocation20], %s911
        %p913 = pneg %p411
        %p914 = pneg %p408
        %s915 = sand.u32 %s46, 1
        %s916 = scalar_lea.sflag [#allocation21], %s915
        %s917 = sand.u32 %s424, 1
        %s918 = scalar_lea.vmem [#allocation22], %s917
        %p919 = pneg %p437
        %p920 = pneg %p434
        %p921 = pneg %p458
        %p922 = pneg %p455
        %p923 = pneg %p479
        %p924 = pneg %p476
        %p925 = scmp.lt.s32.totalorder %s46, 11
        %s926 = scalar_select %p925, %s46, 11
        %s927 = smul.addr %s926, 16
        %s928 = smul.addr %s927, 4
        %s929 = scalar_lea.vmem %s8, %s928
        %p930 = scmp.lt.s32.totalorder %s46, 11
        %s931 = scalar_select %p930, %s46, 11
        %s932 = smul.addr %s931, 16
        %s933 = smul.addr %s932, 4
        %s934 = scalar_lea.vmem %s12, %s933
        %p936 = scmp.eq.s32.totalorder %s46, 0
        // Predicated region
        $region137: #{forward.3} parent=83 // pred_check
          %p937 = pneg %p936
        $region138: #{forward.3} parent=83 // pred_check_branch
          %939 = sbr.rel (%p937) target = $region140
        $region139: #{forward.3} parent=83 // pred_region
          %v940 = vld [vmem:[%s0] sm:$0xff]
          %v941 = vld [vmem:[%s0 + $0x8] sm:$0xff]
          %v942 = vld [vmem:[%s0 + $0x10] sm:$0xff]
          %v943 = vld [vmem:[%s0 + $0x18] sm:$0xff]
          %v944 = vld [vmem:[#allocation3] sm:$0xf]
          %v945 = vld [vmem:[#allocation3 + $0x4] sm:$0xf]
          %v946 = vld [vmem:[#allocation3 + $0x8] sm:$0xf]
          %v947 = vld [vmem:[#allocation3 + $0xc] sm:$0xf]
          %v948 = vld [vmem:[#allocation3 + $0x10] sm:$0xf]
          %v949 = vld [vmem:[#allocation3 + $0x14] sm:$0xf]
          %v950 = vld [vmem:[#allocation3 + $0x18] sm:$0xf]
          %v951 = vld [vmem:[#allocation3 + $0x1c] sm:$0xf]
          %v952 = vld [vmem:[#allocation3 + $0x20] sm:$0xf]
          %v953 = vld [vmem:[#allocation3 + $0x24] sm:$0xf]
          %v954 = vld [vmem:[#allocation3 + $0x28] sm:$0xf]
          %v955 = vld [vmem:[#allocation3 + $0x2c] sm:$0xf]
          %v956 = vld [vmem:[#allocation3 + $0x30] sm:$0xf]
          %v957 = vld [vmem:[#allocation3 + $0x34] sm:$0xf]
          %v958 = vld [vmem:[#allocation3 + $0x38] sm:$0xf]
          %v959 = vld [vmem:[#allocation3 + $0x3c] sm:$0xf]
          %v960 = vld [vmem:[#allocation3 + $0x40] sm:$0xf]
          %v961 = vld [vmem:[#allocation3 + $0x44] sm:$0xf]
          %v962 = vld [vmem:[#allocation3 + $0x48] sm:$0xf]
          %v963 = vld [vmem:[#allocation3 + $0x4c] sm:$0xf]
          %v964 = vld [vmem:[#allocation3 + $0x50] sm:$0xf]
          %v965 = vld [vmem:[#allocation3 + $0x54] sm:$0xf]
          %v966 = vld [vmem:[#allocation3 + $0x58] sm:$0xf]
          %v967 = vld [vmem:[#allocation3 + $0x5c] sm:$0xf]
          %v968 = vld [vmem:[#allocation3 + $0x60] sm:$0xf]
          %v969 = vld [vmem:[#allocation3 + $0x64] sm:$0xf]
          %v970 = vpack.c.bf16 %v942, %v940
          %v971 = vpack.c.bf16 %v943, %v941
          %v972 = vld [vmem:[#allocation5] sm:$0x1]
          %v974 = vlaneseq
          %v975 = vshrl.u32 %v974, 7
          %v976 = vsub.s32 0, %v975
          %v977 = vrot.slane %v972, %v976
          %v1005 = vunpack.c.l.b16 %v944
          %v1006 = vunpack.c.l.b16 %v945
          %v1007 = vunpack.c.l.b16 %v946
          %v1008 = vunpack.c.l.b16 %v947
          %v1009 = vunpack.c.l.b16 %v948
          %v1010 = vunpack.c.l.b16 %v949
          %v1011 = vunpack.c.l.b16 %v950
          %v1012 = vunpack.c.l.b16 %v951
          %v1013 = vunpack.c.l.b16 %v952
          %v1014 = vunpack.c.l.b16 %v953
          %v1015 = vunpack.c.l.b16 %v954
          %v1016 = vunpack.c.l.b16 %v955
          %v1017 = vunpack.c.l.b16 %v956
          %v1018 = vunpack.c.l.b16 %v957
          %v1019 = vunpack.c.l.b16 %v958
          %v1020 = vunpack.c.l.b16 %v959
          %v1021 = vunpack.c.l.b16 %v960
          %v1022 = vunpack.c.l.b16 %v961
          %v1023 = vunpack.c.l.b16 %v962
          %v1024 = vunpack.c.l.b16 %v963
          %v1025 = vunpack.c.l.b16 %v964
          %v1026 = vunpack.c.l.b16 %v965
          %v1027 = vunpack.c.l.b16 %v966
          %v1028 = vunpack.c.l.b16 %v967
          %v1029 = vunpack.c.l.b16 %v968
          %v1030 = vunpack.c.l.b16 %v969
          %v1031 = vpack.c.b16 %v1006, %v1005
          %v1032 = vpack.c.b16 %v1008, %v1007
          %v1033 = vpack.c.b16 %v1010, %v1009
          %v1034 = vpack.c.b16 %v1012, %v1011
          %v1035 = vpack.c.b16 %v1014, %v1013
          %v1036 = vpack.c.b16 %v1016, %v1015
          %v1037 = vpack.c.b16 %v1018, %v1017
          %v1038 = vpack.c.b16 %v1020, %v1019
          %v1039 = vpack.c.b16 %v1022, %v1021
          %v1040 = vpack.c.b16 %v1024, %v1023
          %v1041 = vpack.c.b16 %v1026, %v1025
          %v1042 = vpack.c.b16 %v1028, %v1027
          %v1043 = vpack.c.b16 %v1030, %v1029
          %vm1057 = vcmask 654336
          %v1059 = vsel %vm1057, %v971, 0
          %1061 = vmatprep.subr.bf16.mxu0 0
          %1062 = vmatpush1.bf16.msra.mxu0 %v1038
          %1063 = vmatprep.subr.bf16.mxu0 0
          %1064 = vmatpush1.bf16.msra.mxu0 %v1037
          %1065 = vmatprep.subr.bf16.mxu0 0
          %1066 = vmatpush1.bf16.msra.mxu0 %v1036
          %1067 = vmatprep.subr.bf16.mxu0 0
          %1068 = vmatpush1.bf16.msra.mxu0 %v1035
          %1069 = vmatprep.subr.bf16.mxu0 0
          %1070 = vmatpush1.bf16.msra.mxu0 %v1034
          %1071 = vmatprep.subr.bf16.mxu0 0
          %1072 = vmatpush1.bf16.msra.mxu0 %v1033
          %1073 = vmatprep.subr.bf16.mxu0 0
          %1074 = vmatpush1.bf16.msra.mxu0 %v1032
          %1075 = vmatprep.subr.bf16.mxu0 0
          %1076 = vmatpush1.bf16.msra.mxu0 %v1031
          %1077 = vmatprep.subr.bf16.mxu0 0
          %1078 = vmatpush2.bf16.msra.mxu0 0
          %1079 = vmatprep.subr.bf16.mxu0 0
          %1080 = vmatpush2.bf16.msra.mxu0 0
          %1081 = vmatprep.subr.bf16.mxu0 0
          %1082 = vmatpush2.bf16.msra.mxu0 0
          %1083 = vmatprep.subr.bf16.mxu0 0
          %1084 = vmatpush2.bf16.msra.mxu0 %v1043
          %1085 = vmatprep.subr.bf16.mxu0 0
          %1086 = vmatpush2.bf16.msra.mxu0 %v1042
          %1087 = vmatprep.subr.bf16.mxu0 0
          %1088 = vmatpush2.bf16.msra.mxu0 %v1041
          %1089 = vmatprep.subr.bf16.mxu0 0
          %1090 = vmatpush2.bf16.msra.mxu0 %v1040
          %1091 = vmatprep.subr.bf16.mxu0 0
          %1092 = vmatpush2.bf16.msra.mxu0 %v1039
          %1093 = vmatprep.mubr.bf16.mxu0 %v1059
          %1094 = vmatmul.mubr.bf16.gmra.mxu0 %v970
          %v1095 = vpop.f32.mrf.mxu0
          %v1096 = vadd.f32 %v977, %v1095
          %v1097 = vpop.f32.mrf.mxu0
          %v1098 = vpop.f32.mrf.mxu0
          %v1099 = vadd.f32 %v977, %v1098
          %v1100 = vpop.f32.mrf.mxu0
          %1101 = vdwg.mxu0
          %v1102 = vld [vmem:[#allocation7] sm:$0xff]
          %v1103 = vld [vmem:[#allocation7 + $0x8] sm:$0xff]
          %v1104 = vadd.f32 %v1096, %v1102
          %v1105 = vadd.f32 %v1099, %v1103
          %1106 = vst [vmem:[%s16] sm:$0xff] %v1104
          %1107 = vst [vmem:[%s16 + $0x8] sm:$0xff] %v1105
          %1108 = vst [vmem:[#allocation2] sm:$0xff] %v1104
          %1109 = vst [vmem:[#allocation2 + $0x8] sm:$0xff] %v1105
        $region140: #{forward.3} parent=83 // pred_fallthru
          _
        %v1110 = vld [vmem:[#allocation2] sm:$0xff]
        %v1111 = vld [vmem:[#allocation2 + $0x8] sm:$0xff]
        %v1112 = vld [vmem:[%s756] sm:$0x1]
        %v1113 = vld [vmem:[%s764] sm:$0x1]
        %1114 = vadd.xlane.f32.xlu0 %v1110
        %v1115 = vpop.xlane.xlu0 %1114
        %1116 = vadd.xlane.f32.xlu0 %v1111
        %v1117 = vpop.xlane.xlu0 %1116
        %v1118 = vrcp.pop 128.0
        %v1119 = vmul.f32 %v1115, %v1118
        %v1120 = vmul.f32 %v1117, %v1118
        %v1121 = vsub.f32 %v1110, %v1119
        %v1122 = vsub.f32 %v1111, %v1120
        %v1123 = vmul.f32 %v1121, %v1121
        %v1124 = vmul.f32 %v1122, %v1122
        %1125 = vadd.xlane.f32.xlu0 %v1123
        %v1126 = vpop.xlane.xlu0 %1125
        %1127 = vadd.xlane.f32.xlu0 %v1124
        %v1128 = vpop.xlane.xlu0 %1127
        %v1129 = vmul.f32 %v1126, %v1118
        %v1130 = vmul.f32 %v1128, %v1118
        %v1131 = vadd.f32 %v1129, 1e-05
        %v1132 = vadd.f32 %v1130, 1e-05
        %v1133 = vrsqrt.pop %v1131
        %v1134 = vrsqrt.pop %v1132
        %v1135 = vmul.f32 %v1121, %v1133
        %v1136 = vmul.f32 %v1122, %v1134
        %v1138 = vlaneseq
        %v1139 = vshrl.u32 %v1138, 7
        %v1140 = vsub.s32 0, %v1139
        %v1141 = vrot.slane %v1112, %v1140
        %v1143 = vmul.f32 %v1135, %v1141
        %v1144 = vmul.f32 %v1136, %v1141
        %v1146 = vlaneseq
        %v1147 = vshrl.u32 %v1146, 7
        %v1148 = vsub.s32 0, %v1147
        %v1149 = vrot.slane %v1113, %v1148
        %v1151 = vadd.f32 %v1143, %v1149
        %v1152 = vadd.f32 %v1144, %v1149
        %v1153 = vld [vmem:[%s773] sm:$0xff]
        %v1154 = vld [vmem:[%s773 + $0x8] sm:$0xf]
        %v1155 = vld [vmem:[%s773 + $0xc] sm:$0xff]
        %v1156 = vld [vmem:[%s773 + $0x14] sm:$0xf]
        %v1157 = vld [vmem:[%s773 + $0x18] sm:$0xff]
        %v1158 = vld [vmem:[%s773 + $0x20] sm:$0xf]
        %v1159 = vld [vmem:[%s773 + $0x24] sm:$0xff]
        %v1160 = vld [vmem:[%s773 + $0x2c] sm:$0xf]
        %v1161 = vld [vmem:[%s773 + $0x30] sm:$0xff]
        %v1162 = vld [vmem:[%s773 + $0x38] sm:$0xf]
        %v1163 = vld [vmem:[%s773 + $0x3c] sm:$0xff]
        %v1164 = vld [vmem:[%s773 + $0x44] sm:$0xf]
        %v1165 = vld [vmem:[%s773 + $0x48] sm:$0xff]
        %v1166 = vld [vmem:[%s773 + $0x50] sm:$0xf]
        %v1167 = vld [vmem:[%s773 + $0x54] sm:$0xff]
        %v1168 = vld [vmem:[%s773 + $0x5c] sm:$0xf]
        %v1169 = vld [vmem:[%s773 + $0x60] sm:$0xff]
        %v1170 = vld [vmem:[%s773 + $0x68] sm:$0xf]
        %v1171 = vld [vmem:[%s773 + $0x6c] sm:$0xff]
        %v1172 = vld [vmem:[%s773 + $0x74] sm:$0xf]
        %v1173 = vld [vmem:[%s773 + $0x78] sm:$0xff]
        %v1174 = vld [vmem:[%s773 + $0x80] sm:$0xf]
        %v1175 = vld [vmem:[%s773 + $0x84] sm:$0xff]
        %v1176 = vld [vmem:[%s773 + $0x8c] sm:$0xf]
        %v1177 = vld [vmem:[%s773 + $0x90] sm:$0xff]
        %v1178 = vld [vmem:[%s773 + $0x98] sm:$0xf]
        %v1179 = vld [vmem:[%s773 + $0x9c] sm:$0xff]
        %v1180 = vld [vmem:[%s773 + $0xa4] sm:$0xf]
        %v1181 = vld [vmem:[%s773 + $0xa8] sm:$0xff]
        %v1182 = vld [vmem:[%s773 + $0xb0] sm:$0xf]
        %v1183 = vld [vmem:[%s773 + $0xb4] sm:$0xff]
        %v1184 = vld [vmem:[%s773 + $0xbc] sm:$0xf]
        %v1185 = vpack.c.bf16 %v1152, %v1151
        %v1186 = vld [vmem:[%s782] sm:$0x7]
        %v1188 = vlaneseq
        %v1189 = vshrl.u32 %v1188, 7
        %v1190 = vsub.s32 0, %v1189
        %v1191 = vrot.slane %v1186, %v1190
        %v1192 = vlaneseq
        %v1193 = vshrl.u32 %v1192, 7
        %v1194 = vsub.s32 1, %v1193
        %v1195 = vrot.slane %v1186, %v1194
        %v1196 = vlaneseq
        %v1197 = vshrl.u32 %v1196, 7
        %v1198 = vsub.s32 2, %v1197
        %v1199 = vrot.slane %v1186, %v1198
        %v1235 = vunpack.c.l.b16 %v1153
        %v1236 = vunpack.c.h.b16 %v1153
        %v1237 = vunpack.c.l.b16 %v1154
        %v1238 = vunpack.c.l.b16 %v1155
        %v1239 = vunpack.c.h.b16 %v1155
        %v1240 = vunpack.c.l.b16 %v1156
        %v1241 = vunpack.c.l.b16 %v1157
        %v1242 = vunpack.c.h.b16 %v1157
        %v1243 = vunpack.c.l.b16 %v1158
        %v1244 = vunpack.c.l.b16 %v1159
        %v1245 = vunpack.c.h.b16 %v1159
        %v1246 = vunpack.c.l.b16 %v1160
        %v1247 = vunpack.c.l.b16 %v1161
        %v1248 = vunpack.c.h.b16 %v1161
        %v1249 = vunpack.c.l.b16 %v1162
        %v1250 = vunpack.c.l.b16 %v1163
        %v1251 = vunpack.c.h.b16 %v1163
        %v1252 = vunpack.c.l.b16 %v1164
        %v1253 = vunpack.c.l.b16 %v1165
        %v1254 = vunpack.c.h.b16 %v1165
        %v1255 = vunpack.c.l.b16 %v1166
        %v1256 = vunpack.c.l.b16 %v1167
        %v1257 = vunpack.c.h.b16 %v1167
        %v1258 = vunpack.c.l.b16 %v1168
        %v1259 = vunpack.c.l.b16 %v1169
        %v1260 = vunpack.c.h.b16 %v1169
        %v1261 = vunpack.c.l.b16 %v1170
        %v1262 = vunpack.c.l.b16 %v1171
        %v1263 = vunpack.c.h.b16 %v1171
        %v1264 = vunpack.c.l.b16 %v1172
        %v1265 = vunpack.c.l.b16 %v1173
        %v1266 = vunpack.c.h.b16 %v1173
        %v1267 = vunpack.c.l.b16 %v1174
        %v1268 = vunpack.c.l.b16 %v1175
        %v1269 = vunpack.c.h.b16 %v1175
        %v1270 = vunpack.c.l.b16 %v1176
        %v1271 = vunpack.c.l.b16 %v1177
        %v1272 = vunpack.c.h.b16 %v1177
        %v1273 = vunpack.c.l.b16 %v1178
        %v1274 = vunpack.c.l.b16 %v1179
        %v1275 = vunpack.c.h.b16 %v1179
        %v1276 = vunpack.c.l.b16 %v1180
        %v1277 = vunpack.c.l.b16 %v1181
        %v1278 = vunpack.c.h.b16 %v1181
        %v1279 = vunpack.c.l.b16 %v1182
        %v1280 = vunpack.c.l.b16 %v1183
        %v1281 = vunpack.c.h.b16 %v1183
        %v1282 = vunpack.c.l.b16 %v1184
        %v1283 = vpack.c.b16 %v1238, %v1235
        %v1284 = vpack.c.b16 %v1239, %v1236
        %v1285 = vpack.c.b16 %v1240, %v1237
        %v1286 = vpack.c.b16 %v1244, %v1241
        %v1287 = vpack.c.b16 %v1245, %v1242
        %v1288 = vpack.c.b16 %v1246, %v1243
        %v1289 = vpack.c.b16 %v1250, %v1247
        %v1290 = vpack.c.b16 %v1251, %v1248
        %v1291 = vpack.c.b16 %v1252, %v1249
        %v1292 = vpack.c.b16 %v1256, %v1253
        %v1293 = vpack.c.b16 %v1257, %v1254
        %v1294 = vpack.c.b16 %v1258, %v1255
        %v1295 = vpack.c.b16 %v1262, %v1259
        %v1296 = vpack.c.b16 %v1263, %v1260
        %v1297 = vpack.c.b16 %v1264, %v1261
        %v1298 = vpack.c.b16 %v1268, %v1265
        %v1299 = vpack.c.b16 %v1269, %v1266
        %v1300 = vpack.c.b16 %v1270, %v1267
        %v1301 = vpack.c.b16 %v1274, %v1271
        %v1302 = vpack.c.b16 %v1275, %v1272
        %v1303 = vpack.c.b16 %v1276, %v1273
        %v1304 = vpack.c.b16 %v1280, %v1277
        %v1305 = vpack.c.b16 %v1281, %v1278
        %v1306 = vpack.c.b16 %v1282, %v1279
        %1331 = vmatprep.subr.bf16.mxu0 %v1305
        %1332 = vmatpush1.bf16.msra.mxu0 %v1304
        %1333 = vmatprep.subr.bf16.mxu0 %v1302
        %1334 = vmatpush1.bf16.msra.mxu0 %v1301
        %1335 = vmatprep.subr.bf16.mxu0 %v1299
        %1336 = vmatpush1.bf16.msra.mxu0 %v1298
        %1337 = vmatprep.subr.bf16.mxu0 %v1296
        %1338 = vmatpush1.bf16.msra.mxu0 %v1295
        %1339 = vmatprep.subr.bf16.mxu0 %v1293
        %1340 = vmatpush1.bf16.msra.mxu0 %v1292
        %1341 = vmatprep.subr.bf16.mxu0 %v1290
        %1342 = vmatpush1.bf16.msra.mxu0 %v1289
        %1343 = vmatprep.subr.bf16.mxu0 %v1287
        %1344 = vmatpush1.bf16.msra.mxu0 %v1286
        %1345 = vmatprep.subr.bf16.mxu0 %v1284
        %1346 = vmatpush1.bf16.msra.mxu0 %v1283
        %1347 = vmatprep.subr.bf16.mxu0 0
        %1348 = vmatpush2.bf16.msra.mxu0 0
        %1349 = vmatprep.subr.bf16.mxu0 0
        %1350 = vmatpush2.bf16.msra.mxu0 0
        %1351 = vmatprep.subr.bf16.mxu0 0
        %1352 = vmatpush2.bf16.msra.mxu0 0
        %1353 = vmatprep.subr.bf16.mxu0 0
        %1354 = vmatpush2.bf16.msra.mxu0 0
        %1355 = vmatprep.subr.bf16.mxu0 0
        %1356 = vmatpush2.bf16.msra.mxu0 0
        %1357 = vmatprep.subr.bf16.mxu0 0
        %1358 = vmatpush2.bf16.msra.mxu0 0
        %1359 = vmatprep.subr.bf16.mxu0 0
        %1360 = vmatpush2.bf16.msra.mxu0 0
        %1361 = vmatprep.subr.bf16.mxu0 0
        %1362 = vmatpush2.bf16.msra.mxu0 0
        %1363 = vmatprep.mubr.bf16.mxu0 0
        %1364 = vmatmul.mubr.bf16.gmra.mxu0 %v1185
        %v1365 = vpop.f32.mrf.mxu0
        %v1366 = vadd.f32 %v1191, %v1365
        %v1367 = vpop.f32.mrf.mxu0
        %v1368 = vadd.f32 %v1195, %v1367
        %v1369 = vpop.f32.mrf.mxu0
        %v1370 = vadd.f32 %v1191, %v1369
        %v1371 = vpop.f32.mrf.mxu0
        %v1372 = vadd.f32 %v1195, %v1371
        %1373 = vdwg.mxu0
        %1374 = vmatprep.subr.bf16.mxu0 0
        %1375 = vmatpush1.bf16.msra.mxu0 %v1306
        %1376 = vmatprep.subr.bf16.mxu0 0
        %1377 = vmatpush1.bf16.msra.mxu0 %v1303
        %1378 = vmatprep.subr.bf16.mxu0 0
        %1379 = vmatpush1.bf16.msra.mxu0 %v1300
        %1380 = vmatprep.subr.bf16.mxu0 0
        %1381 = vmatpush1.bf16.msra.mxu0 %v1297
        %1382 = vmatprep.subr.bf16.mxu0 0
        %1383 = vmatpush1.bf16.msra.mxu0 %v1294
        %1384 = vmatprep.subr.bf16.mxu0 0
        %1385 = vmatpush1.bf16.msra.mxu0 %v1291
        %1386 = vmatprep.subr.bf16.mxu0 0
        %1387 = vmatpush1.bf16.msra.mxu0 %v1288
        %1388 = vmatprep.subr.bf16.mxu0 0
        %1389 = vmatpush1.bf16.msra.mxu0 %v1285
        %1390 = vmatprep.subr.bf16.mxu0 0
        %1391 = vmatpush2.bf16.msra.mxu0 0
        %1392 = vmatprep.subr.bf16.mxu0 0
        %1393 = vmatpush2.bf16.msra.mxu0 0
        %1394 = vmatprep.subr.bf16.mxu0 0
        %1395 = vmatpush2.bf16.msra.mxu0 0
        %1396 = vmatprep.subr.bf16.mxu0 0
        %1397 = vmatpush2.bf16.msra.mxu0 0
        %1398 = vmatprep.subr.bf16.mxu0 0
        %1399 = vmatpush2.bf16.msra.mxu0 0
        %1400 = vmatprep.subr.bf16.mxu0 0
        %1401 = vmatpush2.bf16.msra.mxu0 0
        %1402 = vmatprep.subr.bf16.mxu0 0
        %1403 = vmatpush2.bf16.msra.mxu0 0
        %1404 = vmatprep.subr.bf16.mxu0 0
        %1405 = vmatpush2.bf16.msra.mxu0 0
        %1406 = vmatprep.mubr.bf16.mxu0 0
        %1407 = vmatmul.mubr.bf16.gmra.mxu0 %v1185
        %v1408 = vpop.f32.mrf.mxu0
        %v1409 = vadd.f32 %v1199, %v1408
        %v1410 = vpop.f32.mrf.mxu0
        %v1411 = vpop.f32.mrf.mxu0
        %v1412 = vadd.f32 %v1199, %v1411
        %v1413 = vpop.f32.mrf.mxu0
        %1414 = vdwg.mxu0
        %v1415 = vld [vmem:[%s929] sm:$0xf]
        %v1416 = vld [vmem:[%s929 + $0x4] sm:$0xf]
        %v1417 = vld [vmem:[%s929 + $0x8] sm:$0xf]
        %v1418 = vld [vmem:[%s929 + $0xc] sm:$0xf]
        %v1419 = vld [vmem:[%s929 + $0x10] sm:$0xf]
        %v1420 = vld [vmem:[%s929 + $0x14] sm:$0xf]
        %v1421 = vld [vmem:[%s929 + $0x18] sm:$0xf]
        %v1422 = vld [vmem:[%s929 + $0x1c] sm:$0xf]
        %v1423 = vld [vmem:[%s929 + $0x20] sm:$0xf]
        %v1424 = vld [vmem:[%s929 + $0x24] sm:$0xf]
        %v1425 = vld [vmem:[%s929 + $0x28] sm:$0xf]
        %v1426 = vld [vmem:[%s929 + $0x2c] sm:$0xf]
        %v1427 = vld [vmem:[%s929 + $0x30] sm:$0xf]
        %v1428 = vld [vmem:[%s929 + $0x34] sm:$0xf]
        %v1429 = vld [vmem:[%s929 + $0x38] sm:$0xf]
        %v1430 = vld [vmem:[%s929 + $0x3c] sm:$0xf]
        %v1431 = vpack.c.bf16 %v1366, %v1366
        %v1432 = vpack.c.bf16 %v1370, %v1370
        %v1433 = vpack.c.bf16 %v1368, %v1368
        %v1434 = vpack.c.bf16 %v1372, %v1372
        %vm1435 = vcmask 261120
        %v1437 = vsel %vm1435, %v1431, 0
        %v1440 = vsel %vm1435, %v1433, 0
        %1442 = vmatprep.subr.bf16.mxu0 0
        %1443 = vmatpush1.bf16.xpose.msra.mxu0 0
        %1444 = vmatprep.subr.bf16.mxu0 0
        %1445 = vmatpush1.bf16.xpose.msra.mxu0 0
        %1446 = vmatprep.subr.bf16.mxu0 0
        %1447 = vmatpush1.bf16.xpose.msra.mxu0 0
        %1448 = vmatprep.subr.bf16.mxu0 0
        %1449 = vmatpush1.bf16.xpose.msra.mxu0 0
        %1450 = vmatprep.subr.bf16.mxu0 0
        %1451 = vmatpush1.bf16.xpose.msra.mxu0 0
        %1452 = vmatprep.subr.bf16.mxu0 0
        %1453 = vmatpush1.bf16.xpose.msra.mxu0 0
        %1454 = vmatprep.subr.bf16.mxu0 0
        %1455 = vmatpush1.bf16.xpose.msra.mxu0 0
        %1456 = vmatprep.subr.bf16.mxu0 0
        %1457 = vmatpush1.bf16.xpose.msra.mxu0 %v1440
        %1458 = vmatprep.subr.bf16.mxu0 0
        %1459 = vmatpush2.bf16.xpose.msra.mxu0 0
        %1460 = vmatprep.subr.bf16.mxu0 0
        %1461 = vmatpush2.bf16.xpose.msra.mxu0 0
        %1462 = vmatprep.subr.bf16.mxu0 0
        %1463 = vmatpush2.bf16.xpose.msra.mxu0 0
        %1464 = vmatprep.subr.bf16.mxu0 0
        %1465 = vmatpush2.bf16.xpose.msra.mxu0 0
        %1466 = vmatprep.subr.bf16.mxu0 0
        %1467 = vmatpush2.bf16.xpose.msra.mxu0 0
        %1468 = vmatprep.subr.bf16.mxu0 0
        %1469 = vmatpush2.bf16.xpose.msra.mxu0 0
        %1470 = vmatprep.subr.bf16.mxu0 0
        %1471 = vmatpush2.bf16.xpose.msra.mxu0 0
        %1472 = vmatprep.subr.bf16.mxu0 0
        %1473 = vmatpush2.bf16.xpose.msra.mxu0 0
        %1474 = vmatprep.mubr.bf16.mxu0 0
        %1475 = vmatmul.mubr.bf16.gmra.mxu0 %v1437
        %v1476 = vpop.f32.mrf.mxu0
        %v1477 = vadd.f32 0.0, %v1476
        %v1478 = vpop.f32.mrf.mxu0
        %v1479 = vpop.f32.mrf.mxu0
        %v1480 = vpop.f32.mrf.mxu0
        %1481 = vdwg.mxu0
        %v1483 = vsel %vm1435, %v1432, 0
        %v1486 = vsel %vm1435, %v1434, 0
        %1488 = vmatprep.subr.bf16.mxu0 0
        %1489 = vmatpush1.bf16.xpose.msra.mxu0 0
        %1490 = vmatprep.subr.bf16.mxu0 0
        %1491 = vmatpush1.bf16.xpose.msra.mxu0 0
        %1492 = vmatprep.subr.bf16.mxu0 0
        %1493 = vmatpush1.bf16.xpose.msra.mxu0 0
        %1494 = vmatprep.subr.bf16.mxu0 0
        %1495 = vmatpush1.bf16.xpose.msra.mxu0 0
        %1496 = vmatprep.subr.bf16.mxu0 0
        %1497 = vmatpush1.bf16.xpose.msra.mxu0 0
        %1498 = vmatprep.subr.bf16.mxu0 0
        %1499 = vmatpush1.bf16.xpose.msra.mxu0 0
        %1500 = vmatprep.subr.bf16.mxu0 0
        %1501 = vmatpush1.bf16.xpose.msra.mxu0 0
        %1502 = vmatprep.subr.bf16.mxu0 0
        %1503 = vmatpush1.bf16.xpose.msra.mxu0 %v1486
        %1504 = vmatprep.subr.bf16.mxu0 0
        %1505 = vmatpush2.bf16.xpose.msra.mxu0 0
        %1506 = vmatprep.subr.bf16.mxu0 0
        %1507 = vmatpush2.bf16.xpose.msra.mxu0 0
        %1508 = vmatprep.subr.bf16.mxu0 0
        %1509 = vmatpush2.bf16.xpose.msra.mxu0 0
        %1510 = vmatprep.subr.bf16.mxu0 0
        %1511 = vmatpush2.bf16.xpose.msra.mxu0 0
        %1512 = vmatprep.subr.bf16.mxu0 0
        %1513 = vmatpush2.bf16.xpose.msra.mxu0 0
        %1514 = vmatprep.subr.bf16.mxu0 0
        %1515 = vmatpush2.bf16.xpose.msra.mxu0 0
        %1516 = vmatprep.subr.bf16.mxu0 0
        %1517 = vmatpush2.bf16.xpose.msra.mxu0 0
        %1518 = vmatprep.subr.bf16.mxu0 0
        %1519 = vmatpush2.bf16.xpose.msra.mxu0 0
        %1520 = vmatprep.mubr.bf16.mxu0 0
        %1521 = vmatmul.mubr.bf16.gmra.mxu0 %v1483
        %v1522 = vpop.f32.mrf.mxu0
        %v1523 = vadd.f32 0.0, %v1522
        %v1524 = vpop.f32.mrf.mxu0
        %v1525 = vpop.f32.mrf.mxu0
        %v1526 = vpop.f32.mrf.mxu0
        %1527 = vdwg.mxu0
        %v1528 = vmul.f32 %v1477, 0.17677669
        %v1529 = vmul.f32 %v1523, 0.17677669
        %vm1530 = vcmask 64512
        %v1531 = vsel %vm1530, %v1528, -inf
        %1532 = vmax.xlane.f32.xlu0 %v1531
        %v1533 = vpop.xlane.xlu0 %1532
        %v1534 = vsel %vm1530, %v1529, -inf
        %1535 = vmax.xlane.f32.xlu0 %v1534
        %v1536 = vpop.xlane.xlu0 %1535
        %v1537 = vsub.f32 %v1528, %v1533
        %v1538 = vsub.f32 %v1529, %v1536
        %v1539 = vmul.f32 %v1537, 1.442695
        %v1540 = vpow.pop %v1539
        %v1541 = vmul.f32 %v1538, 1.442695
        %v1542 = vpow.pop %v1541
        %v1543 = vsel %vm1530, %v1540, 0.0
        %1544 = vadd.xlane.f32.xlu0 %v1543
        %v1545 = vpop.xlane.xlu0 %1544
        %v1546 = vsel %vm1530, %v1542, 0.0
        %1547 = vadd.xlane.f32.xlu0 %v1546
        %v1548 = vpop.xlane.xlu0 %1547
        %v1549 = vrcp.pop %v1545
        %v1550 = vrcp.pop %v1548
        %v1551 = vmul.f32 %v1540, %v1549
        %v1552 = vmul.f32 %v1542, %v1550
        %v1553 = vpack.c.bf16 %v1551, %v1551
        %v1554 = vpack.c.bf16 %v1552, %v1552
        %v1555 = vpack.c.bf16 %v1409, %v1409
        %v1556 = vpack.c.bf16 %v1412, %v1412
        %v1558 = vsel %vm1530, %v1553, 0
        %vm1560 = vcmask 1043456
        %v1562 = vsel %vm1560, %v1555, 0
        %1564 = vmatprep.subr.bf16.mxu0 0
        %1565 = vmatpush1.bf16.msra.mxu0 0
        %1566 = vmatprep.subr.bf16.mxu0 0
        %1567 = vmatpush1.bf16.msra.mxu0 0
        %1568 = vmatprep.subr.bf16.mxu0 0
        %1569 = vmatpush1.bf16.msra.mxu0 0
        %1570 = vmatprep.subr.bf16.mxu0 0
        %1571 = vmatpush1.bf16.msra.mxu0 0
        %1572 = vmatprep.subr.bf16.mxu0 0
        %1573 = vmatpush1.bf16.msra.mxu0 0
        %1574 = vmatprep.subr.bf16.mxu0 0
        %1575 = vmatpush1.bf16.msra.mxu0 0
        %1576 = vmatprep.subr.bf16.mxu0 0
        %1577 = vmatpush1.bf16.msra.mxu0 0
        %1578 = vmatprep.subr.bf16.mxu0 0
        %1579 = vmatpush1.bf16.msra.mxu0 %v1562
        %1580 = vmatprep.subr.bf16.mxu0 0
        %1581 = vmatpush2.bf16.msra.mxu0 0
        %1582 = vmatprep.subr.bf16.mxu0 0
        %1583 = vmatpush2.bf16.msra.mxu0 0
        %1584 = vmatprep.subr.bf16.mxu0 0
        %1585 = vmatpush2.bf16.msra.mxu0 0
        %1586 = vmatprep.subr.bf16.mxu0 0
        %1587 = vmatpush2.bf16.msra.mxu0 0
        %1588 = vmatprep.subr.bf16.mxu0 0
        %1589 = vmatpush2.bf16.msra.mxu0 0
        %1590 = vmatprep.subr.bf16.mxu0 0
        %1591 = vmatpush2.bf16.msra.mxu0 0
        %1592 = vmatprep.subr.bf16.mxu0 0
        %1593 = vmatpush2.bf16.msra.mxu0 0
        %1594 = vmatprep.subr.bf16.mxu0 0
        %1595 = vmatpush2.bf16.msra.mxu0 0
        %1596 = vmatprep.mubr.bf16.mxu0 0
        %1597 = vmatmul.mubr.bf16.gmra.mxu0 %v1558
        %v1598 = vpop.f32.mrf.mxu0
        %v1599 = vadd.f32 0.0, %v1598
        %v1600 = vpop.f32.mrf.mxu0
        %v1601 = vpop.f32.mrf.mxu0
        %v1602 = vpop.f32.mrf.mxu0
        %1603 = vdwg.mxu0
        %v1605 = vsel %vm1530, %v1554, 0
        %v1608 = vsel %vm1560, %v1556, 0
        %1610 = vmatprep.subr.bf16.mxu0 0
        %1611 = vmatpush1.bf16.msra.mxu0 0
        %1612 = vmatprep.subr.bf16.mxu0 0
        %1613 = vmatpush1.bf16.msra.mxu0 0
        %1614 = vmatprep.subr.bf16.mxu0 0
        %1615 = vmatpush1.bf16.msra.mxu0 0
        %1616 = vmatprep.subr.bf16.mxu0 0
        %1617 = vmatpush1.bf16.msra.mxu0 0
        %1618 = vmatprep.subr.bf16.mxu0 0
        %1619 = vmatpush1.bf16.msra.mxu0 0
        %1620 = vmatprep.subr.bf16.mxu0 0
        %1621 = vmatpush1.bf16.msra.mxu0 0
        %1622 = vmatprep.subr.bf16.mxu0 0
        %1623 = vmatpush1.bf16.msra.mxu0 0
        %1624 = vmatprep.subr.bf16.mxu0 0
        %1625 = vmatpush1.bf16.msra.mxu0 %v1608
        %1626 = vmatprep.subr.bf16.mxu0 0
        %1627 = vmatpush2.bf16.msra.mxu0 0
        %1628 = vmatprep.subr.bf16.mxu0 0
        %1629 = vmatpush2.bf16.msra.mxu0 0
        %1630 = vmatprep.subr.bf16.mxu0 0
        %1631 = vmatpush2.bf16.msra.mxu0 0
        %1632 = vmatprep.subr.bf16.mxu0 0
        %1633 = vmatpush2.bf16.msra.mxu0 0
        %1634 = vmatprep.subr.bf16.mxu0 0
        %1635 = vmatpush2.bf16.msra.mxu0 0
        %1636 = vmatprep.subr.bf16.mxu0 0
        %1637 = vmatpush2.bf16.msra.mxu0 0
        %1638 = vmatprep.subr.bf16.mxu0 0
        %1639 = vmatpush2.bf16.msra.mxu0 0
        %1640 = vmatprep.subr.bf16.mxu0 0
        %1641 = vmatpush2.bf16.msra.mxu0 0
        %1642 = vmatprep.mubr.bf16.mxu0 0
        %1643 = vmatmul.mubr.bf16.gmra.mxu0 %v1605
        %v1644 = vpop.f32.mrf.mxu0
        %v1645 = vadd.f32 0.0, %v1644
        %v1646 = vpop.f32.mrf.mxu0
        %v1647 = vpop.f32.mrf.mxu0
        %v1648 = vpop.f32.mrf.mxu0
        %1649 = vdwg.mxu0
        %v1650 = vpack.c.bf16 %v1645, %v1599
        %1652 = vrot.lane.b32.xlu0 %v1431, 96
        %v1653 = vpop.permute.xlu0 %1652
        %1655 = vrot.lane.b32.xlu0 %v1433, 96
        %v1656 = vpop.permute.xlu0 %1655
        %v1658 = vsel %vm1435, %v1653, 0
        %v1661 = vsel %vm1435, %v1656, 0
        %1663 = vmatprep.subr.bf16.mxu0 0
        %1664 = vmatpush1.bf16.xpose.msra.mxu0 0
        %1665 = vmatprep.subr.bf16.mxu0 0
        %1666 = vmatpush1.bf16.xpose.msra.mxu0 0
        %1667 = vmatprep.subr.bf16.mxu0 0
        %1668 = vmatpush1.bf16.xpose.msra.mxu0 0
        %1669 = vmatprep.subr.bf16.mxu0 0
        %1670 = vmatpush1.bf16.xpose.msra.mxu0 0
        %1671 = vmatprep.subr.bf16.mxu0 0
        %1672 = vmatpush1.bf16.xpose.msra.mxu0 0
        %1673 = vmatprep.subr.bf16.mxu0 0
        %1674 = vmatpush1.bf16.xpose.msra.mxu0 0
        %1675 = vmatprep.subr.bf16.mxu0 0
        %1676 = vmatpush1.bf16.xpose.msra.mxu0 0
        %1677 = vmatprep.subr.bf16.mxu0 0
        %1678 = vmatpush1.bf16.xpose.msra.mxu0 %v1661
        %1679 = vmatprep.subr.bf16.mxu0 0
        %1680 = vmatpush2.bf16.xpose.msra.mxu0 0
        %1681 = vmatprep.subr.bf16.mxu0 0
        %1682 = vmatpush2.bf16.xpose.msra.mxu0 0
        %1683 = vmatprep.subr.bf16.mxu0 0
        %1684 = vmatpush2.bf16.xpose.msra.mxu0 0
        %1685 = vmatprep.subr.bf16.mxu0 0
        %1686 = vmatpush2.bf16.xpose.msra.mxu0 0
        %1687 = vmatprep.subr.bf16.mxu0 0
        %1688 = vmatpush2.bf16.xpose.msra.mxu0 0
        %1689 = vmatprep.subr.bf16.mxu0 0
        %1690 = vmatpush2.bf16.xpose.msra.mxu0 0
        %1691 = vmatprep.subr.bf16.mxu0 0
        %1692 = vmatpush2.bf16.xpose.msra.mxu0 0
        %1693 = vmatprep.subr.bf16.mxu0 0
        %1694 = vmatpush2.bf16.xpose.msra.mxu0 0
        %1695 = vmatprep.mubr.bf16.mxu0 0
        %1696 = vmatmul.mubr.bf16.gmra.mxu0 %v1658
        %v1697 = vpop.f32.mrf.mxu0
        %v1698 = vadd.f32 0.0, %v1697
        %v1699 = vpop.f32.mrf.mxu0
        %v1700 = vpop.f32.mrf.mxu0
        %v1701 = vpop.f32.mrf.mxu0
        %1702 = vdwg.mxu0
        %1704 = vrot.lane.b32.xlu0 %v1432, 96
        %v1705 = vpop.permute.xlu0 %1704
        %1707 = vrot.lane.b32.xlu0 %v1434, 96
        %v1708 = vpop.permute.xlu0 %1707
        %v1710 = vsel %vm1435, %v1705, 0
        %v1713 = vsel %vm1435, %v1708, 0
        %1715 = vmatprep.subr.bf16.mxu0 0
        %1716 = vmatpush1.bf16.xpose.msra.mxu0 0
        %1717 = vmatprep.subr.bf16.mxu0 0
        %1718 = vmatpush1.bf16.xpose.msra.mxu0 0
        %1719 = vmatprep.subr.bf16.mxu0 0
        %1720 = vmatpush1.bf16.xpose.msra.mxu0 0
        %1721 = vmatprep.subr.bf16.mxu0 0
        %1722 = vmatpush1.bf16.xpose.msra.mxu0 0
        %1723 = vmatprep.subr.bf16.mxu0 0
        %1724 = vmatpush1.bf16.xpose.msra.mxu0 0
        %1725 = vmatprep.subr.bf16.mxu0 0
        %1726 = vmatpush1.bf16.xpose.msra.mxu0 0
        %1727 = vmatprep.subr.bf16.mxu0 0
        %1728 = vmatpush1.bf16.xpose.msra.mxu0 0
        %1729 = vmatprep.subr.bf16.mxu0 0
        %1730 = vmatpush1.bf16.xpose.msra.mxu0 %v1713
        %1731 = vmatprep.subr.bf16.mxu0 0
        %1732 = vmatpush2.bf16.xpose.msra.mxu0 0
        %1733 = vmatprep.subr.bf16.mxu0 0
        %1734 = vmatpush2.bf16.xpose.msra.mxu0 0
        %1735 = vmatprep.subr.bf16.mxu0 0
        %1736 = vmatpush2.bf16.xpose.msra.mxu0 0
        %1737 = vmatprep.subr.bf16.mxu0 0
        %1738 = vmatpush2.bf16.xpose.msra.mxu0 0
        %1739 = vmatprep.subr.bf16.mxu0 0
        %1740 = vmatpush2.bf16.xpose.msra.mxu0 0
        %1741 = vmatprep.subr.bf16.mxu0 0
        %1742 = vmatpush2.bf16.xpose.msra.mxu0 0
        %1743 = vmatprep.subr.bf16.mxu0 0
        %1744 = vmatpush2.bf16.xpose.msra.mxu0 0
        %1745 = vmatprep.subr.bf16.mxu0 0
        %1746 = vmatpush2.bf16.xpose.msra.mxu0 0
        %1747 = vmatprep.mubr.bf16.mxu0 0
        %1748 = vmatmul.mubr.bf16.gmra.mxu0 %v1710
        %v1749 = vpop.f32.mrf.mxu0
        %v1750 = vadd.f32 0.0, %v1749
        %v1751 = vpop.f32.mrf.mxu0
        %v1752 = vpop.f32.mrf.mxu0
        %v1753 = vpop.f32.mrf.mxu0
        %1754 = vdwg.mxu0
        %v1755 = vmul.f32 %v1698, 0.17677669
        %v1756 = vmul.f32 %v1750, 0.17677669
        %v1757 = vsel %vm1530, %v1755, -inf
        %1758 = vmax.xlane.f32.xlu0 %v1757
        %v1759 = vpop.xlane.xlu0 %1758
        %v1760 = vsel %vm1530, %v1756, -inf
        %1761 = vmax.xlane.f32.xlu0 %v1760
        %v1762 = vpop.xlane.xlu0 %1761
        %v1763 = vsub.f32 %v1755, %v1759
        %v1764 = vsub.f32 %v1756, %v1762
        %v1765 = vmul.f32 %v1763, 1.442695
        %v1766 = vpow.pop %v1765
        %v1767 = vmul.f32 %v1764, 1.442695
        %v1768 = vpow.pop %v1767
        %v1769 = vsel %vm1530, %v1766, 0.0
        %1770 = vadd.xlane.f32.xlu0 %v1769
        %v1771 = vpop.xlane.xlu0 %1770
        %v1772 = vsel %vm1530, %v1768, 0.0
        %1773 = vadd.xlane.f32.xlu0 %v1772
        %v1774 = vpop.xlane.xlu0 %1773
        %v1775 = vrcp.pop %v1771
        %v1776 = vrcp.pop %v1774
        %v1777 = vmul.f32 %v1766, %v1775
        %v1778 = vmul.f32 %v1768, %v1776
        %v1779 = vpack.c.bf16 %v1777, %v1777
        %v1780 = vpack.c.bf16 %v1778, %v1778
        %1782 = vrot.lane.b32.xlu0 %v1555, 96
        %v1783 = vpop.permute.xlu0 %1782
        %v1785 = vsel %vm1530, %v1779, 0
        %v1788 = vsel %vm1560, %v1783, 0
        %1790 = vmatprep.subr.bf16.mxu0 0
        %1791 = vmatpush1.bf16.msra.mxu0 0
        %1792 = vmatprep.subr.bf16.mxu0 0
        %1793 = vmatpush1.bf16.msra.mxu0 0
        %1794 = vmatprep.subr.bf16.mxu0 0
        %1795 = vmatpush1.bf16.msra.mxu0 0
        %1796 = vmatprep.subr.bf16.mxu0 0
        %1797 = vmatpush1.bf16.msra.mxu0 0
        %1798 = vmatprep.subr.bf16.mxu0 0
        %1799 = vmatpush1.bf16.msra.mxu0 0
        %1800 = vmatprep.subr.bf16.mxu0 0
        %1801 = vmatpush1.bf16.msra.mxu0 0
        %1802 = vmatprep.subr.bf16.mxu0 0
        %1803 = vmatpush1.bf16.msra.mxu0 0
        %1804 = vmatprep.subr.bf16.mxu0 0
        %1805 = vmatpush1.bf16.msra.mxu0 %v1788
        %1806 = vmatprep.subr.bf16.mxu0 0
        %1807 = vmatpush2.bf16.msra.mxu0 0
        %1808 = vmatprep.subr.bf16.mxu0 0
        %1809 = vmatpush2.bf16.msra.mxu0 0
        %1810 = vmatprep.subr.bf16.mxu0 0
        %1811 = vmatpush2.bf16.msra.mxu0 0
        %1812 = vmatprep.subr.bf16.mxu0 0
        %1813 = vmatpush2.bf16.msra.mxu0 0
        %1814 = vmatprep.subr.bf16.mxu0 0
        %1815 = vmatpush2.bf16.msra.mxu0 0
        %1816 = vmatprep.subr.bf16.mxu0 0
        %1817 = vmatpush2.bf16.msra.mxu0 0
        %1818 = vmatprep.subr.bf16.mxu0 0
        %1819 = vmatpush2.bf16.msra.mxu0 0
        %1820 = vmatprep.subr.bf16.mxu0 0
        %1821 = vmatpush2.bf16.msra.mxu0 0
        %1822 = vmatprep.mubr.bf16.mxu0 0
        %1823 = vmatmul.mubr.bf16.gmra.mxu0 %v1785
        %v1824 = vpop.f32.mrf.mxu0
        %v1825 = vadd.f32 0.0, %v1824
        %v1826 = vpop.f32.mrf.mxu0
        %v1827 = vpop.f32.mrf.mxu0
        %v1828 = vpop.f32.mrf.mxu0
        %1829 = vdwg.mxu0
        %1831 = vrot.lane.b32.xlu0 %v1556, 96
        %v1832 = vpop.permute.xlu0 %1831
        %v1834 = vsel %vm1530, %v1780, 0
        %v1837 = vsel %vm1560, %v1832, 0
        %1839 = vmatprep.subr.bf16.mxu0 0
        %1840 = vmatpush1.bf16.msra.mxu0 0
        %1841 = vmatprep.subr.bf16.mxu0 0
        %1842 = vmatpush1.bf16.msra.mxu0 0
        %1843 = vmatprep.subr.bf16.mxu0 0
        %1844 = vmatpush1.bf16.msra.mxu0 0
        %1845 = vmatprep.subr.bf16.mxu0 0
        %1846 = vmatpush1.bf16.msra.mxu0 0
        %1847 = vmatprep.subr.bf16.mxu0 0
        %1848 = vmatpush1.bf16.msra.mxu0 0
        %1849 = vmatprep.subr.bf16.mxu0 0
        %1850 = vmatpush1.bf16.msra.mxu0 0
        %1851 = vmatprep.subr.bf16.mxu0 0
        %1852 = vmatpush1.bf16.msra.mxu0 0
        %1853 = vmatprep.subr.bf16.mxu0 0
        %1854 = vmatpush1.bf16.msra.mxu0 %v1837
        %1855 = vmatprep.subr.bf16.mxu0 0
        %1856 = vmatpush2.bf16.msra.mxu0 0
        %1857 = vmatprep.subr.bf16.mxu0 0
        %1858 = vmatpush2.bf16.msra.mxu0 0
        %1859 = vmatprep.subr.bf16.mxu0 0
        %1860 = vmatpush2.bf16.msra.mxu0 0
        %1861 = vmatprep.subr.bf16.mxu0 0
        %1862 = vmatpush2.bf16.msra.mxu0 0
        %1863 = vmatprep.subr.bf16.mxu0 0
        %1864 = vmatpush2.bf16.msra.mxu0 0
        %1865 = vmatprep.subr.bf16.mxu0 0
        %1866 = vmatpush2.bf16.msra.mxu0 0
        %1867 = vmatprep.subr.bf16.mxu0 0
        %1868 = vmatpush2.bf16.msra.mxu0 0
        %1869 = vmatprep.subr.bf16.mxu0 0
        %1870 = vmatpush2.bf16.msra.mxu0 0
        %1871 = vmatprep.mubr.bf16.mxu0 0
        %1872 = vmatmul.mubr.bf16.gmra.mxu0 %v1834
        %v1873 = vpop.f32.mrf.mxu0
        %v1874 = vadd.f32 0.0, %v1873
        %v1875 = vpop.f32.mrf.mxu0
        %v1876 = vpop.f32.mrf.mxu0
        %v1877 = vpop.f32.mrf.mxu0
        %1878 = vdwg.mxu0
        %v1879 = vpack.c.bf16 %v1874, %v1825
        %v1884 = vunpack.c.l.b16 %v1419
        %v1885 = vunpack.c.l.b16 %v1420
        %v1886 = vunpack.c.l.b16 %v1421
        %v1887 = vunpack.c.l.b16 %v1422
        %v1888 = vpack.c.b16 %v1885, %v1884
        %v1889 = vpack.c.b16 %v1887, %v1886
        %v1893 = vsel %vm1435, %v1879, 0
        %1895 = vmatprep.subr.bf16.mxu0 0
        %1896 = vmatpush1.bf16.msra.mxu0 0
        %1897 = vmatprep.subr.bf16.mxu0 0
        %1898 = vmatpush1.bf16.msra.mxu0 0
        %1899 = vmatprep.subr.bf16.mxu0 0
        %1900 = vmatpush1.bf16.msra.mxu0 0
        %1901 = vmatprep.subr.bf16.mxu0 0
        %1902 = vmatpush1.bf16.msra.mxu0 0
        %1903 = vmatprep.subr.bf16.mxu0 0
        %1904 = vmatpush1.bf16.msra.mxu0 0
        %1905 = vmatprep.subr.bf16.mxu0 0
        %1906 = vmatpush1.bf16.msra.mxu0 0
        %1907 = vmatprep.subr.bf16.mxu0 0
        %1908 = vmatpush1.bf16.msra.mxu0 %v1889
        %1909 = vmatprep.subr.bf16.mxu0 0
        %1910 = vmatpush1.bf16.msra.mxu0 %v1888
        %1911 = vmatprep.subr.bf16.mxu0 0
        %1912 = vmatpush2.bf16.msra.mxu0 0
        %1913 = vmatprep.subr.bf16.mxu0 0
        %1914 = vmatpush2.bf16.msra.mxu0 0
        %1915 = vmatprep.subr.bf16.mxu0 0
        %1916 = vmatpush2.bf16.msra.mxu0 0
        %1917 = vmatprep.subr.bf16.mxu0 0
        %1918 = vmatpush2.bf16.msra.mxu0 0
        %1919 = vmatprep.subr.bf16.mxu0 0
        %1920 = vmatpush2.bf16.msra.mxu0 0
        %1921 = vmatprep.subr.bf16.mxu0 0
        %1922 = vmatpush2.bf16.msra.mxu0 0
        %1923 = vmatprep.subr.bf16.mxu0 0
        %1924 = vmatpush2.bf16.msra.mxu0 0
        %1925 = vmatprep.subr.bf16.mxu0 0
        %1926 = vmatpush2.bf16.msra.mxu0 0
        %1927 = vmatprep.mubr.bf16.mxu0 0
        %1928 = vmatmul.mubr.bf16.gmra.mxu0 %v1893
        %v1929 = vpop.f32.mrf.mxu0
        %v1930 = vadd.f32 0.0, %v1929
        %v1931 = vpop.f32.mrf.mxu0
        %v1932 = vpop.f32.mrf.mxu0
        %v1933 = vadd.f32 0.0, %v1932
        %v1934 = vpop.f32.mrf.mxu0
        %1935 = vdwg.mxu0
        %v1940 = vunpack.c.l.b16 %v1415
        %v1941 = vunpack.c.l.b16 %v1416
        %v1942 = vunpack.c.l.b16 %v1417
        %v1943 = vunpack.c.l.b16 %v1418
        %v1944 = vpack.c.b16 %v1941, %v1940
        %v1945 = vpack.c.b16 %v1943, %v1942
        %v1949 = vsel %vm1435, %v1650, 0
        %1951 = vmatprep.subr.bf16.mxu0 0
        %1952 = vmatpush1.bf16.msra.mxu0 0
        %1953 = vmatprep.subr.bf16.mxu0 0
        %1954 = vmatpush1.bf16.msra.mxu0 0
        %1955 = vmatprep.subr.bf16.mxu0 0
        %1956 = vmatpush1.bf16.msra.mxu0 0
        %1957 = vmatprep.subr.bf16.mxu0 0
        %1958 = vmatpush1.bf16.msra.mxu0 0
        %1959 = vmatprep.subr.bf16.mxu0 0
        %1960 = vmatpush1.bf16.msra.mxu0 0
        %1961 = vmatprep.subr.bf16.mxu0 0
        %1962 = vmatpush1.bf16.msra.mxu0 0
        %1963 = vmatprep.subr.bf16.mxu0 0
        %1964 = vmatpush1.bf16.msra.mxu0 %v1945
        %1965 = vmatprep.subr.bf16.mxu0 0
        %1966 = vmatpush1.bf16.msra.mxu0 %v1944
        %1967 = vmatprep.subr.bf16.mxu0 0
        %1968 = vmatpush2.bf16.msra.mxu0 0
        %1969 = vmatprep.subr.bf16.mxu0 0
        %1970 = vmatpush2.bf16.msra.mxu0 0
        %1971 = vmatprep.subr.bf16.mxu0 0
        %1972 = vmatpush2.bf16.msra.mxu0 0
        %1973 = vmatprep.subr.bf16.mxu0 0
        %1974 = vmatpush2.bf16.msra.mxu0 0
        %1975 = vmatprep.subr.bf16.mxu0 0
        %1976 = vmatpush2.bf16.msra.mxu0 0
        %1977 = vmatprep.subr.bf16.mxu0 0
        %1978 = vmatpush2.bf16.msra.mxu0 0
        %1979 = vmatprep.subr.bf16.mxu0 0
        %1980 = vmatpush2.bf16.msra.mxu0 0
        %1981 = vmatprep.subr.bf16.mxu0 0
        %1982 = vmatpush2.bf16.msra.mxu0 0
        %1983 = vmatprep.mubr.bf16.mxu0 0
        %1984 = vmatmul.mubr.bf16.gmra.mxu0 %v1949
        %v1985 = vpop.f32.mrf.mxu0
        %v1986 = vadd.f32 %v1930, %v1985
        %v1987 = vpop.f32.mrf.mxu0
        %v1988 = vpop.f32.mrf.mxu0
        %v1989 = vadd.f32 %v1933, %v1988
        %v1990 = vpop.f32.mrf.mxu0
        %1991 = vdwg.mxu0
        %1992 = vrot.lane.b32.xlu0 %v1431, 64
        %v1993 = vpop.permute.xlu0 %1992
        %1994 = vrot.lane.b32.xlu0 %v1433, 64
        %v1995 = vpop.permute.xlu0 %1994
        %v1997 = vsel %vm1435, %v1993, 0
        %v2000 = vsel %vm1435, %v1995, 0
        %2002 = vmatprep.subr.bf16.mxu0 0
        %2003 = vmatpush1.bf16.xpose.msra.mxu0 0
        %2004 = vmatprep.subr.bf16.mxu0 0
        %2005 = vmatpush1.bf16.xpose.msra.mxu0 0
        %2006 = vmatprep.subr.bf16.mxu0 0
        %2007 = vmatpush1.bf16.xpose.msra.mxu0 0
        %2008 = vmatprep.subr.bf16.mxu0 0
        %2009 = vmatpush1.bf16.xpose.msra.mxu0 0
        %2010 = vmatprep.subr.bf16.mxu0 0
        %2011 = vmatpush1.bf16.xpose.msra.mxu0 0
        %2012 = vmatprep.subr.bf16.mxu0 0
        %2013 = vmatpush1.bf16.xpose.msra.mxu0 0
        %2014 = vmatprep.subr.bf16.mxu0 0
        %2015 = vmatpush1.bf16.xpose.msra.mxu0 0
        %2016 = vmatprep.subr.bf16.mxu0 0
        %2017 = vmatpush1.bf16.xpose.msra.mxu0 %v2000
        %2018 = vmatprep.subr.bf16.mxu0 0
        %2019 = vmatpush2.bf16.xpose.msra.mxu0 0
        %2020 = vmatprep.subr.bf16.mxu0 0
        %2021 = vmatpush2.bf16.xpose.msra.mxu0 0
        %2022 = vmatprep.subr.bf16.mxu0 0
        %2023 = vmatpush2.bf16.xpose.msra.mxu0 0
        %2024 = vmatprep.subr.bf16.mxu0 0
        %2025 = vmatpush2.bf16.xpose.msra.mxu0 0
        %2026 = vmatprep.subr.bf16.mxu0 0
        %2027 = vmatpush2.bf16.xpose.msra.mxu0 0
        %2028 = vmatprep.subr.bf16.mxu0 0
        %2029 = vmatpush2.bf16.xpose.msra.mxu0 0
        %2030 = vmatprep.subr.bf16.mxu0 0
        %2031 = vmatpush2.bf16.xpose.msra.mxu0 0
        %2032 = vmatprep.subr.bf16.mxu0 0
        %2033 = vmatpush2.bf16.xpose.msra.mxu0 0
        %2034 = vmatprep.mubr.bf16.mxu0 0
        %2035 = vmatmul.mubr.bf16.gmra.mxu0 %v1997
        %v2036 = vpop.f32.mrf.mxu0
        %v2037 = vadd.f32 0.0, %v2036
        %v2038 = vpop.f32.mrf.mxu0
        %v2039 = vpop.f32.mrf.mxu0
        %v2040 = vpop.f32.mrf.mxu0
        %2041 = vdwg.mxu0
        %2042 = vrot.lane.b32.xlu0 %v1432, 64
        %v2043 = vpop.permute.xlu0 %2042
        %2044 = vrot.lane.b32.xlu0 %v1434, 64
        %v2045 = vpop.permute.xlu0 %2044
        %v2047 = vsel %vm1435, %v2043, 0
        %v2050 = vsel %vm1435, %v2045, 0
        %2052 = vmatprep.subr.bf16.mxu0 0
        %2053 = vmatpush1.bf16.xpose.msra.mxu0 0
        %2054 = vmatprep.subr.bf16.mxu0 0
        %2055 = vmatpush1.bf16.xpose.msra.mxu0 0
        %2056 = vmatprep.subr.bf16.mxu0 0
        %2057 = vmatpush1.bf16.xpose.msra.mxu0 0
        %2058 = vmatprep.subr.bf16.mxu0 0
        %2059 = vmatpush1.bf16.xpose.msra.mxu0 0
        %2060 = vmatprep.subr.bf16.mxu0 0
        %2061 = vmatpush1.bf16.xpose.msra.mxu0 0
        %2062 = vmatprep.subr.bf16.mxu0 0
        %2063 = vmatpush1.bf16.xpose.msra.mxu0 0
        %2064 = vmatprep.subr.bf16.mxu0 0
        %2065 = vmatpush1.bf16.xpose.msra.mxu0 0
        %2066 = vmatprep.subr.bf16.mxu0 0
        %2067 = vmatpush1.bf16.xpose.msra.mxu0 %v2050
        %2068 = vmatprep.subr.bf16.mxu0 0
        %2069 = vmatpush2.bf16.xpose.msra.mxu0 0
        %2070 = vmatprep.subr.bf16.mxu0 0
        %2071 = vmatpush2.bf16.xpose.msra.mxu0 0
        %2072 = vmatprep.subr.bf16.mxu0 0
        %2073 = vmatpush2.bf16.xpose.msra.mxu0 0
        %2074 = vmatprep.subr.bf16.mxu0 0
        %2075 = vmatpush2.bf16.xpose.msra.mxu0 0
        %2076 = vmatprep.subr.bf16.mxu0 0
        %2077 = vmatpush2.bf16.xpose.msra.mxu0 0
        %2078 = vmatprep.subr.bf16.mxu0 0
        %2079 = vmatpush2.bf16.xpose.msra.mxu0 0
        %2080 = vmatprep.subr.bf16.mxu0 0
        %2081 = vmatpush2.bf16.xpose.msra.mxu0 0
        %2082 = vmatprep.subr.bf16.mxu0 0
        %2083 = vmatpush2.bf16.xpose.msra.mxu0 0
        %2084 = vmatprep.mubr.bf16.mxu0 0
        %2085 = vmatmul.mubr.bf16.gmra.mxu0 %v2047
        %v2086 = vpop.f32.mrf.mxu0
        %v2087 = vadd.f32 0.0, %v2086
        %v2088 = vpop.f32.mrf.mxu0
        %v2089 = vpop.f32.mrf.mxu0
        %v2090 = vpop.f32.mrf.mxu0
        %2091 = vdwg.mxu0
        %v2092 = vmul.f32 %v2037, 0.17677669
        %v2093 = vmul.f32 %v2087, 0.17677669
        %v2094 = vsel %vm1530, %v2092, -inf
        %2095 = vmax.xlane.f32.xlu0 %v2094
        %v2096 = vpop.xlane.xlu0 %2095
        %v2097 = vsel %vm1530, %v2093, -inf
        %2098 = vmax.xlane.f32.xlu0 %v2097
        %v2099 = vpop.xlane.xlu0 %2098
        %v2100 = vsub.f32 %v2092, %v2096
        %v2101 = vsub.f32 %v2093, %v2099
        %v2102 = vmul.f32 %v2100, 1.442695
        %v2103 = vpow.pop %v2102
        %v2104 = vmul.f32 %v2101, 1.442695
        %v2105 = vpow.pop %v2104
        %v2106 = vsel %vm1530, %v2103, 0.0
        %2107 = vadd.xlane.f32.xlu0 %v2106
        %v2108 = vpop.xlane.xlu0 %2107
        %v2109 = vsel %vm1530, %v2105, 0.0
        %2110 = vadd.xlane.f32.xlu0 %v2109
        %v2111 = vpop.xlane.xlu0 %2110
        %v2112 = vrcp.pop %v2108
        %v2113 = vrcp.pop %v2111
        %v2114 = vmul.f32 %v2103, %v2112
        %v2115 = vmul.f32 %v2105, %v2113
        %v2116 = vpack.c.bf16 %v2114, %v2114
        %v2117 = vpack.c.bf16 %v2115, %v2115
        %2118 = vrot.lane.b32.xlu0 %v1555, 64
        %v2119 = vpop.permute.xlu0 %2118
        %v2121 = vsel %vm1530, %v2116, 0
        %v2124 = vsel %vm1560, %v2119, 0
        %2126 = vmatprep.subr.bf16.mxu0 0
        %2127 = vmatpush1.bf16.msra.mxu0 0
        %2128 = vmatprep.subr.bf16.mxu0 0
        %2129 = vmatpush1.bf16.msra.mxu0 0
        %2130 = vmatprep.subr.bf16.mxu0 0
        %2131 = vmatpush1.bf16.msra.mxu0 0
        %2132 = vmatprep.subr.bf16.mxu0 0
        %2133 = vmatpush1.bf16.msra.mxu0 0
        %2134 = vmatprep.subr.bf16.mxu0 0
        %2135 = vmatpush1.bf16.msra.mxu0 0
        %2136 = vmatprep.subr.bf16.mxu0 0
        %2137 = vmatpush1.bf16.msra.mxu0 0
        %2138 = vmatprep.subr.bf16.mxu0 0
        %2139 = vmatpush1.bf16.msra.mxu0 0
        %2140 = vmatprep.subr.bf16.mxu0 0
        %2141 = vmatpush1.bf16.msra.mxu0 %v2124
        %2142 = vmatprep.subr.bf16.mxu0 0
        %2143 = vmatpush2.bf16.msra.mxu0 0
        %2144 = vmatprep.subr.bf16.mxu0 0
        %2145 = vmatpush2.bf16.msra.mxu0 0
        %2146 = vmatprep.subr.bf16.mxu0 0
        %2147 = vmatpush2.bf16.msra.mxu0 0
        %2148 = vmatprep.subr.bf16.mxu0 0
        %2149 = vmatpush2.bf16.msra.mxu0 0
        %2150 = vmatprep.subr.bf16.mxu0 0
        %2151 = vmatpush2.bf16.msra.mxu0 0
        %2152 = vmatprep.subr.bf16.mxu0 0
        %2153 = vmatpush2.bf16.msra.mxu0 0
        %2154 = vmatprep.subr.bf16.mxu0 0
        %2155 = vmatpush2.bf16.msra.mxu0 0
        %2156 = vmatprep.subr.bf16.mxu0 0
        %2157 = vmatpush2.bf16.msra.mxu0 0
        %2158 = vmatprep.mubr.bf16.mxu0 0
        %2159 = vmatmul.mubr.bf16.gmra.mxu0 %v2121
        %v2160 = vpop.f32.mrf.mxu0
        %v2161 = vadd.f32 0.0, %v2160
        %v2162 = vpop.f32.mrf.mxu0
        %v2163 = vpop.f32.mrf.mxu0
        %v2164 = vpop.f32.mrf.mxu0
        %2165 = vdwg.mxu0
        %2166 = vrot.lane.b32.xlu0 %v1556, 64
        %v2167 = vpop.permute.xlu0 %2166
        %v2169 = vsel %vm1530, %v2117, 0
        %v2172 = vsel %vm1560, %v2167, 0
        %2174 = vmatprep.subr.bf16.mxu0 0
        %2175 = vmatpush1.bf16.msra.mxu0 0
        %2176 = vmatprep.subr.bf16.mxu0 0
        %2177 = vmatpush1.bf16.msra.mxu0 0
        %2178 = vmatprep.subr.bf16.mxu0 0
        %2179 = vmatpush1.bf16.msra.mxu0 0
        %2180 = vmatprep.subr.bf16.mxu0 0
        %2181 = vmatpush1.bf16.msra.mxu0 0
        %2182 = vmatprep.subr.bf16.mxu0 0
        %2183 = vmatpush1.bf16.msra.mxu0 0
        %2184 = vmatprep.subr.bf16.mxu0 0
        %2185 = vmatpush1.bf16.msra.mxu0 0
        %2186 = vmatprep.subr.bf16.mxu0 0
        %2187 = vmatpush1.bf16.msra.mxu0 0
        %2188 = vmatprep.subr.bf16.mxu0 0
        %2189 = vmatpush1.bf16.msra.mxu0 %v2172
        %2190 = vmatprep.subr.bf16.mxu0 0
        %2191 = vmatpush2.bf16.msra.mxu0 0
        %2192 = vmatprep.subr.bf16.mxu0 0
        %2193 = vmatpush2.bf16.msra.mxu0 0
        %2194 = vmatprep.subr.bf16.mxu0 0
        %2195 = vmatpush2.bf16.msra.mxu0 0
        %2196 = vmatprep.subr.bf16.mxu0 0
        %2197 = vmatpush2.bf16.msra.mxu0 0
        %2198 = vmatprep.subr.bf16.mxu0 0
        %2199 = vmatpush2.bf16.msra.mxu0 0
        %2200 = vmatprep.subr.bf16.mxu0 0
        %2201 = vmatpush2.bf16.msra.mxu0 0
        %2202 = vmatprep.subr.bf16.mxu0 0
        %2203 = vmatpush2.bf16.msra.mxu0 0
        %2204 = vmatprep.subr.bf16.mxu0 0
        %2205 = vmatpush2.bf16.msra.mxu0 0
        %2206 = vmatprep.mubr.bf16.mxu0 0
        %2207 = vmatmul.mubr.bf16.gmra.mxu0 %v2169
        %v2208 = vpop.f32.mrf.mxu0
        %v2209 = vadd.f32 0.0, %v2208
        %v2210 = vpop.f32.mrf.mxu0
        %v2211 = vpop.f32.mrf.mxu0
        %v2212 = vpop.f32.mrf.mxu0
        %2213 = vdwg.mxu0
        %v2214 = vpack.c.bf16 %v2209, %v2161
        %v2219 = vunpack.c.l.b16 %v1423
        %v2220 = vunpack.c.l.b16 %v1424
        %v2221 = vunpack.c.l.b16 %v1425
        %v2222 = vunpack.c.l.b16 %v1426
        %v2223 = vpack.c.b16 %v2220, %v2219
        %v2224 = vpack.c.b16 %v2222, %v2221
        %v2228 = vsel %vm1435, %v2214, 0
        %2230 = vmatprep.subr.bf16.mxu0 0
        %2231 = vmatpush1.bf16.msra.mxu0 0
        %2232 = vmatprep.subr.bf16.mxu0 0
        %2233 = vmatpush1.bf16.msra.mxu0 0
        %2234 = vmatprep.subr.bf16.mxu0 0
        %2235 = vmatpush1.bf16.msra.mxu0 0
        %2236 = vmatprep.subr.bf16.mxu0 0
        %2237 = vmatpush1.bf16.msra.mxu0 0
        %2238 = vmatprep.subr.bf16.mxu0 0
        %2239 = vmatpush1.bf16.msra.mxu0 0
        %2240 = vmatprep.subr.bf16.mxu0 0
        %2241 = vmatpush1.bf16.msra.mxu0 0
        %2242 = vmatprep.subr.bf16.mxu0 0
        %2243 = vmatpush1.bf16.msra.mxu0 %v2224
        %2244 = vmatprep.subr.bf16.mxu0 0
        %2245 = vmatpush1.bf16.msra.mxu0 %v2223
        %2246 = vmatprep.subr.bf16.mxu0 0
        %2247 = vmatpush2.bf16.msra.mxu0 0
        %2248 = vmatprep.subr.bf16.mxu0 0
        %2249 = vmatpush2.bf16.msra.mxu0 0
        %2250 = vmatprep.subr.bf16.mxu0 0
        %2251 = vmatpush2.bf16.msra.mxu0 0
        %2252 = vmatprep.subr.bf16.mxu0 0
        %2253 = vmatpush2.bf16.msra.mxu0 0
        %2254 = vmatprep.subr.bf16.mxu0 0
        %2255 = vmatpush2.bf16.msra.mxu0 0
        %2256 = vmatprep.subr.bf16.mxu0 0
        %2257 = vmatpush2.bf16.msra.mxu0 0
        %2258 = vmatprep.subr.bf16.mxu0 0
        %2259 = vmatpush2.bf16.msra.mxu0 0
        %2260 = vmatprep.subr.bf16.mxu0 0
        %2261 = vmatpush2.bf16.msra.mxu0 0
        %2262 = vmatprep.mubr.bf16.mxu0 0
        %2263 = vmatmul.mubr.bf16.gmra.mxu0 %v2228
        %v2264 = vpop.f32.mrf.mxu0
        %v2265 = vadd.f32 0.0, %v2264
        %v2266 = vpop.f32.mrf.mxu0
        %v2267 = vpop.f32.mrf.mxu0
        %v2268 = vadd.f32 0.0, %v2267
        %v2269 = vpop.f32.mrf.mxu0
        %2270 = vdwg.mxu0
        %v2271 = vadd.f32 %v1986, %v2265
        %v2272 = vadd.f32 %v1989, %v2268
        %2273 = vrot.lane.b32.xlu0 %v1431, 32
        %v2274 = vpop.permute.xlu0 %2273
        %2275 = vrot.lane.b32.xlu0 %v1433, 32
        %v2276 = vpop.permute.xlu0 %2275
        %v2278 = vsel %vm1435, %v2274, 0
        %v2281 = vsel %vm1435, %v2276, 0
        %2283 = vmatprep.subr.bf16.mxu0 0
        %2284 = vmatpush1.bf16.xpose.msra.mxu0 0
        %2285 = vmatprep.subr.bf16.mxu0 0
        %2286 = vmatpush1.bf16.xpose.msra.mxu0 0
        %2287 = vmatprep.subr.bf16.mxu0 0
        %2288 = vmatpush1.bf16.xpose.msra.mxu0 0
        %2289 = vmatprep.subr.bf16.mxu0 0
        %2290 = vmatpush1.bf16.xpose.msra.mxu0 0
        %2291 = vmatprep.subr.bf16.mxu0 0
        %2292 = vmatpush1.bf16.xpose.msra.mxu0 0
        %2293 = vmatprep.subr.bf16.mxu0 0
        %2294 = vmatpush1.bf16.xpose.msra.mxu0 0
        %2295 = vmatprep.subr.bf16.mxu0 0
        %2296 = vmatpush1.bf16.xpose.msra.mxu0 0
        %2297 = vmatprep.subr.bf16.mxu0 0
        %2298 = vmatpush1.bf16.xpose.msra.mxu0 %v2281
        %2299 = vmatprep.subr.bf16.mxu0 0
        %2300 = vmatpush2.bf16.xpose.msra.mxu0 0
        %2301 = vmatprep.subr.bf16.mxu0 0
        %2302 = vmatpush2.bf16.xpose.msra.mxu0 0
        %2303 = vmatprep.subr.bf16.mxu0 0
        %2304 = vmatpush2.bf16.xpose.msra.mxu0 0
        %2305 = vmatprep.subr.bf16.mxu0 0
        %2306 = vmatpush2.bf16.xpose.msra.mxu0 0
        %2307 = vmatprep.subr.bf16.mxu0 0
        %2308 = vmatpush2.bf16.xpose.msra.mxu0 0
        %2309 = vmatprep.subr.bf16.mxu0 0
        %2310 = vmatpush2.bf16.xpose.msra.mxu0 0
        %2311 = vmatprep.subr.bf16.mxu0 0
        %2312 = vmatpush2.bf16.xpose.msra.mxu0 0
        %2313 = vmatprep.subr.bf16.mxu0 0
        %2314 = vmatpush2.bf16.xpose.msra.mxu0 0
        %2315 = vmatprep.mubr.bf16.mxu0 0
        %2316 = vmatmul.mubr.bf16.gmra.mxu0 %v2278
        %v2317 = vpop.f32.mrf.mxu0
        %v2318 = vadd.f32 0.0, %v2317
        %v2319 = vpop.f32.mrf.mxu0
        %v2320 = vpop.f32.mrf.mxu0
        %v2321 = vpop.f32.mrf.mxu0
        %2322 = vdwg.mxu0
        %2323 = vrot.lane.b32.xlu0 %v1432, 32
        %v2324 = vpop.permute.xlu0 %2323
        %2325 = vrot.lane.b32.xlu0 %v1434, 32
        %v2326 = vpop.permute.xlu0 %2325
        %v2328 = vsel %vm1435, %v2324, 0
        %v2331 = vsel %vm1435, %v2326, 0
        %2333 = vmatprep.subr.bf16.mxu0 0
        %2334 = vmatpush1.bf16.xpose.msra.mxu0 0
        %2335 = vmatprep.subr.bf16.mxu0 0
        %2336 = vmatpush1.bf16.xpose.msra.mxu0 0
        %2337 = vmatprep.subr.bf16.mxu0 0
        %2338 = vmatpush1.bf16.xpose.msra.mxu0 0
        %2339 = vmatprep.subr.bf16.mxu0 0
        %2340 = vmatpush1.bf16.xpose.msra.mxu0 0
        %2341 = vmatprep.subr.bf16.mxu0 0
        %2342 = vmatpush1.bf16.xpose.msra.mxu0 0
        %2343 = vmatprep.subr.bf16.mxu0 0
        %2344 = vmatpush1.bf16.xpose.msra.mxu0 0
        %2345 = vmatprep.subr.bf16.mxu0 0
        %2346 = vmatpush1.bf16.xpose.msra.mxu0 0
        %2347 = vmatprep.subr.bf16.mxu0 0
        %2348 = vmatpush1.bf16.xpose.msra.mxu0 %v2331
        %2349 = vmatprep.subr.bf16.mxu0 0
        %2350 = vmatpush2.bf16.xpose.msra.mxu0 0
        %2351 = vmatprep.subr.bf16.mxu0 0
        %2352 = vmatpush2.bf16.xpose.msra.mxu0 0
        %2353 = vmatprep.subr.bf16.mxu0 0
        %2354 = vmatpush2.bf16.xpose.msra.mxu0 0
        %2355 = vmatprep.subr.bf16.mxu0 0
        %2356 = vmatpush2.bf16.xpose.msra.mxu0 0
        %2357 = vmatprep.subr.bf16.mxu0 0
        %2358 = vmatpush2.bf16.xpose.msra.mxu0 0
        %2359 = vmatprep.subr.bf16.mxu0 0
        %2360 = vmatpush2.bf16.xpose.msra.mxu0 0
        %2361 = vmatprep.subr.bf16.mxu0 0
        %2362 = vmatpush2.bf16.xpose.msra.mxu0 0
        %2363 = vmatprep.subr.bf16.mxu0 0
        %2364 = vmatpush2.bf16.xpose.msra.mxu0 0
        %2365 = vmatprep.mubr.bf16.mxu0 0
        %2366 = vmatmul.mubr.bf16.gmra.mxu0 %v2328
        %v2367 = vpop.f32.mrf.mxu0
        %v2368 = vadd.f32 0.0, %v2367
        %v2369 = vpop.f32.mrf.mxu0
        %v2370 = vpop.f32.mrf.mxu0
        %v2371 = vpop.f32.mrf.mxu0
        %2372 = vdwg.mxu0
        %v2373 = vmul.f32 %v2318, 0.17677669
        %v2374 = vmul.f32 %v2368, 0.17677669
        %v2375 = vsel %vm1530, %v2373, -inf
        %2376 = vmax.xlane.f32.xlu0 %v2375
        %v2377 = vpop.xlane.xlu0 %2376
        %v2378 = vsel %vm1530, %v2374, -inf
        %2379 = vmax.xlane.f32.xlu0 %v2378
        %v2380 = vpop.xlane.xlu0 %2379
        %v2381 = vsub.f32 %v2373, %v2377
        %v2382 = vsub.f32 %v2374, %v2380
        %v2383 = vmul.f32 %v2381, 1.442695
        %v2384 = vpow.pop %v2383
        %v2385 = vmul.f32 %v2382, 1.442695
        %v2386 = vpow.pop %v2385
        %v2387 = vsel %vm1530, %v2384, 0.0
        %2388 = vadd.xlane.f32.xlu0 %v2387
        %v2389 = vpop.xlane.xlu0 %2388
        %v2390 = vsel %vm1530, %v2386, 0.0
        %2391 = vadd.xlane.f32.xlu0 %v2390
        %v2392 = vpop.xlane.xlu0 %2391
        %v2393 = vrcp.pop %v2389
        %v2394 = vrcp.pop %v2392
        %v2395 = vmul.f32 %v2384, %v2393
        %v2396 = vmul.f32 %v2386, %v2394
        %v2397 = vpack.c.bf16 %v2395, %v2395
        %v2398 = vpack.c.bf16 %v2396, %v2396
        %2399 = vrot.lane.b32.xlu0 %v1555, 32
        %v2400 = vpop.permute.xlu0 %2399
        %v2402 = vsel %vm1530, %v2397, 0
        %v2405 = vsel %vm1560, %v2400, 0
        %2407 = vmatprep.subr.bf16.mxu0 0
        %2408 = vmatpush1.bf16.msra.mxu0 0
        %2409 = vmatprep.subr.bf16.mxu0 0
        %2410 = vmatpush1.bf16.msra.mxu0 0
        %2411 = vmatprep.subr.bf16.mxu0 0
        %2412 = vmatpush1.bf16.msra.mxu0 0
        %2413 = vmatprep.subr.bf16.mxu0 0
        %2414 = vmatpush1.bf16.msra.mxu0 0
        %2415 = vmatprep.subr.bf16.mxu0 0
        %2416 = vmatpush1.bf16.msra.mxu0 0
        %2417 = vmatprep.subr.bf16.mxu0 0
        %2418 = vmatpush1.bf16.msra.mxu0 0
        %2419 = vmatprep.subr.bf16.mxu0 0
        %2420 = vmatpush1.bf16.msra.mxu0 0
        %2421 = vmatprep.subr.bf16.mxu0 0
        %2422 = vmatpush1.bf16.msra.mxu0 %v2405
        %2423 = vmatprep.subr.bf16.mxu0 0
        %2424 = vmatpush2.bf16.msra.mxu0 0
        %2425 = vmatprep.subr.bf16.mxu0 0
        %2426 = vmatpush2.bf16.msra.mxu0 0
        %2427 = vmatprep.subr.bf16.mxu0 0
        %2428 = vmatpush2.bf16.msra.mxu0 0
        %2429 = vmatprep.subr.bf16.mxu0 0
        %2430 = vmatpush2.bf16.msra.mxu0 0
        %2431 = vmatprep.subr.bf16.mxu0 0
        %2432 = vmatpush2.bf16.msra.mxu0 0
        %2433 = vmatprep.subr.bf16.mxu0 0
        %2434 = vmatpush2.bf16.msra.mxu0 0
        %2435 = vmatprep.subr.bf16.mxu0 0
        %2436 = vmatpush2.bf16.msra.mxu0 0
        %2437 = vmatprep.subr.bf16.mxu0 0
        %2438 = vmatpush2.bf16.msra.mxu0 0
        %2439 = vmatprep.mubr.bf16.mxu0 0
        %2440 = vmatmul.mubr.bf16.gmra.mxu0 %v2402
        %v2441 = vpop.f32.mrf.mxu0
        %v2442 = vadd.f32 0.0, %v2441
        %v2443 = vpop.f32.mrf.mxu0
        %v2444 = vpop.f32.mrf.mxu0
        %v2445 = vpop.f32.mrf.mxu0
        %2446 = vdwg.mxu0
        %2447 = vrot.lane.b32.xlu0 %v1556, 32
        %v2448 = vpop.permute.xlu0 %2447
        %v2450 = vsel %vm1530, %v2398, 0
        %v2453 = vsel %vm1560, %v2448, 0
        %2455 = vmatprep.subr.bf16.mxu0 0
        %2456 = vmatpush1.bf16.msra.mxu0 0
        %2457 = vmatprep.subr.bf16.mxu0 0
        %2458 = vmatpush1.bf16.msra.mxu0 0
        %2459 = vmatprep.subr.bf16.mxu0 0
        %2460 = vmatpush1.bf16.msra.mxu0 0
        %2461 = vmatprep.subr.bf16.mxu0 0
        %2462 = vmatpush1.bf16.msra.mxu0 0
        %2463 = vmatprep.subr.bf16.mxu0 0
        %2464 = vmatpush1.bf16.msra.mxu0 0
        %2465 = vmatprep.subr.bf16.mxu0 0
        %2466 = vmatpush1.bf16.msra.mxu0 0
        %2467 = vmatprep.subr.bf16.mxu0 0
        %2468 = vmatpush1.bf16.msra.mxu0 0
        %2469 = vmatprep.subr.bf16.mxu0 0
        %2470 = vmatpush1.bf16.msra.mxu0 %v2453
        %2471 = vmatprep.subr.bf16.mxu0 0
        %2472 = vmatpush2.bf16.msra.mxu0 0
        %2473 = vmatprep.subr.bf16.mxu0 0
        %2474 = vmatpush2.bf16.msra.mxu0 0
        %2475 = vmatprep.subr.bf16.mxu0 0
        %2476 = vmatpush2.bf16.msra.mxu0 0
        %2477 = vmatprep.subr.bf16.mxu0 0
        %2478 = vmatpush2.bf16.msra.mxu0 0
        %2479 = vmatprep.subr.bf16.mxu0 0
        %2480 = vmatpush2.bf16.msra.mxu0 0
        %2481 = vmatprep.subr.bf16.mxu0 0
        %2482 = vmatpush2.bf16.msra.mxu0 0
        %2483 = vmatprep.subr.bf16.mxu0 0
        %2484 = vmatpush2.bf16.msra.mxu0 0
        %2485 = vmatprep.subr.bf16.mxu0 0
        %2486 = vmatpush2.bf16.msra.mxu0 0
        %2487 = vmatprep.mubr.bf16.mxu0 0
        %2488 = vmatmul.mubr.bf16.gmra.mxu0 %v2450
        %v2489 = vpop.f32.mrf.mxu0
        %v2490 = vadd.f32 0.0, %v2489
        %v2491 = vpop.f32.mrf.mxu0
        %v2492 = vpop.f32.mrf.mxu0
        %v2493 = vpop.f32.mrf.mxu0
        %2494 = vdwg.mxu0
        %v2495 = vpack.c.bf16 %v2490, %v2442
        %v2500 = vunpack.c.l.b16 %v1427
        %v2501 = vunpack.c.l.b16 %v1428
        %v2502 = vunpack.c.l.b16 %v1429
        %v2503 = vunpack.c.l.b16 %v1430
        %v2504 = vpack.c.b16 %v2501, %v2500
        %v2505 = vpack.c.b16 %v2503, %v2502
        %v2509 = vsel %vm1435, %v2495, 0
        %2511 = vmatprep.subr.bf16.mxu0 0
        %2512 = vmatpush1.bf16.msra.mxu0 0
        %2513 = vmatprep.subr.bf16.mxu0 0
        %2514 = vmatpush1.bf16.msra.mxu0 0
        %2515 = vmatprep.subr.bf16.mxu0 0
        %2516 = vmatpush1.bf16.msra.mxu0 0
        %2517 = vmatprep.subr.bf16.mxu0 0
        %2518 = vmatpush1.bf16.msra.mxu0 0
        %2519 = vmatprep.subr.bf16.mxu0 0
        %2520 = vmatpush1.bf16.msra.mxu0 0
        %2521 = vmatprep.subr.bf16.mxu0 0
        %2522 = vmatpush1.bf16.msra.mxu0 0
        %2523 = vmatprep.subr.bf16.mxu0 0
        %2524 = vmatpush1.bf16.msra.mxu0 %v2505
        %2525 = vmatprep.subr.bf16.mxu0 0
        %2526 = vmatpush1.bf16.msra.mxu0 %v2504
        %2527 = vmatprep.subr.bf16.mxu0 0
        %2528 = vmatpush2.bf16.msra.mxu0 0
        %2529 = vmatprep.subr.bf16.mxu0 0
        %2530 = vmatpush2.bf16.msra.mxu0 0
        %2531 = vmatprep.subr.bf16.mxu0 0
        %2532 = vmatpush2.bf16.msra.mxu0 0
        %2533 = vmatprep.subr.bf16.mxu0 0
        %2534 = vmatpush2.bf16.msra.mxu0 0
        %2535 = vmatprep.subr.bf16.mxu0 0
        %2536 = vmatpush2.bf16.msra.mxu0 0
        %2537 = vmatprep.subr.bf16.mxu0 0
        %2538 = vmatpush2.bf16.msra.mxu0 0
        %2539 = vmatprep.subr.bf16.mxu0 0
        %2540 = vmatpush2.bf16.msra.mxu0 0
        %2541 = vmatprep.subr.bf16.mxu0 0
        %2542 = vmatpush2.bf16.msra.mxu0 0
        %2543 = vmatprep.mubr.bf16.mxu0 0
        %2544 = vmatmul.mubr.bf16.gmra.mxu0 %v2509
        %v2545 = vpop.f32.mrf.mxu0
        %v2546 = vadd.f32 0.0, %v2545
        %v2547 = vpop.f32.mrf.mxu0
        %v2548 = vpop.f32.mrf.mxu0
        %v2549 = vadd.f32 0.0, %v2548
        %v2550 = vpop.f32.mrf.mxu0
        %2551 = vdwg.mxu0
        %v2552 = vadd.f32 %v2271, %v2546
        %v2553 = vadd.f32 %v2272, %v2549
        %v2554 = vadd.f32 %v1110, %v2552
        %v2555 = vadd.f32 %v1111, %v2553
        %v2556 = vld [vmem:[%s790] sm:$0x1]
        %v2558 = vlaneseq
        %v2559 = vshrl.u32 %v2558, 7
        %v2560 = vsub.s32 0, %v2559
        %v2561 = vrot.slane %v2556, %v2560
        %v2563 = vadd.f32 %v2554, %v2561
        %v2564 = vadd.f32 %v2555, %v2561
        %v2565 = vld [vmem:[%s798] sm:$0x1]
        %v2566 = vld [vmem:[%s806] sm:$0x1]
        %2567 = vadd.xlane.f32.xlu0 %v2563
        %v2568 = vpop.xlane.xlu0 %2567
        %2569 = vadd.xlane.f32.xlu0 %v2564
        %v2570 = vpop.xlane.xlu0 %2569
        %v2571 = vmul.f32 %v2568, %v1118
        %v2572 = vmul.f32 %v2570, %v1118
        %v2573 = vsub.f32 %v2563, %v2571
        %v2574 = vsub.f32 %v2564, %v2572
        %v2575 = vmul.f32 %v2573, %v2573
        %v2576 = vmul.f32 %v2574, %v2574
        %2577 = vadd.xlane.f32.xlu0 %v2575
        %v2578 = vpop.xlane.xlu0 %2577
        %2579 = vadd.xlane.f32.xlu0 %v2576
        %v2580 = vpop.xlane.xlu0 %2579
        %v2581 = vmul.f32 %v2578, %v1118
        %v2582 = vmul.f32 %v2580, %v1118
        %v2583 = vadd.f32 %v2581, 1e-05
        %v2584 = vadd.f32 %v2582, 1e-05
        %v2585 = vrsqrt.pop %v2583
        %v2586 = vrsqrt.pop %v2584
        %v2587 = vmul.f32 %v2573, %v2585
        %v2588 = vmul.f32 %v2574, %v2586
        %v2590 = vlaneseq
        %v2591 = vshrl.u32 %v2590, 7
        %v2592 = vsub.s32 0, %v2591
        %v2593 = vrot.slane %v2565, %v2592
        %v2595 = vmul.f32 %v2587, %v2593
        %v2596 = vmul.f32 %v2588, %v2593
        %v2598 = vlaneseq
        %v2599 = vshrl.u32 %v2598, 7
        %v2600 = vsub.s32 0, %v2599
        %v2601 = vrot.slane %v2566, %v2600
        %v2603 = vadd.f32 %v2595, %v2601
        %v2604 = vadd.f32 %v2596, %v2601
        %v2605 = vld [vmem:[%s934] sm:$0xf]
        %v2606 = vld [vmem:[%s934 + $0x4] sm:$0xf]
        %v2607 = vld [vmem:[%s934 + $0x8] sm:$0xf]
        %v2608 = vld [vmem:[%s934 + $0xc] sm:$0xf]
        %v2609 = vld [vmem:[%s934 + $0x10] sm:$0xf]
        %v2610 = vld [vmem:[%s934 + $0x14] sm:$0xf]
        %v2611 = vld [vmem:[%s934 + $0x18] sm:$0xf]
        %v2612 = vld [vmem:[%s934 + $0x1c] sm:$0xf]
        %v2613 = vld [vmem:[%s934 + $0x20] sm:$0xf]
        %v2614 = vld [vmem:[%s934 + $0x24] sm:$0xf]
        %v2615 = vld [vmem:[%s934 + $0x28] sm:$0xf]
        %v2616 = vld [vmem:[%s934 + $0x2c] sm:$0xf]
        %v2617 = vld [vmem:[%s934 + $0x30] sm:$0xf]
        %v2618 = vld [vmem:[%s934 + $0x34] sm:$0xf]
        %v2619 = vld [vmem:[%s934 + $0x38] sm:$0xf]
        %v2620 = vld [vmem:[%s934 + $0x3c] sm:$0xf]
        %v2621 = vpack.c.bf16 %v2604, %v2603
        %v2622 = vld [vmem:[%s814] sm:$0x1]
        %v2624 = vlaneseq
        %v2625 = vshrl.u32 %v2624, 7
        %v2626 = vsub.s32 0, %v2625
        %v2627 = vrot.slane %v2622, %v2626
        %v2645 = vunpack.c.l.b16 %v2605
        %v2646 = vunpack.c.l.b16 %v2606
        %v2647 = vunpack.c.l.b16 %v2607
        %v2648 = vunpack.c.l.b16 %v2608
        %v2649 = vunpack.c.l.b16 %v2609
        %v2650 = vunpack.c.l.b16 %v2610
        %v2651 = vunpack.c.l.b16 %v2611
        %v2652 = vunpack.c.l.b16 %v2612
        %v2653 = vunpack.c.l.b16 %v2613
        %v2654 = vunpack.c.l.b16 %v2614
        %v2655 = vunpack.c.l.b16 %v2615
        %v2656 = vunpack.c.l.b16 %v2616
        %v2657 = vunpack.c.l.b16 %v2617
        %v2658 = vunpack.c.l.b16 %v2618
        %v2659 = vunpack.c.l.b16 %v2619
        %v2660 = vunpack.c.l.b16 %v2620
        %v2661 = vpack.c.b16 %v2646, %v2645
        %v2662 = vpack.c.b16 %v2648, %v2647
        %v2663 = vpack.c.b16 %v2650, %v2649
        %v2664 = vpack.c.b16 %v2652, %v2651
        %v2665 = vpack.c.b16 %v2654, %v2653
        %v2666 = vpack.c.b16 %v2656, %v2655
        %v2667 = vpack.c.b16 %v2658, %v2657
        %v2668 = vpack.c.b16 %v2660, %v2659
        %2677 = vmatprep.subr.bf16.mxu0 0
        %2678 = vmatpush1.bf16.msra.mxu0 %v2668
        %2679 = vmatprep.subr.bf16.mxu0 0
        %2680 = vmatpush1.bf16.msra.mxu0 %v2667
        %2681 = vmatprep.subr.bf16.mxu0 0
        %2682 = vmatpush1.bf16.msra.mxu0 %v2666
        %2683 = vmatprep.subr.bf16.mxu0 0
        %2684 = vmatpush1.bf16.msra.mxu0 %v2665
        %2685 = vmatprep.subr.bf16.mxu0 0
        %2686 = vmatpush1.bf16.msra.mxu0 %v2664
        %2687 = vmatprep.subr.bf16.mxu0 0
        %2688 = vmatpush1.bf16.msra.mxu0 %v2663
        %2689 = vmatprep.subr.bf16.mxu0 0
        %2690 = vmatpush1.bf16.msra.mxu0 %v2662
        %2691 = vmatprep.subr.bf16.mxu0 0
        %2692 = vmatpush1.bf16.msra.mxu0 %v2661
        %2693 = vmatprep.subr.bf16.mxu0 0
        %2694 = vmatpush2.bf16.msra.mxu0 0
        %2695 = vmatprep.subr.bf16.mxu0 0
        %2696 = vmatpush2.bf16.msra.mxu0 0
        %2697 = vmatprep.subr.bf16.mxu0 0
        %2698 = vmatpush2.bf16.msra.mxu0 0
        %2699 = vmatprep.subr.bf16.mxu0 0
        %2700 = vmatpush2.bf16.msra.mxu0 0
        %2701 = vmatprep.subr.bf16.mxu0 0
        %2702 = vmatpush2.bf16.msra.mxu0 0
        %2703 = vmatprep.subr.bf16.mxu0 0
        %2704 = vmatpush2.bf16.msra.mxu0 0
        %2705 = vmatprep.subr.bf16.mxu0 0
        %2706 = vmatpush2.bf16.msra.mxu0 0
        %2707 = vmatprep.subr.bf16.mxu0 0
        %2708 = vmatpush2.bf16.msra.mxu0 0
        %2709 = vmatprep.mubr.bf16.mxu0 0
        %2710 = vmatmul.mubr.bf16.gmra.mxu0 %v2621
        %v2711 = vpop.f32.mrf.mxu0
        %v2712 = vadd.f32 %v2627, %v2711
        %v2713 = vpop.f32.mrf.mxu0
        %v2714 = vpop.f32.mrf.mxu0
        %v2715 = vadd.f32 %v2627, %v2714
        %v2716 = vpop.f32.mrf.mxu0
        %2717 = vdwg.mxu0
        %v2718 = vmul.f32 %v2712, 0.5
        %v2719 = vmul.f32 %v2715, 0.5
        %v2720 = vmul.f32 %v2712, 0.044715
        %v2721 = vmul.f32 %v2715, 0.044715
        %v2722 = vmul.f32 %v2720, %v2712
        %v2723 = vmul.f32 %v2721, %v2715
        %v2724 = vmul.f32 %v2722, %v2712
        %v2725 = vmul.f32 %v2723, %v2715
        %v2726 = vadd.f32 %v2712, %v2724
        %v2727 = vadd.f32 %v2715, %v2725
        %v2728 = vmul.f32 %v2726, 0.7978846
        %v2729 = vmul.f32 %v2727, 0.7978846
        %v2730 = vtanh.pop %v2728
        %v2731 = vtanh.pop %v2729
        %v2732 = vadd.f32 %v2730, 1.0
        %v2733 = vadd.f32 %v2731, 1.0
        %v2734 = vmul.f32 %v2718, %v2732
        %v2735 = vmul.f32 %v2719, %v2733
        %v2736 = vld [vmem:[%s823] sm:$0xf]
        %v2737 = vld [vmem:[%s823 + $0x4] sm:$0xf]
        %v2738 = vld [vmem:[%s823 + $0x8] sm:$0xf]
        %v2739 = vld [vmem:[%s823 + $0xc] sm:$0xf]
        %v2740 = vld [vmem:[%s823 + $0x10] sm:$0xf]
        %v2741 = vld [vmem:[%s823 + $0x14] sm:$0xf]
        %v2742 = vld [vmem:[%s823 + $0x18] sm:$0xf]
        %v2743 = vld [vmem:[%s823 + $0x1c] sm:$0xf]
        %v2744 = vld [vmem:[%s823 + $0x20] sm:$0xf]
        %v2745 = vld [vmem:[%s823 + $0x24] sm:$0xf]
        %v2746 = vld [vmem:[%s823 + $0x28] sm:$0xf]
        %v2747 = vld [vmem:[%s823 + $0x2c] sm:$0xf]
        %v2748 = vld [vmem:[%s823 + $0x30] sm:$0xf]
        %v2749 = vld [vmem:[%s823 + $0x34] sm:$0xf]
        %v2750 = vld [vmem:[%s823 + $0x38] sm:$0xf]
        %v2751 = vld [vmem:[%s823 + $0x3c] sm:$0xf]
        %v2752 = vpack.c.bf16 %v2735, %v2734
        %v2769 = vunpack.c.l.b16 %v2736
        %v2770 = vunpack.c.l.b16 %v2737
        %v2771 = vunpack.c.l.b16 %v2738
        %v2772 = vunpack.c.l.b16 %v2739
        %v2773 = vunpack.c.l.b16 %v2740
        %v2774 = vunpack.c.l.b16 %v2741
        %v2775 = vunpack.c.l.b16 %v2742
        %v2776 = vunpack.c.l.b16 %v2743
        %v2777 = vunpack.c.l.b16 %v2744
        %v2778 = vunpack.c.l.b16 %v2745
        %v2779 = vunpack.c.l.b16 %v2746
        %v2780 = vunpack.c.l.b16 %v2747
        %v2781 = vunpack.c.l.b16 %v2748
        %v2782 = vunpack.c.l.b16 %v2749
        %v2783 = vunpack.c.l.b16 %v2750
        %v2784 = vunpack.c.l.b16 %v2751
        %v2785 = vpack.c.b16 %v2770, %v2769
        %v2786 = vpack.c.b16 %v2772, %v2771
        %v2787 = vpack.c.b16 %v2774, %v2773
        %v2788 = vpack.c.b16 %v2776, %v2775
        %v2789 = vpack.c.b16 %v2778, %v2777
        %v2790 = vpack.c.b16 %v2780, %v2779
        %v2791 = vpack.c.b16 %v2782, %v2781
        %v2792 = vpack.c.b16 %v2784, %v2783
        %2801 = vmatprep.subr.bf16.mxu0 0
        %2802 = vmatpush1.bf16.msra.mxu0 %v2792
        %2803 = vmatprep.subr.bf16.mxu0 0
        %2804 = vmatpush1.bf16.msra.mxu0 %v2791
        %2805 = vmatprep.subr.bf16.mxu0 0
        %2806 = vmatpush1.bf16.msra.mxu0 %v2790
        %2807 = vmatprep.subr.bf16.mxu0 0
        %2808 = vmatpush1.bf16.msra.mxu0 %v2789
        %2809 = vmatprep.subr.bf16.mxu0 0
        %2810 = vmatpush1.bf16.msra.mxu0 %v2788
        %2811 = vmatprep.subr.bf16.mxu0 0
        %2812 = vmatpush1.bf16.msra.mxu0 %v2787
        %2813 = vmatprep.subr.bf16.mxu0 0
        %2814 = vmatpush1.bf16.msra.mxu0 %v2786
        %2815 = vmatprep.subr.bf16.mxu0 0
        %2816 = vmatpush1.bf16.msra.mxu0 %v2785
        %2817 = vmatprep.subr.bf16.mxu0 0
        %2818 = vmatpush2.bf16.msra.mxu0 0
        %2819 = vmatprep.subr.bf16.mxu0 0
        %2820 = vmatpush2.bf16.msra.mxu0 0
        %2821 = vmatprep.subr.bf16.mxu0 0
        %2822 = vmatpush2.bf16.msra.mxu0 0
        %2823 = vmatprep.subr.bf16.mxu0 0
        %2824 = vmatpush2.bf16.msra.mxu0 0
        %2825 = vmatprep.subr.bf16.mxu0 0
        %2826 = vmatpush2.bf16.msra.mxu0 0
        %2827 = vmatprep.subr.bf16.mxu0 0
        %2828 = vmatpush2.bf16.msra.mxu0 0
        %2829 = vmatprep.subr.bf16.mxu0 0
        %2830 = vmatpush2.bf16.msra.mxu0 0
        %2831 = vmatprep.subr.bf16.mxu0 0
        %2832 = vmatpush2.bf16.msra.mxu0 0
        %2833 = vmatprep.mubr.bf16.mxu0 0
        %2834 = vmatmul.mubr.bf16.gmra.mxu0 %v2752
        %v2835 = vpop.f32.mrf.mxu0
        %v2836 = vadd.f32 0.0, %v2835
        %v2837 = vpop.f32.mrf.mxu0
        %v2838 = vpop.f32.mrf.mxu0
        %v2839 = vadd.f32 0.0, %v2838
        %v2840 = vpop.f32.mrf.mxu0
        %2841 = vdwg.mxu0
        %v2842 = vadd.f32 %v2563, %v2836
        %v2843 = vadd.f32 %v2564, %v2839
        %v2844 = vld [vmem:[%s831] sm:$0x1]
        %v2846 = vlaneseq
        %v2847 = vshrl.u32 %v2846, 7
        %v2848 = vsub.s32 0, %v2847
        %v2849 = vrot.slane %v2844, %v2848
        %v2851 = vadd.f32 %v2842, %v2849
        %v2852 = vadd.f32 %v2843, %v2849
        %2853 = vst [vmem:[#allocation2] sm:$0xff] %v2851
        %2854 = vst [vmem:[#allocation2 + $0x8] sm:$0xff] %v2852
        %p2855 = scmp.eq.s32.totalorder %s46, 11
        // Predicated region
        $region141: #{forward.3} parent=83 // pred_check
          %p2856 = pneg %p2855
        $region142: #{forward.3} parent=83 // pred_check_branch
          %2858 = sbr.rel (%p2856) target = $region144
        $region143: #{forward.3} parent=83 // pred_region
          %2859 = vst [vmem:[%s17] sm:$0xff] %v2851
          %2860 = vst [vmem:[%s17 + $0x8] sm:$0xff] %v2852
        $region144: #{forward.3} parent=83 // pred_fallthru
          _
        // Predicated region
        $region145: #{forward.3} parent=83 // pred_check
          %p2861 = pneg %p455
        $region146: #{forward.3} parent=83 // pred_check_branch
          %2863 = sbr.rel (%p2861) target = $region148
        $region147: #{forward.3} parent=83 // pred_region
          _
        $region148: #{forward.3} parent=83 // pred_fallthru
          _
        // Predicated region
        $region149: #{forward.3} parent=83 // pred_check
          %p2864 = pneg %p476
        $region150: #{forward.3} parent=83 // pred_check_branch
          %2866 = sbr.rel (%p2864) target = $region152
        $region151: #{forward.3} parent=83 // pred_region
          _
        $region152: #{forward.3} parent=83 // pred_fallthru
          _
        // Predicated region
        $region153: #{forward.3} parent=83 // pred_check
          %p2867 = pneg %p455
        $region154: #{forward.3} parent=83 // pred_check_branch
          %2869 = sbr.rel (%p2867) target = $region156
        $region155: #{forward.3} parent=83 // pred_region
          _
        $region156: #{forward.3} parent=83 // pred_fallthru
          _
        // Predicated region
        $region157: #{forward.3} parent=83 // pred_check
          %p2870 = pneg %p476
        $region158: #{forward.3} parent=83 // pred_check_branch
          %2872 = sbr.rel (%p2870) target = $region160
        $region159: #{forward.3} parent=83 // pred_region
          _
        $region160: #{forward.3} parent=83 // pred_fallthru
          _
      $region84: #{forward.3} parent=5 // pred_fallthru
        _
      %p2873 = scmp.le.s32.totalorder 2, %s41
      // Predicated region
      $region161: #{forward.3} parent=5 // pred_check
        %p2874 = pneg %p2873
      $region162: #{forward.3} parent=5 // pred_check_branch
        %2876 = sbr.rel (%p2874) target = $region164
      $region163: #{forward.3} parent=5 // pred_region
        %s2877 = ssub.s32 %s41, 2
      $region164: #{forward.3} parent=5 // pred_fallthru
        _
    $region6: #{forward.3} parent=1 // loop_footer
      %s45 = sadd.s32 1, %s41
    $region7: #{forward.3} parent=1 // loop_footer_branch
      %40 = sbr.rel target = $region3
    $region8: #{forward.3} parent=1 // loop_exit
      _
    %2878 = vsyncpa [#allocation4], 1
    %s2879 = scalar_lea.sflag [#allocation4], 1
    %2880 = vsyncpa %s2879, 1
    %2881 = vsyncpa [#allocation6], 1
    %2882 = vsyncpa [#allocation9], 1
    %s2883 = scalar_lea.sflag [#allocation9], 1
    %2884 = vsyncpa %s2883, 1
    %2885 = vsyncpa [#allocation12], 1
    %s2886 = scalar_lea.sflag [#allocation12], 1
    %2887 = vsyncpa %s2886, 1
    %2888 = vsyncpa [#allocation15], 1
    %s2889 = scalar_lea.sflag [#allocation15], 1
    %2890 = vsyncpa %s2889, 1
    %2891 = vsyncpa [#allocation18], 1
    %s2892 = scalar_lea.sflag [#allocation18], 1
    %2893 = vsyncpa %s2892, 1
    %2894 = vsyncpa [#allocation21], 1
    %s2895 = scalar_lea.sflag [#allocation21], 1
    %2896 = vsyncpa %s2895, 1

// kernel: forward.5
$region0: #{forward.5}
  #allocation0 [shape = 'u32[]', space=smem, size = 0x4, offset = 0x4, fixed_abs, tag = 'smem constant byte address 0x4 - core index']
  #allocation1 [shape = 'u32[144,128]{1,0:T(1,128)}', space=vmem, size = 0x12000, scoped, tag = 'internal scratch']
  %s0 = inlined_call_operand.vmem [shape: f32[16,128], index: 0, kind: input, shape index: {}]
  %s1 = inlined_call_operand.vmem [shape: f32[16,3], index: 1, kind: input, shape index: {}]
  %s2 = inlined_call_operand.vmem [shape: bf16[3,64], index: 2, kind: input, shape index: {}]
  %s3 = inlined_call_operand.vmem [shape: f32[1,64], index: 3, kind: input, shape index: {}]
  %s4 = inlined_call_operand.vmem [shape: bf16[128,64], index: 4, kind: input, shape index: {}]
  %s5 = inlined_call_operand.vmem [shape: f32[1,64], index: 5, kind: input, shape index: {}]
  %s6 = inlined_call_operand.vmem [shape: bf16[128,256], index: 6, kind: input, shape index: {}]
  %s7 = inlined_call_operand.vmem [shape: f32[1,256], index: 7, kind: input, shape index: {}]
  %s8 = inlined_call_operand.vmem [shape: bf16[256,128], index: 8, kind: input, shape index: {}]
  %s9 = inlined_call_operand.vmem [shape: f32[1,128], index: 9, kind: input, shape index: {}]
  %s10 = inlined_call_operand.vmem [shape: bf16[1024,128], index: 10, kind: input, shape index: {}]
  %s11 = inlined_call_operand.vmem [shape: f32[1,128], index: 11, kind: input, shape index: {}]
  %s12 = inlined_call_operand.vmem [shape: f32[2,128], index: 12, kind: output, shape index: {}]
  %s13 = sld [smem:[#allocation0]]
  $region58: #{forward.5} parent=0
    _
  %s15 = ssub.s32 1, %s13
  %s16 = scalar_select 0, %s15, %s13
  // Predicated region
  $region2: #{forward.5} parent=0 // pred_check
    _
  $region3: #{forward.5} parent=0 // pred_check_branch
    %18 = sbr.rel (0) target = $region5
  $region4: #{forward.5} parent=0 // pred_region
    _
  $region5: #{forward.5} parent=0 // pred_fallthru
    _
  // Predicated region
  $region6: #{forward.5} parent=0 // pred_check
    _
  $region7: #{forward.5} parent=0 // pred_check_branch
    %20 = sbr.rel (0) target = $region9
  $region8: #{forward.5} parent=0 // pred_region
    _
  $region9: #{forward.5} parent=0 // pred_fallthru
    _
  // Predicated region
  $region10: #{forward.5} parent=0 // pred_check
    _
  $region11: #{forward.5} parent=0 // pred_check_branch
    %22 = sbr.rel (0) target = $region13
  $region12: #{forward.5} parent=0 // pred_region
    _
  $region13: #{forward.5} parent=0 // pred_fallthru
    _
  // Predicated region
  $region14: #{forward.5} parent=0 // pred_check
    _
  $region15: #{forward.5} parent=0 // pred_check_branch
    %24 = sbr.rel (0) target = $region17
  $region16: #{forward.5} parent=0 // pred_region
    _
  $region17: #{forward.5} parent=0 // pred_fallthru
    _
  // Predicated region
  $region18: #{forward.5} parent=0 // pred_check
    _
  $region19: #{forward.5} parent=0 // pred_check_branch
    %26 = sbr.rel (0) target = $region21
  $region20: #{forward.5} parent=0 // pred_region
    _
  $region21: #{forward.5} parent=0 // pred_fallthru
    _
  // Predicated region
  $region22: #{forward.5} parent=0 // pred_check
    _
  $region23: #{forward.5} parent=0 // pred_check_branch
    %28 = sbr.rel (0) target = $region25
  $region24: #{forward.5} parent=0 // pred_region
    _
  $region25: #{forward.5} parent=0 // pred_fallthru
    _
  // Predicated region
  $region26: #{forward.5} parent=0 // pred_check
    _
  $region27: #{forward.5} parent=0 // pred_check_branch
    %30 = sbr.rel (0) target = $region29
  $region28: #{forward.5} parent=0 // pred_region
    _
  $region29: #{forward.5} parent=0 // pred_fallthru
    _
  // Predicated region
  $region30: #{forward.5} parent=0 // pred_check
    _
  $region31: #{forward.5} parent=0 // pred_check_branch
    %32 = sbr.rel (0) target = $region33
  $region32: #{forward.5} parent=0 // pred_region
    _
  $region33: #{forward.5} parent=0 // pred_fallthru
    _
  // Predicated region
  $region34: #{forward.5} parent=0 // pred_check
    _
  $region35: #{forward.5} parent=0 // pred_check_branch
    %34 = sbr.rel (0) target = $region37
  $region36: #{forward.5} parent=0 // pred_region
    _
  $region37: #{forward.5} parent=0 // pred_fallthru
    _
  // Predicated region
  $region38: #{forward.5} parent=0 // pred_check
    _
  $region39: #{forward.5} parent=0 // pred_check_branch
    %36 = sbr.rel (0) target = $region41
  $region40: #{forward.5} parent=0 // pred_region
    _
  $region41: #{forward.5} parent=0 // pred_fallthru
    _
  // Predicated region
  $region42: #{forward.5} parent=0 // pred_check
    _
  $region43: #{forward.5} parent=0 // pred_check_branch
    %38 = sbr.rel (0) target = $region45
  $region44: #{forward.5} parent=0 // pred_region
    _
  $region45: #{forward.5} parent=0 // pred_fallthru
    _
  // Predicated region
  $region46: #{forward.5} parent=0 // pred_check
    _
  $region47: #{forward.5} parent=0 // pred_check_branch
    %40 = sbr.rel (0) target = $region49
  $region48: #{forward.5} parent=0 // pred_region
    _
  $region49: #{forward.5} parent=0 // pred_fallthru
    _
  %v42 = vld [vmem:[%s1] sm:$0xff]
  %v43 = vld [vmem:[%s1 + $0x8] sm:$0xff]
  %v44 = vld [vmem:[%s2] sm:$0x3]
  %v45 = vpack.c.bf16 %v43, %v42
  %v46 = vld [vmem:[%s3] sm:$0x1]
  %v48 = vlaneseq
  %v49 = vshrl.u32 %v48, 7
  %v50 = vsub.s32 0, %v49
  %v51 = vrot.slane %v46, %v50
  %vm53 = vcmask 23552
  %v55 = vsel %vm53, %v45, 0
  %vm57 = vcmask 1040384
  %vm58 = vcmask 1041408
  %v59 = vsel %vm57, 4294967295, 65535
  %v60 = vsel %vm58, %v59, 0
  %v62 = vand.u32 %v44, %v60
  %64 = vmatprep.subr.bf16.mxu0 0
  %65 = vmatpush1.bf16.msra.mxu0 0
  %66 = vmatprep.subr.bf16.mxu0 0
  %67 = vmatpush1.bf16.msra.mxu0 0
  %68 = vmatprep.subr.bf16.mxu0 0
  %69 = vmatpush1.bf16.msra.mxu0 0
  %70 = vmatprep.subr.bf16.mxu0 0
  %71 = vmatpush1.bf16.msra.mxu0 0
  %72 = vmatprep.subr.bf16.mxu0 0
  %73 = vmatpush1.bf16.msra.mxu0 0
  %74 = vmatprep.subr.bf16.mxu0 0
  %75 = vmatpush1.bf16.msra.mxu0 0
  %76 = vmatprep.subr.bf16.mxu0 0
  %77 = vmatpush1.bf16.msra.mxu0 0
  %78 = vmatprep.subr.bf16.mxu0 0
  %79 = vmatpush1.bf16.msra.mxu0 %v62
  %80 = vmatprep.subr.bf16.mxu0 0
  %81 = vmatpush2.bf16.msra.mxu0 0
  %82 = vmatprep.subr.bf16.mxu0 0
  %83 = vmatpush2.bf16.msra.mxu0 0
  %84 = vmatprep.subr.bf16.mxu0 0
  %85 = vmatpush2.bf16.msra.mxu0 0
  %86 = vmatprep.subr.bf16.mxu0 0
  %87 = vmatpush2.bf16.msra.mxu0 0
  %88 = vmatprep.subr.bf16.mxu0 0
  %89 = vmatpush2.bf16.msra.mxu0 0
  %90 = vmatprep.subr.bf16.mxu0 0
  %91 = vmatpush2.bf16.msra.mxu0 0
  %92 = vmatprep.subr.bf16.mxu0 0
  %93 = vmatpush2.bf16.msra.mxu0 0
  %94 = vmatprep.subr.bf16.mxu0 0
  %95 = vmatpush2.bf16.msra.mxu0 0
  %96 = vmatprep.mubr.bf16.mxu0 0
  %97 = vmatmul.mubr.bf16.gmra.mxu0 %v55
  %v98 = vpop.f32.mrf.mxu0
  %v99 = vadd.f32 %v51, %v98
  %v100 = vpop.f32.mrf.mxu0
  %v101 = vpop.f32.mrf.mxu0
  %v102 = vadd.f32 %v51, %v101
  %v103 = vpop.f32.mrf.mxu0
  %104 = vdwg.mxu0
  %v105 = vmax.f32 %v99, 0.0
  %v106 = vmax.f32 %v102, 0.0
  %v107 = vld [vmem:[%s0] sm:$0xff]
  %v108 = vld [vmem:[%s0 + $0x8] sm:$0xff]
  %v109 = vld [vmem:[%s4] sm:$0xf]
  %v110 = vld [vmem:[%s4 + $0x4] sm:$0xf]
  %v111 = vld [vmem:[%s4 + $0x8] sm:$0xf]
  %v112 = vld [vmem:[%s4 + $0xc] sm:$0xf]
  %v113 = vld [vmem:[%s4 + $0x10] sm:$0xf]
  %v114 = vld [vmem:[%s4 + $0x14] sm:$0xf]
  %v115 = vld [vmem:[%s4 + $0x18] sm:$0xf]
  %v116 = vld [vmem:[%s4 + $0x1c] sm:$0xf]
  %v117 = vld [vmem:[%s4 + $0x20] sm:$0xf]
  %v118 = vld [vmem:[%s4 + $0x24] sm:$0xf]
  %v119 = vld [vmem:[%s4 + $0x28] sm:$0xf]
  %v120 = vld [vmem:[%s4 + $0x2c] sm:$0xf]
  %v121 = vld [vmem:[%s4 + $0x30] sm:$0xf]
  %v122 = vld [vmem:[%s4 + $0x34] sm:$0xf]
  %v123 = vld [vmem:[%s4 + $0x38] sm:$0xf]
  %v124 = vld [vmem:[%s4 + $0x3c] sm:$0xf]
  %v125 = vpack.c.bf16 %v108, %v107
  %v126 = vld [vmem:[%s5] sm:$0x1]
  %v128 = vlaneseq
  %v129 = vshrl.u32 %v128, 7
  %v130 = vsub.s32 0, %v129
  %v131 = vrot.slane %v126, %v130
  %v149 = vunpack.c.l.b16 %v109
  %v150 = vunpack.c.l.b16 %v110
  %v151 = vunpack.c.l.b16 %v111
  %v152 = vunpack.c.l.b16 %v112
  %v153 = vunpack.c.l.b16 %v113
  %v154 = vunpack.c.l.b16 %v114
  %v155 = vunpack.c.l.b16 %v115
  %v156 = vunpack.c.l.b16 %v116
  %v157 = vunpack.c.l.b16 %v117
  %v158 = vunpack.c.l.b16 %v118
  %v159 = vunpack.c.l.b16 %v119
  %v160 = vunpack.c.l.b16 %v120
  %v161 = vunpack.c.l.b16 %v121
  %v162 = vunpack.c.l.b16 %v122
  %v163 = vunpack.c.l.b16 %v123
  %v164 = vunpack.c.l.b16 %v124
  %v165 = vpack.c.b16 %v150, %v149
  %v166 = vpack.c.b16 %v152, %v151
  %v167 = vpack.c.b16 %v154, %v153
  %v168 = vpack.c.b16 %v156, %v155
  %v169 = vpack.c.b16 %v158, %v157
  %v170 = vpack.c.b16 %v160, %v159
  %v171 = vpack.c.b16 %v162, %v161
  %v172 = vpack.c.b16 %v164, %v163
  %181 = vmatprep.subr.bf16.mxu0 0
  %182 = vmatpush1.bf16.msra.mxu0 %v172
  %183 = vmatprep.subr.bf16.mxu0 0
  %184 = vmatpush1.bf16.msra.mxu0 %v171
  %185 = vmatprep.subr.bf16.mxu0 0
  %186 = vmatpush1.bf16.msra.mxu0 %v170
  %187 = vmatprep.subr.bf16.mxu0 0
  %188 = vmatpush1.bf16.msra.mxu0 %v169
  %189 = vmatprep.subr.bf16.mxu0 0
  %190 = vmatpush1.bf16.msra.mxu0 %v168
  %191 = vmatprep.subr.bf16.mxu0 0
  %192 = vmatpush1.bf16.msra.mxu0 %v167
  %193 = vmatprep.subr.bf16.mxu0 0
  %194 = vmatpush1.bf16.msra.mxu0 %v166
  %195 = vmatprep.subr.bf16.mxu0 0
  %196 = vmatpush1.bf16.msra.mxu0 %v165
  %197 = vmatprep.subr.bf16.mxu0 0
  %198 = vmatpush2.bf16.msra.mxu0 0
  %199 = vmatprep.subr.bf16.mxu0 0
  %200 = vmatpush2.bf16.msra.mxu0 0
  %201 = vmatprep.subr.bf16.mxu0 0
  %202 = vmatpush2.bf16.msra.mxu0 0
  %203 = vmatprep.subr.bf16.mxu0 0
  %204 = vmatpush2.bf16.msra.mxu0 0
  %205 = vmatprep.subr.bf16.mxu0 0
  %206 = vmatpush2.bf16.msra.mxu0 0
  %207 = vmatprep.subr.bf16.mxu0 0
  %208 = vmatpush2.bf16.msra.mxu0 0
  %209 = vmatprep.subr.bf16.mxu0 0
  %210 = vmatpush2.bf16.msra.mxu0 0
  %211 = vmatprep.subr.bf16.mxu0 0
  %212 = vmatpush2.bf16.msra.mxu0 0
  %213 = vmatprep.mubr.bf16.mxu0 0
  %214 = vmatmul.mubr.bf16.gmra.mxu0 %v125
  %v215 = vpop.f32.mrf.mxu0
  %v216 = vadd.f32 %v131, %v215
  %v217 = vpop.f32.mrf.mxu0
  %v218 = vpop.f32.mrf.mxu0
  %v219 = vadd.f32 %v131, %v218
  %v220 = vpop.f32.mrf.mxu0
  %221 = vdwg.mxu0
  %v222 = vmax.f32 %v216, 0.0
  %v223 = vmax.f32 %v219, 0.0
  %v224 = vld [vmem:[%s6] sm:$0xff]
  %v225 = vld [vmem:[%s6 + $0x8] sm:$0xff]
  %v226 = vld [vmem:[%s6 + $0x10] sm:$0xff]
  %v227 = vld [vmem:[%s6 + $0x18] sm:$0xff]
  %v228 = vld [vmem:[%s6 + $0x20] sm:$0xff]
  %v229 = vld [vmem:[%s6 + $0x28] sm:$0xff]
  %v230 = vld [vmem:[%s6 + $0x30] sm:$0xff]
  %v231 = vld [vmem:[%s6 + $0x38] sm:$0xff]
  %v232 = vld [vmem:[%s6 + $0x40] sm:$0xff]
  %v233 = vld [vmem:[%s6 + $0x48] sm:$0xff]
  %v234 = vld [vmem:[%s6 + $0x50] sm:$0xff]
  %v235 = vld [vmem:[%s6 + $0x58] sm:$0xff]
  %v236 = vld [vmem:[%s6 + $0x60] sm:$0xff]
  %v237 = vld [vmem:[%s6 + $0x68] sm:$0xff]
  %v238 = vld [vmem:[%s6 + $0x70] sm:$0xff]
  %v239 = vld [vmem:[%s6 + $0x78] sm:$0xff]
  %v240 = vpack.c.bf16 %v106, %v105
  %v241 = vpack.c.bf16 %v223, %v222
  %v250 = vunpack.c.l.b16 %v232
  %v251 = vunpack.c.h.b16 %v232
  %v252 = vunpack.c.l.b16 %v233
  %v253 = vunpack.c.h.b16 %v233
  %v254 = vunpack.c.l.b16 %v234
  %v255 = vunpack.c.h.b16 %v234
  %v256 = vunpack.c.l.b16 %v235
  %v257 = vunpack.c.h.b16 %v235
  %v258 = vunpack.c.l.b16 %v236
  %v259 = vunpack.c.h.b16 %v236
  %v260 = vunpack.c.l.b16 %v237
  %v261 = vunpack.c.h.b16 %v237
  %v262 = vunpack.c.l.b16 %v238
  %v263 = vunpack.c.h.b16 %v238
  %v264 = vunpack.c.l.b16 %v239
  %v265 = vunpack.c.h.b16 %v239
  %v266 = vpack.c.b16 %v252, %v250
  %v267 = vpack.c.b16 %v253, %v251
  %v268 = vpack.c.b16 %v256, %v254
  %v269 = vpack.c.b16 %v257, %v255
  %v270 = vpack.c.b16 %v260, %v258
  %v271 = vpack.c.b16 %v261, %v259
  %v272 = vpack.c.b16 %v264, %v262
  %v273 = vpack.c.b16 %v265, %v263
  %vm282 = vcmask 523264
  %v284 = vsel %vm282, %v241, 0
  %286 = vmatprep.subr.bf16.mxu0 0
  %287 = vmatpush1.bf16.msra.mxu0 0
  %288 = vmatprep.subr.bf16.mxu0 0
  %289 = vmatpush1.bf16.msra.mxu0 0
  %290 = vmatprep.subr.bf16.mxu0 0
  %291 = vmatpush1.bf16.msra.mxu0 0
  %292 = vmatprep.subr.bf16.mxu0 0
  %293 = vmatpush1.bf16.msra.mxu0 0
  %294 = vmatprep.subr.bf16.mxu0 %v273
  %295 = vmatpush1.bf16.msra.mxu0 %v272
  %296 = vmatprep.subr.bf16.mxu0 %v271
  %297 = vmatpush1.bf16.msra.mxu0 %v270
  %298 = vmatprep.subr.bf16.mxu0 %v269
  %299 = vmatpush1.bf16.msra.mxu0 %v268
  %300 = vmatprep.subr.bf16.mxu0 %v267
  %301 = vmatpush1.bf16.msra.mxu0 %v266
  %302 = vmatprep.subr.bf16.mxu0 0
  %303 = vmatpush2.bf16.msra.mxu0 0
  %304 = vmatprep.subr.bf16.mxu0 0
  %305 = vmatpush2.bf16.msra.mxu0 0
  %306 = vmatprep.subr.bf16.mxu0 0
  %307 = vmatpush2.bf16.msra.mxu0 0
  %308 = vmatprep.subr.bf16.mxu0 0
  %309 = vmatpush2.bf16.msra.mxu0 0
  %310 = vmatprep.subr.bf16.mxu0 0
  %311 = vmatpush2.bf16.msra.mxu0 0
  %312 = vmatprep.subr.bf16.mxu0 0
  %313 = vmatpush2.bf16.msra.mxu0 0
  %314 = vmatprep.subr.bf16.mxu0 0
  %315 = vmatpush2.bf16.msra.mxu0 0
  %316 = vmatprep.subr.bf16.mxu0 0
  %317 = vmatpush2.bf16.msra.mxu0 0
  %318 = vmatprep.mubr.bf16.mxu0 0
  %319 = vmatmul.mubr.bf16.gmra.mxu0 %v284
  %v320 = vpop.f32.mrf.mxu0
  %v321 = vadd.f32 0.0, %v320
  %v322 = vpop.f32.mrf.mxu0
  %v323 = vadd.f32 0.0, %v322
  %v324 = vpop.f32.mrf.mxu0
  %v325 = vadd.f32 0.0, %v324
  %v326 = vpop.f32.mrf.mxu0
  %v327 = vadd.f32 0.0, %v326
  %328 = vdwg.mxu0
  %v337 = vunpack.c.l.b16 %v224
  %v338 = vunpack.c.h.b16 %v224
  %v339 = vunpack.c.l.b16 %v225
  %v340 = vunpack.c.h.b16 %v225
  %v341 = vunpack.c.l.b16 %v226
  %v342 = vunpack.c.h.b16 %v226
  %v343 = vunpack.c.l.b16 %v227
  %v344 = vunpack.c.h.b16 %v227
  %v345 = vunpack.c.l.b16 %v228
  %v346 = vunpack.c.h.b16 %v228
  %v347 = vunpack.c.l.b16 %v229
  %v348 = vunpack.c.h.b16 %v229
  %v349 = vunpack.c.l.b16 %v230
  %v350 = vunpack.c.h.b16 %v230
  %v351 = vunpack.c.l.b16 %v231
  %v352 = vunpack.c.h.b16 %v231
  %v353 = vpack.c.b16 %v339, %v337
  %v354 = vpack.c.b16 %v340, %v338
  %v355 = vpack.c.b16 %v343, %v341
  %v356 = vpack.c.b16 %v344, %v342
  %v357 = vpack.c.b16 %v347, %v345
  %v358 = vpack.c.b16 %v348, %v346
  %v359 = vpack.c.b16 %v351, %v349
  %v360 = vpack.c.b16 %v352, %v350
  %v370 = vsel %vm282, %v240, 0
  %372 = vmatprep.subr.bf16.mxu0 0
  %373 = vmatpush1.bf16.msra.mxu0 0
  %374 = vmatprep.subr.bf16.mxu0 0
  %375 = vmatpush1.bf16.msra.mxu0 0
  %376 = vmatprep.subr.bf16.mxu0 0
  %377 = vmatpush1.bf16.msra.mxu0 0
  %378 = vmatprep.subr.bf16.mxu0 0
  %379 = vmatpush1.bf16.msra.mxu0 0
  %380 = vmatprep.subr.bf16.mxu0 %v360
  %381 = vmatpush1.bf16.msra.mxu0 %v359
  %382 = vmatprep.subr.bf16.mxu0 %v358
  %383 = vmatpush1.bf16.msra.mxu0 %v357
  %384 = vmatprep.subr.bf16.mxu0 %v356
  %385 = vmatpush1.bf16.msra.mxu0 %v355
  %386 = vmatprep.subr.bf16.mxu0 %v354
  %387 = vmatpush1.bf16.msra.mxu0 %v353
  %388 = vmatprep.subr.bf16.mxu0 0
  %389 = vmatpush2.bf16.msra.mxu0 0
  %390 = vmatprep.subr.bf16.mxu0 0
  %391 = vmatpush2.bf16.msra.mxu0 0
  %392 = vmatprep.subr.bf16.mxu0 0
  %393 = vmatpush2.bf16.msra.mxu0 0
  %394 = vmatprep.subr.bf16.mxu0 0
  %395 = vmatpush2.bf16.msra.mxu0 0
  %396 = vmatprep.subr.bf16.mxu0 0
  %397 = vmatpush2.bf16.msra.mxu0 0
  %398 = vmatprep.subr.bf16.mxu0 0
  %399 = vmatpush2.bf16.msra.mxu0 0
  %400 = vmatprep.subr.bf16.mxu0 0
  %401 = vmatpush2.bf16.msra.mxu0 0
  %402 = vmatprep.subr.bf16.mxu0 0
  %403 = vmatpush2.bf16.msra.mxu0 0
  %404 = vmatprep.mubr.bf16.mxu0 0
  %405 = vmatmul.mubr.bf16.gmra.mxu0 %v370
  %v406 = vpop.f32.mrf.mxu0
  %v407 = vadd.f32 %v321, %v406
  %v408 = vpop.f32.mrf.mxu0
  %v409 = vadd.f32 %v323, %v408
  %v410 = vpop.f32.mrf.mxu0
  %v411 = vadd.f32 %v325, %v410
  %v412 = vpop.f32.mrf.mxu0
  %v413 = vadd.f32 %v327, %v412
  %414 = vdwg.mxu0
  %v415 = vld [vmem:[%s7] sm:$0x3]
  %v417 = vlaneseq
  %v418 = vshrl.u32 %v417, 7
  %v419 = vsub.s32 0, %v418
  %v420 = vrot.slane %v415, %v419
  %v421 = vlaneseq
  %v422 = vshrl.u32 %v421, 7
  %v423 = vsub.s32 1, %v422
  %v424 = vrot.slane %v415, %v423
  %v427 = vadd.f32 %v407, %v420
  %v428 = vadd.f32 %v409, %v424
  %v429 = vadd.f32 %v411, %v420
  %v430 = vadd.f32 %v413, %v424
  %v431 = vmax.f32 %v427, 0.0
  %v432 = vmax.f32 %v428, 0.0
  %v433 = vmax.f32 %v429, 0.0
  %v434 = vmax.f32 %v430, 0.0
  %v435 = vld [vmem:[%s8] sm:$0xf]
  %v436 = vld [vmem:[%s8 + $0x4] sm:$0xf]
  %v437 = vld [vmem:[%s8 + $0x8] sm:$0xf]
  %v438 = vld [vmem:[%s8 + $0xc] sm:$0xf]
  %v439 = vld [vmem:[%s8 + $0x10] sm:$0xf]
  %v440 = vld [vmem:[%s8 + $0x14] sm:$0xf]
  %v441 = vld [vmem:[%s8 + $0x18] sm:$0xf]
  %v442 = vld [vmem:[%s8 + $0x1c] sm:$0xf]
  %v443 = vld [vmem:[%s8 + $0x20] sm:$0xf]
  %v444 = vld [vmem:[%s8 + $0x24] sm:$0xf]
  %v445 = vld [vmem:[%s8 + $0x28] sm:$0xf]
  %v446 = vld [vmem:[%s8 + $0x2c] sm:$0xf]
  %v447 = vld [vmem:[%s8 + $0x30] sm:$0xf]
  %v448 = vld [vmem:[%s8 + $0x34] sm:$0xf]
  %v449 = vld [vmem:[%s8 + $0x38] sm:$0xf]
  %v450 = vld [vmem:[%s8 + $0x3c] sm:$0xf]
  %v451 = vld [vmem:[%s8 + $0x40] sm:$0xf]
  %v452 = vld [vmem:[%s8 + $0x44] sm:$0xf]
  %v453 = vld [vmem:[%s8 + $0x48] sm:$0xf]
  %v454 = vld [vmem:[%s8 + $0x4c] sm:$0xf]
  %v455 = vld [vmem:[%s8 + $0x50] sm:$0xf]
  %v456 = vld [vmem:[%s8 + $0x54] sm:$0xf]
  %v457 = vld [vmem:[%s8 + $0x58] sm:$0xf]
  %v458 = vld [vmem:[%s8 + $0x5c] sm:$0xf]
  %v459 = vld [vmem:[%s8 + $0x60] sm:$0xf]
  %v460 = vld [vmem:[%s8 + $0x64] sm:$0xf]
  %v461 = vld [vmem:[%s8 + $0x68] sm:$0xf]
  %v462 = vld [vmem:[%s8 + $0x6c] sm:$0xf]
  %v463 = vld [vmem:[%s8 + $0x70] sm:$0xf]
  %v464 = vld [vmem:[%s8 + $0x74] sm:$0xf]
  %v465 = vld [vmem:[%s8 + $0x78] sm:$0xf]
  %v466 = vld [vmem:[%s8 + $0x7c] sm:$0xf]
  %v467 = vpack.c.bf16 %v433, %v431
  %v468 = vpack.c.bf16 %v434, %v432
  %v469 = vld [vmem:[%s9] sm:$0x1]
  %v471 = vlaneseq
  %v472 = vshrl.u32 %v471, 7
  %v473 = vsub.s32 0, %v472
  %v474 = vrot.slane %v469, %v473
  %v508 = vunpack.c.l.b16 %v435
  %v509 = vunpack.c.l.b16 %v436
  %v510 = vunpack.c.l.b16 %v437
  %v511 = vunpack.c.l.b16 %v438
  %v512 = vunpack.c.l.b16 %v439
  %v513 = vunpack.c.l.b16 %v440
  %v514 = vunpack.c.l.b16 %v441
  %v515 = vunpack.c.l.b16 %v442
  %v516 = vunpack.c.l.b16 %v443
  %v517 = vunpack.c.l.b16 %v444
  %v518 = vunpack.c.l.b16 %v445
  %v519 = vunpack.c.l.b16 %v446
  %v520 = vunpack.c.l.b16 %v447
  %v521 = vunpack.c.l.b16 %v448
  %v522 = vunpack.c.l.b16 %v449
  %v523 = vunpack.c.l.b16 %v450
  %v524 = vunpack.c.l.b16 %v451
  %v525 = vunpack.c.l.b16 %v452
  %v526 = vunpack.c.l.b16 %v453
  %v527 = vunpack.c.l.b16 %v454
  %v528 = vunpack.c.l.b16 %v455
  %v529 = vunpack.c.l.b16 %v456
  %v530 = vunpack.c.l.b16 %v457
  %v531 = vunpack.c.l.b16 %v458
  %v532 = vunpack.c.l.b16 %v459
  %v533 = vunpack.c.l.b16 %v460
  %v534 = vunpack.c.l.b16 %v461
  %v535 = vunpack.c.l.b16 %v462
  %v536 = vunpack.c.l.b16 %v463
  %v537 = vunpack.c.l.b16 %v464
  %v538 = vunpack.c.l.b16 %v465
  %v539 = vunpack.c.l.b16 %v466
  %v540 = vpack.c.b16 %v509, %v508
  %v541 = vpack.c.b16 %v511, %v510
  %v542 = vpack.c.b16 %v513, %v512
  %v543 = vpack.c.b16 %v515, %v514
  %v544 = vpack.c.b16 %v517, %v516
  %v545 = vpack.c.b16 %v519, %v518
  %v546 = vpack.c.b16 %v521, %v520
  %v547 = vpack.c.b16 %v523, %v522
  %v548 = vpack.c.b16 %v525, %v524
  %v549 = vpack.c.b16 %v527, %v526
  %v550 = vpack.c.b16 %v529, %v528
  %v551 = vpack.c.b16 %v531, %v530
  %v552 = vpack.c.b16 %v533, %v532
  %v553 = vpack.c.b16 %v535, %v534
  %v554 = vpack.c.b16 %v537, %v536
  %v555 = vpack.c.b16 %v539, %v538
  %572 = vmatprep.subr.bf16.mxu0 0
  %573 = vmatpush1.bf16.msra.mxu0 %v547
  %574 = vmatprep.subr.bf16.mxu0 0
  %575 = vmatpush1.bf16.msra.mxu0 %v546
  %576 = vmatprep.subr.bf16.mxu0 0
  %577 = vmatpush1.bf16.msra.mxu0 %v545
  %578 = vmatprep.subr.bf16.mxu0 0
  %579 = vmatpush1.bf16.msra.mxu0 %v544
  %580 = vmatprep.subr.bf16.mxu0 0
  %581 = vmatpush1.bf16.msra.mxu0 %v543
  %582 = vmatprep.subr.bf16.mxu0 0
  %583 = vmatpush1.bf16.msra.mxu0 %v542
  %584 = vmatprep.subr.bf16.mxu0 0
  %585 = vmatpush1.bf16.msra.mxu0 %v541
  %586 = vmatprep.subr.bf16.mxu0 0
  %587 = vmatpush1.bf16.msra.mxu0 %v540
  %588 = vmatprep.subr.bf16.mxu0 0
  %589 = vmatpush2.bf16.msra.mxu0 %v555
  %590 = vmatprep.subr.bf16.mxu0 0
  %591 = vmatpush2.bf16.msra.mxu0 %v554
  %592 = vmatprep.subr.bf16.mxu0 0
  %593 = vmatpush2.bf16.msra.mxu0 %v553
  %594 = vmatprep.subr.bf16.mxu0 0
  %595 = vmatpush2.bf16.msra.mxu0 %v552
  %596 = vmatprep.subr.bf16.mxu0 0
  %597 = vmatpush2.bf16.msra.mxu0 %v551
  %598 = vmatprep.subr.bf16.mxu0 0
  %599 = vmatpush2.bf16.msra.mxu0 %v550
  %600 = vmatprep.subr.bf16.mxu0 0
  %601 = vmatpush2.bf16.msra.mxu0 %v549
  %602 = vmatprep.subr.bf16.mxu0 0
  %603 = vmatpush2.bf16.msra.mxu0 %v548
  %604 = vmatprep.mubr.bf16.mxu0 %v468
  %605 = vmatmul.mubr.bf16.gmra.mxu0 %v467
  %v606 = vpop.f32.mrf.mxu0
  %v607 = vadd.f32 %v474, %v606
  %v608 = vpop.f32.mrf.mxu0
  %v609 = vpop.f32.mrf.mxu0
  %v610 = vadd.f32 %v474, %v609
  %v611 = vpop.f32.mrf.mxu0
  %612 = vdwg.mxu0
  %v613 = vmax.f32 %v607, 0.0
  %v614 = vmax.f32 %v610, 0.0
  %v615 = vld [vmem:[%s10] sm:$0xf]
  %v616 = vld [vmem:[%s10 + $0x4] sm:$0xf]
  %v617 = vld [vmem:[%s10 + $0x8] sm:$0xf]
  %v618 = vld [vmem:[%s10 + $0xc] sm:$0xf]
  %v619 = vld [vmem:[%s10 + $0x10] sm:$0xf]
  %v620 = vld [vmem:[%s10 + $0x14] sm:$0xf]
  %v621 = vld [vmem:[%s10 + $0x18] sm:$0xf]
  %v622 = vld [vmem:[%s10 + $0x1c] sm:$0xf]
  %v623 = vld [vmem:[%s10 + $0x20] sm:$0xf]
  %v624 = vld [vmem:[%s10 + $0x24] sm:$0xf]
  %v625 = vld [vmem:[%s10 + $0x28] sm:$0xf]
  %v626 = vld [vmem:[%s10 + $0x2c] sm:$0xf]
  %v627 = vld [vmem:[%s10 + $0x30] sm:$0xf]
  %v628 = vld [vmem:[%s10 + $0x34] sm:$0xf]
  %v629 = vld [vmem:[%s10 + $0x38] sm:$0xf]
  %v630 = vld [vmem:[%s10 + $0x3c] sm:$0xf]
  %v631 = vpack.c.bf16 %v613, %v613
  %v632 = vpack.c.bf16 %v614, %v614
  %v633 = vld [vmem:[%s10 + $0x40] sm:$0xf]
  %v634 = vld [vmem:[%s10 + $0x44] sm:$0xf]
  %v635 = vld [vmem:[%s10 + $0x48] sm:$0xf]
  %v636 = vld [vmem:[%s10 + $0x4c] sm:$0xf]
  %v637 = vld [vmem:[%s10 + $0x50] sm:$0xf]
  %v638 = vld [vmem:[%s10 + $0x54] sm:$0xf]
  %v639 = vld [vmem:[%s10 + $0x58] sm:$0xf]
  %v640 = vld [vmem:[%s10 + $0x5c] sm:$0xf]
  %v641 = vld [vmem:[%s10 + $0x60] sm:$0xf]
  %v642 = vld [vmem:[%s10 + $0x64] sm:$0xf]
  %v643 = vld [vmem:[%s10 + $0x68] sm:$0xf]
  %v644 = vld [vmem:[%s10 + $0x6c] sm:$0xf]
  %v645 = vld [vmem:[%s10 + $0x70] sm:$0xf]
  %v646 = vld [vmem:[%s10 + $0x74] sm:$0xf]
  %v647 = vld [vmem:[%s10 + $0x78] sm:$0xf]
  %v648 = vld [vmem:[%s10 + $0x7c] sm:$0xf]
  %v651 = vunpack.c.l.b16 %v631
  %v652 = vunpack.c.l.b16 %v632
  %v653 = vrot.slane %v651, 1
  %vm654 = vcmask 1041409
  %v655 = vsel %vm654, %v652, %v653
  %v656 = vpack.c.b16 %v655, %v655
  %v674 = vunpack.c.l.b16 %v633
  %v675 = vunpack.c.l.b16 %v634
  %v676 = vunpack.c.l.b16 %v635
  %v677 = vunpack.c.l.b16 %v636
  %v678 = vunpack.c.l.b16 %v637
  %v679 = vunpack.c.l.b16 %v638
  %v680 = vunpack.c.l.b16 %v639
  %v681 = vunpack.c.l.b16 %v640
  %v682 = vunpack.c.l.b16 %v641
  %v683 = vunpack.c.l.b16 %v642
  %v684 = vunpack.c.l.b16 %v643
  %v685 = vunpack.c.l.b16 %v644
  %v686 = vunpack.c.l.b16 %v645
  %v687 = vunpack.c.l.b16 %v646
  %v688 = vunpack.c.l.b16 %v647
  %v689 = vunpack.c.l.b16 %v648
  %v690 = vpack.c.b16 %v675, %v674
  %v691 = vpack.c.b16 %v677, %v676
  %v692 = vpack.c.b16 %v679, %v678
  %v693 = vpack.c.b16 %v681, %v680
  %v694 = vpack.c.b16 %v683, %v682
  %v695 = vpack.c.b16 %v685, %v684
  %v696 = vpack.c.b16 %v687, %v686
  %v697 = vpack.c.b16 %v689, %v688
  %706 = vmatprep.subr.bf16.mxu0 0
  %707 = vmatpush1.bf16.msra.mxu0 %v697
  %708 = vmatprep.subr.bf16.mxu0 0
  %709 = vmatpush1.bf16.msra.mxu0 %v696
  %710 = vmatprep.subr.bf16.mxu0 0
  %711 = vmatpush1.bf16.msra.mxu0 %v695
  %712 = vmatprep.subr.bf16.mxu0 0
  %713 = vmatpush1.bf16.msra.mxu0 %v694
  %714 = vmatprep.subr.bf16.mxu0 0
  %715 = vmatpush1.bf16.msra.mxu0 %v693
  %716 = vmatprep.subr.bf16.mxu0 0
  %717 = vmatpush1.bf16.msra.mxu0 %v692
  %718 = vmatprep.subr.bf16.mxu0 0
  %719 = vmatpush1.bf16.msra.mxu0 %v691
  %720 = vmatprep.subr.bf16.mxu0 0
  %721 = vmatpush1.bf16.msra.mxu0 %v690
  %722 = vmatprep.subr.bf16.mxu0 0
  %723 = vmatpush2.bf16.msra.mxu0 0
  %724 = vmatprep.subr.bf16.mxu0 0
  %725 = vmatpush2.bf16.msra.mxu0 0
  %726 = vmatprep.subr.bf16.mxu0 0
  %727 = vmatpush2.bf16.msra.mxu0 0
  %728 = vmatprep.subr.bf16.mxu0 0
  %729 = vmatpush2.bf16.msra.mxu0 0
  %730 = vmatprep.subr.bf16.mxu0 0
  %731 = vmatpush2.bf16.msra.mxu0 0
  %732 = vmatprep.subr.bf16.mxu0 0
  %733 = vmatpush2.bf16.msra.mxu0 0
  %734 = vmatprep.subr.bf16.mxu0 0
  %735 = vmatpush2.bf16.msra.mxu0 0
  %736 = vmatprep.subr.bf16.mxu0 0
  %737 = vmatpush2.bf16.msra.mxu0 0
  %738 = vmatprep.mubr.bf16.mxu0 0
  %739 = vmatmul.mubr.bf16.gmra.mxu0 %v656
  %v740 = vpop.f32.mrf.mxu0
  %v741 = vadd.f32 0.0, %v740
  %v742 = vpop.f32.mrf.mxu0
  %v743 = vpop.f32.mrf.mxu0
  %v744 = vpop.f32.mrf.mxu0
  %745 = vdwg.mxu0
  %v746 = vrot.slane %v652, 7
  %v747 = vsel %vm654, %v746, %v651
  %v748 = vpack.c.b16 %v747, %v747
  %v766 = vunpack.c.l.b16 %v615
  %v767 = vunpack.c.l.b16 %v616
  %v768 = vunpack.c.l.b16 %v617
  %v769 = vunpack.c.l.b16 %v618
  %v770 = vunpack.c.l.b16 %v619
  %v771 = vunpack.c.l.b16 %v620
  %v772 = vunpack.c.l.b16 %v621
  %v773 = vunpack.c.l.b16 %v622
  %v774 = vunpack.c.l.b16 %v623
  %v775 = vunpack.c.l.b16 %v624
  %v776 = vunpack.c.l.b16 %v625
  %v777 = vunpack.c.l.b16 %v626
  %v778 = vunpack.c.l.b16 %v627
  %v779 = vunpack.c.l.b16 %v628
  %v780 = vunpack.c.l.b16 %v629
  %v781 = vunpack.c.l.b16 %v630
  %v782 = vpack.c.b16 %v767, %v766
  %v783 = vpack.c.b16 %v769, %v768
  %v784 = vpack.c.b16 %v771, %v770
  %v785 = vpack.c.b16 %v773, %v772
  %v786 = vpack.c.b16 %v775, %v774
  %v787 = vpack.c.b16 %v777, %v776
  %v788 = vpack.c.b16 %v779, %v778
  %v789 = vpack.c.b16 %v781, %v780
  %798 = vmatprep.subr.bf16.mxu0 0
  %799 = vmatpush1.bf16.msra.mxu0 %v789
  %800 = vmatprep.subr.bf16.mxu0 0
  %801 = vmatpush1.bf16.msra.mxu0 %v788
  %802 = vmatprep.subr.bf16.mxu0 0
  %803 = vmatpush1.bf16.msra.mxu0 %v787
  %804 = vmatprep.subr.bf16.mxu0 0
  %805 = vmatpush1.bf16.msra.mxu0 %v786
  %806 = vmatprep.subr.bf16.mxu0 0
  %807 = vmatpush1.bf16.msra.mxu0 %v785
  %808 = vmatprep.subr.bf16.mxu0 0
  %809 = vmatpush1.bf16.msra.mxu0 %v784
  %810 = vmatprep.subr.bf16.mxu0 0
  %811 = vmatpush1.bf16.msra.mxu0 %v783
  %812 = vmatprep.subr.bf16.mxu0 0
  %813 = vmatpush1.bf16.msra.mxu0 %v782
  %814 = vmatprep.subr.bf16.mxu0 0
  %815 = vmatpush2.bf16.msra.mxu0 0
  %816 = vmatprep.subr.bf16.mxu0 0
  %817 = vmatpush2.bf16.msra.mxu0 0
  %818 = vmatprep.subr.bf16.mxu0 0
  %819 = vmatpush2.bf16.msra.mxu0 0
  %820 = vmatprep.subr.bf16.mxu0 0
  %821 = vmatpush2.bf16.msra.mxu0 0
  %822 = vmatprep.subr.bf16.mxu0 0
  %823 = vmatpush2.bf16.msra.mxu0 0
  %824 = vmatprep.subr.bf16.mxu0 0
  %825 = vmatpush2.bf16.msra.mxu0 0
  %826 = vmatprep.subr.bf16.mxu0 0
  %827 = vmatpush2.bf16.msra.mxu0 0
  %828 = vmatprep.subr.bf16.mxu0 0
  %829 = vmatpush2.bf16.msra.mxu0 0
  %830 = vmatprep.mubr.bf16.mxu0 0
  %831 = vmatmul.mubr.bf16.gmra.mxu0 %v748
  %v832 = vpop.f32.mrf.mxu0
  %v833 = vadd.f32 %v741, %v832
  %v834 = vpop.f32.mrf.mxu0
  %v835 = vpop.f32.mrf.mxu0
  %v836 = vpop.f32.mrf.mxu0
  %837 = vdwg.mxu0
  %v838 = vld [vmem:[%s10 + $0x80] sm:$0xf]
  %v839 = vld [vmem:[%s10 + $0x84] sm:$0xf]
  %v840 = vld [vmem:[%s10 + $0x88] sm:$0xf]
  %v841 = vld [vmem:[%s10 + $0x8c] sm:$0xf]
  %v842 = vld [vmem:[%s10 + $0x90] sm:$0xf]
  %v843 = vld [vmem:[%s10 + $0x94] sm:$0xf]
  %v844 = vld [vmem:[%s10 + $0x98] sm:$0xf]
  %v845 = vld [vmem:[%s10 + $0x9c] sm:$0xf]
  %v846 = vld [vmem:[%s10 + $0xa0] sm:$0xf]
  %v847 = vld [vmem:[%s10 + $0xa4] sm:$0xf]
  %v848 = vld [vmem:[%s10 + $0xa8] sm:$0xf]
  %v849 = vld [vmem:[%s10 + $0xac] sm:$0xf]
  %v850 = vld [vmem:[%s10 + $0xb0] sm:$0xf]
  %v851 = vld [vmem:[%s10 + $0xb4] sm:$0xf]
  %v852 = vld [vmem:[%s10 + $0xb8] sm:$0xf]
  %v853 = vld [vmem:[%s10 + $0xbc] sm:$0xf]
  %v854 = vrot.slane %v651, 2
  %v855 = vrot.slane %v652, 1
  %v856 = vsel %vm654, %v855, %v854
  %v857 = vpack.c.b16 %v856, %v856
  %v875 = vunpack.c.l.b16 %v838
  %v876 = vunpack.c.l.b16 %v839
  %v877 = vunpack.c.l.b16 %v840
  %v878 = vunpack.c.l.b16 %v841
  %v879 = vunpack.c.l.b16 %v842
  %v880 = vunpack.c.l.b16 %v843
  %v881 = vunpack.c.l.b16 %v844
  %v882 = vunpack.c.l.b16 %v845
  %v883 = vunpack.c.l.b16 %v846
  %v884 = vunpack.c.l.b16 %v847
  %v885 = vunpack.c.l.b16 %v848
  %v886 = vunpack.c.l.b16 %v849
  %v887 = vunpack.c.l.b16 %v850
  %v888 = vunpack.c.l.b16 %v851
  %v889 = vunpack.c.l.b16 %v852
  %v890 = vunpack.c.l.b16 %v853
  %v891 = vpack.c.b16 %v876, %v875
  %v892 = vpack.c.b16 %v878, %v877
  %v893 = vpack.c.b16 %v880, %v879
  %v894 = vpack.c.b16 %v882, %v881
  %v895 = vpack.c.b16 %v884, %v883
  %v896 = vpack.c.b16 %v886, %v885
  %v897 = vpack.c.b16 %v888, %v887
  %v898 = vpack.c.b16 %v890, %v889
  %907 = vmatprep.subr.bf16.mxu0 0
  %908 = vmatpush1.bf16.msra.mxu0 %v898
  %909 = vmatprep.subr.bf16.mxu0 0
  %910 = vmatpush1.bf16.msra.mxu0 %v897
  %911 = vmatprep.subr.bf16.mxu0 0
  %912 = vmatpush1.bf16.msra.mxu0 %v896
  %913 = vmatprep.subr.bf16.mxu0 0
  %914 = vmatpush1.bf16.msra.mxu0 %v895
  %915 = vmatprep.subr.bf16.mxu0 0
  %916 = vmatpush1.bf16.msra.mxu0 %v894
  %917 = vmatprep.subr.bf16.mxu0 0
  %918 = vmatpush1.bf16.msra.mxu0 %v893
  %919 = vmatprep.subr.bf16.mxu0 0
  %920 = vmatpush1.bf16.msra.mxu0 %v892
  %921 = vmatprep.subr.bf16.mxu0 0
  %922 = vmatpush1.bf16.msra.mxu0 %v891
  %923 = vmatprep.subr.bf16.mxu0 0
  %924 = vmatpush2.bf16.msra.mxu0 0
  %925 = vmatprep.subr.bf16.mxu0 0
  %926 = vmatpush2.bf16.msra.mxu0 0
  %927 = vmatprep.subr.bf16.mxu0 0
  %928 = vmatpush2.bf16.msra.mxu0 0
  %929 = vmatprep.subr.bf16.mxu0 0
  %930 = vmatpush2.bf16.msra.mxu0 0
  %931 = vmatprep.subr.bf16.mxu0 0
  %932 = vmatpush2.bf16.msra.mxu0 0
  %933 = vmatprep.subr.bf16.mxu0 0
  %934 = vmatpush2.bf16.msra.mxu0 0
  %935 = vmatprep.subr.bf16.mxu0 0
  %936 = vmatpush2.bf16.msra.mxu0 0
  %937 = vmatprep.subr.bf16.mxu0 0
  %938 = vmatpush2.bf16.msra.mxu0 0
  %939 = vmatprep.mubr.bf16.mxu0 0
  %940 = vmatmul.mubr.bf16.gmra.mxu0 %v857
  %v941 = vpop.f32.mrf.mxu0
  %v942 = vadd.f32 0.0, %v941
  %v943 = vpop.f32.mrf.mxu0
  %v944 = vpop.f32.mrf.mxu0
  %v945 = vpop.f32.mrf.mxu0
  %946 = vdwg.mxu0
  %v947 = vadd.f32 %v833, %v942
  %v948 = vld [vmem:[%s10 + $0xc0] sm:$0xf]
  %v949 = vld [vmem:[%s10 + $0xc4] sm:$0xf]
  %v950 = vld [vmem:[%s10 + $0xc8] sm:$0xf]
  %v951 = vld [vmem:[%s10 + $0xcc] sm:$0xf]
  %v952 = vld [vmem:[%s10 + $0xd0] sm:$0xf]
  %v953 = vld [vmem:[%s10 + $0xd4] sm:$0xf]
  %v954 = vld [vmem:[%s10 + $0xd8] sm:$0xf]
  %v955 = vld [vmem:[%s10 + $0xdc] sm:$0xf]
  %v956 = vld [vmem:[%s10 + $0xe0] sm:$0xf]
  %v957 = vld [vmem:[%s10 + $0xe4] sm:$0xf]
  %v958 = vld [vmem:[%s10 + $0xe8] sm:$0xf]
  %v959 = vld [vmem:[%s10 + $0xec] sm:$0xf]
  %v960 = vld [vmem:[%s10 + $0xf0] sm:$0xf]
  %v961 = vld [vmem:[%s10 + $0xf4] sm:$0xf]
  %v962 = vld [vmem:[%s10 + $0xf8] sm:$0xf]
  %v963 = vld [vmem:[%s10 + $0xfc] sm:$0xf]
  %v964 = vrot.slane %v651, 3
  %v965 = vrot.slane %v652, 2
  %v966 = vsel %vm654, %v965, %v964
  %v967 = vpack.c.b16 %v966, %v966
  %v985 = vunpack.c.l.b16 %v948
  %v986 = vunpack.c.l.b16 %v949
  %v987 = vunpack.c.l.b16 %v950
  %v988 = vunpack.c.l.b16 %v951
  %v989 = vunpack.c.l.b16 %v952
  %v990 = vunpack.c.l.b16 %v953
  %v991 = vunpack.c.l.b16 %v954
  %v992 = vunpack.c.l.b16 %v955
  %v993 = vunpack.c.l.b16 %v956
  %v994 = vunpack.c.l.b16 %v957
  %v995 = vunpack.c.l.b16 %v958
  %v996 = vunpack.c.l.b16 %v959
  %v997 = vunpack.c.l.b16 %v960
  %v998 = vunpack.c.l.b16 %v961
  %v999 = vunpack.c.l.b16 %v962
  %v1000 = vunpack.c.l.b16 %v963
  %v1001 = vpack.c.b16 %v986, %v985
  %v1002 = vpack.c.b16 %v988, %v987
  %v1003 = vpack.c.b16 %v990, %v989
  %v1004 = vpack.c.b16 %v992, %v991
  %v1005 = vpack.c.b16 %v994, %v993
  %v1006 = vpack.c.b16 %v996, %v995
  %v1007 = vpack.c.b16 %v998, %v997
  %v1008 = vpack.c.b16 %v1000, %v999
  %1017 = vmatprep.subr.bf16.mxu0 0
  %1018 = vmatpush1.bf16.msra.mxu0 %v1008
  %1019 = vmatprep.subr.bf16.mxu0 0
  %1020 = vmatpush1.bf16.msra.mxu0 %v1007
  %1021 = vmatprep.subr.bf16.mxu0 0
  %1022 = vmatpush1.bf16.msra.mxu0 %v1006
  %1023 = vmatprep.subr.bf16.mxu0 0
  %1024 = vmatpush1.bf16.msra.mxu0 %v1005
  %1025 = vmatprep.subr.bf16.mxu0 0
  %1026 = vmatpush1.bf16.msra.mxu0 %v1004
  %1027 = vmatprep.subr.bf16.mxu0 0
  %1028 = vmatpush1.bf16.msra.mxu0 %v1003
  %1029 = vmatprep.subr.bf16.mxu0 0
  %1030 = vmatpush1.bf16.msra.mxu0 %v1002
  %1031 = vmatprep.subr.bf16.mxu0 0
  %1032 = vmatpush1.bf16.msra.mxu0 %v1001
  %1033 = vmatprep.subr.bf16.mxu0 0
  %1034 = vmatpush2.bf16.msra.mxu0 0
  %1035 = vmatprep.subr.bf16.mxu0 0
  %1036 = vmatpush2.bf16.msra.mxu0 0
  %1037 = vmatprep.subr.bf16.mxu0 0
  %1038 = vmatpush2.bf16.msra.mxu0 0
  %1039 = vmatprep.subr.bf16.mxu0 0
  %1040 = vmatpush2.bf16.msra.mxu0 0
  %1041 = vmatprep.subr.bf16.mxu0 0
  %1042 = vmatpush2.bf16.msra.mxu0 0
  %1043 = vmatprep.subr.bf16.mxu0 0
  %1044 = vmatpush2.bf16.msra.mxu0 0
  %1045 = vmatprep.subr.bf16.mxu0 0
  %1046 = vmatpush2.bf16.msra.mxu0 0
  %1047 = vmatprep.subr.bf16.mxu0 0
  %1048 = vmatpush2.bf16.msra.mxu0 0
  %1049 = vmatprep.mubr.bf16.mxu0 0
  %1050 = vmatmul.mubr.bf16.gmra.mxu0 %v967
  %v1051 = vpop.f32.mrf.mxu0
  %v1052 = vadd.f32 0.0, %v1051
  %v1053 = vpop.f32.mrf.mxu0
  %v1054 = vpop.f32.mrf.mxu0
  %v1055 = vpop.f32.mrf.mxu0
  %1056 = vdwg.mxu0
  %v1057 = vadd.f32 %v947, %v1052
  %v1058 = vld [vmem:[%s10 + $0x100] sm:$0xf]
  %v1059 = vld [vmem:[%s10 + $0x104] sm:$0xf]
  %v1060 = vld [vmem:[%s10 + $0x108] sm:$0xf]
  %v1061 = vld [vmem:[%s10 + $0x10c] sm:$0xf]
  %v1062 = vld [vmem:[%s10 + $0x110] sm:$0xf]
  %v1063 = vld [vmem:[%s10 + $0x114] sm:$0xf]
  %v1064 = vld [vmem:[%s10 + $0x118] sm:$0xf]
  %v1065 = vld [vmem:[%s10 + $0x11c] sm:$0xf]
  %v1066 = vld [vmem:[%s10 + $0x120] sm:$0xf]
  %v1067 = vld [vmem:[%s10 + $0x124] sm:$0xf]
  %v1068 = vld [vmem:[%s10 + $0x128] sm:$0xf]
  %v1069 = vld [vmem:[%s10 + $0x12c] sm:$0xf]
  %v1070 = vld [vmem:[%s10 + $0x130] sm:$0xf]
  %v1071 = vld [vmem:[%s10 + $0x134] sm:$0xf]
  %v1072 = vld [vmem:[%s10 + $0x138] sm:$0xf]
  %v1073 = vld [vmem:[%s10 + $0x13c] sm:$0xf]
  %v1074 = vrot.slane %v651, 4
  %v1075 = vrot.slane %v652, 3
  %v1076 = vsel %vm654, %v1075, %v1074
  %v1077 = vpack.c.b16 %v1076, %v1076
  %v1095 = vunpack.c.l.b16 %v1058
  %v1096 = vunpack.c.l.b16 %v1059
  %v1097 = vunpack.c.l.b16 %v1060
  %v1098 = vunpack.c.l.b16 %v1061
  %v1099 = vunpack.c.l.b16 %v1062
  %v1100 = vunpack.c.l.b16 %v1063
  %v1101 = vunpack.c.l.b16 %v1064
  %v1102 = vunpack.c.l.b16 %v1065
  %v1103 = vunpack.c.l.b16 %v1066
  %v1104 = vunpack.c.l.b16 %v1067
  %v1105 = vunpack.c.l.b16 %v1068
  %v1106 = vunpack.c.l.b16 %v1069
  %v1107 = vunpack.c.l.b16 %v1070
  %v1108 = vunpack.c.l.b16 %v1071
  %v1109 = vunpack.c.l.b16 %v1072
  %v1110 = vunpack.c.l.b16 %v1073
  %v1111 = vpack.c.b16 %v1096, %v1095
  %v1112 = vpack.c.b16 %v1098, %v1097
  %v1113 = vpack.c.b16 %v1100, %v1099
  %v1114 = vpack.c.b16 %v1102, %v1101
  %v1115 = vpack.c.b16 %v1104, %v1103
  %v1116 = vpack.c.b16 %v1106, %v1105
  %v1117 = vpack.c.b16 %v1108, %v1107
  %v1118 = vpack.c.b16 %v1110, %v1109
  %1127 = vmatprep.subr.bf16.mxu0 0
  %1128 = vmatpush1.bf16.msra.mxu0 %v1118
  %1129 = vmatprep.subr.bf16.mxu0 0
  %1130 = vmatpush1.bf16.msra.mxu0 %v1117
  %1131 = vmatprep.subr.bf16.mxu0 0
  %1132 = vmatpush1.bf16.msra.mxu0 %v1116
  %1133 = vmatprep.subr.bf16.mxu0 0
  %1134 = vmatpush1.bf16.msra.mxu0 %v1115
  %1135 = vmatprep.subr.bf16.mxu0 0
  %1136 = vmatpush1.bf16.msra.mxu0 %v1114
  %1137 = vmatprep.subr.bf16.mxu0 0
  %1138 = vmatpush1.bf16.msra.mxu0 %v1113
  %1139 = vmatprep.subr.bf16.mxu0 0
  %1140 = vmatpush1.bf16.msra.mxu0 %v1112
  %1141 = vmatprep.subr.bf16.mxu0 0
  %1142 = vmatpush1.bf16.msra.mxu0 %v1111
  %1143 = vmatprep.subr.bf16.mxu0 0
  %1144 = vmatpush2.bf16.msra.mxu0 0
  %1145 = vmatprep.subr.bf16.mxu0 0
  %1146 = vmatpush2.bf16.msra.mxu0 0
  %1147 = vmatprep.subr.bf16.mxu0 0
  %1148 = vmatpush2.bf16.msra.mxu0 0
  %1149 = vmatprep.subr.bf16.mxu0 0
  %1150 = vmatpush2.bf16.msra.mxu0 0
  %1151 = vmatprep.subr.bf16.mxu0 0
  %1152 = vmatpush2.bf16.msra.mxu0 0
  %1153 = vmatprep.subr.bf16.mxu0 0
  %1154 = vmatpush2.bf16.msra.mxu0 0
  %1155 = vmatprep.subr.bf16.mxu0 0
  %1156 = vmatpush2.bf16.msra.mxu0 0
  %1157 = vmatprep.subr.bf16.mxu0 0
  %1158 = vmatpush2.bf16.msra.mxu0 0
  %1159 = vmatprep.mubr.bf16.mxu0 0
  %1160 = vmatmul.mubr.bf16.gmra.mxu0 %v1077
  %v1161 = vpop.f32.mrf.mxu0
  %v1162 = vadd.f32 0.0, %v1161
  %v1163 = vpop.f32.mrf.mxu0
  %v1164 = vpop.f32.mrf.mxu0
  %v1165 = vpop.f32.mrf.mxu0
  %1166 = vdwg.mxu0
  %v1167 = vadd.f32 %v1057, %v1162
  %v1168 = vld [vmem:[%s10 + $0x140] sm:$0xf]
  %v1169 = vld [vmem:[%s10 + $0x144] sm:$0xf]
  %v1170 = vld [vmem:[%s10 + $0x148] sm:$0xf]
  %v1171 = vld [vmem:[%s10 + $0x14c] sm:$0xf]
  %v1172 = vld [vmem:[%s10 + $0x150] sm:$0xf]
  %v1173 = vld [vmem:[%s10 + $0x154] sm:$0xf]
  %v1174 = vld [vmem:[%s10 + $0x158] sm:$0xf]
  %v1175 = vld [vmem:[%s10 + $0x15c] sm:$0xf]
  %v1176 = vld [vmem:[%s10 + $0x160] sm:$0xf]
  %v1177 = vld [vmem:[%s10 + $0x164] sm:$0xf]
  %v1178 = vld [vmem:[%s10 + $0x168] sm:$0xf]
  %v1179 = vld [vmem:[%s10 + $0x16c] sm:$0xf]
  %v1180 = vld [vmem:[%s10 + $0x170] sm:$0xf]
  %v1181 = vld [vmem:[%s10 + $0x174] sm:$0xf]
  %v1182 = vld [vmem:[%s10 + $0x178] sm:$0xf]
  %v1183 = vld [vmem:[%s10 + $0x17c] sm:$0xf]
  %v1184 = vrot.slane %v651, 5
  %v1185 = vrot.slane %v652, 4
  %v1186 = vsel %vm654, %v1185, %v1184
  %v1187 = vpack.c.b16 %v1186, %v1186
  %v1205 = vunpack.c.l.b16 %v1168
  %v1206 = vunpack.c.l.b16 %v1169
  %v1207 = vunpack.c.l.b16 %v1170
  %v1208 = vunpack.c.l.b16 %v1171
  %v1209 = vunpack.c.l.b16 %v1172
  %v1210 = vunpack.c.l.b16 %v1173
  %v1211 = vunpack.c.l.b16 %v1174
  %v1212 = vunpack.c.l.b16 %v1175
  %v1213 = vunpack.c.l.b16 %v1176
  %v1214 = vunpack.c.l.b16 %v1177
  %v1215 = vunpack.c.l.b16 %v1178
  %v1216 = vunpack.c.l.b16 %v1179
  %v1217 = vunpack.c.l.b16 %v1180
  %v1218 = vunpack.c.l.b16 %v1181
  %v1219 = vunpack.c.l.b16 %v1182
  %v1220 = vunpack.c.l.b16 %v1183
  %v1221 = vpack.c.b16 %v1206, %v1205
  %v1222 = vpack.c.b16 %v1208, %v1207
  %v1223 = vpack.c.b16 %v1210, %v1209
  %v1224 = vpack.c.b16 %v1212, %v1211
  %v1225 = vpack.c.b16 %v1214, %v1213
  %v1226 = vpack.c.b16 %v1216, %v1215
  %v1227 = vpack.c.b16 %v1218, %v1217
  %v1228 = vpack.c.b16 %v1220, %v1219
  %1237 = vmatprep.subr.bf16.mxu0 0
  %1238 = vmatpush1.bf16.msra.mxu0 %v1228
  %1239 = vmatprep.subr.bf16.mxu0 0
  %1240 = vmatpush1.bf16.msra.mxu0 %v1227
  %1241 = vmatprep.subr.bf16.mxu0 0
  %1242 = vmatpush1.bf16.msra.mxu0 %v1226
  %1243 = vmatprep.subr.bf16.mxu0 0
  %1244 = vmatpush1.bf16.msra.mxu0 %v1225
  %1245 = vmatprep.subr.bf16.mxu0 0
  %1246 = vmatpush1.bf16.msra.mxu0 %v1224
  %1247 = vmatprep.subr.bf16.mxu0 0
  %1248 = vmatpush1.bf16.msra.mxu0 %v1223
  %1249 = vmatprep.subr.bf16.mxu0 0
  %1250 = vmatpush1.bf16.msra.mxu0 %v1222
  %1251 = vmatprep.subr.bf16.mxu0 0
  %1252 = vmatpush1.bf16.msra.mxu0 %v1221
  %1253 = vmatprep.subr.bf16.mxu0 0
  %1254 = vmatpush2.bf16.msra.mxu0 0
  %1255 = vmatprep.subr.bf16.mxu0 0
  %1256 = vmatpush2.bf16.msra.mxu0 0
  %1257 = vmatprep.subr.bf16.mxu0 0
  %1258 = vmatpush2.bf16.msra.mxu0 0
  %1259 = vmatprep.subr.bf16.mxu0 0
  %1260 = vmatpush2.bf16.msra.mxu0 0
  %1261 = vmatprep.subr.bf16.mxu0 0
  %1262 = vmatpush2.bf16.msra.mxu0 0
  %1263 = vmatprep.subr.bf16.mxu0 0
  %1264 = vmatpush2.bf16.msra.mxu0 0
  %1265 = vmatprep.subr.bf16.mxu0 0
  %1266 = vmatpush2.bf16.msra.mxu0 0
  %1267 = vmatprep.subr.bf16.mxu0 0
  %1268 = vmatpush2.bf16.msra.mxu0 0
  %1269 = vmatprep.mubr.bf16.mxu0 0
  %1270 = vmatmul.mubr.bf16.gmra.mxu0 %v1187
  %v1271 = vpop.f32.mrf.mxu0
  %v1272 = vadd.f32 0.0, %v1271
  %v1273 = vpop.f32.mrf.mxu0
  %v1274 = vpop.f32.mrf.mxu0
  %v1275 = vpop.f32.mrf.mxu0
  %1276 = vdwg.mxu0
  %v1277 = vadd.f32 %v1167, %v1272
  %v1278 = vld [vmem:[%s10 + $0x180] sm:$0xf]
  %v1279 = vld [vmem:[%s10 + $0x184] sm:$0xf]
  %v1280 = vld [vmem:[%s10 + $0x188] sm:$0xf]
  %v1281 = vld [vmem:[%s10 + $0x18c] sm:$0xf]
  %v1282 = vld [vmem:[%s10 + $0x190] sm:$0xf]
  %v1283 = vld [vmem:[%s10 + $0x194] sm:$0xf]
  %v1284 = vld [vmem:[%s10 + $0x198] sm:$0xf]
  %v1285 = vld [vmem:[%s10 + $0x19c] sm:$0xf]
  %v1286 = vld [vmem:[%s10 + $0x1a0] sm:$0xf]
  %v1287 = vld [vmem:[%s10 + $0x1a4] sm:$0xf]
  %v1288 = vld [vmem:[%s10 + $0x1a8] sm:$0xf]
  %v1289 = vld [vmem:[%s10 + $0x1ac] sm:$0xf]
  %v1290 = vld [vmem:[%s10 + $0x1b0] sm:$0xf]
  %v1291 = vld [vmem:[%s10 + $0x1b4] sm:$0xf]
  %v1292 = vld [vmem:[%s10 + $0x1b8] sm:$0xf]
  %v1293 = vld [vmem:[%s10 + $0x1bc] sm:$0xf]
  %v1294 = vrot.slane %v651, 6
  %v1295 = vrot.slane %v652, 5
  %v1296 = vsel %vm654, %v1295, %v1294
  %v1297 = vpack.c.b16 %v1296, %v1296
  %v1315 = vunpack.c.l.b16 %v1278
  %v1316 = vunpack.c.l.b16 %v1279
  %v1317 = vunpack.c.l.b16 %v1280
  %v1318 = vunpack.c.l.b16 %v1281
  %v1319 = vunpack.c.l.b16 %v1282
  %v1320 = vunpack.c.l.b16 %v1283
  %v1321 = vunpack.c.l.b16 %v1284
  %v1322 = vunpack.c.l.b16 %v1285
  %v1323 = vunpack.c.l.b16 %v1286
  %v1324 = vunpack.c.l.b16 %v1287
  %v1325 = vunpack.c.l.b16 %v1288
  %v1326 = vunpack.c.l.b16 %v1289
  %v1327 = vunpack.c.l.b16 %v1290
  %v1328 = vunpack.c.l.b16 %v1291
  %v1329 = vunpack.c.l.b16 %v1292
  %v1330 = vunpack.c.l.b16 %v1293
  %v1331 = vpack.c.b16 %v1316, %v1315
  %v1332 = vpack.c.b16 %v1318, %v1317
  %v1333 = vpack.c.b16 %v1320, %v1319
  %v1334 = vpack.c.b16 %v1322, %v1321
  %v1335 = vpack.c.b16 %v1324, %v1323
  %v1336 = vpack.c.b16 %v1326, %v1325
  %v1337 = vpack.c.b16 %v1328, %v1327
  %v1338 = vpack.c.b16 %v1330, %v1329
  %1347 = vmatprep.subr.bf16.mxu0 0
  %1348 = vmatpush1.bf16.msra.mxu0 %v1338
  %1349 = vmatprep.subr.bf16.mxu0 0
  %1350 = vmatpush1.bf16.msra.mxu0 %v1337
  %1351 = vmatprep.subr.bf16.mxu0 0
  %1352 = vmatpush1.bf16.msra.mxu0 %v1336
  %1353 = vmatprep.subr.bf16.mxu0 0
  %1354 = vmatpush1.bf16.msra.mxu0 %v1335
  %1355 = vmatprep.subr.bf16.mxu0 0
  %1356 = vmatpush1.bf16.msra.mxu0 %v1334
  %1357 = vmatprep.subr.bf16.mxu0 0
  %1358 = vmatpush1.bf16.msra.mxu0 %v1333
  %1359 = vmatprep.subr.bf16.mxu0 0
  %1360 = vmatpush1.bf16.msra.mxu0 %v1332
  %1361 = vmatprep.subr.bf16.mxu0 0
  %1362 = vmatpush1.bf16.msra.mxu0 %v1331
  %1363 = vmatprep.subr.bf16.mxu0 0
  %1364 = vmatpush2.bf16.msra.mxu0 0
  %1365 = vmatprep.subr.bf16.mxu0 0
  %1366 = vmatpush2.bf16.msra.mxu0 0
  %1367 = vmatprep.subr.bf16.mxu0 0
  %1368 = vmatpush2.bf16.msra.mxu0 0
  %1369 = vmatprep.subr.bf16.mxu0 0
  %1370 = vmatpush2.bf16.msra.mxu0 0
  %1371 = vmatprep.subr.bf16.mxu0 0
  %1372 = vmatpush2.bf16.msra.mxu0 0
  %1373 = vmatprep.subr.bf16.mxu0 0
  %1374 = vmatpush2.bf16.msra.mxu0 0
  %1375 = vmatprep.subr.bf16.mxu0 0
  %1376 = vmatpush2.bf16.msra.mxu0 0
  %1377 = vmatprep.subr.bf16.mxu0 0
  %1378 = vmatpush2.bf16.msra.mxu0 0
  %1379 = vmatprep.mubr.bf16.mxu0 0
  %1380 = vmatmul.mubr.bf16.gmra.mxu0 %v1297
  %v1381 = vpop.f32.mrf.mxu0
  %v1382 = vadd.f32 0.0, %v1381
  %v1383 = vpop.f32.mrf.mxu0
  %v1384 = vpop.f32.mrf.mxu0
  %v1385 = vpop.f32.mrf.mxu0
  %1386 = vdwg.mxu0
  %v1387 = vadd.f32 %v1277, %v1382
  %v1388 = vld [vmem:[%s10 + $0x1c0] sm:$0xf]
  %v1389 = vld [vmem:[%s10 + $0x1c4] sm:$0xf]
  %v1390 = vld [vmem:[%s10 + $0x1c8] sm:$0xf]
  %v1391 = vld [vmem:[%s10 + $0x1cc] sm:$0xf]
  %v1392 = vld [vmem:[%s10 + $0x1d0] sm:$0xf]
  %v1393 = vld [vmem:[%s10 + $0x1d4] sm:$0xf]
  %v1394 = vld [vmem:[%s10 + $0x1d8] sm:$0xf]
  %v1395 = vld [vmem:[%s10 + $0x1dc] sm:$0xf]
  %v1396 = vld [vmem:[%s10 + $0x1e0] sm:$0xf]
  %v1397 = vld [vmem:[%s10 + $0x1e4] sm:$0xf]
  %v1398 = vld [vmem:[%s10 + $0x1e8] sm:$0xf]
  %v1399 = vld [vmem:[%s10 + $0x1ec] sm:$0xf]
  %v1400 = vld [vmem:[%s10 + $0x1f0] sm:$0xf]
  %v1401 = vld [vmem:[%s10 + $0x1f4] sm:$0xf]
  %v1402 = vld [vmem:[%s10 + $0x1f8] sm:$0xf]
  %v1403 = vld [vmem:[%s10 + $0x1fc] sm:$0xf]
  %v1404 = vrot.slane %v651, 7
  %v1405 = vrot.slane %v652, 6
  %v1406 = vsel %vm654, %v1405, %v1404
  %v1407 = vpack.c.b16 %v1406, %v1406
  %v1425 = vunpack.c.l.b16 %v1388
  %v1426 = vunpack.c.l.b16 %v1389
  %v1427 = vunpack.c.l.b16 %v1390
  %v1428 = vunpack.c.l.b16 %v1391
  %v1429 = vunpack.c.l.b16 %v1392
  %v1430 = vunpack.c.l.b16 %v1393
  %v1431 = vunpack.c.l.b16 %v1394
  %v1432 = vunpack.c.l.b16 %v1395
  %v1433 = vunpack.c.l.b16 %v1396
  %v1434 = vunpack.c.l.b16 %v1397
  %v1435 = vunpack.c.l.b16 %v1398
  %v1436 = vunpack.c.l.b16 %v1399
  %v1437 = vunpack.c.l.b16 %v1400
  %v1438 = vunpack.c.l.b16 %v1401
  %v1439 = vunpack.c.l.b16 %v1402
  %v1440 = vunpack.c.l.b16 %v1403
  %v1441 = vpack.c.b16 %v1426, %v1425
  %v1442 = vpack.c.b16 %v1428, %v1427
  %v1443 = vpack.c.b16 %v1430, %v1429
  %v1444 = vpack.c.b16 %v1432, %v1431
  %v1445 = vpack.c.b16 %v1434, %v1433
  %v1446 = vpack.c.b16 %v1436, %v1435
  %v1447 = vpack.c.b16 %v1438, %v1437
  %v1448 = vpack.c.b16 %v1440, %v1439
  %1457 = vmatprep.subr.bf16.mxu0 0
  %1458 = vmatpush1.bf16.msra.mxu0 %v1448
  %1459 = vmatprep.subr.bf16.mxu0 0
  %1460 = vmatpush1.bf16.msra.mxu0 %v1447
  %1461 = vmatprep.subr.bf16.mxu0 0
  %1462 = vmatpush1.bf16.msra.mxu0 %v1446
  %1463 = vmatprep.subr.bf16.mxu0 0
  %1464 = vmatpush1.bf16.msra.mxu0 %v1445
  %1465 = vmatprep.subr.bf16.mxu0 0
  %1466 = vmatpush1.bf16.msra.mxu0 %v1444
  %1467 = vmatprep.subr.bf16.mxu0 0
  %1468 = vmatpush1.bf16.msra.mxu0 %v1443
  %1469 = vmatprep.subr.bf16.mxu0 0
  %1470 = vmatpush1.bf16.msra.mxu0 %v1442
  %1471 = vmatprep.subr.bf16.mxu0 0
  %1472 = vmatpush1.bf16.msra.mxu0 %v1441
  %1473 = vmatprep.subr.bf16.mxu0 0
  %1474 = vmatpush2.bf16.msra.mxu0 0
  %1475 = vmatprep.subr.bf16.mxu0 0
  %1476 = vmatpush2.bf16.msra.mxu0 0
  %1477 = vmatprep.subr.bf16.mxu0 0
  %1478 = vmatpush2.bf16.msra.mxu0 0
  %1479 = vmatprep.subr.bf16.mxu0 0
  %1480 = vmatpush2.bf16.msra.mxu0 0
  %1481 = vmatprep.subr.bf16.mxu0 0
  %1482 = vmatpush2.bf16.msra.mxu0 0
  %1483 = vmatprep.subr.bf16.mxu0 0
  %1484 = vmatpush2.bf16.msra.mxu0 0
  %1485 = vmatprep.subr.bf16.mxu0 0
  %1486 = vmatpush2.bf16.msra.mxu0 0
  %1487 = vmatprep.subr.bf16.mxu0 0
  %1488 = vmatpush2.bf16.msra.mxu0 0
  %1489 = vmatprep.mubr.bf16.mxu0 0
  %1490 = vmatmul.mubr.bf16.gmra.mxu0 %v1407
  %v1491 = vpop.f32.mrf.mxu0
  %v1492 = vadd.f32 0.0, %v1491
  %v1493 = vpop.f32.mrf.mxu0
  %v1494 = vpop.f32.mrf.mxu0
  %v1495 = vpop.f32.mrf.mxu0
  %1496 = vdwg.mxu0
  %v1497 = vadd.f32 %v1387, %v1492
  %v1498 = vld [vmem:[%s11] sm:$0x1]
  %v1500 = vlaneseq
  %v1501 = vshrl.u32 %v1500, 7
  %v1502 = vsub.s32 0, %v1501
  %v1503 = vrot.slane %v1498, %v1502
  %v1505 = vadd.f32 %v1497, %v1503
  %v1506 = vlaneseq
  %v1507 = vand.u32 %v1506, 127
  %vm1508 = vcmp.lt.s32.totalorder %v1507, 11
  %v1509 = vsel %vm1508, %v1505, -1e+30
  %v1510 = vsel %vm58, %v1509, -inf
  %1511 = vmax.xlane.f32.xlu0 %v1510
  %v1512 = vpop.xlane.xlu0 %1511
  %v1513 = vsub.f32 %v1509, %v1512
  %v1514 = vmul.f32 %v1513, 1.442695
  %v1515 = vpow.pop %v1514
  %v1516 = vsel %vm58, %v1515, 0.0
  %1517 = vadd.xlane.f32.xlu0 %v1516
  %v1518 = vpop.xlane.xlu0 %1517
  %v1519 = vrcp.pop %v1518
  %v1520 = vmul.f32 %v1515, %v1519
  %vm1521 = vcmp.eq.s32.totalorder %v1507, 11
  %v1522 = vsel %vm1521, %v1505, %v1520
  %1523 = vst [vmem:[%s12] sm:$0x3] %v1522
  // Predicated region
  $region50: #{forward.5} parent=0 // pred_check
    _
  $region51: #{forward.5} parent=0 // pred_check_branch
    %1525 = sbr.rel (0) target = $region53
  $region52: #{forward.5} parent=0 // pred_region
    _
  $region53: #{forward.5} parent=0 // pred_fallthru
    _
  // Predicated region
  $region54: #{forward.5} parent=0 // pred_check
    _
  $region55: #{forward.5} parent=0 // pred_check_branch
    %1527 = sbr.rel (0) target = $region57
  $region56: #{forward.5} parent=0 // pred_region
    _
  $region57: #{forward.5} parent=0 // pred_fallthru
    _

// kernel: forward.4
$region0: #{forward.4}
  #allocation0 [shape = 'u32[]', space=smem, size = 0x4, offset = 0x4, fixed_abs, tag = 'smem constant byte address 0x4 - core index']
  #allocation1 [shape = 'u32[144,128]{1,0:T(1,128)}', space=vmem, size = 0x12000, scoped, tag = 'internal scratch']
  #allocation2 [shape = 'f32[16,128]{1,0:T(8,128)}', space=vmem, size = 0x2000, scoped, tag = 'scratch operand']
  %s0 = inlined_call_operand.vmem [shape: f32[16,128], index: 0, kind: input, shape index: {}]
  %s1 = inlined_call_operand.vmem [shape: f32[16,128], index: 1, kind: input, shape index: {}]
  %s2 = inlined_call_operand.vmem [shape: f32[2,8,8], index: 2, kind: input, shape index: {}]
  %s3 = inlined_call_operand.vmem [shape: f32[12,1,128], index: 3, kind: input, shape index: {}]
  %s4 = inlined_call_operand.vmem [shape: f32[12,1,128], index: 4, kind: input, shape index: {}]
  %s5 = inlined_call_operand.vmem [shape: bf16[12,128,384], index: 5, kind: input, shape index: {}]
  %s6 = inlined_call_operand.vmem [shape: f32[12,1,384], index: 6, kind: input, shape index: {}]
  %s7 = inlined_call_operand.vmem [shape: bf16[12,128,128], index: 7, kind: input, shape index: {}]
  %s8 = inlined_call_operand.vmem [shape: f32[12,1,128], index: 8, kind: input, shape index: {}]
  %s9 = inlined_call_operand.vmem [shape: f32[12,1,128], index: 9, kind: input, shape index: {}]
  %s10 = inlined_call_operand.vmem [shape: f32[12,1,128], index: 10, kind: input, shape index: {}]
  %s11 = inlined_call_operand.vmem [shape: bf16[12,128,128], index: 11, kind: input, shape index: {}]
  %s12 = inlined_call_operand.vmem [shape: f32[12,1,128], index: 12, kind: input, shape index: {}]
  %s13 = inlined_call_operand.vmem [shape: bf16[12,128,256], index: 13, kind: input, shape index: {}]
  %s14 = inlined_call_operand.vmem [shape: f32[12,1,256], index: 14, kind: input, shape index: {}]
  %s15 = inlined_call_operand.hbm [shape: bf16[12,128,128], index: 15, kind: input, shape index: {}]
  %s16 = inlined_call_operand.vmem [shape: f32[12,1,128], index: 16, kind: input, shape index: {}]
  %s17 = inlined_call_operand.vmem [shape: f32[12,1,128], index: 17, kind: input, shape index: {}]
  %s18 = inlined_call_operand.vmem [shape: f32[12,1,128], index: 18, kind: input, shape index: {}]
  %s19 = inlined_call_operand.hbm [shape: bf16[12,128,128], index: 19, kind: input, shape index: {}]
  %s20 = inlined_call_operand.vmem [shape: f32[12,1,128], index: 20, kind: input, shape index: {}]
  %s21 = inlined_call_operand.hbm [shape: bf16[12,128,128], index: 21, kind: input, shape index: {}]
  %s22 = inlined_call_operand.hbm [shape: f32[12,1,128], index: 22, kind: input, shape index: {}]
  %s23 = inlined_call_operand.vmem [shape: f32[16,128], index: 23, kind: output, shape index: {}]
  %s24 = sld [smem:[#allocation0]]
  $region149: #{forward.4} parent=0
    _
  %s26 = ssub.s32 1, %s24
  %s27 = scalar_select 0, %s26, %s24
  $region1: #{forward.4} parent=0
    #allocation3 [shape = 'u8[65536]{0}', space=vmem, size = 0x10000, scoped, tag = 'input window, operand 15']
    #allocation4 [shape = 's32[2]{0}', space=sflag, size = 0x8, scoped, tag = 'scoped memory for forward.4']
    #allocation5 [shape = 'u8[65536]{0}', space=vmem, size = 0x10000, scoped, tag = 'input window, operand 19']
    #allocation6 [shape = 's32[2]{0}', space=sflag, size = 0x8, scoped, tag = 'scoped memory for forward.4']
    #allocation7 [shape = 'u8[65536]{0}', space=vmem, size = 0x10000, scoped, tag = 'input window, operand 21']
    #allocation8 [shape = 'u8[1024]{0}', space=vmem, size = 0x400, scoped, tag = 'input window, operand 22']
    #allocation9 [shape = 's32[2]{0}', space=sflag, size = 0x8, scoped, tag = 'scoped memory for forward.4']
    %28 = vsyncpa [#allocation4], 0
    %s29 = scalar_lea.sflag [#allocation4], 1
    %30 = vsyncpa %s29, 0
    %31 = vsyncpa [#allocation6], 0
    %s32 = scalar_lea.sflag [#allocation6], 1
    %33 = vsyncpa %s32, 0
    %34 = vsyncpa [#allocation9], 0
    %s35 = scalar_lea.sflag [#allocation9], 1
    %36 = vsyncpa %s35, 0
    loop: start=0, step=1, limit=14
    $region2: #{forward.4} parent=1 // loop_pre_header
      _
    $region3: #{forward.4} parent=1 // loop_header
      %s38 = sphi 0, %s42
      %p39 = scmp.ge.s32.totalorder %s38, 14
      %s46 = sphi 0, %s46
      %s48 = sphi 0, %s46
      %s49 = sphi 0, %s48
      %s63 = sphi 0, %s49
      %s67 = sphi 0, %s67
      %s69 = sphi 0, %s67
      %s70 = sphi 0, %s69
      %s84 = sphi 0, %s70
      %s88 = sphi 0, %s88
      %s90 = sphi 0, %s88
      %s91 = sphi 0, %s90
      %s105 = sphi 0, %s91
      %s111 = sphi 0, %s113
      %s114 = sphi 0, %s111
      %s115 = sphi 0, %s114
      %s131 = sphi 0, %s115
      %s137 = sphi 0, %s139
      %s140 = sphi 0, %s137
      %s141 = sphi 0, %s140
      %s157 = sphi 0, %s141
      %s163 = sphi 0, %s165
      %s166 = sphi 0, %s163
      %s167 = sphi 0, %s166
      %s183 = sphi 0, %s167
      %s189 = sphi 0, %s191
      %s192 = sphi 0, %s189
      %s193 = sphi 0, %s192
      %s209 = sphi 0, %s193
      %s215 = sphi 0, %s217
      %s218 = sphi 0, %s215
      %s219 = sphi 0, %s218
      %s235 = sphi 0, %s219
      %s241 = sphi 0, %s243
      %s244 = sphi 0, %s241
      %s245 = sphi 0, %s244
      %s261 = sphi 0, %s245
      %s267 = sphi 0, %s269
      %s270 = sphi 0, %s267
      %s271 = sphi 0, %s270
      %s287 = sphi 0, %s271
      %s293 = sphi 0, %s295
      %s296 = sphi 0, %s293
      %s297 = sphi 0, %s296
      %s313 = sphi 0, %s297
      %s319 = sphi 0, %s321
      %s322 = sphi 0, %s319
      %s323 = sphi 0, %s322
      %s339 = sphi 0, %s323
      %s345 = sphi 0, %s347
      %s348 = sphi 0, %s345
      %s349 = sphi 0, %s348
      %s365 = sphi 0, %s349
      %s371 = sphi 0, %s373
      %s374 = sphi 0, %s371
      %s375 = sphi 0, %s374
      %s391 = sphi 0, %s375
      %s397 = sphi 0, %s399
      %s400 = sphi 0, %s397
      %s401 = sphi 0, %s400
      %s417 = sphi 0, %s401
      %s423 = sphi 0, %s425
      %s426 = sphi 0, %s423
      %s427 = sphi 0, %s426
      %s443 = sphi 0, %s427
      %s449 = sphi 0, %s451
      %s452 = sphi 0, %s449
      %s453 = sphi 0, %s452
      %s469 = sphi 0, %s453
      %s475 = sphi 0, %s477
      %s478 = sphi 0, %s475
      %s479 = sphi 0, %s478
      %s495 = sphi 0, %s479
      %s501 = sphi 0, %s503
      %s504 = sphi 0, %s501
      %s505 = sphi 0, %s504
      %s521 = sphi 0, %s505
      %s527 = sphi 0, %s529
      %s530 = sphi 0, %s527
      %s531 = sphi 0, %s530
      %s547 = sphi 0, %s531
      %s553 = sphi 0, %s555
      %s556 = sphi 0, %s553
      %s557 = sphi 0, %s556
      %s573 = sphi 0, %s557
      %s579 = sphi 0, %s581
      %s582 = sphi 0, %s579
      %s583 = sphi 0, %s582
      %s599 = sphi 0, %s583
      %s605 = sphi 0, %s607
      %s608 = sphi 0, %s605
      %s609 = sphi 0, %s608
      %s625 = sphi 0, %s609
      %s629 = sphi 0, %s629
      %s631 = sphi 0, %s629
      %s632 = sphi 0, %s631
      %s646 = sphi 0, %s632
    $region4: #{forward.4} parent=1 // loop_header_branch
      %41 = sbr.rel (%p39) target = $region8
    $region5: #{forward.4} parent=1 // loop_body
      %s43 = ssub.s32 %s38, 1
      %s44 = ssub.s32 %s38, 2
      %s45 = sadd.s32 %s38, 1
      %s47 = sadd.s32 %s46, 1
      %p50 = scmp.eq.s32.totalorder %s38, 11
      %p51 = scmp.ne.s32.totalorder %s46, %s48
      %p52 = scmp.eq.s32.totalorder %s38, 0
      %p53 = por %p51, %p52
      %p54 = scmp.ne.s32.totalorder %s46, %s48
      %p55 = scmp.eq.s32.totalorder %s43, 11
      %p56 = por %p54, %p55
      %p57 = scmp.ne.s32.totalorder %s48, %s49
      %p58 = scmp.eq.s32.totalorder %s43, 0
      %p59 = por %p57, %p58
      %p60 = scmp.ne.s32.totalorder %s48, %s49
      %p61 = scmp.eq.s32.totalorder %s44, 11
      %p62 = por %p60, %p61
      %p64 = scmp.ne.s32.totalorder %s49, %s63
      %p65 = scmp.eq.s32.totalorder %s44, 0
      %p66 = por %p64, %p65
      %s68 = sadd.s32 %s67, 1
      %p71 = scmp.eq.s32.totalorder %s38, 11
      %p72 = scmp.ne.s32.totalorder %s67, %s69
      %p73 = scmp.eq.s32.totalorder %s38, 0
      %p74 = por %p72, %p73
      %p75 = scmp.ne.s32.totalorder %s67, %s69
      %p76 = scmp.eq.s32.totalorder %s43, 11
      %p77 = por %p75, %p76
      %p78 = scmp.ne.s32.totalorder %s69, %s70
      %p79 = scmp.eq.s32.totalorder %s43, 0
      %p80 = por %p78, %p79
      %p81 = scmp.ne.s32.totalorder %s69, %s70
      %p82 = scmp.eq.s32.totalorder %s44, 11
      %p83 = por %p81, %p82
      %p85 = scmp.ne.s32.totalorder %s70, %s84
      %p86 = scmp.eq.s32.totalorder %s44, 0
      %p87 = por %p85, %p86
      %s89 = sadd.s32 %s88, 1
      %p92 = scmp.eq.s32.totalorder %s38, 11
      %p93 = scmp.ne.s32.totalorder %s88, %s90
      %p94 = scmp.eq.s32.totalorder %s38, 0
      %p95 = por %p93, %p94
      %p96 = scmp.ne.s32.totalorder %s88, %s90
      %p97 = scmp.eq.s32.totalorder %s43, 11
      %p98 = por %p96, %p97
      %p99 = scmp.ne.s32.totalorder %s90, %s91
      %p100 = scmp.eq.s32.totalorder %s43, 0
      %p101 = por %p99, %p100
      %p102 = scmp.ne.s32.totalorder %s90, %s91
      %p103 = scmp.eq.s32.totalorder %s44, 11
      %p104 = por %p102, %p103
      %p106 = scmp.ne.s32.totalorder %s91, %s105
      %p107 = scmp.eq.s32.totalorder %s44, 0
      %p108 = por %p106, %p107
      %s109 = ssub.s32 %s38, %s45
      %p110 = scmp.eq.s32.totalorder %s109, 0
      %s112 = sadd.s32 %s111, 1
      %s113 = scalar_select %p110, %s111, %s112
      %p116 = pneg %p110
      %p117 = scmp.eq.s32.totalorder %s38, 11
      %p118 = por %p116, %p117
      %p119 = scmp.ne.s32.totalorder %s111, %s114
      %p120 = scmp.eq.s32.totalorder %s38, 0
      %p121 = por %p119, %p120
      %p122 = scmp.ne.s32.totalorder %s111, %s114
      %p123 = scmp.eq.s32.totalorder %s43, 11
      %p124 = por %p122, %p123
      %p125 = scmp.ne.s32.totalorder %s114, %s115
      %p126 = scmp.eq.s32.totalorder %s43, 0
      %p127 = por %p125, %p126
      %p128 = scmp.ne.s32.totalorder %s114, %s115
      %p129 = scmp.eq.s32.totalorder %s44, 11
      %p130 = por %p128, %p129
      %p132 = scmp.ne.s32.totalorder %s115, %s131
      %p133 = scmp.eq.s32.totalorder %s44, 0
      %p134 = por %p132, %p133
      %s135 = ssub.s32 %s38, %s45
      %p136 = scmp.eq.s32.totalorder %s135, 0
      %s138 = sadd.s32 %s137, 1
      %s139 = scalar_select %p136, %s137, %s138
      %p142 = pneg %p136
      %p143 = scmp.eq.s32.totalorder %s38, 11
      %p144 = por %p142, %p143
      %p145 = scmp.ne.s32.totalorder %s137, %s140
      %p146 = scmp.eq.s32.totalorder %s38, 0
      %p147 = por %p145, %p146
      %p148 = scmp.ne.s32.totalorder %s137, %s140
      %p149 = scmp.eq.s32.totalorder %s43, 11
      %p150 = por %p148, %p149
      %p151 = scmp.ne.s32.totalorder %s140, %s141
      %p152 = scmp.eq.s32.totalorder %s43, 0
      %p153 = por %p151, %p152
      %p154 = scmp.ne.s32.totalorder %s140, %s141
      %p155 = scmp.eq.s32.totalorder %s44, 11
      %p156 = por %p154, %p155
      %p158 = scmp.ne.s32.totalorder %s141, %s157
      %p159 = scmp.eq.s32.totalorder %s44, 0
      %p160 = por %p158, %p159
      %s161 = ssub.s32 %s38, %s45
      %p162 = scmp.eq.s32.totalorder %s161, 0
      %s164 = sadd.s32 %s163, 1
      %s165 = scalar_select %p162, %s163, %s164
      %p168 = pneg %p162
      %p169 = scmp.eq.s32.totalorder %s38, 11
      %p170 = por %p168, %p169
      %p171 = scmp.ne.s32.totalorder %s163, %s166
      %p172 = scmp.eq.s32.totalorder %s38, 0
      %p173 = por %p171, %p172
      %p174 = scmp.ne.s32.totalorder %s163, %s166
      %p175 = scmp.eq.s32.totalorder %s43, 11
      %p176 = por %p174, %p175
      %p177 = scmp.ne.s32.totalorder %s166, %s167
      %p178 = scmp.eq.s32.totalorder %s43, 0
      %p179 = por %p177, %p178
      %p180 = scmp.ne.s32.totalorder %s166, %s167
      %p181 = scmp.eq.s32.totalorder %s44, 11
      %p182 = por %p180, %p181
      %p184 = scmp.ne.s32.totalorder %s167, %s183
      %p185 = scmp.eq.s32.totalorder %s44, 0
      %p186 = por %p184, %p185
      %s187 = ssub.s32 %s38, %s45
      %p188 = scmp.eq.s32.totalorder %s187, 0
      %s190 = sadd.s32 %s189, 1
      %s191 = scalar_select %p188, %s189, %s190
      %p194 = pneg %p188
      %p195 = scmp.eq.s32.totalorder %s38, 11
      %p196 = por %p194, %p195
      %p197 = scmp.ne.s32.totalorder %s189, %s192
      %p198 = scmp.eq.s32.totalorder %s38, 0
      %p199 = por %p197, %p198
      %p200 = scmp.ne.s32.totalorder %s189, %s192
      %p201 = scmp.eq.s32.totalorder %s43, 11
      %p202 = por %p200, %p201
      %p203 = scmp.ne.s32.totalorder %s192, %s193
      %p204 = scmp.eq.s32.totalorder %s43, 0
      %p205 = por %p203, %p204
      %p206 = scmp.ne.s32.totalorder %s192, %s193
      %p207 = scmp.eq.s32.totalorder %s44, 11
      %p208 = por %p206, %p207
      %p210 = scmp.ne.s32.totalorder %s193, %s209
      %p211 = scmp.eq.s32.totalorder %s44, 0
      %p212 = por %p210, %p211
      %s213 = ssub.s32 %s38, %s45
      %p214 = scmp.eq.s32.totalorder %s213, 0
      %s216 = sadd.s32 %s215, 1
      %s217 = scalar_select %p214, %s215, %s216
      %p220 = pneg %p214
      %p221 = scmp.eq.s32.totalorder %s38, 11
      %p222 = por %p220, %p221
      %p223 = scmp.ne.s32.totalorder %s215, %s218
      %p224 = scmp.eq.s32.totalorder %s38, 0
      %p225 = por %p223, %p224
      %p226 = scmp.ne.s32.totalorder %s215, %s218
      %p227 = scmp.eq.s32.totalorder %s43, 11
      %p228 = por %p226, %p227
      %p229 = scmp.ne.s32.totalorder %s218, %s219
      %p230 = scmp.eq.s32.totalorder %s43, 0
      %p231 = por %p229, %p230
      %p232 = scmp.ne.s32.totalorder %s218, %s219
      %p233 = scmp.eq.s32.totalorder %s44, 11
      %p234 = por %p232, %p233
      %p236 = scmp.ne.s32.totalorder %s219, %s235
      %p237 = scmp.eq.s32.totalorder %s44, 0
      %p238 = por %p236, %p237
      %s239 = ssub.s32 %s38, %s45
      %p240 = scmp.eq.s32.totalorder %s239, 0
      %s242 = sadd.s32 %s241, 1
      %s243 = scalar_select %p240, %s241, %s242
      %p246 = pneg %p240
      %p247 = scmp.eq.s32.totalorder %s38, 11
      %p248 = por %p246, %p247
      %p249 = scmp.ne.s32.totalorder %s241, %s244
      %p250 = scmp.eq.s32.totalorder %s38, 0
      %p251 = por %p249, %p250
      %p252 = scmp.ne.s32.totalorder %s241, %s244
      %p253 = scmp.eq.s32.totalorder %s43, 11
      %p254 = por %p252, %p253
      %p255 = scmp.ne.s32.totalorder %s244, %s245
      %p256 = scmp.eq.s32.totalorder %s43, 0
      %p257 = por %p255, %p256
      %p258 = scmp.ne.s32.totalorder %s244, %s245
      %p259 = scmp.eq.s32.totalorder %s44, 11
      %p260 = por %p258, %p259
      %p262 = scmp.ne.s32.totalorder %s245, %s261
      %p263 = scmp.eq.s32.totalorder %s44, 0
      %p264 = por %p262, %p263
      %s265 = ssub.s32 %s38, %s45
      %p266 = scmp.eq.s32.totalorder %s265, 0
      %s268 = sadd.s32 %s267, 1
      %s269 = scalar_select %p266, %s267, %s268
      %p272 = pneg %p266
      %p273 = scmp.eq.s32.totalorder %s38, 11
      %p274 = por %p272, %p273
      %p275 = scmp.ne.s32.totalorder %s267, %s270
      %p276 = scmp.eq.s32.totalorder %s38, 0
      %p277 = por %p275, %p276
      %p278 = scmp.ne.s32.totalorder %s267, %s270
      %p279 = scmp.eq.s32.totalorder %s43, 11
      %p280 = por %p278, %p279
      %p281 = scmp.ne.s32.totalorder %s270, %s271
      %p282 = scmp.eq.s32.totalorder %s43, 0
      %p283 = por %p281, %p282
      %p284 = scmp.ne.s32.totalorder %s270, %s271
      %p285 = scmp.eq.s32.totalorder %s44, 11
      %p286 = por %p284, %p285
      %p288 = scmp.ne.s32.totalorder %s271, %s287
      %p289 = scmp.eq.s32.totalorder %s44, 0
      %p290 = por %p288, %p289
      %s291 = ssub.s32 %s38, %s45
      %p292 = scmp.eq.s32.totalorder %s291, 0
      %s294 = sadd.s32 %s293, 1
      %s295 = scalar_select %p292, %s293, %s294
      %p298 = pneg %p292
      %p299 = scmp.eq.s32.totalorder %s38, 11
      %p300 = por %p298, %p299
      %p301 = scmp.ne.s32.totalorder %s293, %s296
      %p302 = scmp.eq.s32.totalorder %s38, 0
      %p303 = por %p301, %p302
      %p304 = scmp.ne.s32.totalorder %s293, %s296
      %p305 = scmp.eq.s32.totalorder %s43, 11
      %p306 = por %p304, %p305
      %p307 = scmp.ne.s32.totalorder %s296, %s297
      %p308 = scmp.eq.s32.totalorder %s43, 0
      %p309 = por %p307, %p308
      %p310 = scmp.ne.s32.totalorder %s296, %s297
      %p311 = scmp.eq.s32.totalorder %s44, 11
      %p312 = por %p310, %p311
      %p314 = scmp.ne.s32.totalorder %s297, %s313
      %p315 = scmp.eq.s32.totalorder %s44, 0
      %p316 = por %p314, %p315
      %s317 = ssub.s32 %s38, %s45
      %p318 = scmp.eq.s32.totalorder %s317, 0
      %s320 = sadd.s32 %s319, 1
      %s321 = scalar_select %p318, %s319, %s320
      %p324 = pneg %p318
      %p325 = scmp.eq.s32.totalorder %s38, 11
      %p326 = por %p324, %p325
      %p327 = scmp.ne.s32.totalorder %s319, %s322
      %p328 = scmp.eq.s32.totalorder %s38, 0
      %p329 = por %p327, %p328
      %p330 = scmp.ne.s32.totalorder %s319, %s322
      %p331 = scmp.eq.s32.totalorder %s43, 11
      %p332 = por %p330, %p331
      %p333 = scmp.ne.s32.totalorder %s322, %s323
      %p334 = scmp.eq.s32.totalorder %s43, 0
      %p335 = por %p333, %p334
      %p336 = scmp.ne.s32.totalorder %s322, %s323
      %p337 = scmp.eq.s32.totalorder %s44, 11
      %p338 = por %p336, %p337
      %p340 = scmp.ne.s32.totalorder %s323, %s339
      %p341 = scmp.eq.s32.totalorder %s44, 0
      %p342 = por %p340, %p341
      %s343 = ssub.s32 %s38, %s45
      %p344 = scmp.eq.s32.totalorder %s343, 0
      %s346 = sadd.s32 %s345, 1
      %s347 = scalar_select %p344, %s345, %s346
      %p350 = pneg %p344
      %p351 = scmp.eq.s32.totalorder %s38, 11
      %p352 = por %p350, %p351
      %p353 = scmp.ne.s32.totalorder %s345, %s348
      %p354 = scmp.eq.s32.totalorder %s38, 0
      %p355 = por %p353, %p354
      %p356 = scmp.ne.s32.totalorder %s345, %s348
      %p357 = scmp.eq.s32.totalorder %s43, 11
      %p358 = por %p356, %p357
      %p359 = scmp.ne.s32.totalorder %s348, %s349
      %p360 = scmp.eq.s32.totalorder %s43, 0
      %p361 = por %p359, %p360
      %p362 = scmp.ne.s32.totalorder %s348, %s349
      %p363 = scmp.eq.s32.totalorder %s44, 11
      %p364 = por %p362, %p363
      %p366 = scmp.ne.s32.totalorder %s349, %s365
      %p367 = scmp.eq.s32.totalorder %s44, 0
      %p368 = por %p366, %p367
      %s369 = ssub.s32 %s38, %s45
      %p370 = scmp.eq.s32.totalorder %s369, 0
      %s372 = sadd.s32 %s371, 1
      %s373 = scalar_select %p370, %s371, %s372
      %p376 = pneg %p370
      %p377 = scmp.eq.s32.totalorder %s38, 11
      %p378 = por %p376, %p377
      %p379 = scmp.ne.s32.totalorder %s371, %s374
      %p380 = scmp.eq.s32.totalorder %s38, 0
      %p381 = por %p379, %p380
      %p382 = scmp.ne.s32.totalorder %s371, %s374
      %p383 = scmp.eq.s32.totalorder %s43, 11
      %p384 = por %p382, %p383
      %p385 = scmp.ne.s32.totalorder %s374, %s375
      %p386 = scmp.eq.s32.totalorder %s43, 0
      %p387 = por %p385, %p386
      %p388 = scmp.ne.s32.totalorder %s374, %s375
      %p389 = scmp.eq.s32.totalorder %s44, 11
      %p390 = por %p388, %p389
      %p392 = scmp.ne.s32.totalorder %s375, %s391
      %p393 = scmp.eq.s32.totalorder %s44, 0
      %p394 = por %p392, %p393
      %s395 = ssub.s32 %s38, %s45
      %p396 = scmp.eq.s32.totalorder %s395, 0
      %s398 = sadd.s32 %s397, 1
      %s399 = scalar_select %p396, %s397, %s398
      %p402 = pneg %p396
      %p403 = scmp.eq.s32.totalorder %s38, 11
      %p404 = por %p402, %p403
      %p405 = scmp.ne.s32.totalorder %s397, %s400
      %p406 = scmp.eq.s32.totalorder %s38, 0
      %p407 = por %p405, %p406
      %p408 = scmp.ne.s32.totalorder %s397, %s400
      %p409 = scmp.eq.s32.totalorder %s43, 11
      %p410 = por %p408, %p409
      %p411 = scmp.ne.s32.totalorder %s400, %s401
      %p412 = scmp.eq.s32.totalorder %s43, 0
      %p413 = por %p411, %p412
      %p414 = scmp.ne.s32.totalorder %s400, %s401
      %p415 = scmp.eq.s32.totalorder %s44, 11
      %p416 = por %p414, %p415
      %p418 = scmp.ne.s32.totalorder %s401, %s417
      %p419 = scmp.eq.s32.totalorder %s44, 0
      %p420 = por %p418, %p419
      %s421 = ssub.s32 %s38, %s45
      %p422 = scmp.eq.s32.totalorder %s421, 0
      %s424 = sadd.s32 %s423, 1
      %s425 = scalar_select %p422, %s423, %s424
      %p428 = pneg %p422
      %p429 = scmp.eq.s32.totalorder %s38, 11
      %p430 = por %p428, %p429
      %p431 = scmp.ne.s32.totalorder %s423, %s426
      %p432 = scmp.eq.s32.totalorder %s38, 0
      %p433 = por %p431, %p432
      %p434 = scmp.ne.s32.totalorder %s423, %s426
      %p435 = scmp.eq.s32.totalorder %s43, 11
      %p436 = por %p434, %p435
      %p437 = scmp.ne.s32.totalorder %s426, %s427
      %p438 = scmp.eq.s32.totalorder %s43, 0
      %p439 = por %p437, %p438
      %p440 = scmp.ne.s32.totalorder %s426, %s427
      %p441 = scmp.eq.s32.totalorder %s44, 11
      %p442 = por %p440, %p441
      %p444 = scmp.ne.s32.totalorder %s427, %s443
      %p445 = scmp.eq.s32.totalorder %s44, 0
      %p446 = por %p444, %p445
      %s447 = ssub.s32 %s38, %s45
      %p448 = scmp.eq.s32.totalorder %s447, 0
      %s450 = sadd.s32 %s449, 1
      %s451 = scalar_select %p448, %s449, %s450
      %p454 = pneg %p448
      %p455 = scmp.eq.s32.totalorder %s38, 11
      %p456 = por %p454, %p455
      %p457 = scmp.ne.s32.totalorder %s449, %s452
      %p458 = scmp.eq.s32.totalorder %s38, 0
      %p459 = por %p457, %p458
      %p460 = scmp.ne.s32.totalorder %s449, %s452
      %p461 = scmp.eq.s32.totalorder %s43, 11
      %p462 = por %p460, %p461
      %p463 = scmp.ne.s32.totalorder %s452, %s453
      %p464 = scmp.eq.s32.totalorder %s43, 0
      %p465 = por %p463, %p464
      %p466 = scmp.ne.s32.totalorder %s452, %s453
      %p467 = scmp.eq.s32.totalorder %s44, 11
      %p468 = por %p466, %p467
      %p470 = scmp.ne.s32.totalorder %s453, %s469
      %p471 = scmp.eq.s32.totalorder %s44, 0
      %p472 = por %p470, %p471
      %s473 = ssub.s32 %s38, %s45
      %p474 = scmp.eq.s32.totalorder %s473, 0
      %s476 = sadd.s32 %s475, 1
      %s477 = scalar_select %p474, %s475, %s476
      %p480 = pneg %p474
      %p481 = scmp.eq.s32.totalorder %s38, 11
      %p482 = por %p480, %p481
      %p483 = scmp.ne.s32.totalorder %s475, %s478
      %p484 = scmp.eq.s32.totalorder %s38, 0
      %p485 = por %p483, %p484
      %p486 = scmp.ne.s32.totalorder %s475, %s478
      %p487 = scmp.eq.s32.totalorder %s43, 11
      %p488 = por %p486, %p487
      %p489 = scmp.ne.s32.totalorder %s478, %s479
      %p490 = scmp.eq.s32.totalorder %s43, 0
      %p491 = por %p489, %p490
      %p492 = scmp.ne.s32.totalorder %s478, %s479
      %p493 = scmp.eq.s32.totalorder %s44, 11
      %p494 = por %p492, %p493
      %p496 = scmp.ne.s32.totalorder %s479, %s495
      %p497 = scmp.eq.s32.totalorder %s44, 0
      %p498 = por %p496, %p497
      %s499 = ssub.s32 %s38, %s45
      %p500 = scmp.eq.s32.totalorder %s499, 0
      %s502 = sadd.s32 %s501, 1
      %s503 = scalar_select %p500, %s501, %s502
      %p506 = pneg %p500
      %p507 = scmp.eq.s32.totalorder %s38, 11
      %p508 = por %p506, %p507
      %p509 = scmp.ne.s32.totalorder %s501, %s504
      %p510 = scmp.eq.s32.totalorder %s38, 0
      %p511 = por %p509, %p510
      %p512 = scmp.ne.s32.totalorder %s501, %s504
      %p513 = scmp.eq.s32.totalorder %s43, 11
      %p514 = por %p512, %p513
      %p515 = scmp.ne.s32.totalorder %s504, %s505
      %p516 = scmp.eq.s32.totalorder %s43, 0
      %p517 = por %p515, %p516
      %p518 = scmp.ne.s32.totalorder %s504, %s505
      %p519 = scmp.eq.s32.totalorder %s44, 11
      %p520 = por %p518, %p519
      %p522 = scmp.ne.s32.totalorder %s505, %s521
      %p523 = scmp.eq.s32.totalorder %s44, 0
      %p524 = por %p522, %p523
      %s525 = ssub.s32 %s38, %s45
      %p526 = scmp.eq.s32.totalorder %s525, 0
      %s528 = sadd.s32 %s527, 1
      %s529 = scalar_select %p526, %s527, %s528
      %p532 = pneg %p526
      %p533 = scmp.eq.s32.totalorder %s38, 11
      %p534 = por %p532, %p533
      %p535 = scmp.ne.s32.totalorder %s527, %s530
      %p536 = scmp.eq.s32.totalorder %s38, 0
      %p537 = por %p535, %p536
      %p538 = scmp.ne.s32.totalorder %s527, %s530
      %p539 = scmp.eq.s32.totalorder %s43, 11
      %p540 = por %p538, %p539
      %p541 = scmp.ne.s32.totalorder %s530, %s531
      %p542 = scmp.eq.s32.totalorder %s43, 0
      %p543 = por %p541, %p542
      %p544 = scmp.ne.s32.totalorder %s530, %s531
      %p545 = scmp.eq.s32.totalorder %s44, 11
      %p546 = por %p544, %p545
      %p548 = scmp.ne.s32.totalorder %s531, %s547
      %p549 = scmp.eq.s32.totalorder %s44, 0
      %p550 = por %p548, %p549
      %s551 = ssub.s32 %s38, %s45
      %p552 = scmp.eq.s32.totalorder %s551, 0
      %s554 = sadd.s32 %s553, 1
      %s555 = scalar_select %p552, %s553, %s554
      %p558 = pneg %p552
      %p559 = scmp.eq.s32.totalorder %s38, 11
      %p560 = por %p558, %p559
      %p561 = scmp.ne.s32.totalorder %s553, %s556
      %p562 = scmp.eq.s32.totalorder %s38, 0
      %p563 = por %p561, %p562
      %p564 = scmp.ne.s32.totalorder %s553, %s556
      %p565 = scmp.eq.s32.totalorder %s43, 11
      %p566 = por %p564, %p565
      %p567 = scmp.ne.s32.totalorder %s556, %s557
      %p568 = scmp.eq.s32.totalorder %s43, 0
      %p569 = por %p567, %p568
      %p570 = scmp.ne.s32.totalorder %s556, %s557
      %p571 = scmp.eq.s32.totalorder %s44, 11
      %p572 = por %p570, %p571
      %p574 = scmp.ne.s32.totalorder %s557, %s573
      %p575 = scmp.eq.s32.totalorder %s44, 0
      %p576 = por %p574, %p575
      %s577 = ssub.s32 %s38, %s45
      %p578 = scmp.eq.s32.totalorder %s577, 0
      %s580 = sadd.s32 %s579, 1
      %s581 = scalar_select %p578, %s579, %s580
      %p584 = pneg %p578
      %p585 = scmp.eq.s32.totalorder %s38, 11
      %p586 = por %p584, %p585
      %p587 = scmp.ne.s32.totalorder %s579, %s582
      %p588 = scmp.eq.s32.totalorder %s38, 0
      %p589 = por %p587, %p588
      %p590 = scmp.ne.s32.totalorder %s579, %s582
      %p591 = scmp.eq.s32.totalorder %s43, 11
      %p592 = por %p590, %p591
      %p593 = scmp.ne.s32.totalorder %s582, %s583
      %p594 = scmp.eq.s32.totalorder %s43, 0
      %p595 = por %p593, %p594
      %p596 = scmp.ne.s32.totalorder %s582, %s583
      %p597 = scmp.eq.s32.totalorder %s44, 11
      %p598 = por %p596, %p597
      %p600 = scmp.ne.s32.totalorder %s583, %s599
      %p601 = scmp.eq.s32.totalorder %s44, 0
      %p602 = por %p600, %p601
      %s603 = ssub.s32 %s38, %s45
      %p604 = scmp.eq.s32.totalorder %s603, 0
      %s606 = sadd.s32 %s605, 1
      %s607 = scalar_select %p604, %s605, %s606
      %p610 = pneg %p604
      %p611 = scmp.eq.s32.totalorder %s38, 11
      %p612 = por %p610, %p611
      %p613 = scmp.ne.s32.totalorder %s605, %s608
      %p614 = scmp.eq.s32.totalorder %s38, 0
      %p615 = por %p613, %p614
      %p616 = scmp.ne.s32.totalorder %s605, %s608
      %p617 = scmp.eq.s32.totalorder %s43, 11
      %p618 = por %p616, %p617
      %p619 = scmp.ne.s32.totalorder %s608, %s609
      %p620 = scmp.eq.s32.totalorder %s43, 0
      %p621 = por %p619, %p620
      %p622 = scmp.ne.s32.totalorder %s608, %s609
      %p623 = scmp.eq.s32.totalorder %s44, 11
      %p624 = por %p622, %p623
      %p626 = scmp.ne.s32.totalorder %s609, %s625
      %p627 = scmp.eq.s32.totalorder %s44, 0
      %p628 = por %p626, %p627
      %s630 = sadd.s32 %s629, 1
      %p633 = scmp.eq.s32.totalorder %s38, 11
      %p634 = scmp.ne.s32.totalorder %s629, %s631
      %p635 = scmp.eq.s32.totalorder %s38, 0
      %p636 = por %p634, %p635
      %p637 = scmp.ne.s32.totalorder %s629, %s631
      %p638 = scmp.eq.s32.totalorder %s43, 11
      %p639 = por %p637, %p638
      %p640 = scmp.ne.s32.totalorder %s631, %s632
      %p641 = scmp.eq.s32.totalorder %s43, 0
      %p642 = por %p640, %p641
      %p643 = scmp.ne.s32.totalorder %s631, %s632
      %p644 = scmp.eq.s32.totalorder %s44, 11
      %p645 = por %p643, %p644
      %p647 = scmp.ne.s32.totalorder %s632, %s646
      %p648 = scmp.eq.s32.totalorder %s44, 0
      %p649 = por %p647, %p648
      %p650 = scmp.le.s32.totalorder 1, %s38
      %p651 = scmp.lt.s32.totalorder %s38, 13
      %p652 = pnand %p650, %p651
      %p653 = pneg %p652
      // Predicated region
      $region9: #{forward.4} parent=5 // pred_check
        _
      $region10: #{forward.4} parent=5 // pred_check_branch
        %655 = sbr.rel (%p652) target = $region12
      $region11: #{forward.4} parent=5 // pred_region
        %s656 = ssub.s32 %s38, 1
        // Predicated region
        $region13: #{forward.4} parent=11 // pred_check
          %p657 = pneg %p59
        $region14: #{forward.4} parent=11 // pred_check_branch
          %659 = sbr.rel (%p657) target = $region16
        $region15: #{forward.4} parent=11 // pred_region
          _
        $region16: #{forward.4} parent=11 // pred_fallthru
          _
        // Predicated region
        $region17: #{forward.4} parent=11 // pred_check
          %p660 = pneg %p80
        $region18: #{forward.4} parent=11 // pred_check_branch
          %662 = sbr.rel (%p660) target = $region20
        $region19: #{forward.4} parent=11 // pred_region
          _
        $region20: #{forward.4} parent=11 // pred_fallthru
          _
        // Predicated region
        $region21: #{forward.4} parent=11 // pred_check
          %p663 = pneg %p101
        $region22: #{forward.4} parent=11 // pred_check_branch
          %665 = sbr.rel (%p663) target = $region24
        $region23: #{forward.4} parent=11 // pred_region
          _
        $region24: #{forward.4} parent=11 // pred_fallthru
          _
      $region12: #{forward.4} parent=5 // pred_fallthru
        _
      %p666 = scmp.lt.s32.totalorder %s38, 12
      // Predicated region
      $region25: #{forward.4} parent=5 // pred_check
        %p667 = pneg %p666
      $region26: #{forward.4} parent=5 // pred_check_branch
        %669 = sbr.rel (%p667) target = $region28
      $region27: #{forward.4} parent=5 // pred_region
        // Predicated region
        $region29: #{forward.4} parent=27 // pred_check
          %p670 = pneg %p121
        $region30: #{forward.4} parent=27 // pred_check_branch
          %672 = sbr.rel (%p670) target = $region32
        $region31: #{forward.4} parent=27 // pred_region
          %p673 = scmp.lt.s32.totalorder %s38, 11
          %s674 = scalar_select %p673, %s38, 11
          %s675 = scalar_lea.vmem %s3, %s674
        $region32: #{forward.4} parent=27 // pred_fallthru
          _
        // Predicated region
        $region33: #{forward.4} parent=27 // pred_check
          %p676 = pneg %p147
        $region34: #{forward.4} parent=27 // pred_check_branch
          %678 = sbr.rel (%p676) target = $region36
        $region35: #{forward.4} parent=27 // pred_region
          %p679 = scmp.lt.s32.totalorder %s38, 11
          %s680 = scalar_select %p679, %s38, 11
          %s681 = scalar_lea.vmem %s4, %s680
        $region36: #{forward.4} parent=27 // pred_fallthru
          _
        // Predicated region
        $region37: #{forward.4} parent=27 // pred_check
          %p682 = pneg %p173
        $region38: #{forward.4} parent=27 // pred_check_branch
          %684 = sbr.rel (%p682) target = $region40
        $region39: #{forward.4} parent=27 // pred_region
          %p685 = scmp.lt.s32.totalorder %s38, 11
          %s686 = scalar_select %p685, %s38, 11
          %s687 = smul.addr %s686, 48
          %s688 = smul.addr %s687, 4
          %s689 = scalar_lea.vmem %s5, %s688
        $region40: #{forward.4} parent=27 // pred_fallthru
          _
        // Predicated region
        $region41: #{forward.4} parent=27 // pred_check
          %p690 = pneg %p199
        $region42: #{forward.4} parent=27 // pred_check_branch
          %692 = sbr.rel (%p690) target = $region44
        $region43: #{forward.4} parent=27 // pred_region
          %p693 = scmp.lt.s32.totalorder %s38, 11
          %s694 = scalar_select %p693, %s38, 11
          %s695 = smul.addr %s694, 3
          %s696 = scalar_lea.vmem %s6, %s695
        $region44: #{forward.4} parent=27 // pred_fallthru
          _
        // Predicated region
        $region45: #{forward.4} parent=27 // pred_check
          %p697 = pneg %p225
        $region46: #{forward.4} parent=27 // pred_check_branch
          %699 = sbr.rel (%p697) target = $region48
        $region47: #{forward.4} parent=27 // pred_region
          %p700 = scmp.lt.s32.totalorder %s38, 11
          %s701 = scalar_select %p700, %s38, 11
          %s702 = smul.addr %s701, 16
          %s703 = smul.addr %s702, 4
          %s704 = scalar_lea.vmem %s7, %s703
        $region48: #{forward.4} parent=27 // pred_fallthru
          _
        // Predicated region
        $region49: #{forward.4} parent=27 // pred_check
          %p705 = pneg %p251
        $region50: #{forward.4} parent=27 // pred_check_branch
          %707 = sbr.rel (%p705) target = $region52
        $region51: #{forward.4} parent=27 // pred_region
          %p708 = scmp.lt.s32.totalorder %s38, 11
          %s709 = scalar_select %p708, %s38, 11
          %s710 = scalar_lea.vmem %s8, %s709
        $region52: #{forward.4} parent=27 // pred_fallthru
          _
        // Predicated region
        $region53: #{forward.4} parent=27 // pred_check
          %p711 = pneg %p277
        $region54: #{forward.4} parent=27 // pred_check_branch
          %713 = sbr.rel (%p711) target = $region56
        $region55: #{forward.4} parent=27 // pred_region
          %p714 = scmp.lt.s32.totalorder %s38, 11
          %s715 = scalar_select %p714, %s38, 11
          %s716 = scalar_lea.vmem %s9, %s715
        $region56: #{forward.4} parent=27 // pred_fallthru
          _
        // Predicated region
        $region57: #{forward.4} parent=27 // pred_check
          %p717 = pneg %p303
        $region58: #{forward.4} parent=27 // pred_check_branch
          %719 = sbr.rel (%p717) target = $region60
        $region59: #{forward.4} parent=27 // pred_region
          %p720 = scmp.lt.s32.totalorder %s38, 11
          %s721 = scalar_select %p720, %s38, 11
          %s722 = scalar_lea.vmem %s10, %s721
        $region60: #{forward.4} parent=27 // pred_fallthru
          _
        // Predicated region
        $region61: #{forward.4} parent=27 // pred_check
          %p723 = pneg %p329
        $region62: #{forward.4} parent=27 // pred_check_branch
          %725 = sbr.rel (%p723) target = $region64
        $region63: #{forward.4} parent=27 // pred_region
          %p726 = scmp.lt.s32.totalorder %s38, 11
          %s727 = scalar_select %p726, %s38, 11
          %s728 = smul.addr %s727, 16
          %s729 = smul.addr %s728, 4
          %s730 = scalar_lea.vmem %s11, %s729
        $region64: #{forward.4} parent=27 // pred_fallthru
          _
        // Predicated region
        $region65: #{forward.4} parent=27 // pred_check
          %p731 = pneg %p355
        $region66: #{forward.4} parent=27 // pred_check_branch
          %733 = sbr.rel (%p731) target = $region68
        $region67: #{forward.4} parent=27 // pred_region
          %p734 = scmp.lt.s32.totalorder %s38, 11
          %s735 = scalar_select %p734, %s38, 11
          %s736 = scalar_lea.vmem %s12, %s735
        $region68: #{forward.4} parent=27 // pred_fallthru
          _
        // Predicated region
        $region69: #{forward.4} parent=27 // pred_check
          %p737 = pneg %p381
        $region70: #{forward.4} parent=27 // pred_check_branch
          %739 = sbr.rel (%p737) target = $region72
        $region71: #{forward.4} parent=27 // pred_region
          %p740 = scmp.lt.s32.totalorder %s38, 11
          %s741 = scalar_select %p740, %s38, 11
          %s742 = smul.addr %s741, 32
          %s743 = smul.addr %s742, 4
          %s744 = scalar_lea.vmem %s13, %s743
        $region72: #{forward.4} parent=27 // pred_fallthru
          _
        // Predicated region
        $region73: #{forward.4} parent=27 // pred_check
          %p745 = pneg %p407
        $region74: #{forward.4} parent=27 // pred_check_branch
          %747 = sbr.rel (%p745) target = $region76
        $region75: #{forward.4} parent=27 // pred_region
          %p748 = scmp.lt.s32.totalorder %s38, 11
          %s749 = scalar_select %p748, %s38, 11
          %s750 = smul.addr %s749, 2
          %s751 = scalar_lea.vmem %s14, %s750
        $region76: #{forward.4} parent=27 // pred_fallthru
          _
        // Predicated region
        $region77: #{forward.4} parent=27 // pred_check
          %p752 = pneg %p433
        $region78: #{forward.4} parent=27 // pred_check_branch
          %754 = sbr.rel (%p752) target = $region80
        $region79: #{forward.4} parent=27 // pred_region
          %s755 = sand.u32 %s423, 1
          %s756 = scalar_lea.sflag [#allocation4], %s755
          %s757 = sand.u32 %s423, 1
          %s758 = smul.addr %s757, 64
          %s759 = scalar_lea.vmem [#allocation3], %s758
          %s761 = ssub.s32 1024, 1024
          %762 = vsyncadd %s756, %s761
          %s763 = smul.addr %s38, 16
          %s764 = smul.addr %s763, 64
          %s765 = scalar_lea.hbm %s15, %s764
          %s766 = sshll.u32 %s759, 4
          %s767 = int_to_ptr.vmem [resolvable:$true] %s766
          %772 = dma.hbm_to_vmem [thread:$0]  %s765, 1024, %s767, %s756, 64, 64, 4
        $region80: #{forward.4} parent=27 // pred_fallthru
          _
        // Predicated region
        $region81: #{forward.4} parent=27 // pred_check
          %p773 = pneg %p459
        $region82: #{forward.4} parent=27 // pred_check_branch
          %775 = sbr.rel (%p773) target = $region84
        $region83: #{forward.4} parent=27 // pred_region
          %p776 = scmp.lt.s32.totalorder %s38, 11
          %s777 = scalar_select %p776, %s38, 11
          %s778 = scalar_lea.vmem %s16, %s777
        $region84: #{forward.4} parent=27 // pred_fallthru
          _
        // Predicated region
        $region85: #{forward.4} parent=27 // pred_check
          %p779 = pneg %p485
        $region86: #{forward.4} parent=27 // pred_check_branch
          %781 = sbr.rel (%p779) target = $region88
        $region87: #{forward.4} parent=27 // pred_region
          %p782 = scmp.lt.s32.totalorder %s38, 11
          %s783 = scalar_select %p782, %s38, 11
          %s784 = scalar_lea.vmem %s17, %s783
        $region88: #{forward.4} parent=27 // pred_fallthru
          _
        // Predicated region
        $region89: #{forward.4} parent=27 // pred_check
          %p785 = pneg %p511
        $region90: #{forward.4} parent=27 // pred_check_branch
          %787 = sbr.rel (%p785) target = $region92
        $region91: #{forward.4} parent=27 // pred_region
          %p788 = scmp.lt.s32.totalorder %s38, 11
          %s789 = scalar_select %p788, %s38, 11
          %s790 = scalar_lea.vmem %s18, %s789
        $region92: #{forward.4} parent=27 // pred_fallthru
          _
        // Predicated region
        $region93: #{forward.4} parent=27 // pred_check
          %p791 = pneg %p537
        $region94: #{forward.4} parent=27 // pred_check_branch
          %793 = sbr.rel (%p791) target = $region96
        $region95: #{forward.4} parent=27 // pred_region
          %s794 = sand.u32 %s38, 1
          %s795 = scalar_lea.sflag [#allocation6], %s794
          %s796 = sand.u32 %s527, 1
          %s797 = smul.addr %s796, 64
          %s798 = scalar_lea.vmem [#allocation5], %s797
          %s800 = ssub.s32 1024, 1024
          %801 = vsyncadd %s795, %s800
          %s802 = smul.addr %s38, 16
          %s803 = smul.addr %s802, 64
          %s804 = scalar_lea.hbm %s19, %s803
          %s805 = sshll.u32 %s798, 4
          %s806 = int_to_ptr.vmem [resolvable:$true] %s805
          %811 = dma.hbm_to_vmem [thread:$0]  %s804, 1024, %s806, %s795, 64, 64, 4
        $region96: #{forward.4} parent=27 // pred_fallthru
          _
        // Predicated region
        $region97: #{forward.4} parent=27 // pred_check
          %p812 = pneg %p563
        $region98: #{forward.4} parent=27 // pred_check_branch
          %814 = sbr.rel (%p812) target = $region100
        $region99: #{forward.4} parent=27 // pred_region
          %p815 = scmp.lt.s32.totalorder %s38, 11
          %s816 = scalar_select %p815, %s38, 11
          %s817 = scalar_lea.vmem %s20, %s816
        $region100: #{forward.4} parent=27 // pred_fallthru
          _
        // Predicated region
        $region101: #{forward.4} parent=27 // pred_check
          %p818 = pneg %p589
        $region102: #{forward.4} parent=27 // pred_check_branch
          %820 = sbr.rel (%p818) target = $region104
        $region103: #{forward.4} parent=27 // pred_region
          %s821 = sand.u32 %s38, 1
          %s822 = scalar_lea.sflag [#allocation6], %s821
          %s823 = sand.u32 %s579, 1
          %s824 = smul.addr %s823, 64
          %s825 = scalar_lea.vmem [#allocation7], %s824
          %s827 = ssub.s32 1024, 1024
          %828 = vsyncadd %s822, %s827
          %s829 = smul.addr %s38, 16
          %s830 = smul.addr %s829, 64
          %s831 = scalar_lea.hbm %s21, %s830
          %s832 = sshll.u32 %s825, 4
          %s833 = int_to_ptr.vmem [resolvable:$true] %s832
          %838 = dma.hbm_to_vmem [thread:$0]  %s831, 1024, %s833, %s822, 64, 64, 4
        $region104: #{forward.4} parent=27 // pred_fallthru
          _
        // Predicated region
        $region105: #{forward.4} parent=27 // pred_check
          %p839 = pneg %p615
        $region106: #{forward.4} parent=27 // pred_check_branch
          %841 = sbr.rel (%p839) target = $region108
        $region107: #{forward.4} parent=27 // pred_region
          %s842 = sand.u32 %s605, 1
          %s843 = scalar_lea.sflag [#allocation9], %s842
          %s844 = sand.u32 %s605, 1
          %s845 = scalar_lea.vmem [#allocation8], %s844
          %s847 = ssub.s32 16, 16
          %848 = vsyncadd %s843, %s847
          %s849 = smul.addr %s38, 16
          %s850 = scalar_lea.hbm %s22, %s849
          %s852 = sshll.u32 %s845, 4
          %s853 = int_to_ptr.vmem [resolvable:$true] %s852
          %855 = dma.hbm_to_vmem [thread:$0]  %s850, 16, %s853, %s843
        $region108: #{forward.4} parent=27 // pred_fallthru
          _
      $region28: #{forward.4} parent=5 // pred_fallthru
        _
      %p856 = scmp.le.s32.totalorder 1, %s38
      %p857 = scmp.lt.s32.totalorder %s38, 13
      %p858 = pnand %p856, %p857
      %p859 = pneg %p858
      // Predicated region
      $region109: #{forward.4} parent=5 // pred_check
        _
      $region110: #{forward.4} parent=5 // pred_check_branch
        %861 = sbr.rel (%p858) target = $region112
      $region111: #{forward.4} parent=5 // pred_region
        %s862 = ssub.s32 %s38, 1
        %s863 = sand.u32 %s426, 1
        %s864 = scalar_lea.sflag [#allocation4], %s863
        %s865 = sand.u32 %s426, 1
        %s866 = smul.addr %s865, 64
        %s867 = scalar_lea.vmem [#allocation3], %s866
        // Predicated region
        $region113: #{forward.4} parent=111 // pred_check
          %p868 = pneg %p439
        $region114: #{forward.4} parent=111 // pred_check_branch
          %870 = sbr.rel (%p868) target = $region116
        $region115: #{forward.4} parent=111 // pred_region
          %871 = dma.done %s864, 1024
        $region116: #{forward.4} parent=111 // pred_fallthru
          _
        %s872 = sand.u32 %s43, 1
        %s873 = scalar_lea.sflag [#allocation6], %s872
        %s874 = sand.u32 %s530, 1
        %s875 = smul.addr %s874, 64
        %s876 = scalar_lea.vmem [#allocation5], %s875
        // Predicated region
        $region117: #{forward.4} parent=111 // pred_check
          %p877 = pneg %p543
        $region118: #{forward.4} parent=111 // pred_check_branch
          %879 = sbr.rel (%p877) target = $region120
        $region119: #{forward.4} parent=111 // pred_region
          %880 = dma.done %s873, 1024
        $region120: #{forward.4} parent=111 // pred_fallthru
          _
        %s881 = sand.u32 %s43, 1
        %s882 = scalar_lea.sflag [#allocation6], %s881
        %s883 = sand.u32 %s582, 1
        %s884 = smul.addr %s883, 64
        %s885 = scalar_lea.vmem [#allocation7], %s884
        // Predicated region
        $region121: #{forward.4} parent=111 // pred_check
          %p886 = pneg %p595
        $region122: #{forward.4} parent=111 // pred_check_branch
          %888 = sbr.rel (%p886) target = $region124
        $region123: #{forward.4} parent=111 // pred_region
          %889 = dma.done %s882, 1024
        $region124: #{forward.4} parent=111 // pred_fallthru
          _
        %s890 = sand.u32 %s608, 1
        %s891 = scalar_lea.sflag [#allocation9], %s890
        %s892 = sand.u32 %s608, 1
        %s893 = scalar_lea.vmem [#allocation8], %s892
        // Predicated region
        $region125: #{forward.4} parent=111 // pred_check
          %p894 = pneg %p621
        $region126: #{forward.4} parent=111 // pred_check_branch
          %896 = sbr.rel (%p894) target = $region128
        $region127: #{forward.4} parent=111 // pred_region
          %897 = dma.done %s891, 16
        $region128: #{forward.4} parent=111 // pred_fallthru
          _
        %p898 = pneg %p59
        %p899 = pneg %p56
        %p900 = pneg %p80
        %p901 = pneg %p77
        %p902 = pneg %p101
        %p903 = pneg %p98
        %p904 = scmp.lt.s32.totalorder %s43, 11
        %s905 = scalar_select %p904, %s43, 11
        %s906 = scalar_lea.vmem %s3, %s905
        %p907 = pneg %p127
        %p908 = pneg %p124
        %p909 = scmp.lt.s32.totalorder %s43, 11
        %s910 = scalar_select %p909, %s43, 11
        %s911 = scalar_lea.vmem %s4, %s910
        %p912 = pneg %p153
        %p913 = pneg %p150
        %p914 = scmp.lt.s32.totalorder %s43, 11
        %s915 = scalar_select %p914, %s43, 11
        %s916 = smul.addr %s915, 48
        %s917 = smul.addr %s916, 4
        %s918 = scalar_lea.vmem %s5, %s917
        %p919 = pneg %p179
        %p920 = pneg %p176
        %p921 = scmp.lt.s32.totalorder %s43, 11
        %s922 = scalar_select %p921, %s43, 11
        %s923 = smul.addr %s922, 3
        %s924 = scalar_lea.vmem %s6, %s923
        %p925 = pneg %p205
        %p926 = pneg %p202
        %p927 = scmp.lt.s32.totalorder %s43, 11
        %s928 = scalar_select %p927, %s43, 11
        %s929 = smul.addr %s928, 16
        %s930 = smul.addr %s929, 4
        %s931 = scalar_lea.vmem %s7, %s930
        %p932 = pneg %p231
        %p933 = pneg %p228
        %p934 = scmp.lt.s32.totalorder %s43, 11
        %s935 = scalar_select %p934, %s43, 11
        %s936 = scalar_lea.vmem %s8, %s935
        %p937 = pneg %p257
        %p938 = pneg %p254
        %p939 = scmp.lt.s32.totalorder %s43, 11
        %s940 = scalar_select %p939, %s43, 11
        %s941 = scalar_lea.vmem %s9, %s940
        %p942 = pneg %p283
        %p943 = pneg %p280
        %p944 = scmp.lt.s32.totalorder %s43, 11
        %s945 = scalar_select %p944, %s43, 11
        %s946 = scalar_lea.vmem %s10, %s945
        %p947 = pneg %p309
        %p948 = pneg %p306
        %p949 = scmp.lt.s32.totalorder %s43, 11
        %s950 = scalar_select %p949, %s43, 11
        %s951 = smul.addr %s950, 16
        %s952 = smul.addr %s951, 4
        %s953 = scalar_lea.vmem %s11, %s952
        %p954 = pneg %p335
        %p955 = pneg %p332
        %p956 = scmp.lt.s32.totalorder %s43, 11
        %s957 = scalar_select %p956, %s43, 11
        %s958 = scalar_lea.vmem %s12, %s957
        %p959 = pneg %p361
        %p960 = pneg %p358
        %p961 = scmp.lt.s32.totalorder %s43, 11
        %s962 = scalar_select %p961, %s43, 11
        %s963 = smul.addr %s962, 32
        %s964 = smul.addr %s963, 4
        %s965 = scalar_lea.vmem %s13, %s964
        %p966 = pneg %p387
        %p967 = pneg %p384
        %p968 = scmp.lt.s32.totalorder %s43, 11
        %s969 = scalar_select %p968, %s43, 11
        %s970 = smul.addr %s969, 2
        %s971 = scalar_lea.vmem %s14, %s970
        %p972 = pneg %p413
        %p973 = pneg %p410
        %s974 = sand.u32 %s426, 1
        %s975 = scalar_lea.sflag [#allocation4], %s974
        %s976 = sand.u32 %s426, 1
        %s977 = smul.addr %s976, 64
        %s978 = scalar_lea.vmem [#allocation3], %s977
        %p979 = pneg %p439
        %p980 = pneg %p436
        %p981 = scmp.lt.s32.totalorder %s43, 11
        %s982 = scalar_select %p981, %s43, 11
        %s983 = scalar_lea.vmem %s16, %s982
        %p984 = pneg %p465
        %p985 = pneg %p462
        %p986 = scmp.lt.s32.totalorder %s43, 11
        %s987 = scalar_select %p986, %s43, 11
        %s988 = scalar_lea.vmem %s17, %s987
        %p989 = pneg %p491
        %p990 = pneg %p488
        %p991 = scmp.lt.s32.totalorder %s43, 11
        %s992 = scalar_select %p991, %s43, 11
        %s993 = scalar_lea.vmem %s18, %s992
        %p994 = pneg %p517
        %p995 = pneg %p514
        %s996 = sand.u32 %s43, 1
        %s997 = scalar_lea.sflag [#allocation6], %s996
        %s998 = sand.u32 %s530, 1
        %s999 = smul.addr %s998, 64
        %s1000 = scalar_lea.vmem [#allocation5], %s999
        %p1001 = pneg %p543
        %p1002 = pneg %p540
        %p1003 = scmp.lt.s32.totalorder %s43, 11
        %s1004 = scalar_select %p1003, %s43, 11
        %s1005 = scalar_lea.vmem %s20, %s1004
        %p1006 = pneg %p569
        %p1007 = pneg %p566
        %s1008 = sand.u32 %s43, 1
        %s1009 = scalar_lea.sflag [#allocation6], %s1008
        %s1010 = sand.u32 %s582, 1
        %s1011 = smul.addr %s1010, 64
        %s1012 = scalar_lea.vmem [#allocation7], %s1011
        %p1013 = pneg %p595
        %p1014 = pneg %p592
        %s1015 = sand.u32 %s608, 1
        %s1016 = scalar_lea.sflag [#allocation9], %s1015
        %s1017 = sand.u32 %s608, 1
        %s1018 = scalar_lea.vmem [#allocation8], %s1017
        %p1019 = pneg %p621
        %p1020 = pneg %p618
        %p1021 = pneg %p642
        %p1022 = pneg %p639
        %p1023 = scmp.lt.s32.totalorder %s43, 11
        %s1024 = scalar_select %p1023, %s43, 11
        %s1025 = scalar_lea.vmem %s3, %s1024
        %p1026 = scmp.lt.s32.totalorder %s43, 11
        %s1027 = scalar_select %p1026, %s43, 11
        %s1028 = scalar_lea.vmem %s4, %s1027
        %p1029 = scmp.lt.s32.totalorder %s43, 11
        %s1030 = scalar_select %p1029, %s43, 11
        %s1031 = smul.addr %s1030, 48
        %s1032 = smul.addr %s1031, 4
        %s1033 = scalar_lea.vmem %s5, %s1032
        %p1034 = scmp.lt.s32.totalorder %s43, 11
        %s1035 = scalar_select %p1034, %s43, 11
        %s1036 = smul.addr %s1035, 3
        %s1037 = scalar_lea.vmem %s6, %s1036
        %p1038 = scmp.lt.s32.totalorder %s43, 11
        %s1039 = scalar_select %p1038, %s43, 11
        %s1040 = smul.addr %s1039, 16
        %s1041 = smul.addr %s1040, 4
        %s1042 = scalar_lea.vmem %s7, %s1041
        %p1043 = scmp.lt.s32.totalorder %s43, 11
        %s1044 = scalar_select %p1043, %s43, 11
        %s1045 = scalar_lea.vmem %s8, %s1044
        %p1046 = scmp.lt.s32.totalorder %s43, 11
        %s1047 = scalar_select %p1046, %s43, 11
        %s1048 = scalar_lea.vmem %s9, %s1047
        %p1049 = scmp.lt.s32.totalorder %s43, 11
        %s1050 = scalar_select %p1049, %s43, 11
        %s1051 = scalar_lea.vmem %s10, %s1050
        %p1052 = scmp.lt.s32.totalorder %s43, 11
        %s1053 = scalar_select %p1052, %s43, 11
        %s1054 = smul.addr %s1053, 16
        %s1055 = smul.addr %s1054, 4
        %s1056 = scalar_lea.vmem %s11, %s1055
        %p1057 = scmp.lt.s32.totalorder %s43, 11
        %s1058 = scalar_select %p1057, %s43, 11
        %s1059 = scalar_lea.vmem %s12, %s1058
        %p1060 = scmp.lt.s32.totalorder %s43, 11
        %s1061 = scalar_select %p1060, %s43, 11
        %s1062 = smul.addr %s1061, 32
        %s1063 = smul.addr %s1062, 4
        %s1064 = scalar_lea.vmem %s13, %s1063
        %p1065 = scmp.lt.s32.totalorder %s43, 11
        %s1066 = scalar_select %p1065, %s43, 11
        %s1067 = smul.addr %s1066, 2
        %s1068 = scalar_lea.vmem %s14, %s1067
        %p1069 = scmp.lt.s32.totalorder %s43, 11
        %s1070 = scalar_select %p1069, %s43, 11
        %s1071 = scalar_lea.vmem %s16, %s1070
        %p1072 = scmp.lt.s32.totalorder %s43, 11
        %s1073 = scalar_select %p1072, %s43, 11
        %s1074 = scalar_lea.vmem %s17, %s1073
        %p1075 = scmp.lt.s32.totalorder %s43, 11
        %s1076 = scalar_select %p1075, %s43, 11
        %s1077 = scalar_lea.vmem %s18, %s1076
        %p1078 = scmp.lt.s32.totalorder %s43, 11
        %s1079 = scalar_select %p1078, %s43, 11
        %s1080 = scalar_lea.vmem %s20, %s1079
        %p1082 = scmp.eq.s32.totalorder %s43, 0
        // Predicated region
        $region129: #{forward.4} parent=111 // pred_check
          %p1083 = pneg %p1082
        $region130: #{forward.4} parent=111 // pred_check_branch
          %1085 = sbr.rel (%p1083) target = $region132
        $region131: #{forward.4} parent=111 // pred_region
          %v1086 = vld [vmem:[%s0] sm:$0xff]
          %v1087 = vld [vmem:[%s0 + $0x8] sm:$0xff]
          %1088 = vst [vmem:[#allocation2] sm:$0xff] %v1086
          %1089 = vst [vmem:[#allocation2 + $0x8] sm:$0xff] %v1087
        $region132: #{forward.4} parent=111 // pred_fallthru
          _
        %v1090 = vld [vmem:[#allocation2] sm:$0xff]
        %v1091 = vld [vmem:[#allocation2 + $0x8] sm:$0xff]
        %v1092 = vld [vmem:[%s1] sm:$0xff]
        %v1093 = vld [vmem:[%s1 + $0x8] sm:$0xff]
        %v1094 = vld [vmem:[%s2] sm:$0xff]
        %v1095 = vld [vmem:[%s2 + $0x8] sm:$0xff]
        %v1096 = vld [vmem:[%s1025] sm:$0x1]
        %v1097 = vld [vmem:[%s1028] sm:$0x1]
        %1098 = vadd.xlane.f32.xlu0 %v1090
        %v1099 = vpop.xlane.xlu0 %1098
        %1100 = vadd.xlane.f32.xlu0 %v1091
        %v1101 = vpop.xlane.xlu0 %1100
        %v1102 = vrcp.pop 128.0
        %v1103 = vmul.f32 %v1099, %v1102
        %v1104 = vmul.f32 %v1101, %v1102
        %v1105 = vsub.f32 %v1090, %v1103
        %v1106 = vsub.f32 %v1091, %v1104
        %v1107 = vmul.f32 %v1105, %v1105
        %v1108 = vmul.f32 %v1106, %v1106
        %1109 = vadd.xlane.f32.xlu0 %v1107
        %v1110 = vpop.xlane.xlu0 %1109
        %1111 = vadd.xlane.f32.xlu0 %v1108
        %v1112 = vpop.xlane.xlu0 %1111
        %v1113 = vmul.f32 %v1110, %v1102
        %v1114 = vmul.f32 %v1112, %v1102
        %v1115 = vadd.f32 %v1113, 1e-05
        %v1116 = vadd.f32 %v1114, 1e-05
        %v1117 = vrsqrt.pop %v1115
        %v1118 = vrsqrt.pop %v1116
        %v1119 = vmul.f32 %v1105, %v1117
        %v1120 = vmul.f32 %v1106, %v1118
        %v1122 = vlaneseq
        %v1123 = vshrl.u32 %v1122, 7
        %v1124 = vsub.s32 0, %v1123
        %v1125 = vrot.slane %v1096, %v1124
        %v1127 = vmul.f32 %v1119, %v1125
        %v1128 = vmul.f32 %v1120, %v1125
        %v1130 = vlaneseq
        %v1131 = vshrl.u32 %v1130, 7
        %v1132 = vsub.s32 0, %v1131
        %v1133 = vrot.slane %v1097, %v1132
        %v1135 = vadd.f32 %v1127, %v1133
        %v1136 = vadd.f32 %v1128, %v1133
        %v1137 = vld [vmem:[%s1033] sm:$0xff]
        %v1138 = vld [vmem:[%s1033 + $0x8] sm:$0xf]
        %v1139 = vld [vmem:[%s1033 + $0xc] sm:$0xff]
        %v1140 = vld [vmem:[%s1033 + $0x14] sm:$0xf]
        %v1141 = vld [vmem:[%s1033 + $0x18] sm:$0xff]
        %v1142 = vld [vmem:[%s1033 + $0x20] sm:$0xf]
        %v1143 = vld [vmem:[%s1033 + $0x24] sm:$0xff]
        %v1144 = vld [vmem:[%s1033 + $0x2c] sm:$0xf]
        %v1145 = vld [vmem:[%s1033 + $0x30] sm:$0xff]
        %v1146 = vld [vmem:[%s1033 + $0x38] sm:$0xf]
        %v1147 = vld [vmem:[%s1033 + $0x3c] sm:$0xff]
        %v1148 = vld [vmem:[%s1033 + $0x44] sm:$0xf]
        %v1149 = vld [vmem:[%s1033 + $0x48] sm:$0xff]
        %v1150 = vld [vmem:[%s1033 + $0x50] sm:$0xf]
        %v1151 = vld [vmem:[%s1033 + $0x54] sm:$0xff]
        %v1152 = vld [vmem:[%s1033 + $0x5c] sm:$0xf]
        %v1153 = vld [vmem:[%s1033 + $0x60] sm:$0xff]
        %v1154 = vld [vmem:[%s1033 + $0x68] sm:$0xf]
        %v1155 = vld [vmem:[%s1033 + $0x6c] sm:$0xff]
        %v1156 = vld [vmem:[%s1033 + $0x74] sm:$0xf]
        %v1157 = vld [vmem:[%s1033 + $0x78] sm:$0xff]
        %v1158 = vld [vmem:[%s1033 + $0x80] sm:$0xf]
        %v1159 = vld [vmem:[%s1033 + $0x84] sm:$0xff]
        %v1160 = vld [vmem:[%s1033 + $0x8c] sm:$0xf]
        %v1161 = vld [vmem:[%s1033 + $0x90] sm:$0xff]
        %v1162 = vld [vmem:[%s1033 + $0x98] sm:$0xf]
        %v1163 = vld [vmem:[%s1033 + $0x9c] sm:$0xff]
        %v1164 = vld [vmem:[%s1033 + $0xa4] sm:$0xf]
        %v1165 = vld [vmem:[%s1033 + $0xa8] sm:$0xff]
        %v1166 = vld [vmem:[%s1033 + $0xb0] sm:$0xf]
        %v1167 = vld [vmem:[%s1033 + $0xb4] sm:$0xff]
        %v1168 = vld [vmem:[%s1033 + $0xbc] sm:$0xf]
        %v1169 = vpack.c.bf16 %v1136, %v1135
        %v1170 = vld [vmem:[%s1037] sm:$0x7]
        %v1172 = vlaneseq
        %v1173 = vshrl.u32 %v1172, 7
        %v1174 = vsub.s32 0, %v1173
        %v1175 = vrot.slane %v1170, %v1174
        %v1176 = vlaneseq
        %v1177 = vshrl.u32 %v1176, 7
        %v1178 = vsub.s32 1, %v1177
        %v1179 = vrot.slane %v1170, %v1178
        %v1180 = vlaneseq
        %v1181 = vshrl.u32 %v1180, 7
        %v1182 = vsub.s32 2, %v1181
        %v1183 = vrot.slane %v1170, %v1182
        %v1219 = vunpack.c.l.b16 %v1137
        %v1220 = vunpack.c.h.b16 %v1137
        %v1221 = vunpack.c.l.b16 %v1138
        %v1222 = vunpack.c.l.b16 %v1139
        %v1223 = vunpack.c.h.b16 %v1139
        %v1224 = vunpack.c.l.b16 %v1140
        %v1225 = vunpack.c.l.b16 %v1141
        %v1226 = vunpack.c.h.b16 %v1141
        %v1227 = vunpack.c.l.b16 %v1142
        %v1228 = vunpack.c.l.b16 %v1143
        %v1229 = vunpack.c.h.b16 %v1143
        %v1230 = vunpack.c.l.b16 %v1144
        %v1231 = vunpack.c.l.b16 %v1145
        %v1232 = vunpack.c.h.b16 %v1145
        %v1233 = vunpack.c.l.b16 %v1146
        %v1234 = vunpack.c.l.b16 %v1147
        %v1235 = vunpack.c.h.b16 %v1147
        %v1236 = vunpack.c.l.b16 %v1148
        %v1237 = vunpack.c.l.b16 %v1149
        %v1238 = vunpack.c.h.b16 %v1149
        %v1239 = vunpack.c.l.b16 %v1150
        %v1240 = vunpack.c.l.b16 %v1151
        %v1241 = vunpack.c.h.b16 %v1151
        %v1242 = vunpack.c.l.b16 %v1152
        %v1243 = vunpack.c.l.b16 %v1153
        %v1244 = vunpack.c.h.b16 %v1153
        %v1245 = vunpack.c.l.b16 %v1154
        %v1246 = vunpack.c.l.b16 %v1155
        %v1247 = vunpack.c.h.b16 %v1155
        %v1248 = vunpack.c.l.b16 %v1156
        %v1249 = vunpack.c.l.b16 %v1157
        %v1250 = vunpack.c.h.b16 %v1157
        %v1251 = vunpack.c.l.b16 %v1158
        %v1252 = vunpack.c.l.b16 %v1159
        %v1253 = vunpack.c.h.b16 %v1159
        %v1254 = vunpack.c.l.b16 %v1160
        %v1255 = vunpack.c.l.b16 %v1161
        %v1256 = vunpack.c.h.b16 %v1161
        %v1257 = vunpack.c.l.b16 %v1162
        %v1258 = vunpack.c.l.b16 %v1163
        %v1259 = vunpack.c.h.b16 %v1163
        %v1260 = vunpack.c.l.b16 %v1164
        %v1261 = vunpack.c.l.b16 %v1165
        %v1262 = vunpack.c.h.b16 %v1165
        %v1263 = vunpack.c.l.b16 %v1166
        %v1264 = vunpack.c.l.b16 %v1167
        %v1265 = vunpack.c.h.b16 %v1167
        %v1266 = vunpack.c.l.b16 %v1168
        %v1267 = vpack.c.b16 %v1222, %v1219
        %v1268 = vpack.c.b16 %v1223, %v1220
        %v1269 = vpack.c.b16 %v1224, %v1221
        %v1270 = vpack.c.b16 %v1228, %v1225
        %v1271 = vpack.c.b16 %v1229, %v1226
        %v1272 = vpack.c.b16 %v1230, %v1227
        %v1273 = vpack.c.b16 %v1234, %v1231
        %v1274 = vpack.c.b16 %v1235, %v1232
        %v1275 = vpack.c.b16 %v1236, %v1233
        %v1276 = vpack.c.b16 %v1240, %v1237
        %v1277 = vpack.c.b16 %v1241, %v1238
        %v1278 = vpack.c.b16 %v1242, %v1239
        %v1279 = vpack.c.b16 %v1246, %v1243
        %v1280 = vpack.c.b16 %v1247, %v1244
        %v1281 = vpack.c.b16 %v1248, %v1245
        %v1282 = vpack.c.b16 %v1252, %v1249
        %v1283 = vpack.c.b16 %v1253, %v1250
        %v1284 = vpack.c.b16 %v1254, %v1251
        %v1285 = vpack.c.b16 %v1258, %v1255
        %v1286 = vpack.c.b16 %v1259, %v1256
        %v1287 = vpack.c.b16 %v1260, %v1257
        %v1288 = vpack.c.b16 %v1264, %v1261
        %v1289 = vpack.c.b16 %v1265, %v1262
        %v1290 = vpack.c.b16 %v1266, %v1263
        %1315 = vmatprep.subr.bf16.mxu0 %v1289
        %1316 = vmatpush1.bf16.msra.mxu0 %v1288
        %1317 = vmatprep.subr.bf16.mxu0 %v1286
        %1318 = vmatpush1.bf16.msra.mxu0 %v1285
        %1319 = vmatprep.subr.bf16.mxu0 %v1283
        %1320 = vmatpush1.bf16.msra.mxu0 %v1282
        %1321 = vmatprep.subr.bf16.mxu0 %v1280
        %1322 = vmatpush1.bf16.msra.mxu0 %v1279
        %1323 = vmatprep.subr.bf16.mxu0 %v1277
        %1324 = vmatpush1.bf16.msra.mxu0 %v1276
        %1325 = vmatprep.subr.bf16.mxu0 %v1274
        %1326 = vmatpush1.bf16.msra.mxu0 %v1273
        %1327 = vmatprep.subr.bf16.mxu0 %v1271
        %1328 = vmatpush1.bf16.msra.mxu0 %v1270
        %1329 = vmatprep.subr.bf16.mxu0 %v1268
        %1330 = vmatpush1.bf16.msra.mxu0 %v1267
        %1331 = vmatprep.subr.bf16.mxu0 0
        %1332 = vmatpush2.bf16.msra.mxu0 0
        %1333 = vmatprep.subr.bf16.mxu0 0
        %1334 = vmatpush2.bf16.msra.mxu0 0
        %1335 = vmatprep.subr.bf16.mxu0 0
        %1336 = vmatpush2.bf16.msra.mxu0 0
        %1337 = vmatprep.subr.bf16.mxu0 0
        %1338 = vmatpush2.bf16.msra.mxu0 0
        %1339 = vmatprep.subr.bf16.mxu0 0
        %1340 = vmatpush2.bf16.msra.mxu0 0
        %1341 = vmatprep.subr.bf16.mxu0 0
        %1342 = vmatpush2.bf16.msra.mxu0 0
        %1343 = vmatprep.subr.bf16.mxu0 0
        %1344 = vmatpush2.bf16.msra.mxu0 0
        %1345 = vmatprep.subr.bf16.mxu0 0
        %1346 = vmatpush2.bf16.msra.mxu0 0
        %1347 = vmatprep.mubr.bf16.mxu0 0
        %1348 = vmatmul.mubr.bf16.gmra.mxu0 %v1169
        %v1349 = vpop.f32.mrf.mxu0
        %v1350 = vadd.f32 %v1175, %v1349
        %v1351 = vpop.f32.mrf.mxu0
        %v1352 = vadd.f32 %v1179, %v1351
        %v1353 = vpop.f32.mrf.mxu0
        %v1354 = vadd.f32 %v1175, %v1353
        %v1355 = vpop.f32.mrf.mxu0
        %v1356 = vadd.f32 %v1179, %v1355
        %1357 = vdwg.mxu0
        %1358 = vmatprep.subr.bf16.mxu0 0
        %1359 = vmatpush1.bf16.msra.mxu0 %v1290
        %1360 = vmatprep.subr.bf16.mxu0 0
        %1361 = vmatpush1.bf16.msra.mxu0 %v1287
        %1362 = vmatprep.subr.bf16.mxu0 0
        %1363 = vmatpush1.bf16.msra.mxu0 %v1284
        %1364 = vmatprep.subr.bf16.mxu0 0
        %1365 = vmatpush1.bf16.msra.mxu0 %v1281
        %1366 = vmatprep.subr.bf16.mxu0 0
        %1367 = vmatpush1.bf16.msra.mxu0 %v1278
        %1368 = vmatprep.subr.bf16.mxu0 0
        %1369 = vmatpush1.bf16.msra.mxu0 %v1275
        %1370 = vmatprep.subr.bf16.mxu0 0
        %1371 = vmatpush1.bf16.msra.mxu0 %v1272
        %1372 = vmatprep.subr.bf16.mxu0 0
        %1373 = vmatpush1.bf16.msra.mxu0 %v1269
        %1374 = vmatprep.subr.bf16.mxu0 0
        %1375 = vmatpush2.bf16.msra.mxu0 0
        %1376 = vmatprep.subr.bf16.mxu0 0
        %1377 = vmatpush2.bf16.msra.mxu0 0
        %1378 = vmatprep.subr.bf16.mxu0 0
        %1379 = vmatpush2.bf16.msra.mxu0 0
        %1380 = vmatprep.subr.bf16.mxu0 0
        %1381 = vmatpush2.bf16.msra.mxu0 0
        %1382 = vmatprep.subr.bf16.mxu0 0
        %1383 = vmatpush2.bf16.msra.mxu0 0
        %1384 = vmatprep.subr.bf16.mxu0 0
        %1385 = vmatpush2.bf16.msra.mxu0 0
        %1386 = vmatprep.subr.bf16.mxu0 0
        %1387 = vmatpush2.bf16.msra.mxu0 0
        %1388 = vmatprep.subr.bf16.mxu0 0
        %1389 = vmatpush2.bf16.msra.mxu0 0
        %1390 = vmatprep.mubr.bf16.mxu0 0
        %1391 = vmatmul.mubr.bf16.gmra.mxu0 %v1169
        %v1392 = vpop.f32.mrf.mxu0
        %v1393 = vadd.f32 %v1183, %v1392
        %v1394 = vpop.f32.mrf.mxu0
        %v1395 = vpop.f32.mrf.mxu0
        %v1396 = vadd.f32 %v1183, %v1395
        %v1397 = vpop.f32.mrf.mxu0
        %1398 = vdwg.mxu0
        %v1399 = vld [vmem:[%s1042] sm:$0xf]
        %v1400 = vld [vmem:[%s1042 + $0x4] sm:$0xf]
        %v1401 = vld [vmem:[%s1042 + $0x8] sm:$0xf]
        %v1402 = vld [vmem:[%s1042 + $0xc] sm:$0xf]
        %v1403 = vld [vmem:[%s1042 + $0x10] sm:$0xf]
        %v1404 = vld [vmem:[%s1042 + $0x14] sm:$0xf]
        %v1405 = vld [vmem:[%s1042 + $0x18] sm:$0xf]
        %v1406 = vld [vmem:[%s1042 + $0x1c] sm:$0xf]
        %v1407 = vld [vmem:[%s1042 + $0x20] sm:$0xf]
        %v1408 = vld [vmem:[%s1042 + $0x24] sm:$0xf]
        %v1409 = vld [vmem:[%s1042 + $0x28] sm:$0xf]
        %v1410 = vld [vmem:[%s1042 + $0x2c] sm:$0xf]
        %v1411 = vld [vmem:[%s1042 + $0x30] sm:$0xf]
        %v1412 = vld [vmem:[%s1042 + $0x34] sm:$0xf]
        %v1413 = vld [vmem:[%s1042 + $0x38] sm:$0xf]
        %v1414 = vld [vmem:[%s1042 + $0x3c] sm:$0xf]
        %v1415 = vpack.c.bf16 %v1350, %v1350
        %v1416 = vpack.c.bf16 %v1354, %v1354
        %v1417 = vpack.c.bf16 %v1352, %v1352
        %v1418 = vpack.c.bf16 %v1356, %v1356
        %vm1419 = vcmask 261120
        %v1421 = vsel %vm1419, %v1415, 0
        %v1424 = vsel %vm1419, %v1417, 0
        %1426 = vmatprep.subr.bf16.mxu0 0
        %1427 = vmatpush1.bf16.xpose.msra.mxu0 0
        %1428 = vmatprep.subr.bf16.mxu0 0
        %1429 = vmatpush1.bf16.xpose.msra.mxu0 0
        %1430 = vmatprep.subr.bf16.mxu0 0
        %1431 = vmatpush1.bf16.xpose.msra.mxu0 0
        %1432 = vmatprep.subr.bf16.mxu0 0
        %1433 = vmatpush1.bf16.xpose.msra.mxu0 0
        %1434 = vmatprep.subr.bf16.mxu0 0
        %1435 = vmatpush1.bf16.xpose.msra.mxu0 0
        %1436 = vmatprep.subr.bf16.mxu0 0
        %1437 = vmatpush1.bf16.xpose.msra.mxu0 0
        %1438 = vmatprep.subr.bf16.mxu0 0
        %1439 = vmatpush1.bf16.xpose.msra.mxu0 0
        %1440 = vmatprep.subr.bf16.mxu0 0
        %1441 = vmatpush1.bf16.xpose.msra.mxu0 %v1424
        %1442 = vmatprep.subr.bf16.mxu0 0
        %1443 = vmatpush2.bf16.xpose.msra.mxu0 0
        %1444 = vmatprep.subr.bf16.mxu0 0
        %1445 = vmatpush2.bf16.xpose.msra.mxu0 0
        %1446 = vmatprep.subr.bf16.mxu0 0
        %1447 = vmatpush2.bf16.xpose.msra.mxu0 0
        %1448 = vmatprep.subr.bf16.mxu0 0
        %1449 = vmatpush2.bf16.xpose.msra.mxu0 0
        %1450 = vmatprep.subr.bf16.mxu0 0
        %1451 = vmatpush2.bf16.xpose.msra.mxu0 0
        %1452 = vmatprep.subr.bf16.mxu0 0
        %1453 = vmatpush2.bf16.xpose.msra.mxu0 0
        %1454 = vmatprep.subr.bf16.mxu0 0
        %1455 = vmatpush2.bf16.xpose.msra.mxu0 0
        %1456 = vmatprep.subr.bf16.mxu0 0
        %1457 = vmatpush2.bf16.xpose.msra.mxu0 0
        %1458 = vmatprep.mubr.bf16.mxu0 0
        %1459 = vmatmul.mubr.bf16.gmra.mxu0 %v1421
        %v1460 = vpop.f32.mrf.mxu0
        %v1461 = vadd.f32 0.0, %v1460
        %v1462 = vpop.f32.mrf.mxu0
        %v1463 = vpop.f32.mrf.mxu0
        %v1464 = vpop.f32.mrf.mxu0
        %1465 = vdwg.mxu0
        %v1467 = vsel %vm1419, %v1416, 0
        %v1470 = vsel %vm1419, %v1418, 0
        %1472 = vmatprep.subr.bf16.mxu0 0
        %1473 = vmatpush1.bf16.xpose.msra.mxu0 0
        %1474 = vmatprep.subr.bf16.mxu0 0
        %1475 = vmatpush1.bf16.xpose.msra.mxu0 0
        %1476 = vmatprep.subr.bf16.mxu0 0
        %1477 = vmatpush1.bf16.xpose.msra.mxu0 0
        %1478 = vmatprep.subr.bf16.mxu0 0
        %1479 = vmatpush1.bf16.xpose.msra.mxu0 0
        %1480 = vmatprep.subr.bf16.mxu0 0
        %1481 = vmatpush1.bf16.xpose.msra.mxu0 0
        %1482 = vmatprep.subr.bf16.mxu0 0
        %1483 = vmatpush1.bf16.xpose.msra.mxu0 0
        %1484 = vmatprep.subr.bf16.mxu0 0
        %1485 = vmatpush1.bf16.xpose.msra.mxu0 0
        %1486 = vmatprep.subr.bf16.mxu0 0
        %1487 = vmatpush1.bf16.xpose.msra.mxu0 %v1470
        %1488 = vmatprep.subr.bf16.mxu0 0
        %1489 = vmatpush2.bf16.xpose.msra.mxu0 0
        %1490 = vmatprep.subr.bf16.mxu0 0
        %1491 = vmatpush2.bf16.xpose.msra.mxu0 0
        %1492 = vmatprep.subr.bf16.mxu0 0
        %1493 = vmatpush2.bf16.xpose.msra.mxu0 0
        %1494 = vmatprep.subr.bf16.mxu0 0
        %1495 = vmatpush2.bf16.xpose.msra.mxu0 0
        %1496 = vmatprep.subr.bf16.mxu0 0
        %1497 = vmatpush2.bf16.xpose.msra.mxu0 0
        %1498 = vmatprep.subr.bf16.mxu0 0
        %1499 = vmatpush2.bf16.xpose.msra.mxu0 0
        %1500 = vmatprep.subr.bf16.mxu0 0
        %1501 = vmatpush2.bf16.xpose.msra.mxu0 0
        %1502 = vmatprep.subr.bf16.mxu0 0
        %1503 = vmatpush2.bf16.xpose.msra.mxu0 0
        %1504 = vmatprep.mubr.bf16.mxu0 0
        %1505 = vmatmul.mubr.bf16.gmra.mxu0 %v1467
        %v1506 = vpop.f32.mrf.mxu0
        %v1507 = vadd.f32 0.0, %v1506
        %v1508 = vpop.f32.mrf.mxu0
        %v1509 = vpop.f32.mrf.mxu0
        %v1510 = vpop.f32.mrf.mxu0
        %1511 = vdwg.mxu0
        %v1512 = vmul.f32 %v1461, 0.17677669
        %v1513 = vmul.f32 %v1507, 0.17677669
        %v1514 = vadd.f32 %v1512, %v1094
        %v1515 = vadd.f32 %v1513, %v1095
        %vm1516 = vcmask 64512
        %v1517 = vsel %vm1516, %v1514, -inf
        %1518 = vmax.xlane.f32.xlu0 %v1517
        %v1519 = vpop.xlane.xlu0 %1518
        %v1520 = vsel %vm1516, %v1515, -inf
        %1521 = vmax.xlane.f32.xlu0 %v1520
        %v1522 = vpop.xlane.xlu0 %1521
        %v1523 = vsub.f32 %v1514, %v1519
        %v1524 = vsub.f32 %v1515, %v1522
        %v1525 = vmul.f32 %v1523, 1.442695
        %v1526 = vpow.pop %v1525
        %v1527 = vmul.f32 %v1524, 1.442695
        %v1528 = vpow.pop %v1527
        %v1529 = vsel %vm1516, %v1526, 0.0
        %1530 = vadd.xlane.f32.xlu0 %v1529
        %v1531 = vpop.xlane.xlu0 %1530
        %v1532 = vsel %vm1516, %v1528, 0.0
        %1533 = vadd.xlane.f32.xlu0 %v1532
        %v1534 = vpop.xlane.xlu0 %1533
        %v1535 = vrcp.pop %v1531
        %v1536 = vrcp.pop %v1534
        %v1537 = vmul.f32 %v1526, %v1535
        %v1538 = vmul.f32 %v1528, %v1536
        %v1539 = vpack.c.bf16 %v1537, %v1537
        %v1540 = vpack.c.bf16 %v1538, %v1538
        %v1541 = vpack.c.bf16 %v1393, %v1393
        %v1542 = vpack.c.bf16 %v1396, %v1396
        %v1544 = vsel %vm1516, %v1539, 0
        %vm1546 = vcmask 1043456
        %v1548 = vsel %vm1546, %v1541, 0
        %1550 = vmatprep.subr.bf16.mxu0 0
        %1551 = vmatpush1.bf16.msra.mxu0 0
        %1552 = vmatprep.subr.bf16.mxu0 0
        %1553 = vmatpush1.bf16.msra.mxu0 0
        %1554 = vmatprep.subr.bf16.mxu0 0
        %1555 = vmatpush1.bf16.msra.mxu0 0
        %1556 = vmatprep.subr.bf16.mxu0 0
        %1557 = vmatpush1.bf16.msra.mxu0 0
        %1558 = vmatprep.subr.bf16.mxu0 0
        %1559 = vmatpush1.bf16.msra.mxu0 0
        %1560 = vmatprep.subr.bf16.mxu0 0
        %1561 = vmatpush1.bf16.msra.mxu0 0
        %1562 = vmatprep.subr.bf16.mxu0 0
        %1563 = vmatpush1.bf16.msra.mxu0 0
        %1564 = vmatprep.subr.bf16.mxu0 0
        %1565 = vmatpush1.bf16.msra.mxu0 %v1548
        %1566 = vmatprep.subr.bf16.mxu0 0
        %1567 = vmatpush2.bf16.msra.mxu0 0
        %1568 = vmatprep.subr.bf16.mxu0 0
        %1569 = vmatpush2.bf16.msra.mxu0 0
        %1570 = vmatprep.subr.bf16.mxu0 0
        %1571 = vmatpush2.bf16.msra.mxu0 0
        %1572 = vmatprep.subr.bf16.mxu0 0
        %1573 = vmatpush2.bf16.msra.mxu0 0
        %1574 = vmatprep.subr.bf16.mxu0 0
        %1575 = vmatpush2.bf16.msra.mxu0 0
        %1576 = vmatprep.subr.bf16.mxu0 0
        %1577 = vmatpush2.bf16.msra.mxu0 0
        %1578 = vmatprep.subr.bf16.mxu0 0
        %1579 = vmatpush2.bf16.msra.mxu0 0
        %1580 = vmatprep.subr.bf16.mxu0 0
        %1581 = vmatpush2.bf16.msra.mxu0 0
        %1582 = vmatprep.mubr.bf16.mxu0 0
        %1583 = vmatmul.mubr.bf16.gmra.mxu0 %v1544
        %v1584 = vpop.f32.mrf.mxu0
        %v1585 = vadd.f32 0.0, %v1584
        %v1586 = vpop.f32.mrf.mxu0
        %v1587 = vpop.f32.mrf.mxu0
        %v1588 = vpop.f32.mrf.mxu0
        %1589 = vdwg.mxu0
        %v1591 = vsel %vm1516, %v1540, 0
        %v1594 = vsel %vm1546, %v1542, 0
        %1596 = vmatprep.subr.bf16.mxu0 0
        %1597 = vmatpush1.bf16.msra.mxu0 0
        %1598 = vmatprep.subr.bf16.mxu0 0
        %1599 = vmatpush1.bf16.msra.mxu0 0
        %1600 = vmatprep.subr.bf16.mxu0 0
        %1601 = vmatpush1.bf16.msra.mxu0 0
        %1602 = vmatprep.subr.bf16.mxu0 0
        %1603 = vmatpush1.bf16.msra.mxu0 0
        %1604 = vmatprep.subr.bf16.mxu0 0
        %1605 = vmatpush1.bf16.msra.mxu0 0
        %1606 = vmatprep.subr.bf16.mxu0 0
        %1607 = vmatpush1.bf16.msra.mxu0 0
        %1608 = vmatprep.subr.bf16.mxu0 0
        %1609 = vmatpush1.bf16.msra.mxu0 0
        %1610 = vmatprep.subr.bf16.mxu0 0
        %1611 = vmatpush1.bf16.msra.mxu0 %v1594
        %1612 = vmatprep.subr.bf16.mxu0 0
        %1613 = vmatpush2.bf16.msra.mxu0 0
        %1614 = vmatprep.subr.bf16.mxu0 0
        %1615 = vmatpush2.bf16.msra.mxu0 0
        %1616 = vmatprep.subr.bf16.mxu0 0
        %1617 = vmatpush2.bf16.msra.mxu0 0
        %1618 = vmatprep.subr.bf16.mxu0 0
        %1619 = vmatpush2.bf16.msra.mxu0 0
        %1620 = vmatprep.subr.bf16.mxu0 0
        %1621 = vmatpush2.bf16.msra.mxu0 0
        %1622 = vmatprep.subr.bf16.mxu0 0
        %1623 = vmatpush2.bf16.msra.mxu0 0
        %1624 = vmatprep.subr.bf16.mxu0 0
        %1625 = vmatpush2.bf16.msra.mxu0 0
        %1626 = vmatprep.subr.bf16.mxu0 0
        %1627 = vmatpush2.bf16.msra.mxu0 0
        %1628 = vmatprep.mubr.bf16.mxu0 0
        %1629 = vmatmul.mubr.bf16.gmra.mxu0 %v1591
        %v1630 = vpop.f32.mrf.mxu0
        %v1631 = vadd.f32 0.0, %v1630
        %v1632 = vpop.f32.mrf.mxu0
        %v1633 = vpop.f32.mrf.mxu0
        %v1634 = vpop.f32.mrf.mxu0
        %1635 = vdwg.mxu0
        %v1636 = vpack.c.bf16 %v1631, %v1585
        %1638 = vrot.lane.b32.xlu0 %v1415, 96
        %v1639 = vpop.permute.xlu0 %1638
        %1641 = vrot.lane.b32.xlu0 %v1417, 96
        %v1642 = vpop.permute.xlu0 %1641
        %v1644 = vsel %vm1419, %v1639, 0
        %v1647 = vsel %vm1419, %v1642, 0
        %1649 = vmatprep.subr.bf16.mxu0 0
        %1650 = vmatpush1.bf16.xpose.msra.mxu0 0
        %1651 = vmatprep.subr.bf16.mxu0 0
        %1652 = vmatpush1.bf16.xpose.msra.mxu0 0
        %1653 = vmatprep.subr.bf16.mxu0 0
        %1654 = vmatpush1.bf16.xpose.msra.mxu0 0
        %1655 = vmatprep.subr.bf16.mxu0 0
        %1656 = vmatpush1.bf16.xpose.msra.mxu0 0
        %1657 = vmatprep.subr.bf16.mxu0 0
        %1658 = vmatpush1.bf16.xpose.msra.mxu0 0
        %1659 = vmatprep.subr.bf16.mxu0 0
        %1660 = vmatpush1.bf16.xpose.msra.mxu0 0
        %1661 = vmatprep.subr.bf16.mxu0 0
        %1662 = vmatpush1.bf16.xpose.msra.mxu0 0
        %1663 = vmatprep.subr.bf16.mxu0 0
        %1664 = vmatpush1.bf16.xpose.msra.mxu0 %v1647
        %1665 = vmatprep.subr.bf16.mxu0 0
        %1666 = vmatpush2.bf16.xpose.msra.mxu0 0
        %1667 = vmatprep.subr.bf16.mxu0 0
        %1668 = vmatpush2.bf16.xpose.msra.mxu0 0
        %1669 = vmatprep.subr.bf16.mxu0 0
        %1670 = vmatpush2.bf16.xpose.msra.mxu0 0
        %1671 = vmatprep.subr.bf16.mxu0 0
        %1672 = vmatpush2.bf16.xpose.msra.mxu0 0
        %1673 = vmatprep.subr.bf16.mxu0 0
        %1674 = vmatpush2.bf16.xpose.msra.mxu0 0
        %1675 = vmatprep.subr.bf16.mxu0 0
        %1676 = vmatpush2.bf16.xpose.msra.mxu0 0
        %1677 = vmatprep.subr.bf16.mxu0 0
        %1678 = vmatpush2.bf16.xpose.msra.mxu0 0
        %1679 = vmatprep.subr.bf16.mxu0 0
        %1680 = vmatpush2.bf16.xpose.msra.mxu0 0
        %1681 = vmatprep.mubr.bf16.mxu0 0
        %1682 = vmatmul.mubr.bf16.gmra.mxu0 %v1644
        %v1683 = vpop.f32.mrf.mxu0
        %v1684 = vadd.f32 0.0, %v1683
        %v1685 = vpop.f32.mrf.mxu0
        %v1686 = vpop.f32.mrf.mxu0
        %v1687 = vpop.f32.mrf.mxu0
        %1688 = vdwg.mxu0
        %1690 = vrot.lane.b32.xlu0 %v1416, 96
        %v1691 = vpop.permute.xlu0 %1690
        %1693 = vrot.lane.b32.xlu0 %v1418, 96
        %v1694 = vpop.permute.xlu0 %1693
        %v1696 = vsel %vm1419, %v1691, 0
        %v1699 = vsel %vm1419, %v1694, 0
        %1701 = vmatprep.subr.bf16.mxu0 0
        %1702 = vmatpush1.bf16.xpose.msra.mxu0 0
        %1703 = vmatprep.subr.bf16.mxu0 0
        %1704 = vmatpush1.bf16.xpose.msra.mxu0 0
        %1705 = vmatprep.subr.bf16.mxu0 0
        %1706 = vmatpush1.bf16.xpose.msra.mxu0 0
        %1707 = vmatprep.subr.bf16.mxu0 0
        %1708 = vmatpush1.bf16.xpose.msra.mxu0 0
        %1709 = vmatprep.subr.bf16.mxu0 0
        %1710 = vmatpush1.bf16.xpose.msra.mxu0 0
        %1711 = vmatprep.subr.bf16.mxu0 0
        %1712 = vmatpush1.bf16.xpose.msra.mxu0 0
        %1713 = vmatprep.subr.bf16.mxu0 0
        %1714 = vmatpush1.bf16.xpose.msra.mxu0 0
        %1715 = vmatprep.subr.bf16.mxu0 0
        %1716 = vmatpush1.bf16.xpose.msra.mxu0 %v1699
        %1717 = vmatprep.subr.bf16.mxu0 0
        %1718 = vmatpush2.bf16.xpose.msra.mxu0 0
        %1719 = vmatprep.subr.bf16.mxu0 0
        %1720 = vmatpush2.bf16.xpose.msra.mxu0 0
        %1721 = vmatprep.subr.bf16.mxu0 0
        %1722 = vmatpush2.bf16.xpose.msra.mxu0 0
        %1723 = vmatprep.subr.bf16.mxu0 0
        %1724 = vmatpush2.bf16.xpose.msra.mxu0 0
        %1725 = vmatprep.subr.bf16.mxu0 0
        %1726 = vmatpush2.bf16.xpose.msra.mxu0 0
        %1727 = vmatprep.subr.bf16.mxu0 0
        %1728 = vmatpush2.bf16.xpose.msra.mxu0 0
        %1729 = vmatprep.subr.bf16.mxu0 0
        %1730 = vmatpush2.bf16.xpose.msra.mxu0 0
        %1731 = vmatprep.subr.bf16.mxu0 0
        %1732 = vmatpush2.bf16.xpose.msra.mxu0 0
        %1733 = vmatprep.mubr.bf16.mxu0 0
        %1734 = vmatmul.mubr.bf16.gmra.mxu0 %v1696
        %v1735 = vpop.f32.mrf.mxu0
        %v1736 = vadd.f32 0.0, %v1735
        %v1737 = vpop.f32.mrf.mxu0
        %v1738 = vpop.f32.mrf.mxu0
        %v1739 = vpop.f32.mrf.mxu0
        %1740 = vdwg.mxu0
        %v1741 = vmul.f32 %v1684, 0.17677669
        %v1742 = vmul.f32 %v1736, 0.17677669
        %v1743 = vadd.f32 %v1741, %v1094
        %v1744 = vadd.f32 %v1742, %v1095
        %v1745 = vsel %vm1516, %v1743, -inf
        %1746 = vmax.xlane.f32.xlu0 %v1745
        %v1747 = vpop.xlane.xlu0 %1746
        %v1748 = vsel %vm1516, %v1744, -inf
        %1749 = vmax.xlane.f32.xlu0 %v1748
        %v1750 = vpop.xlane.xlu0 %1749
        %v1751 = vsub.f32 %v1743, %v1747
        %v1752 = vsub.f32 %v1744, %v1750
        %v1753 = vmul.f32 %v1751, 1.442695
        %v1754 = vpow.pop %v1753
        %v1755 = vmul.f32 %v1752, 1.442695
        %v1756 = vpow.pop %v1755
        %v1757 = vsel %vm1516, %v1754, 0.0
        %1758 = vadd.xlane.f32.xlu0 %v1757
        %v1759 = vpop.xlane.xlu0 %1758
        %v1760 = vsel %vm1516, %v1756, 0.0
        %1761 = vadd.xlane.f32.xlu0 %v1760
        %v1762 = vpop.xlane.xlu0 %1761
        %v1763 = vrcp.pop %v1759
        %v1764 = vrcp.pop %v1762
        %v1765 = vmul.f32 %v1754, %v1763
        %v1766 = vmul.f32 %v1756, %v1764
        %v1767 = vpack.c.bf16 %v1765, %v1765
        %v1768 = vpack.c.bf16 %v1766, %v1766
        %1770 = vrot.lane.b32.xlu0 %v1541, 96
        %v1771 = vpop.permute.xlu0 %1770
        %v1773 = vsel %vm1516, %v1767, 0
        %v1776 = vsel %vm1546, %v1771, 0
        %1778 = vmatprep.subr.bf16.mxu0 0
        %1779 = vmatpush1.bf16.msra.mxu0 0
        %1780 = vmatprep.subr.bf16.mxu0 0
        %1781 = vmatpush1.bf16.msra.mxu0 0
        %1782 = vmatprep.subr.bf16.mxu0 0
        %1783 = vmatpush1.bf16.msra.mxu0 0
        %1784 = vmatprep.subr.bf16.mxu0 0
        %1785 = vmatpush1.bf16.msra.mxu0 0
        %1786 = vmatprep.subr.bf16.mxu0 0
        %1787 = vmatpush1.bf16.msra.mxu0 0
        %1788 = vmatprep.subr.bf16.mxu0 0
        %1789 = vmatpush1.bf16.msra.mxu0 0
        %1790 = vmatprep.subr.bf16.mxu0 0
        %1791 = vmatpush1.bf16.msra.mxu0 0
        %1792 = vmatprep.subr.bf16.mxu0 0
        %1793 = vmatpush1.bf16.msra.mxu0 %v1776
        %1794 = vmatprep.subr.bf16.mxu0 0
        %1795 = vmatpush2.bf16.msra.mxu0 0
        %1796 = vmatprep.subr.bf16.mxu0 0
        %1797 = vmatpush2.bf16.msra.mxu0 0
        %1798 = vmatprep.subr.bf16.mxu0 0
        %1799 = vmatpush2.bf16.msra.mxu0 0
        %1800 = vmatprep.subr.bf16.mxu0 0
        %1801 = vmatpush2.bf16.msra.mxu0 0
        %1802 = vmatprep.subr.bf16.mxu0 0
        %1803 = vmatpush2.bf16.msra.mxu0 0
        %1804 = vmatprep.subr.bf16.mxu0 0
        %1805 = vmatpush2.bf16.msra.mxu0 0
        %1806 = vmatprep.subr.bf16.mxu0 0
        %1807 = vmatpush2.bf16.msra.mxu0 0
        %1808 = vmatprep.subr.bf16.mxu0 0
        %1809 = vmatpush2.bf16.msra.mxu0 0
        %1810 = vmatprep.mubr.bf16.mxu0 0
        %1811 = vmatmul.mubr.bf16.gmra.mxu0 %v1773
        %v1812 = vpop.f32.mrf.mxu0
        %v1813 = vadd.f32 0.0, %v1812
        %v1814 = vpop.f32.mrf.mxu0
        %v1815 = vpop.f32.mrf.mxu0
        %v1816 = vpop.f32.mrf.mxu0
        %1817 = vdwg.mxu0
        %1819 = vrot.lane.b32.xlu0 %v1542, 96
        %v1820 = vpop.permute.xlu0 %1819
        %v1822 = vsel %vm1516, %v1768, 0
        %v1825 = vsel %vm1546, %v1820, 0
        %1827 = vmatprep.subr.bf16.mxu0 0
        %1828 = vmatpush1.bf16.msra.mxu0 0
        %1829 = vmatprep.subr.bf16.mxu0 0
        %1830 = vmatpush1.bf16.msra.mxu0 0
        %1831 = vmatprep.subr.bf16.mxu0 0
        %1832 = vmatpush1.bf16.msra.mxu0 0
        %1833 = vmatprep.subr.bf16.mxu0 0
        %1834 = vmatpush1.bf16.msra.mxu0 0
        %1835 = vmatprep.subr.bf16.mxu0 0
        %1836 = vmatpush1.bf16.msra.mxu0 0
        %1837 = vmatprep.subr.bf16.mxu0 0
        %1838 = vmatpush1.bf16.msra.mxu0 0
        %1839 = vmatprep.subr.bf16.mxu0 0
        %1840 = vmatpush1.bf16.msra.mxu0 0
        %1841 = vmatprep.subr.bf16.mxu0 0
        %1842 = vmatpush1.bf16.msra.mxu0 %v1825
        %1843 = vmatprep.subr.bf16.mxu0 0
        %1844 = vmatpush2.bf16.msra.mxu0 0
        %1845 = vmatprep.subr.bf16.mxu0 0
        %1846 = vmatpush2.bf16.msra.mxu0 0
        %1847 = vmatprep.subr.bf16.mxu0 0
        %1848 = vmatpush2.bf16.msra.mxu0 0
        %1849 = vmatprep.subr.bf16.mxu0 0
        %1850 = vmatpush2.bf16.msra.mxu0 0
        %1851 = vmatprep.subr.bf16.mxu0 0
        %1852 = vmatpush2.bf16.msra.mxu0 0
        %1853 = vmatprep.subr.bf16.mxu0 0
        %1854 = vmatpush2.bf16.msra.mxu0 0
        %1855 = vmatprep.subr.bf16.mxu0 0
        %1856 = vmatpush2.bf16.msra.mxu0 0
        %1857 = vmatprep.subr.bf16.mxu0 0
        %1858 = vmatpush2.bf16.msra.mxu0 0
        %1859 = vmatprep.mubr.bf16.mxu0 0
        %1860 = vmatmul.mubr.bf16.gmra.mxu0 %v1822
        %v1861 = vpop.f32.mrf.mxu0
        %v1862 = vadd.f32 0.0, %v1861
        %v1863 = vpop.f32.mrf.mxu0
        %v1864 = vpop.f32.mrf.mxu0
        %v1865 = vpop.f32.mrf.mxu0
        %1866 = vdwg.mxu0
        %v1867 = vpack.c.bf16 %v1862, %v1813
        %v1872 = vunpack.c.l.b16 %v1403
        %v1873 = vunpack.c.l.b16 %v1404
        %v1874 = vunpack.c.l.b16 %v1405
        %v1875 = vunpack.c.l.b16 %v1406
        %v1876 = vpack.c.b16 %v1873, %v1872
        %v1877 = vpack.c.b16 %v1875, %v1874
        %v1881 = vsel %vm1419, %v1867, 0
        %1883 = vmatprep.subr.bf16.mxu0 0
        %1884 = vmatpush1.bf16.msra.mxu0 0
        %1885 = vmatprep.subr.bf16.mxu0 0
        %1886 = vmatpush1.bf16.msra.mxu0 0
        %1887 = vmatprep.subr.bf16.mxu0 0
        %1888 = vmatpush1.bf16.msra.mxu0 0
        %1889 = vmatprep.subr.bf16.mxu0 0
        %1890 = vmatpush1.bf16.msra.mxu0 0
        %1891 = vmatprep.subr.bf16.mxu0 0
        %1892 = vmatpush1.bf16.msra.mxu0 0
        %1893 = vmatprep.subr.bf16.mxu0 0
        %1894 = vmatpush1.bf16.msra.mxu0 0
        %1895 = vmatprep.subr.bf16.mxu0 0
        %1896 = vmatpush1.bf16.msra.mxu0 %v1877
        %1897 = vmatprep.subr.bf16.mxu0 0
        %1898 = vmatpush1.bf16.msra.mxu0 %v1876
        %1899 = vmatprep.subr.bf16.mxu0 0
        %1900 = vmatpush2.bf16.msra.mxu0 0
        %1901 = vmatprep.subr.bf16.mxu0 0
        %1902 = vmatpush2.bf16.msra.mxu0 0
        %1903 = vmatprep.subr.bf16.mxu0 0
        %1904 = vmatpush2.bf16.msra.mxu0 0
        %1905 = vmatprep.subr.bf16.mxu0 0
        %1906 = vmatpush2.bf16.msra.mxu0 0
        %1907 = vmatprep.subr.bf16.mxu0 0
        %1908 = vmatpush2.bf16.msra.mxu0 0
        %1909 = vmatprep.subr.bf16.mxu0 0
        %1910 = vmatpush2.bf16.msra.mxu0 0
        %1911 = vmatprep.subr.bf16.mxu0 0
        %1912 = vmatpush2.bf16.msra.mxu0 0
        %1913 = vmatprep.subr.bf16.mxu0 0
        %1914 = vmatpush2.bf16.msra.mxu0 0
        %1915 = vmatprep.mubr.bf16.mxu0 0
        %1916 = vmatmul.mubr.bf16.gmra.mxu0 %v1881
        %v1917 = vpop.f32.mrf.mxu0
        %v1918 = vadd.f32 0.0, %v1917
        %v1919 = vpop.f32.mrf.mxu0
        %v1920 = vpop.f32.mrf.mxu0
        %v1921 = vadd.f32 0.0, %v1920
        %v1922 = vpop.f32.mrf.mxu0
        %1923 = vdwg.mxu0
        %v1928 = vunpack.c.l.b16 %v1399
        %v1929 = vunpack.c.l.b16 %v1400
        %v1930 = vunpack.c.l.b16 %v1401
        %v1931 = vunpack.c.l.b16 %v1402
        %v1932 = vpack.c.b16 %v1929, %v1928
        %v1933 = vpack.c.b16 %v1931, %v1930
        %v1937 = vsel %vm1419, %v1636, 0
        %1939 = vmatprep.subr.bf16.mxu0 0
        %1940 = vmatpush1.bf16.msra.mxu0 0
        %1941 = vmatprep.subr.bf16.mxu0 0
        %1942 = vmatpush1.bf16.msra.mxu0 0
        %1943 = vmatprep.subr.bf16.mxu0 0
        %1944 = vmatpush1.bf16.msra.mxu0 0
        %1945 = vmatprep.subr.bf16.mxu0 0
        %1946 = vmatpush1.bf16.msra.mxu0 0
        %1947 = vmatprep.subr.bf16.mxu0 0
        %1948 = vmatpush1.bf16.msra.mxu0 0
        %1949 = vmatprep.subr.bf16.mxu0 0
        %1950 = vmatpush1.bf16.msra.mxu0 0
        %1951 = vmatprep.subr.bf16.mxu0 0
        %1952 = vmatpush1.bf16.msra.mxu0 %v1933
        %1953 = vmatprep.subr.bf16.mxu0 0
        %1954 = vmatpush1.bf16.msra.mxu0 %v1932
        %1955 = vmatprep.subr.bf16.mxu0 0
        %1956 = vmatpush2.bf16.msra.mxu0 0
        %1957 = vmatprep.subr.bf16.mxu0 0
        %1958 = vmatpush2.bf16.msra.mxu0 0
        %1959 = vmatprep.subr.bf16.mxu0 0
        %1960 = vmatpush2.bf16.msra.mxu0 0
        %1961 = vmatprep.subr.bf16.mxu0 0
        %1962 = vmatpush2.bf16.msra.mxu0 0
        %1963 = vmatprep.subr.bf16.mxu0 0
        %1964 = vmatpush2.bf16.msra.mxu0 0
        %1965 = vmatprep.subr.bf16.mxu0 0
        %1966 = vmatpush2.bf16.msra.mxu0 0
        %1967 = vmatprep.subr.bf16.mxu0 0
        %1968 = vmatpush2.bf16.msra.mxu0 0
        %1969 = vmatprep.subr.bf16.mxu0 0
        %1970 = vmatpush2.bf16.msra.mxu0 0
        %1971 = vmatprep.mubr.bf16.mxu0 0
        %1972 = vmatmul.mubr.bf16.gmra.mxu0 %v1937
        %v1973 = vpop.f32.mrf.mxu0
        %v1974 = vadd.f32 %v1918, %v1973
        %v1975 = vpop.f32.mrf.mxu0
        %v1976 = vpop.f32.mrf.mxu0
        %v1977 = vadd.f32 %v1921, %v1976
        %v1978 = vpop.f32.mrf.mxu0
        %1979 = vdwg.mxu0
        %1980 = vrot.lane.b32.xlu0 %v1415, 64
        %v1981 = vpop.permute.xlu0 %1980
        %1982 = vrot.lane.b32.xlu0 %v1417, 64
        %v1983 = vpop.permute.xlu0 %1982
        %v1985 = vsel %vm1419, %v1981, 0
        %v1988 = vsel %vm1419, %v1983, 0
        %1990 = vmatprep.subr.bf16.mxu0 0
        %1991 = vmatpush1.bf16.xpose.msra.mxu0 0
        %1992 = vmatprep.subr.bf16.mxu0 0
        %1993 = vmatpush1.bf16.xpose.msra.mxu0 0
        %1994 = vmatprep.subr.bf16.mxu0 0
        %1995 = vmatpush1.bf16.xpose.msra.mxu0 0
        %1996 = vmatprep.subr.bf16.mxu0 0
        %1997 = vmatpush1.bf16.xpose.msra.mxu0 0
        %1998 = vmatprep.subr.bf16.mxu0 0
        %1999 = vmatpush1.bf16.xpose.msra.mxu0 0
        %2000 = vmatprep.subr.bf16.mxu0 0
        %2001 = vmatpush1.bf16.xpose.msra.mxu0 0
        %2002 = vmatprep.subr.bf16.mxu0 0
        %2003 = vmatpush1.bf16.xpose.msra.mxu0 0
        %2004 = vmatprep.subr.bf16.mxu0 0
        %2005 = vmatpush1.bf16.xpose.msra.mxu0 %v1988
        %2006 = vmatprep.subr.bf16.mxu0 0
        %2007 = vmatpush2.bf16.xpose.msra.mxu0 0
        %2008 = vmatprep.subr.bf16.mxu0 0
        %2009 = vmatpush2.bf16.xpose.msra.mxu0 0
        %2010 = vmatprep.subr.bf16.mxu0 0
        %2011 = vmatpush2.bf16.xpose.msra.mxu0 0
        %2012 = vmatprep.subr.bf16.mxu0 0
        %2013 = vmatpush2.bf16.xpose.msra.mxu0 0
        %2014 = vmatprep.subr.bf16.mxu0 0
        %2015 = vmatpush2.bf16.xpose.msra.mxu0 0
        %2016 = vmatprep.subr.bf16.mxu0 0
        %2017 = vmatpush2.bf16.xpose.msra.mxu0 0
        %2018 = vmatprep.subr.bf16.mxu0 0
        %2019 = vmatpush2.bf16.xpose.msra.mxu0 0
        %2020 = vmatprep.subr.bf16.mxu0 0
        %2021 = vmatpush2.bf16.xpose.msra.mxu0 0
        %2022 = vmatprep.mubr.bf16.mxu0 0
        %2023 = vmatmul.mubr.bf16.gmra.mxu0 %v1985
        %v2024 = vpop.f32.mrf.mxu0
        %v2025 = vadd.f32 0.0, %v2024
        %v2026 = vpop.f32.mrf.mxu0
        %v2027 = vpop.f32.mrf.mxu0
        %v2028 = vpop.f32.mrf.mxu0
        %2029 = vdwg.mxu0
        %2030 = vrot.lane.b32.xlu0 %v1416, 64
        %v2031 = vpop.permute.xlu0 %2030
        %2032 = vrot.lane.b32.xlu0 %v1418, 64
        %v2033 = vpop.permute.xlu0 %2032
        %v2035 = vsel %vm1419, %v2031, 0
        %v2038 = vsel %vm1419, %v2033, 0
        %2040 = vmatprep.subr.bf16.mxu0 0
        %2041 = vmatpush1.bf16.xpose.msra.mxu0 0
        %2042 = vmatprep.subr.bf16.mxu0 0
        %2043 = vmatpush1.bf16.xpose.msra.mxu0 0
        %2044 = vmatprep.subr.bf16.mxu0 0
        %2045 = vmatpush1.bf16.xpose.msra.mxu0 0
        %2046 = vmatprep.subr.bf16.mxu0 0
        %2047 = vmatpush1.bf16.xpose.msra.mxu0 0
        %2048 = vmatprep.subr.bf16.mxu0 0
        %2049 = vmatpush1.bf16.xpose.msra.mxu0 0
        %2050 = vmatprep.subr.bf16.mxu0 0
        %2051 = vmatpush1.bf16.xpose.msra.mxu0 0
        %2052 = vmatprep.subr.bf16.mxu0 0
        %2053 = vmatpush1.bf16.xpose.msra.mxu0 0
        %2054 = vmatprep.subr.bf16.mxu0 0
        %2055 = vmatpush1.bf16.xpose.msra.mxu0 %v2038
        %2056 = vmatprep.subr.bf16.mxu0 0
        %2057 = vmatpush2.bf16.xpose.msra.mxu0 0
        %2058 = vmatprep.subr.bf16.mxu0 0
        %2059 = vmatpush2.bf16.xpose.msra.mxu0 0
        %2060 = vmatprep.subr.bf16.mxu0 0
        %2061 = vmatpush2.bf16.xpose.msra.mxu0 0
        %2062 = vmatprep.subr.bf16.mxu0 0
        %2063 = vmatpush2.bf16.xpose.msra.mxu0 0
        %2064 = vmatprep.subr.bf16.mxu0 0
        %2065 = vmatpush2.bf16.xpose.msra.mxu0 0
        %2066 = vmatprep.subr.bf16.mxu0 0
        %2067 = vmatpush2.bf16.xpose.msra.mxu0 0
        %2068 = vmatprep.subr.bf16.mxu0 0
        %2069 = vmatpush2.bf16.xpose.msra.mxu0 0
        %2070 = vmatprep.subr.bf16.mxu0 0
        %2071 = vmatpush2.bf16.xpose.msra.mxu0 0
        %2072 = vmatprep.mubr.bf16.mxu0 0
        %2073 = vmatmul.mubr.bf16.gmra.mxu0 %v2035
        %v2074 = vpop.f32.mrf.mxu0
        %v2075 = vadd.f32 0.0, %v2074
        %v2076 = vpop.f32.mrf.mxu0
        %v2077 = vpop.f32.mrf.mxu0
        %v2078 = vpop.f32.mrf.mxu0
        %2079 = vdwg.mxu0
        %v2080 = vmul.f32 %v2025, 0.17677669
        %v2081 = vmul.f32 %v2075, 0.17677669
        %v2082 = vadd.f32 %v2080, %v1094
        %v2083 = vadd.f32 %v2081, %v1095
        %v2084 = vsel %vm1516, %v2082, -inf
        %2085 = vmax.xlane.f32.xlu0 %v2084
        %v2086 = vpop.xlane.xlu0 %2085
        %v2087 = vsel %vm1516, %v2083, -inf
        %2088 = vmax.xlane.f32.xlu0 %v2087
        %v2089 = vpop.xlane.xlu0 %2088
        %v2090 = vsub.f32 %v2082, %v2086
        %v2091 = vsub.f32 %v2083, %v2089
        %v2092 = vmul.f32 %v2090, 1.442695
        %v2093 = vpow.pop %v2092
        %v2094 = vmul.f32 %v2091, 1.442695
        %v2095 = vpow.pop %v2094
        %v2096 = vsel %vm1516, %v2093, 0.0
        %2097 = vadd.xlane.f32.xlu0 %v2096
        %v2098 = vpop.xlane.xlu0 %2097
        %v2099 = vsel %vm1516, %v2095, 0.0
        %2100 = vadd.xlane.f32.xlu0 %v2099
        %v2101 = vpop.xlane.xlu0 %2100
        %v2102 = vrcp.pop %v2098
        %v2103 = vrcp.pop %v2101
        %v2104 = vmul.f32 %v2093, %v2102
        %v2105 = vmul.f32 %v2095, %v2103
        %v2106 = vpack.c.bf16 %v2104, %v2104
        %v2107 = vpack.c.bf16 %v2105, %v2105
        %2108 = vrot.lane.b32.xlu0 %v1541, 64
        %v2109 = vpop.permute.xlu0 %2108
        %v2111 = vsel %vm1516, %v2106, 0
        %v2114 = vsel %vm1546, %v2109, 0
        %2116 = vmatprep.subr.bf16.mxu0 0
        %2117 = vmatpush1.bf16.msra.mxu0 0
        %2118 = vmatprep.subr.bf16.mxu0 0
        %2119 = vmatpush1.bf16.msra.mxu0 0
        %2120 = vmatprep.subr.bf16.mxu0 0
        %2121 = vmatpush1.bf16.msra.mxu0 0
        %2122 = vmatprep.subr.bf16.mxu0 0
        %2123 = vmatpush1.bf16.msra.mxu0 0
        %2124 = vmatprep.subr.bf16.mxu0 0
        %2125 = vmatpush1.bf16.msra.mxu0 0
        %2126 = vmatprep.subr.bf16.mxu0 0
        %2127 = vmatpush1.bf16.msra.mxu0 0
        %2128 = vmatprep.subr.bf16.mxu0 0
        %2129 = vmatpush1.bf16.msra.mxu0 0
        %2130 = vmatprep.subr.bf16.mxu0 0
        %2131 = vmatpush1.bf16.msra.mxu0 %v2114
        %2132 = vmatprep.subr.bf16.mxu0 0
        %2133 = vmatpush2.bf16.msra.mxu0 0
        %2134 = vmatprep.subr.bf16.mxu0 0
        %2135 = vmatpush2.bf16.msra.mxu0 0
        %2136 = vmatprep.subr.bf16.mxu0 0
        %2137 = vmatpush2.bf16.msra.mxu0 0
        %2138 = vmatprep.subr.bf16.mxu0 0
        %2139 = vmatpush2.bf16.msra.mxu0 0
        %2140 = vmatprep.subr.bf16.mxu0 0
        %2141 = vmatpush2.bf16.msra.mxu0 0
        %2142 = vmatprep.subr.bf16.mxu0 0
        %2143 = vmatpush2.bf16.msra.mxu0 0
        %2144 = vmatprep.subr.bf16.mxu0 0
        %2145 = vmatpush2.bf16.msra.mxu0 0
        %2146 = vmatprep.subr.bf16.mxu0 0
        %2147 = vmatpush2.bf16.msra.mxu0 0
        %2148 = vmatprep.mubr.bf16.mxu0 0
        %2149 = vmatmul.mubr.bf16.gmra.mxu0 %v2111
        %v2150 = vpop.f32.mrf.mxu0
        %v2151 = vadd.f32 0.0, %v2150
        %v2152 = vpop.f32.mrf.mxu0
        %v2153 = vpop.f32.mrf.mxu0
        %v2154 = vpop.f32.mrf.mxu0
        %2155 = vdwg.mxu0
        %2156 = vrot.lane.b32.xlu0 %v1542, 64
        %v2157 = vpop.permute.xlu0 %2156
        %v2159 = vsel %vm1516, %v2107, 0
        %v2162 = vsel %vm1546, %v2157, 0
        %2164 = vmatprep.subr.bf16.mxu0 0
        %2165 = vmatpush1.bf16.msra.mxu0 0
        %2166 = vmatprep.subr.bf16.mxu0 0
        %2167 = vmatpush1.bf16.msra.mxu0 0
        %2168 = vmatprep.subr.bf16.mxu0 0
        %2169 = vmatpush1.bf16.msra.mxu0 0
        %2170 = vmatprep.subr.bf16.mxu0 0
        %2171 = vmatpush1.bf16.msra.mxu0 0
        %2172 = vmatprep.subr.bf16.mxu0 0
        %2173 = vmatpush1.bf16.msra.mxu0 0
        %2174 = vmatprep.subr.bf16.mxu0 0
        %2175 = vmatpush1.bf16.msra.mxu0 0
        %2176 = vmatprep.subr.bf16.mxu0 0
        %2177 = vmatpush1.bf16.msra.mxu0 0
        %2178 = vmatprep.subr.bf16.mxu0 0
        %2179 = vmatpush1.bf16.msra.mxu0 %v2162
        %2180 = vmatprep.subr.bf16.mxu0 0
        %2181 = vmatpush2.bf16.msra.mxu0 0
        %2182 = vmatprep.subr.bf16.mxu0 0
        %2183 = vmatpush2.bf16.msra.mxu0 0
        %2184 = vmatprep.subr.bf16.mxu0 0
        %2185 = vmatpush2.bf16.msra.mxu0 0
        %2186 = vmatprep.subr.bf16.mxu0 0
        %2187 = vmatpush2.bf16.msra.mxu0 0
        %2188 = vmatprep.subr.bf16.mxu0 0
        %2189 = vmatpush2.bf16.msra.mxu0 0
        %2190 = vmatprep.subr.bf16.mxu0 0
        %2191 = vmatpush2.bf16.msra.mxu0 0
        %2192 = vmatprep.subr.bf16.mxu0 0
        %2193 = vmatpush2.bf16.msra.mxu0 0
        %2194 = vmatprep.subr.bf16.mxu0 0
        %2195 = vmatpush2.bf16.msra.mxu0 0
        %2196 = vmatprep.mubr.bf16.mxu0 0
        %2197 = vmatmul.mubr.bf16.gmra.mxu0 %v2159
        %v2198 = vpop.f32.mrf.mxu0
        %v2199 = vadd.f32 0.0, %v2198
        %v2200 = vpop.f32.mrf.mxu0
        %v2201 = vpop.f32.mrf.mxu0
        %v2202 = vpop.f32.mrf.mxu0
        %2203 = vdwg.mxu0
        %v2204 = vpack.c.bf16 %v2199, %v2151
        %v2209 = vunpack.c.l.b16 %v1407
        %v2210 = vunpack.c.l.b16 %v1408
        %v2211 = vunpack.c.l.b16 %v1409
        %v2212 = vunpack.c.l.b16 %v1410
        %v2213 = vpack.c.b16 %v2210, %v2209
        %v2214 = vpack.c.b16 %v2212, %v2211
        %v2218 = vsel %vm1419, %v2204, 0
        %2220 = vmatprep.subr.bf16.mxu0 0
        %2221 = vmatpush1.bf16.msra.mxu0 0
        %2222 = vmatprep.subr.bf16.mxu0 0
        %2223 = vmatpush1.bf16.msra.mxu0 0
        %2224 = vmatprep.subr.bf16.mxu0 0
        %2225 = vmatpush1.bf16.msra.mxu0 0
        %2226 = vmatprep.subr.bf16.mxu0 0
        %2227 = vmatpush1.bf16.msra.mxu0 0
        %2228 = vmatprep.subr.bf16.mxu0 0
        %2229 = vmatpush1.bf16.msra.mxu0 0
        %2230 = vmatprep.subr.bf16.mxu0 0
        %2231 = vmatpush1.bf16.msra.mxu0 0
        %2232 = vmatprep.subr.bf16.mxu0 0
        %2233 = vmatpush1.bf16.msra.mxu0 %v2214
        %2234 = vmatprep.subr.bf16.mxu0 0
        %2235 = vmatpush1.bf16.msra.mxu0 %v2213
        %2236 = vmatprep.subr.bf16.mxu0 0
        %2237 = vmatpush2.bf16.msra.mxu0 0
        %2238 = vmatprep.subr.bf16.mxu0 0
        %2239 = vmatpush2.bf16.msra.mxu0 0
        %2240 = vmatprep.subr.bf16.mxu0 0
        %2241 = vmatpush2.bf16.msra.mxu0 0
        %2242 = vmatprep.subr.bf16.mxu0 0
        %2243 = vmatpush2.bf16.msra.mxu0 0
        %2244 = vmatprep.subr.bf16.mxu0 0
        %2245 = vmatpush2.bf16.msra.mxu0 0
        %2246 = vmatprep.subr.bf16.mxu0 0
        %2247 = vmatpush2.bf16.msra.mxu0 0
        %2248 = vmatprep.subr.bf16.mxu0 0
        %2249 = vmatpush2.bf16.msra.mxu0 0
        %2250 = vmatprep.subr.bf16.mxu0 0
        %2251 = vmatpush2.bf16.msra.mxu0 0
        %2252 = vmatprep.mubr.bf16.mxu0 0
        %2253 = vmatmul.mubr.bf16.gmra.mxu0 %v2218
        %v2254 = vpop.f32.mrf.mxu0
        %v2255 = vadd.f32 0.0, %v2254
        %v2256 = vpop.f32.mrf.mxu0
        %v2257 = vpop.f32.mrf.mxu0
        %v2258 = vadd.f32 0.0, %v2257
        %v2259 = vpop.f32.mrf.mxu0
        %2260 = vdwg.mxu0
        %v2261 = vadd.f32 %v1974, %v2255
        %v2262 = vadd.f32 %v1977, %v2258
        %2263 = vrot.lane.b32.xlu0 %v1415, 32
        %v2264 = vpop.permute.xlu0 %2263
        %2265 = vrot.lane.b32.xlu0 %v1417, 32
        %v2266 = vpop.permute.xlu0 %2265
        %v2268 = vsel %vm1419, %v2264, 0
        %v2271 = vsel %vm1419, %v2266, 0
        %2273 = vmatprep.subr.bf16.mxu0 0
        %2274 = vmatpush1.bf16.xpose.msra.mxu0 0
        %2275 = vmatprep.subr.bf16.mxu0 0
        %2276 = vmatpush1.bf16.xpose.msra.mxu0 0
        %2277 = vmatprep.subr.bf16.mxu0 0
        %2278 = vmatpush1.bf16.xpose.msra.mxu0 0
        %2279 = vmatprep.subr.bf16.mxu0 0
        %2280 = vmatpush1.bf16.xpose.msra.mxu0 0
        %2281 = vmatprep.subr.bf16.mxu0 0
        %2282 = vmatpush1.bf16.xpose.msra.mxu0 0
        %2283 = vmatprep.subr.bf16.mxu0 0
        %2284 = vmatpush1.bf16.xpose.msra.mxu0 0
        %2285 = vmatprep.subr.bf16.mxu0 0
        %2286 = vmatpush1.bf16.xpose.msra.mxu0 0
        %2287 = vmatprep.subr.bf16.mxu0 0
        %2288 = vmatpush1.bf16.xpose.msra.mxu0 %v2271
        %2289 = vmatprep.subr.bf16.mxu0 0
        %2290 = vmatpush2.bf16.xpose.msra.mxu0 0
        %2291 = vmatprep.subr.bf16.mxu0 0
        %2292 = vmatpush2.bf16.xpose.msra.mxu0 0
        %2293 = vmatprep.subr.bf16.mxu0 0
        %2294 = vmatpush2.bf16.xpose.msra.mxu0 0
        %2295 = vmatprep.subr.bf16.mxu0 0
        %2296 = vmatpush2.bf16.xpose.msra.mxu0 0
        %2297 = vmatprep.subr.bf16.mxu0 0
        %2298 = vmatpush2.bf16.xpose.msra.mxu0 0
        %2299 = vmatprep.subr.bf16.mxu0 0
        %2300 = vmatpush2.bf16.xpose.msra.mxu0 0
        %2301 = vmatprep.subr.bf16.mxu0 0
        %2302 = vmatpush2.bf16.xpose.msra.mxu0 0
        %2303 = vmatprep.subr.bf16.mxu0 0
        %2304 = vmatpush2.bf16.xpose.msra.mxu0 0
        %2305 = vmatprep.mubr.bf16.mxu0 0
        %2306 = vmatmul.mubr.bf16.gmra.mxu0 %v2268
        %v2307 = vpop.f32.mrf.mxu0
        %v2308 = vadd.f32 0.0, %v2307
        %v2309 = vpop.f32.mrf.mxu0
        %v2310 = vpop.f32.mrf.mxu0
        %v2311 = vpop.f32.mrf.mxu0
        %2312 = vdwg.mxu0
        %2313 = vrot.lane.b32.xlu0 %v1416, 32
        %v2314 = vpop.permute.xlu0 %2313
        %2315 = vrot.lane.b32.xlu0 %v1418, 32
        %v2316 = vpop.permute.xlu0 %2315
        %v2318 = vsel %vm1419, %v2314, 0
        %v2321 = vsel %vm1419, %v2316, 0
        %2323 = vmatprep.subr.bf16.mxu0 0
        %2324 = vmatpush1.bf16.xpose.msra.mxu0 0
        %2325 = vmatprep.subr.bf16.mxu0 0
        %2326 = vmatpush1.bf16.xpose.msra.mxu0 0
        %2327 = vmatprep.subr.bf16.mxu0 0
        %2328 = vmatpush1.bf16.xpose.msra.mxu0 0
        %2329 = vmatprep.subr.bf16.mxu0 0
        %2330 = vmatpush1.bf16.xpose.msra.mxu0 0
        %2331 = vmatprep.subr.bf16.mxu0 0
        %2332 = vmatpush1.bf16.xpose.msra.mxu0 0
        %2333 = vmatprep.subr.bf16.mxu0 0
        %2334 = vmatpush1.bf16.xpose.msra.mxu0 0
        %2335 = vmatprep.subr.bf16.mxu0 0
        %2336 = vmatpush1.bf16.xpose.msra.mxu0 0
        %2337 = vmatprep.subr.bf16.mxu0 0
        %2338 = vmatpush1.bf16.xpose.msra.mxu0 %v2321
        %2339 = vmatprep.subr.bf16.mxu0 0
        %2340 = vmatpush2.bf16.xpose.msra.mxu0 0
        %2341 = vmatprep.subr.bf16.mxu0 0
        %2342 = vmatpush2.bf16.xpose.msra.mxu0 0
        %2343 = vmatprep.subr.bf16.mxu0 0
        %2344 = vmatpush2.bf16.xpose.msra.mxu0 0
        %2345 = vmatprep.subr.bf16.mxu0 0
        %2346 = vmatpush2.bf16.xpose.msra.mxu0 0
        %2347 = vmatprep.subr.bf16.mxu0 0
        %2348 = vmatpush2.bf16.xpose.msra.mxu0 0
        %2349 = vmatprep.subr.bf16.mxu0 0
        %2350 = vmatpush2.bf16.xpose.msra.mxu0 0
        %2351 = vmatprep.subr.bf16.mxu0 0
        %2352 = vmatpush2.bf16.xpose.msra.mxu0 0
        %2353 = vmatprep.subr.bf16.mxu0 0
        %2354 = vmatpush2.bf16.xpose.msra.mxu0 0
        %2355 = vmatprep.mubr.bf16.mxu0 0
        %2356 = vmatmul.mubr.bf16.gmra.mxu0 %v2318
        %v2357 = vpop.f32.mrf.mxu0
        %v2358 = vadd.f32 0.0, %v2357
        %v2359 = vpop.f32.mrf.mxu0
        %v2360 = vpop.f32.mrf.mxu0
        %v2361 = vpop.f32.mrf.mxu0
        %2362 = vdwg.mxu0
        %v2363 = vmul.f32 %v2308, 0.17677669
        %v2364 = vmul.f32 %v2358, 0.17677669
        %v2365 = vadd.f32 %v2363, %v1094
        %v2366 = vadd.f32 %v2364, %v1095
        %v2367 = vsel %vm1516, %v2365, -inf
        %2368 = vmax.xlane.f32.xlu0 %v2367
        %v2369 = vpop.xlane.xlu0 %2368
        %v2370 = vsel %vm1516, %v2366, -inf
        %2371 = vmax.xlane.f32.xlu0 %v2370
        %v2372 = vpop.xlane.xlu0 %2371
        %v2373 = vsub.f32 %v2365, %v2369
        %v2374 = vsub.f32 %v2366, %v2372
        %v2375 = vmul.f32 %v2373, 1.442695
        %v2376 = vpow.pop %v2375
        %v2377 = vmul.f32 %v2374, 1.442695
        %v2378 = vpow.pop %v2377
        %v2379 = vsel %vm1516, %v2376, 0.0
        %2380 = vadd.xlane.f32.xlu0 %v2379
        %v2381 = vpop.xlane.xlu0 %2380
        %v2382 = vsel %vm1516, %v2378, 0.0
        %2383 = vadd.xlane.f32.xlu0 %v2382
        %v2384 = vpop.xlane.xlu0 %2383
        %v2385 = vrcp.pop %v2381
        %v2386 = vrcp.pop %v2384
        %v2387 = vmul.f32 %v2376, %v2385
        %v2388 = vmul.f32 %v2378, %v2386
        %v2389 = vpack.c.bf16 %v2387, %v2387
        %v2390 = vpack.c.bf16 %v2388, %v2388
        %2391 = vrot.lane.b32.xlu0 %v1541, 32
        %v2392 = vpop.permute.xlu0 %2391
        %v2394 = vsel %vm1516, %v2389, 0
        %v2397 = vsel %vm1546, %v2392, 0
        %2399 = vmatprep.subr.bf16.mxu0 0
        %2400 = vmatpush1.bf16.msra.mxu0 0
        %2401 = vmatprep.subr.bf16.mxu0 0
        %2402 = vmatpush1.bf16.msra.mxu0 0
        %2403 = vmatprep.subr.bf16.mxu0 0
        %2404 = vmatpush1.bf16.msra.mxu0 0
        %2405 = vmatprep.subr.bf16.mxu0 0
        %2406 = vmatpush1.bf16.msra.mxu0 0
        %2407 = vmatprep.subr.bf16.mxu0 0
        %2408 = vmatpush1.bf16.msra.mxu0 0
        %2409 = vmatprep.subr.bf16.mxu0 0
        %2410 = vmatpush1.bf16.msra.mxu0 0
        %2411 = vmatprep.subr.bf16.mxu0 0
        %2412 = vmatpush1.bf16.msra.mxu0 0
        %2413 = vmatprep.subr.bf16.mxu0 0
        %2414 = vmatpush1.bf16.msra.mxu0 %v2397
        %2415 = vmatprep.subr.bf16.mxu0 0
        %2416 = vmatpush2.bf16.msra.mxu0 0
        %2417 = vmatprep.subr.bf16.mxu0 0
        %2418 = vmatpush2.bf16.msra.mxu0 0
        %2419 = vmatprep.subr.bf16.mxu0 0
        %2420 = vmatpush2.bf16.msra.mxu0 0
        %2421 = vmatprep.subr.bf16.mxu0 0
        %2422 = vmatpush2.bf16.msra.mxu0 0
        %2423 = vmatprep.subr.bf16.mxu0 0
        %2424 = vmatpush2.bf16.msra.mxu0 0
        %2425 = vmatprep.subr.bf16.mxu0 0
        %2426 = vmatpush2.bf16.msra.mxu0 0
        %2427 = vmatprep.subr.bf16.mxu0 0
        %2428 = vmatpush2.bf16.msra.mxu0 0
        %2429 = vmatprep.subr.bf16.mxu0 0
        %2430 = vmatpush2.bf16.msra.mxu0 0
        %2431 = vmatprep.mubr.bf16.mxu0 0
        %2432 = vmatmul.mubr.bf16.gmra.mxu0 %v2394
        %v2433 = vpop.f32.mrf.mxu0
        %v2434 = vadd.f32 0.0, %v2433
        %v2435 = vpop.f32.mrf.mxu0
        %v2436 = vpop.f32.mrf.mxu0
        %v2437 = vpop.f32.mrf.mxu0
        %2438 = vdwg.mxu0
        %2439 = vrot.lane.b32.xlu0 %v1542, 32
        %v2440 = vpop.permute.xlu0 %2439
        %v2442 = vsel %vm1516, %v2390, 0
        %v2445 = vsel %vm1546, %v2440, 0
        %2447 = vmatprep.subr.bf16.mxu0 0
        %2448 = vmatpush1.bf16.msra.mxu0 0
        %2449 = vmatprep.subr.bf16.mxu0 0
        %2450 = vmatpush1.bf16.msra.mxu0 0
        %2451 = vmatprep.subr.bf16.mxu0 0
        %2452 = vmatpush1.bf16.msra.mxu0 0
        %2453 = vmatprep.subr.bf16.mxu0 0
        %2454 = vmatpush1.bf16.msra.mxu0 0
        %2455 = vmatprep.subr.bf16.mxu0 0
        %2456 = vmatpush1.bf16.msra.mxu0 0
        %2457 = vmatprep.subr.bf16.mxu0 0
        %2458 = vmatpush1.bf16.msra.mxu0 0
        %2459 = vmatprep.subr.bf16.mxu0 0
        %2460 = vmatpush1.bf16.msra.mxu0 0
        %2461 = vmatprep.subr.bf16.mxu0 0
        %2462 = vmatpush1.bf16.msra.mxu0 %v2445
        %2463 = vmatprep.subr.bf16.mxu0 0
        %2464 = vmatpush2.bf16.msra.mxu0 0
        %2465 = vmatprep.subr.bf16.mxu0 0
        %2466 = vmatpush2.bf16.msra.mxu0 0
        %2467 = vmatprep.subr.bf16.mxu0 0
        %2468 = vmatpush2.bf16.msra.mxu0 0
        %2469 = vmatprep.subr.bf16.mxu0 0
        %2470 = vmatpush2.bf16.msra.mxu0 0
        %2471 = vmatprep.subr.bf16.mxu0 0
        %2472 = vmatpush2.bf16.msra.mxu0 0
        %2473 = vmatprep.subr.bf16.mxu0 0
        %2474 = vmatpush2.bf16.msra.mxu0 0
        %2475 = vmatprep.subr.bf16.mxu0 0
        %2476 = vmatpush2.bf16.msra.mxu0 0
        %2477 = vmatprep.subr.bf16.mxu0 0
        %2478 = vmatpush2.bf16.msra.mxu0 0
        %2479 = vmatprep.mubr.bf16.mxu0 0
        %2480 = vmatmul.mubr.bf16.gmra.mxu0 %v2442
        %v2481 = vpop.f32.mrf.mxu0
        %v2482 = vadd.f32 0.0, %v2481
        %v2483 = vpop.f32.mrf.mxu0
        %v2484 = vpop.f32.mrf.mxu0
        %v2485 = vpop.f32.mrf.mxu0
        %2486 = vdwg.mxu0
        %v2487 = vpack.c.bf16 %v2482, %v2434
        %v2492 = vunpack.c.l.b16 %v1411
        %v2493 = vunpack.c.l.b16 %v1412
        %v2494 = vunpack.c.l.b16 %v1413
        %v2495 = vunpack.c.l.b16 %v1414
        %v2496 = vpack.c.b16 %v2493, %v2492
        %v2497 = vpack.c.b16 %v2495, %v2494
        %v2501 = vsel %vm1419, %v2487, 0
        %2503 = vmatprep.subr.bf16.mxu0 0
        %2504 = vmatpush1.bf16.msra.mxu0 0
        %2505 = vmatprep.subr.bf16.mxu0 0
        %2506 = vmatpush1.bf16.msra.mxu0 0
        %2507 = vmatprep.subr.bf16.mxu0 0
        %2508 = vmatpush1.bf16.msra.mxu0 0
        %2509 = vmatprep.subr.bf16.mxu0 0
        %2510 = vmatpush1.bf16.msra.mxu0 0
        %2511 = vmatprep.subr.bf16.mxu0 0
        %2512 = vmatpush1.bf16.msra.mxu0 0
        %2513 = vmatprep.subr.bf16.mxu0 0
        %2514 = vmatpush1.bf16.msra.mxu0 0
        %2515 = vmatprep.subr.bf16.mxu0 0
        %2516 = vmatpush1.bf16.msra.mxu0 %v2497
        %2517 = vmatprep.subr.bf16.mxu0 0
        %2518 = vmatpush1.bf16.msra.mxu0 %v2496
        %2519 = vmatprep.subr.bf16.mxu0 0
        %2520 = vmatpush2.bf16.msra.mxu0 0
        %2521 = vmatprep.subr.bf16.mxu0 0
        %2522 = vmatpush2.bf16.msra.mxu0 0
        %2523 = vmatprep.subr.bf16.mxu0 0
        %2524 = vmatpush2.bf16.msra.mxu0 0
        %2525 = vmatprep.subr.bf16.mxu0 0
        %2526 = vmatpush2.bf16.msra.mxu0 0
        %2527 = vmatprep.subr.bf16.mxu0 0
        %2528 = vmatpush2.bf16.msra.mxu0 0
        %2529 = vmatprep.subr.bf16.mxu0 0
        %2530 = vmatpush2.bf16.msra.mxu0 0
        %2531 = vmatprep.subr.bf16.mxu0 0
        %2532 = vmatpush2.bf16.msra.mxu0 0
        %2533 = vmatprep.subr.bf16.mxu0 0
        %2534 = vmatpush2.bf16.msra.mxu0 0
        %2535 = vmatprep.mubr.bf16.mxu0 0
        %2536 = vmatmul.mubr.bf16.gmra.mxu0 %v2501
        %v2537 = vpop.f32.mrf.mxu0
        %v2538 = vadd.f32 0.0, %v2537
        %v2539 = vpop.f32.mrf.mxu0
        %v2540 = vpop.f32.mrf.mxu0
        %v2541 = vadd.f32 0.0, %v2540
        %v2542 = vpop.f32.mrf.mxu0
        %2543 = vdwg.mxu0
        %v2544 = vadd.f32 %v2261, %v2538
        %v2545 = vadd.f32 %v2262, %v2541
        %v2546 = vadd.f32 %v1090, %v2544
        %v2547 = vadd.f32 %v1091, %v2545
        %v2548 = vld [vmem:[%s1045] sm:$0x1]
        %v2550 = vlaneseq
        %v2551 = vshrl.u32 %v2550, 7
        %v2552 = vsub.s32 0, %v2551
        %v2553 = vrot.slane %v2548, %v2552
        %v2555 = vadd.f32 %v2546, %v2553
        %v2556 = vadd.f32 %v2547, %v2553
        %v2557 = vld [vmem:[%s1048] sm:$0x1]
        %v2558 = vld [vmem:[%s1051] sm:$0x1]
        %2559 = vadd.xlane.f32.xlu0 %v2555
        %v2560 = vpop.xlane.xlu0 %2559
        %2561 = vadd.xlane.f32.xlu0 %v2556
        %v2562 = vpop.xlane.xlu0 %2561
        %v2563 = vmul.f32 %v2560, %v1102
        %v2564 = vmul.f32 %v2562, %v1102
        %v2565 = vsub.f32 %v2555, %v2563
        %v2566 = vsub.f32 %v2556, %v2564
        %v2567 = vmul.f32 %v2565, %v2565
        %v2568 = vmul.f32 %v2566, %v2566
        %2569 = vadd.xlane.f32.xlu0 %v2567
        %v2570 = vpop.xlane.xlu0 %2569
        %2571 = vadd.xlane.f32.xlu0 %v2568
        %v2572 = vpop.xlane.xlu0 %2571
        %v2573 = vmul.f32 %v2570, %v1102
        %v2574 = vmul.f32 %v2572, %v1102
        %v2575 = vadd.f32 %v2573, 1e-05
        %v2576 = vadd.f32 %v2574, 1e-05
        %v2577 = vrsqrt.pop %v2575
        %v2578 = vrsqrt.pop %v2576
        %v2579 = vmul.f32 %v2565, %v2577
        %v2580 = vmul.f32 %v2566, %v2578
        %v2582 = vlaneseq
        %v2583 = vshrl.u32 %v2582, 7
        %v2584 = vsub.s32 0, %v2583
        %v2585 = vrot.slane %v2557, %v2584
        %v2587 = vmul.f32 %v2579, %v2585
        %v2588 = vmul.f32 %v2580, %v2585
        %v2590 = vlaneseq
        %v2591 = vshrl.u32 %v2590, 7
        %v2592 = vsub.s32 0, %v2591
        %v2593 = vrot.slane %v2558, %v2592
        %v2595 = vadd.f32 %v2587, %v2593
        %v2596 = vadd.f32 %v2588, %v2593
        %v2597 = vld [vmem:[%s1056] sm:$0xf]
        %v2598 = vld [vmem:[%s1056 + $0x4] sm:$0xf]
        %v2599 = vld [vmem:[%s1056 + $0x8] sm:$0xf]
        %v2600 = vld [vmem:[%s1056 + $0xc] sm:$0xf]
        %v2601 = vld [vmem:[%s1056 + $0x10] sm:$0xf]
        %v2602 = vld [vmem:[%s1056 + $0x14] sm:$0xf]
        %v2603 = vld [vmem:[%s1056 + $0x18] sm:$0xf]
        %v2604 = vld [vmem:[%s1056 + $0x1c] sm:$0xf]
        %v2605 = vld [vmem:[%s1056 + $0x20] sm:$0xf]
        %v2606 = vld [vmem:[%s1056 + $0x24] sm:$0xf]
        %v2607 = vld [vmem:[%s1056 + $0x28] sm:$0xf]
        %v2608 = vld [vmem:[%s1056 + $0x2c] sm:$0xf]
        %v2609 = vld [vmem:[%s1056 + $0x30] sm:$0xf]
        %v2610 = vld [vmem:[%s1056 + $0x34] sm:$0xf]
        %v2611 = vld [vmem:[%s1056 + $0x38] sm:$0xf]
        %v2612 = vld [vmem:[%s1056 + $0x3c] sm:$0xf]
        %v2613 = vpack.c.bf16 %v2596, %v2595
        %v2614 = vld [vmem:[%s1059] sm:$0x1]
        %v2616 = vlaneseq
        %v2617 = vshrl.u32 %v2616, 7
        %v2618 = vsub.s32 0, %v2617
        %v2619 = vrot.slane %v2614, %v2618
        %v2637 = vunpack.c.l.b16 %v2597
        %v2638 = vunpack.c.l.b16 %v2598
        %v2639 = vunpack.c.l.b16 %v2599
        %v2640 = vunpack.c.l.b16 %v2600
        %v2641 = vunpack.c.l.b16 %v2601
        %v2642 = vunpack.c.l.b16 %v2602
        %v2643 = vunpack.c.l.b16 %v2603
        %v2644 = vunpack.c.l.b16 %v2604
        %v2645 = vunpack.c.l.b16 %v2605
        %v2646 = vunpack.c.l.b16 %v2606
        %v2647 = vunpack.c.l.b16 %v2607
        %v2648 = vunpack.c.l.b16 %v2608
        %v2649 = vunpack.c.l.b16 %v2609
        %v2650 = vunpack.c.l.b16 %v2610
        %v2651 = vunpack.c.l.b16 %v2611
        %v2652 = vunpack.c.l.b16 %v2612
        %v2653 = vpack.c.b16 %v2638, %v2637
        %v2654 = vpack.c.b16 %v2640, %v2639
        %v2655 = vpack.c.b16 %v2642, %v2641
        %v2656 = vpack.c.b16 %v2644, %v2643
        %v2657 = vpack.c.b16 %v2646, %v2645
        %v2658 = vpack.c.b16 %v2648, %v2647
        %v2659 = vpack.c.b16 %v2650, %v2649
        %v2660 = vpack.c.b16 %v2652, %v2651
        %2669 = vmatprep.subr.bf16.mxu0 0
        %2670 = vmatpush1.bf16.msra.mxu0 %v2660
        %2671 = vmatprep.subr.bf16.mxu0 0
        %2672 = vmatpush1.bf16.msra.mxu0 %v2659
        %2673 = vmatprep.subr.bf16.mxu0 0
        %2674 = vmatpush1.bf16.msra.mxu0 %v2658
        %2675 = vmatprep.subr.bf16.mxu0 0
        %2676 = vmatpush1.bf16.msra.mxu0 %v2657
        %2677 = vmatprep.subr.bf16.mxu0 0
        %2678 = vmatpush1.bf16.msra.mxu0 %v2656
        %2679 = vmatprep.subr.bf16.mxu0 0
        %2680 = vmatpush1.bf16.msra.mxu0 %v2655
        %2681 = vmatprep.subr.bf16.mxu0 0
        %2682 = vmatpush1.bf16.msra.mxu0 %v2654
        %2683 = vmatprep.subr.bf16.mxu0 0
        %2684 = vmatpush1.bf16.msra.mxu0 %v2653
        %2685 = vmatprep.subr.bf16.mxu0 0
        %2686 = vmatpush2.bf16.msra.mxu0 0
        %2687 = vmatprep.subr.bf16.mxu0 0
        %2688 = vmatpush2.bf16.msra.mxu0 0
        %2689 = vmatprep.subr.bf16.mxu0 0
        %2690 = vmatpush2.bf16.msra.mxu0 0
        %2691 = vmatprep.subr.bf16.mxu0 0
        %2692 = vmatpush2.bf16.msra.mxu0 0
        %2693 = vmatprep.subr.bf16.mxu0 0
        %2694 = vmatpush2.bf16.msra.mxu0 0
        %2695 = vmatprep.subr.bf16.mxu0 0
        %2696 = vmatpush2.bf16.msra.mxu0 0
        %2697 = vmatprep.subr.bf16.mxu0 0
        %2698 = vmatpush2.bf16.msra.mxu0 0
        %2699 = vmatprep.subr.bf16.mxu0 0
        %2700 = vmatpush2.bf16.msra.mxu0 0
        %2701 = vmatprep.mubr.bf16.mxu0 0
        %2702 = vmatmul.mubr.bf16.gmra.mxu0 %v2613
        %v2703 = vpop.f32.mrf.mxu0
        %v2704 = vadd.f32 %v2619, %v2703
        %v2705 = vpop.f32.mrf.mxu0
        %v2706 = vpop.f32.mrf.mxu0
        %v2707 = vadd.f32 %v2619, %v2706
        %v2708 = vpop.f32.mrf.mxu0
        %2709 = vdwg.mxu0
        %v2710 = vld [vmem:[%s1064] sm:$0xff]
        %v2711 = vld [vmem:[%s1064 + $0x8] sm:$0xff]
        %v2712 = vld [vmem:[%s1064 + $0x10] sm:$0xff]
        %v2713 = vld [vmem:[%s1064 + $0x18] sm:$0xff]
        %v2714 = vld [vmem:[%s1064 + $0x20] sm:$0xff]
        %v2715 = vld [vmem:[%s1064 + $0x28] sm:$0xff]
        %v2716 = vld [vmem:[%s1064 + $0x30] sm:$0xff]
        %v2717 = vld [vmem:[%s1064 + $0x38] sm:$0xff]
        %v2718 = vld [vmem:[%s1064 + $0x40] sm:$0xff]
        %v2719 = vld [vmem:[%s1064 + $0x48] sm:$0xff]
        %v2720 = vld [vmem:[%s1064 + $0x50] sm:$0xff]
        %v2721 = vld [vmem:[%s1064 + $0x58] sm:$0xff]
        %v2722 = vld [vmem:[%s1064 + $0x60] sm:$0xff]
        %v2723 = vld [vmem:[%s1064 + $0x68] sm:$0xff]
        %v2724 = vld [vmem:[%s1064 + $0x70] sm:$0xff]
        %v2725 = vld [vmem:[%s1064 + $0x78] sm:$0xff]
        %v2726 = vpack.c.bf16 %v1093, %v1092
        %v2727 = vld [vmem:[%s1068] sm:$0x3]
        %v2729 = vlaneseq
        %v2730 = vshrl.u32 %v2729, 7
        %v2731 = vsub.s32 0, %v2730
        %v2732 = vrot.slane %v2727, %v2731
        %v2733 = vlaneseq
        %v2734 = vshrl.u32 %v2733, 7
        %v2735 = vsub.s32 1, %v2734
        %v2736 = vrot.slane %v2727, %v2735
        %v2755 = vunpack.c.l.b16 %v2710
        %v2756 = vunpack.c.h.b16 %v2710
        %v2757 = vunpack.c.l.b16 %v2711
        %v2758 = vunpack.c.h.b16 %v2711
        %v2759 = vunpack.c.l.b16 %v2712
        %v2760 = vunpack.c.h.b16 %v2712
        %v2761 = vunpack.c.l.b16 %v2713
        %v2762 = vunpack.c.h.b16 %v2713
        %v2763 = vunpack.c.l.b16 %v2714
        %v2764 = vunpack.c.h.b16 %v2714
        %v2765 = vunpack.c.l.b16 %v2715
        %v2766 = vunpack.c.h.b16 %v2715
        %v2767 = vunpack.c.l.b16 %v2716
        %v2768 = vunpack.c.h.b16 %v2716
        %v2769 = vunpack.c.l.b16 %v2717
        %v2770 = vunpack.c.h.b16 %v2717
        %v2771 = vunpack.c.l.b16 %v2718
        %v2772 = vunpack.c.h.b16 %v2718
        %v2773 = vunpack.c.l.b16 %v2719
        %v2774 = vunpack.c.h.b16 %v2719
        %v2775 = vunpack.c.l.b16 %v2720
        %v2776 = vunpack.c.h.b16 %v2720
        %v2777 = vunpack.c.l.b16 %v2721
        %v2778 = vunpack.c.h.b16 %v2721
        %v2779 = vunpack.c.l.b16 %v2722
        %v2780 = vunpack.c.h.b16 %v2722
        %v2781 = vunpack.c.l.b16 %v2723
        %v2782 = vunpack.c.h.b16 %v2723
        %v2783 = vunpack.c.l.b16 %v2724
        %v2784 = vunpack.c.h.b16 %v2724
        %v2785 = vunpack.c.l.b16 %v2725
        %v2786 = vunpack.c.h.b16 %v2725
        %v2787 = vpack.c.b16 %v2757, %v2755
        %v2788 = vpack.c.b16 %v2758, %v2756
        %v2789 = vpack.c.b16 %v2761, %v2759
        %v2790 = vpack.c.b16 %v2762, %v2760
        %v2791 = vpack.c.b16 %v2765, %v2763
        %v2792 = vpack.c.b16 %v2766, %v2764
        %v2793 = vpack.c.b16 %v2769, %v2767
        %v2794 = vpack.c.b16 %v2770, %v2768
        %v2795 = vpack.c.b16 %v2773, %v2771
        %v2796 = vpack.c.b16 %v2774, %v2772
        %v2797 = vpack.c.b16 %v2777, %v2775
        %v2798 = vpack.c.b16 %v2778, %v2776
        %v2799 = vpack.c.b16 %v2781, %v2779
        %v2800 = vpack.c.b16 %v2782, %v2780
        %v2801 = vpack.c.b16 %v2785, %v2783
        %v2802 = vpack.c.b16 %v2786, %v2784
        %2819 = vmatprep.subr.bf16.mxu0 %v2802
        %2820 = vmatpush1.bf16.msra.mxu0 %v2801
        %2821 = vmatprep.subr.bf16.mxu0 %v2800
        %2822 = vmatpush1.bf16.msra.mxu0 %v2799
        %2823 = vmatprep.subr.bf16.mxu0 %v2798
        %2824 = vmatpush1.bf16.msra.mxu0 %v2797
        %2825 = vmatprep.subr.bf16.mxu0 %v2796
        %2826 = vmatpush1.bf16.msra.mxu0 %v2795
        %2827 = vmatprep.subr.bf16.mxu0 %v2794
        %2828 = vmatpush1.bf16.msra.mxu0 %v2793
        %2829 = vmatprep.subr.bf16.mxu0 %v2792
        %2830 = vmatpush1.bf16.msra.mxu0 %v2791
        %2831 = vmatprep.subr.bf16.mxu0 %v2790
        %2832 = vmatpush1.bf16.msra.mxu0 %v2789
        %2833 = vmatprep.subr.bf16.mxu0 %v2788
        %2834 = vmatpush1.bf16.msra.mxu0 %v2787
        %2835 = vmatprep.subr.bf16.mxu0 0
        %2836 = vmatpush2.bf16.msra.mxu0 0
        %2837 = vmatprep.subr.bf16.mxu0 0
        %2838 = vmatpush2.bf16.msra.mxu0 0
        %2839 = vmatprep.subr.bf16.mxu0 0
        %2840 = vmatpush2.bf16.msra.mxu0 0
        %2841 = vmatprep.subr.bf16.mxu0 0
        %2842 = vmatpush2.bf16.msra.mxu0 0
        %2843 = vmatprep.subr.bf16.mxu0 0
        %2844 = vmatpush2.bf16.msra.mxu0 0
        %2845 = vmatprep.subr.bf16.mxu0 0
        %2846 = vmatpush2.bf16.msra.mxu0 0
        %2847 = vmatprep.subr.bf16.mxu0 0
        %2848 = vmatpush2.bf16.msra.mxu0 0
        %2849 = vmatprep.subr.bf16.mxu0 0
        %2850 = vmatpush2.bf16.msra.mxu0 0
        %2851 = vmatprep.mubr.bf16.mxu0 0
        %2852 = vmatmul.mubr.bf16.gmra.mxu0 %v2726
        %v2853 = vpop.f32.mrf.mxu0
        %v2854 = vadd.f32 %v2732, %v2853
        %v2855 = vpop.f32.mrf.mxu0
        %v2856 = vadd.f32 %v2736, %v2855
        %v2857 = vpop.f32.mrf.mxu0
        %v2858 = vadd.f32 %v2732, %v2857
        %v2859 = vpop.f32.mrf.mxu0
        %v2860 = vadd.f32 %v2736, %v2859
        %2861 = vdwg.mxu0
        %v2862 = vld [vmem:[%s867] sm:$0xf]
        %v2863 = vld [vmem:[%s867 + $0x4] sm:$0xf]
        %v2864 = vld [vmem:[%s867 + $0x8] sm:$0xf]
        %v2865 = vld [vmem:[%s867 + $0xc] sm:$0xf]
        %v2866 = vld [vmem:[%s867 + $0x10] sm:$0xf]
        %v2867 = vld [vmem:[%s867 + $0x14] sm:$0xf]
        %v2868 = vld [vmem:[%s867 + $0x18] sm:$0xf]
        %v2869 = vld [vmem:[%s867 + $0x1c] sm:$0xf]
        %v2870 = vld [vmem:[%s867 + $0x20] sm:$0xf]
        %v2871 = vld [vmem:[%s867 + $0x24] sm:$0xf]
        %v2872 = vld [vmem:[%s867 + $0x28] sm:$0xf]
        %v2873 = vld [vmem:[%s867 + $0x2c] sm:$0xf]
        %v2874 = vld [vmem:[%s867 + $0x30] sm:$0xf]
        %v2875 = vld [vmem:[%s867 + $0x34] sm:$0xf]
        %v2876 = vld [vmem:[%s867 + $0x38] sm:$0xf]
        %v2877 = vld [vmem:[%s867 + $0x3c] sm:$0xf]
        %v2878 = vpack.c.bf16 %v2704, %v2704
        %v2879 = vpack.c.bf16 %v2707, %v2707
        %v2880 = vpack.c.bf16 %v2854, %v2854
        %v2881 = vpack.c.bf16 %v2858, %v2858
        %v2883 = vsel %vm1419, %v2878, 0
        %v2886 = vsel %vm1419, %v2880, 0
        %2888 = vmatprep.subr.bf16.mxu0 0
        %2889 = vmatpush1.bf16.xpose.msra.mxu0 0
        %2890 = vmatprep.subr.bf16.mxu0 0
        %2891 = vmatpush1.bf16.xpose.msra.mxu0 0
        %2892 = vmatprep.subr.bf16.mxu0 0
        %2893 = vmatpush1.bf16.xpose.msra.mxu0 0
        %2894 = vmatprep.subr.bf16.mxu0 0
        %2895 = vmatpush1.bf16.xpose.msra.mxu0 0
        %2896 = vmatprep.subr.bf16.mxu0 0
        %2897 = vmatpush1.bf16.xpose.msra.mxu0 0
        %2898 = vmatprep.subr.bf16.mxu0 0
        %2899 = vmatpush1.bf16.xpose.msra.mxu0 0
        %2900 = vmatprep.subr.bf16.mxu0 0
        %2901 = vmatpush1.bf16.xpose.msra.mxu0 0
        %2902 = vmatprep.subr.bf16.mxu0 0
        %2903 = vmatpush1.bf16.xpose.msra.mxu0 %v2886
        %2904 = vmatprep.subr.bf16.mxu0 0
        %2905 = vmatpush2.bf16.xpose.msra.mxu0 0
        %2906 = vmatprep.subr.bf16.mxu0 0
        %2907 = vmatpush2.bf16.xpose.msra.mxu0 0
        %2908 = vmatprep.subr.bf16.mxu0 0
        %2909 = vmatpush2.bf16.xpose.msra.mxu0 0
        %2910 = vmatprep.subr.bf16.mxu0 0
        %2911 = vmatpush2.bf16.xpose.msra.mxu0 0
        %2912 = vmatprep.subr.bf16.mxu0 0
        %2913 = vmatpush2.bf16.xpose.msra.mxu0 0
        %2914 = vmatprep.subr.bf16.mxu0 0
        %2915 = vmatpush2.bf16.xpose.msra.mxu0 0
        %2916 = vmatprep.subr.bf16.mxu0 0
        %2917 = vmatpush2.bf16.xpose.msra.mxu0 0
        %2918 = vmatprep.subr.bf16.mxu0 0
        %2919 = vmatpush2.bf16.xpose.msra.mxu0 0
        %2920 = vmatprep.mubr.bf16.mxu0 0
        %2921 = vmatmul.mubr.bf16.gmra.mxu0 %v2883
        %v2922 = vpop.f32.mrf.mxu0
        %v2923 = vadd.f32 0.0, %v2922
        %v2924 = vpop.f32.mrf.mxu0
        %v2925 = vpop.f32.mrf.mxu0
        %v2926 = vpop.f32.mrf.mxu0
        %2927 = vdwg.mxu0
        %v2929 = vsel %vm1419, %v2879, 0
        %v2932 = vsel %vm1419, %v2881, 0
        %2934 = vmatprep.subr.bf16.mxu0 0
        %2935 = vmatpush1.bf16.xpose.msra.mxu0 0
        %2936 = vmatprep.subr.bf16.mxu0 0
        %2937 = vmatpush1.bf16.xpose.msra.mxu0 0
        %2938 = vmatprep.subr.bf16.mxu0 0
        %2939 = vmatpush1.bf16.xpose.msra.mxu0 0
        %2940 = vmatprep.subr.bf16.mxu0 0
        %2941 = vmatpush1.bf16.xpose.msra.mxu0 0
        %2942 = vmatprep.subr.bf16.mxu0 0
        %2943 = vmatpush1.bf16.xpose.msra.mxu0 0
        %2944 = vmatprep.subr.bf16.mxu0 0
        %2945 = vmatpush1.bf16.xpose.msra.mxu0 0
        %2946 = vmatprep.subr.bf16.mxu0 0
        %2947 = vmatpush1.bf16.xpose.msra.mxu0 0
        %2948 = vmatprep.subr.bf16.mxu0 0
        %2949 = vmatpush1.bf16.xpose.msra.mxu0 %v2932
        %2950 = vmatprep.subr.bf16.mxu0 0
        %2951 = vmatpush2.bf16.xpose.msra.mxu0 0
        %2952 = vmatprep.subr.bf16.mxu0 0
        %2953 = vmatpush2.bf16.xpose.msra.mxu0 0
        %2954 = vmatprep.subr.bf16.mxu0 0
        %2955 = vmatpush2.bf16.xpose.msra.mxu0 0
        %2956 = vmatprep.subr.bf16.mxu0 0
        %2957 = vmatpush2.bf16.xpose.msra.mxu0 0
        %2958 = vmatprep.subr.bf16.mxu0 0
        %2959 = vmatpush2.bf16.xpose.msra.mxu0 0
        %2960 = vmatprep.subr.bf16.mxu0 0
        %2961 = vmatpush2.bf16.xpose.msra.mxu0 0
        %2962 = vmatprep.subr.bf16.mxu0 0
        %2963 = vmatpush2.bf16.xpose.msra.mxu0 0
        %2964 = vmatprep.subr.bf16.mxu0 0
        %2965 = vmatpush2.bf16.xpose.msra.mxu0 0
        %2966 = vmatprep.mubr.bf16.mxu0 0
        %2967 = vmatmul.mubr.bf16.gmra.mxu0 %v2929
        %v2968 = vpop.f32.mrf.mxu0
        %v2969 = vadd.f32 0.0, %v2968
        %v2970 = vpop.f32.mrf.mxu0
        %v2971 = vpop.f32.mrf.mxu0
        %v2972 = vpop.f32.mrf.mxu0
        %2973 = vdwg.mxu0
        %v2974 = vmul.f32 %v2923, 0.17677669
        %v2975 = vmul.f32 %v2969, 0.17677669
        %v2976 = vsel %vm1516, %v2974, -inf
        %2977 = vmax.xlane.f32.xlu0 %v2976
        %v2978 = vpop.xlane.xlu0 %2977
        %v2979 = vsel %vm1516, %v2975, -inf
        %2980 = vmax.xlane.f32.xlu0 %v2979
        %v2981 = vpop.xlane.xlu0 %2980
        %v2982 = vsub.f32 %v2974, %v2978
        %v2983 = vsub.f32 %v2975, %v2981
        %v2984 = vmul.f32 %v2982, 1.442695
        %v2985 = vpow.pop %v2984
        %v2986 = vmul.f32 %v2983, 1.442695
        %v2987 = vpow.pop %v2986
        %v2988 = vsel %vm1516, %v2985, 0.0
        %2989 = vadd.xlane.f32.xlu0 %v2988
        %v2990 = vpop.xlane.xlu0 %2989
        %v2991 = vsel %vm1516, %v2987, 0.0
        %2992 = vadd.xlane.f32.xlu0 %v2991
        %v2993 = vpop.xlane.xlu0 %2992
        %v2994 = vrcp.pop %v2990
        %v2995 = vrcp.pop %v2993
        %v2996 = vmul.f32 %v2985, %v2994
        %v2997 = vmul.f32 %v2987, %v2995
        %v2998 = vpack.c.bf16 %v2996, %v2996
        %v2999 = vpack.c.bf16 %v2997, %v2997
        %v3000 = vpack.c.bf16 %v2856, %v2856
        %v3001 = vpack.c.bf16 %v2860, %v2860
        %v3003 = vsel %vm1516, %v2998, 0
        %v3006 = vsel %vm1546, %v3000, 0
        %3008 = vmatprep.subr.bf16.mxu0 0
        %3009 = vmatpush1.bf16.msra.mxu0 0
        %3010 = vmatprep.subr.bf16.mxu0 0
        %3011 = vmatpush1.bf16.msra.mxu0 0
        %3012 = vmatprep.subr.bf16.mxu0 0
        %3013 = vmatpush1.bf16.msra.mxu0 0
        %3014 = vmatprep.subr.bf16.mxu0 0
        %3015 = vmatpush1.bf16.msra.mxu0 0
        %3016 = vmatprep.subr.bf16.mxu0 0
        %3017 = vmatpush1.bf16.msra.mxu0 0
        %3018 = vmatprep.subr.bf16.mxu0 0
        %3019 = vmatpush1.bf16.msra.mxu0 0
        %3020 = vmatprep.subr.bf16.mxu0 0
        %3021 = vmatpush1.bf16.msra.mxu0 0
        %3022 = vmatprep.subr.bf16.mxu0 0
        %3023 = vmatpush1.bf16.msra.mxu0 %v3006
        %3024 = vmatprep.subr.bf16.mxu0 0
        %3025 = vmatpush2.bf16.msra.mxu0 0
        %3026 = vmatprep.subr.bf16.mxu0 0
        %3027 = vmatpush2.bf16.msra.mxu0 0
        %3028 = vmatprep.subr.bf16.mxu0 0
        %3029 = vmatpush2.bf16.msra.mxu0 0
        %3030 = vmatprep.subr.bf16.mxu0 0
        %3031 = vmatpush2.bf16.msra.mxu0 0
        %3032 = vmatprep.subr.bf16.mxu0 0
        %3033 = vmatpush2.bf16.msra.mxu0 0
        %3034 = vmatprep.subr.bf16.mxu0 0
        %3035 = vmatpush2.bf16.msra.mxu0 0
        %3036 = vmatprep.subr.bf16.mxu0 0
        %3037 = vmatpush2.bf16.msra.mxu0 0
        %3038 = vmatprep.subr.bf16.mxu0 0
        %3039 = vmatpush2.bf16.msra.mxu0 0
        %3040 = vmatprep.mubr.bf16.mxu0 0
        %3041 = vmatmul.mubr.bf16.gmra.mxu0 %v3003
        %v3042 = vpop.f32.mrf.mxu0
        %v3043 = vadd.f32 0.0, %v3042
        %v3044 = vpop.f32.mrf.mxu0
        %v3045 = vpop.f32.mrf.mxu0
        %v3046 = vpop.f32.mrf.mxu0
        %3047 = vdwg.mxu0
        %v3049 = vsel %vm1516, %v2999, 0
        %v3052 = vsel %vm1546, %v3001, 0
        %3054 = vmatprep.subr.bf16.mxu0 0
        %3055 = vmatpush1.bf16.msra.mxu0 0
        %3056 = vmatprep.subr.bf16.mxu0 0
        %3057 = vmatpush1.bf16.msra.mxu0 0
        %3058 = vmatprep.subr.bf16.mxu0 0
        %3059 = vmatpush1.bf16.msra.mxu0 0
        %3060 = vmatprep.subr.bf16.mxu0 0
        %3061 = vmatpush1.bf16.msra.mxu0 0
        %3062 = vmatprep.subr.bf16.mxu0 0
        %3063 = vmatpush1.bf16.msra.mxu0 0
        %3064 = vmatprep.subr.bf16.mxu0 0
        %3065 = vmatpush1.bf16.msra.mxu0 0
        %3066 = vmatprep.subr.bf16.mxu0 0
        %3067 = vmatpush1.bf16.msra.mxu0 0
        %3068 = vmatprep.subr.bf16.mxu0 0
        %3069 = vmatpush1.bf16.msra.mxu0 %v3052
        %3070 = vmatprep.subr.bf16.mxu0 0
        %3071 = vmatpush2.bf16.msra.mxu0 0
        %3072 = vmatprep.subr.bf16.mxu0 0
        %3073 = vmatpush2.bf16.msra.mxu0 0
        %3074 = vmatprep.subr.bf16.mxu0 0
        %3075 = vmatpush2.bf16.msra.mxu0 0
        %3076 = vmatprep.subr.bf16.mxu0 0
        %3077 = vmatpush2.bf16.msra.mxu0 0
        %3078 = vmatprep.subr.bf16.mxu0 0
        %3079 = vmatpush2.bf16.msra.mxu0 0
        %3080 = vmatprep.subr.bf16.mxu0 0
        %3081 = vmatpush2.bf16.msra.mxu0 0
        %3082 = vmatprep.subr.bf16.mxu0 0
        %3083 = vmatpush2.bf16.msra.mxu0 0
        %3084 = vmatprep.subr.bf16.mxu0 0
        %3085 = vmatpush2.bf16.msra.mxu0 0
        %3086 = vmatprep.mubr.bf16.mxu0 0
        %3087 = vmatmul.mubr.bf16.gmra.mxu0 %v3049
        %v3088 = vpop.f32.mrf.mxu0
        %v3089 = vadd.f32 0.0, %v3088
        %v3090 = vpop.f32.mrf.mxu0
        %v3091 = vpop.f32.mrf.mxu0
        %v3092 = vpop.f32.mrf.mxu0
        %3093 = vdwg.mxu0
        %v3094 = vpack.c.bf16 %v3089, %v3043
        %3096 = vrot.lane.b32.xlu0 %v2878, 96
        %v3097 = vpop.permute.xlu0 %3096
        %3099 = vrot.lane.b32.xlu0 %v2880, 96
        %v3100 = vpop.permute.xlu0 %3099
        %v3102 = vsel %vm1419, %v3097, 0
        %v3105 = vsel %vm1419, %v3100, 0
        %3107 = vmatprep.subr.bf16.mxu0 0
        %3108 = vmatpush1.bf16.xpose.msra.mxu0 0
        %3109 = vmatprep.subr.bf16.mxu0 0
        %3110 = vmatpush1.bf16.xpose.msra.mxu0 0
        %3111 = vmatprep.subr.bf16.mxu0 0
        %3112 = vmatpush1.bf16.xpose.msra.mxu0 0
        %3113 = vmatprep.subr.bf16.mxu0 0
        %3114 = vmatpush1.bf16.xpose.msra.mxu0 0
        %3115 = vmatprep.subr.bf16.mxu0 0
        %3116 = vmatpush1.bf16.xpose.msra.mxu0 0
        %3117 = vmatprep.subr.bf16.mxu0 0
        %3118 = vmatpush1.bf16.xpose.msra.mxu0 0
        %3119 = vmatprep.subr.bf16.mxu0 0
        %3120 = vmatpush1.bf16.xpose.msra.mxu0 0
        %3121 = vmatprep.subr.bf16.mxu0 0
        %3122 = vmatpush1.bf16.xpose.msra.mxu0 %v3105
        %3123 = vmatprep.subr.bf16.mxu0 0
        %3124 = vmatpush2.bf16.xpose.msra.mxu0 0
        %3125 = vmatprep.subr.bf16.mxu0 0
        %3126 = vmatpush2.bf16.xpose.msra.mxu0 0
        %3127 = vmatprep.subr.bf16.mxu0 0
        %3128 = vmatpush2.bf16.xpose.msra.mxu0 0
        %3129 = vmatprep.subr.bf16.mxu0 0
        %3130 = vmatpush2.bf16.xpose.msra.mxu0 0
        %3131 = vmatprep.subr.bf16.mxu0 0
        %3132 = vmatpush2.bf16.xpose.msra.mxu0 0
        %3133 = vmatprep.subr.bf16.mxu0 0
        %3134 = vmatpush2.bf16.xpose.msra.mxu0 0
        %3135 = vmatprep.subr.bf16.mxu0 0
        %3136 = vmatpush2.bf16.xpose.msra.mxu0 0
        %3137 = vmatprep.subr.bf16.mxu0 0
        %3138 = vmatpush2.bf16.xpose.msra.mxu0 0
        %3139 = vmatprep.mubr.bf16.mxu0 0
        %3140 = vmatmul.mubr.bf16.gmra.mxu0 %v3102
        %v3141 = vpop.f32.mrf.mxu0
        %v3142 = vadd.f32 0.0, %v3141
        %v3143 = vpop.f32.mrf.mxu0
        %v3144 = vpop.f32.mrf.mxu0
        %v3145 = vpop.f32.mrf.mxu0
        %3146 = vdwg.mxu0
        %3148 = vrot.lane.b32.xlu0 %v2879, 96
        %v3149 = vpop.permute.xlu0 %3148
        %3151 = vrot.lane.b32.xlu0 %v2881, 96
        %v3152 = vpop.permute.xlu0 %3151
        %v3154 = vsel %vm1419, %v3149, 0
        %v3157 = vsel %vm1419, %v3152, 0
        %3159 = vmatprep.subr.bf16.mxu0 0
        %3160 = vmatpush1.bf16.xpose.msra.mxu0 0
        %3161 = vmatprep.subr.bf16.mxu0 0
        %3162 = vmatpush1.bf16.xpose.msra.mxu0 0
        %3163 = vmatprep.subr.bf16.mxu0 0
        %3164 = vmatpush1.bf16.xpose.msra.mxu0 0
        %3165 = vmatprep.subr.bf16.mxu0 0
        %3166 = vmatpush1.bf16.xpose.msra.mxu0 0
        %3167 = vmatprep.subr.bf16.mxu0 0
        %3168 = vmatpush1.bf16.xpose.msra.mxu0 0
        %3169 = vmatprep.subr.bf16.mxu0 0
        %3170 = vmatpush1.bf16.xpose.msra.mxu0 0
        %3171 = vmatprep.subr.bf16.mxu0 0
        %3172 = vmatpush1.bf16.xpose.msra.mxu0 0
        %3173 = vmatprep.subr.bf16.mxu0 0
        %3174 = vmatpush1.bf16.xpose.msra.mxu0 %v3157
        %3175 = vmatprep.subr.bf16.mxu0 0
        %3176 = vmatpush2.bf16.xpose.msra.mxu0 0
        %3177 = vmatprep.subr.bf16.mxu0 0
        %3178 = vmatpush2.bf16.xpose.msra.mxu0 0
        %3179 = vmatprep.subr.bf16.mxu0 0
        %3180 = vmatpush2.bf16.xpose.msra.mxu0 0
        %3181 = vmatprep.subr.bf16.mxu0 0
        %3182 = vmatpush2.bf16.xpose.msra.mxu0 0
        %3183 = vmatprep.subr.bf16.mxu0 0
        %3184 = vmatpush2.bf16.xpose.msra.mxu0 0
        %3185 = vmatprep.subr.bf16.mxu0 0
        %3186 = vmatpush2.bf16.xpose.msra.mxu0 0
        %3187 = vmatprep.subr.bf16.mxu0 0
        %3188 = vmatpush2.bf16.xpose.msra.mxu0 0
        %3189 = vmatprep.subr.bf16.mxu0 0
        %3190 = vmatpush2.bf16.xpose.msra.mxu0 0
        %3191 = vmatprep.mubr.bf16.mxu0 0
        %3192 = vmatmul.mubr.bf16.gmra.mxu0 %v3154
        %v3193 = vpop.f32.mrf.mxu0
        %v3194 = vadd.f32 0.0, %v3193
        %v3195 = vpop.f32.mrf.mxu0
        %v3196 = vpop.f32.mrf.mxu0
        %v3197 = vpop.f32.mrf.mxu0
        %3198 = vdwg.mxu0
        %v3199 = vmul.f32 %v3142, 0.17677669
        %v3200 = vmul.f32 %v3194, 0.17677669
        %v3201 = vsel %vm1516, %v3199, -inf
        %3202 = vmax.xlane.f32.xlu0 %v3201
        %v3203 = vpop.xlane.xlu0 %3202
        %v3204 = vsel %vm1516, %v3200, -inf
        %3205 = vmax.xlane.f32.xlu0 %v3204
        %v3206 = vpop.xlane.xlu0 %3205
        %v3207 = vsub.f32 %v3199, %v3203
        %v3208 = vsub.f32 %v3200, %v3206
        %v3209 = vmul.f32 %v3207, 1.442695
        %v3210 = vpow.pop %v3209
        %v3211 = vmul.f32 %v3208, 1.442695
        %v3212 = vpow.pop %v3211
        %v3213 = vsel %vm1516, %v3210, 0.0
        %3214 = vadd.xlane.f32.xlu0 %v3213
        %v3215 = vpop.xlane.xlu0 %3214
        %v3216 = vsel %vm1516, %v3212, 0.0
        %3217 = vadd.xlane.f32.xlu0 %v3216
        %v3218 = vpop.xlane.xlu0 %3217
        %v3219 = vrcp.pop %v3215
        %v3220 = vrcp.pop %v3218
        %v3221 = vmul.f32 %v3210, %v3219
        %v3222 = vmul.f32 %v3212, %v3220
        %v3223 = vpack.c.bf16 %v3221, %v3221
        %v3224 = vpack.c.bf16 %v3222, %v3222
        %3226 = vrot.lane.b32.xlu0 %v3000, 96
        %v3227 = vpop.permute.xlu0 %3226
        %v3229 = vsel %vm1516, %v3223, 0
        %v3232 = vsel %vm1546, %v3227, 0
        %3234 = vmatprep.subr.bf16.mxu0 0
        %3235 = vmatpush1.bf16.msra.mxu0 0
        %3236 = vmatprep.subr.bf16.mxu0 0
        %3237 = vmatpush1.bf16.msra.mxu0 0
        %3238 = vmatprep.subr.bf16.mxu0 0
        %3239 = vmatpush1.bf16.msra.mxu0 0
        %3240 = vmatprep.subr.bf16.mxu0 0
        %3241 = vmatpush1.bf16.msra.mxu0 0
        %3242 = vmatprep.subr.bf16.mxu0 0
        %3243 = vmatpush1.bf16.msra.mxu0 0
        %3244 = vmatprep.subr.bf16.mxu0 0
        %3245 = vmatpush1.bf16.msra.mxu0 0
        %3246 = vmatprep.subr.bf16.mxu0 0
        %3247 = vmatpush1.bf16.msra.mxu0 0
        %3248 = vmatprep.subr.bf16.mxu0 0
        %3249 = vmatpush1.bf16.msra.mxu0 %v3232
        %3250 = vmatprep.subr.bf16.mxu0 0
        %3251 = vmatpush2.bf16.msra.mxu0 0
        %3252 = vmatprep.subr.bf16.mxu0 0
        %3253 = vmatpush2.bf16.msra.mxu0 0
        %3254 = vmatprep.subr.bf16.mxu0 0
        %3255 = vmatpush2.bf16.msra.mxu0 0
        %3256 = vmatprep.subr.bf16.mxu0 0
        %3257 = vmatpush2.bf16.msra.mxu0 0
        %3258 = vmatprep.subr.bf16.mxu0 0
        %3259 = vmatpush2.bf16.msra.mxu0 0
        %3260 = vmatprep.subr.bf16.mxu0 0
        %3261 = vmatpush2.bf16.msra.mxu0 0
        %3262 = vmatprep.subr.bf16.mxu0 0
        %3263 = vmatpush2.bf16.msra.mxu0 0
        %3264 = vmatprep.subr.bf16.mxu0 0
        %3265 = vmatpush2.bf16.msra.mxu0 0
        %3266 = vmatprep.mubr.bf16.mxu0 0
        %3267 = vmatmul.mubr.bf16.gmra.mxu0 %v3229
        %v3268 = vpop.f32.mrf.mxu0
        %v3269 = vadd.f32 0.0, %v3268
        %v3270 = vpop.f32.mrf.mxu0
        %v3271 = vpop.f32.mrf.mxu0
        %v3272 = vpop.f32.mrf.mxu0
        %3273 = vdwg.mxu0
        %3275 = vrot.lane.b32.xlu0 %v3001, 96
        %v3276 = vpop.permute.xlu0 %3275
        %v3278 = vsel %vm1516, %v3224, 0
        %v3281 = vsel %vm1546, %v3276, 0
        %3283 = vmatprep.subr.bf16.mxu0 0
        %3284 = vmatpush1.bf16.msra.mxu0 0
        %3285 = vmatprep.subr.bf16.mxu0 0
        %3286 = vmatpush1.bf16.msra.mxu0 0
        %3287 = vmatprep.subr.bf16.mxu0 0
        %3288 = vmatpush1.bf16.msra.mxu0 0
        %3289 = vmatprep.subr.bf16.mxu0 0
        %3290 = vmatpush1.bf16.msra.mxu0 0
        %3291 = vmatprep.subr.bf16.mxu0 0
        %3292 = vmatpush1.bf16.msra.mxu0 0
        %3293 = vmatprep.subr.bf16.mxu0 0
        %3294 = vmatpush1.bf16.msra.mxu0 0
        %3295 = vmatprep.subr.bf16.mxu0 0
        %3296 = vmatpush1.bf16.msra.mxu0 0
        %3297 = vmatprep.subr.bf16.mxu0 0
        %3298 = vmatpush1.bf16.msra.mxu0 %v3281
        %3299 = vmatprep.subr.bf16.mxu0 0
        %3300 = vmatpush2.bf16.msra.mxu0 0
        %3301 = vmatprep.subr.bf16.mxu0 0
        %3302 = vmatpush2.bf16.msra.mxu0 0
        %3303 = vmatprep.subr.bf16.mxu0 0
        %3304 = vmatpush2.bf16.msra.mxu0 0
        %3305 = vmatprep.subr.bf16.mxu0 0
        %3306 = vmatpush2.bf16.msra.mxu0 0
        %3307 = vmatprep.subr.bf16.mxu0 0
        %3308 = vmatpush2.bf16.msra.mxu0 0
        %3309 = vmatprep.subr.bf16.mxu0 0
        %3310 = vmatpush2.bf16.msra.mxu0 0
        %3311 = vmatprep.subr.bf16.mxu0 0
        %3312 = vmatpush2.bf16.msra.mxu0 0
        %3313 = vmatprep.subr.bf16.mxu0 0
        %3314 = vmatpush2.bf16.msra.mxu0 0
        %3315 = vmatprep.mubr.bf16.mxu0 0
        %3316 = vmatmul.mubr.bf16.gmra.mxu0 %v3278
        %v3317 = vpop.f32.mrf.mxu0
        %v3318 = vadd.f32 0.0, %v3317
        %v3319 = vpop.f32.mrf.mxu0
        %v3320 = vpop.f32.mrf.mxu0
        %v3321 = vpop.f32.mrf.mxu0
        %3322 = vdwg.mxu0
        %v3323 = vpack.c.bf16 %v3318, %v3269
        %v3328 = vunpack.c.l.b16 %v2866
        %v3329 = vunpack.c.l.b16 %v2867
        %v3330 = vunpack.c.l.b16 %v2868
        %v3331 = vunpack.c.l.b16 %v2869
        %v3332 = vpack.c.b16 %v3329, %v3328
        %v3333 = vpack.c.b16 %v3331, %v3330
        %v3337 = vsel %vm1419, %v3323, 0
        %3339 = vmatprep.subr.bf16.mxu0 0
        %3340 = vmatpush1.bf16.msra.mxu0 0
        %3341 = vmatprep.subr.bf16.mxu0 0
        %3342 = vmatpush1.bf16.msra.mxu0 0
        %3343 = vmatprep.subr.bf16.mxu0 0
        %3344 = vmatpush1.bf16.msra.mxu0 0
        %3345 = vmatprep.subr.bf16.mxu0 0
        %3346 = vmatpush1.bf16.msra.mxu0 0
        %3347 = vmatprep.subr.bf16.mxu0 0
        %3348 = vmatpush1.bf16.msra.mxu0 0
        %3349 = vmatprep.subr.bf16.mxu0 0
        %3350 = vmatpush1.bf16.msra.mxu0 0
        %3351 = vmatprep.subr.bf16.mxu0 0
        %3352 = vmatpush1.bf16.msra.mxu0 %v3333
        %3353 = vmatprep.subr.bf16.mxu0 0
        %3354 = vmatpush1.bf16.msra.mxu0 %v3332
        %3355 = vmatprep.subr.bf16.mxu0 0
        %3356 = vmatpush2.bf16.msra.mxu0 0
        %3357 = vmatprep.subr.bf16.mxu0 0
        %3358 = vmatpush2.bf16.msra.mxu0 0
        %3359 = vmatprep.subr.bf16.mxu0 0
        %3360 = vmatpush2.bf16.msra.mxu0 0
        %3361 = vmatprep.subr.bf16.mxu0 0
        %3362 = vmatpush2.bf16.msra.mxu0 0
        %3363 = vmatprep.subr.bf16.mxu0 0
        %3364 = vmatpush2.bf16.msra.mxu0 0
        %3365 = vmatprep.subr.bf16.mxu0 0
        %3366 = vmatpush2.bf16.msra.mxu0 0
        %3367 = vmatprep.subr.bf16.mxu0 0
        %3368 = vmatpush2.bf16.msra.mxu0 0
        %3369 = vmatprep.subr.bf16.mxu0 0
        %3370 = vmatpush2.bf16.msra.mxu0 0
        %3371 = vmatprep.mubr.bf16.mxu0 0
        %3372 = vmatmul.mubr.bf16.gmra.mxu0 %v3337
        %v3373 = vpop.f32.mrf.mxu0
        %v3374 = vadd.f32 0.0, %v3373
        %v3375 = vpop.f32.mrf.mxu0
        %v3376 = vpop.f32.mrf.mxu0
        %v3377 = vadd.f32 0.0, %v3376
        %v3378 = vpop.f32.mrf.mxu0
        %3379 = vdwg.mxu0
        %v3384 = vunpack.c.l.b16 %v2862
        %v3385 = vunpack.c.l.b16 %v2863
        %v3386 = vunpack.c.l.b16 %v2864
        %v3387 = vunpack.c.l.b16 %v2865
        %v3388 = vpack.c.b16 %v3385, %v3384
        %v3389 = vpack.c.b16 %v3387, %v3386
        %v3393 = vsel %vm1419, %v3094, 0
        %3395 = vmatprep.subr.bf16.mxu0 0
        %3396 = vmatpush1.bf16.msra.mxu0 0
        %3397 = vmatprep.subr.bf16.mxu0 0
        %3398 = vmatpush1.bf16.msra.mxu0 0
        %3399 = vmatprep.subr.bf16.mxu0 0
        %3400 = vmatpush1.bf16.msra.mxu0 0
        %3401 = vmatprep.subr.bf16.mxu0 0
        %3402 = vmatpush1.bf16.msra.mxu0 0
        %3403 = vmatprep.subr.bf16.mxu0 0
        %3404 = vmatpush1.bf16.msra.mxu0 0
        %3405 = vmatprep.subr.bf16.mxu0 0
        %3406 = vmatpush1.bf16.msra.mxu0 0
        %3407 = vmatprep.subr.bf16.mxu0 0
        %3408 = vmatpush1.bf16.msra.mxu0 %v3389
        %3409 = vmatprep.subr.bf16.mxu0 0
        %3410 = vmatpush1.bf16.msra.mxu0 %v3388
        %3411 = vmatprep.subr.bf16.mxu0 0
        %3412 = vmatpush2.bf16.msra.mxu0 0
        %3413 = vmatprep.subr.bf16.mxu0 0
        %3414 = vmatpush2.bf16.msra.mxu0 0
        %3415 = vmatprep.subr.bf16.mxu0 0
        %3416 = vmatpush2.bf16.msra.mxu0 0
        %3417 = vmatprep.subr.bf16.mxu0 0
        %3418 = vmatpush2.bf16.msra.mxu0 0
        %3419 = vmatprep.subr.bf16.mxu0 0
        %3420 = vmatpush2.bf16.msra.mxu0 0
        %3421 = vmatprep.subr.bf16.mxu0 0
        %3422 = vmatpush2.bf16.msra.mxu0 0
        %3423 = vmatprep.subr.bf16.mxu0 0
        %3424 = vmatpush2.bf16.msra.mxu0 0
        %3425 = vmatprep.subr.bf16.mxu0 0
        %3426 = vmatpush2.bf16.msra.mxu0 0
        %3427 = vmatprep.mubr.bf16.mxu0 0
        %3428 = vmatmul.mubr.bf16.gmra.mxu0 %v3393
        %v3429 = vpop.f32.mrf.mxu0
        %v3430 = vadd.f32 %v3374, %v3429
        %v3431 = vpop.f32.mrf.mxu0
        %v3432 = vpop.f32.mrf.mxu0
        %v3433 = vadd.f32 %v3377, %v3432
        %v3434 = vpop.f32.mrf.mxu0
        %3435 = vdwg.mxu0
        %3436 = vrot.lane.b32.xlu0 %v2878, 64
        %v3437 = vpop.permute.xlu0 %3436
        %3438 = vrot.lane.b32.xlu0 %v2880, 64
        %v3439 = vpop.permute.xlu0 %3438
        %v3441 = vsel %vm1419, %v3437, 0
        %v3444 = vsel %vm1419, %v3439, 0
        %3446 = vmatprep.subr.bf16.mxu0 0
        %3447 = vmatpush1.bf16.xpose.msra.mxu0 0
        %3448 = vmatprep.subr.bf16.mxu0 0
        %3449 = vmatpush1.bf16.xpose.msra.mxu0 0
        %3450 = vmatprep.subr.bf16.mxu0 0
        %3451 = vmatpush1.bf16.xpose.msra.mxu0 0
        %3452 = vmatprep.subr.bf16.mxu0 0
        %3453 = vmatpush1.bf16.xpose.msra.mxu0 0
        %3454 = vmatprep.subr.bf16.mxu0 0
        %3455 = vmatpush1.bf16.xpose.msra.mxu0 0
        %3456 = vmatprep.subr.bf16.mxu0 0
        %3457 = vmatpush1.bf16.xpose.msra.mxu0 0
        %3458 = vmatprep.subr.bf16.mxu0 0
        %3459 = vmatpush1.bf16.xpose.msra.mxu0 0
        %3460 = vmatprep.subr.bf16.mxu0 0
        %3461 = vmatpush1.bf16.xpose.msra.mxu0 %v3444
        %3462 = vmatprep.subr.bf16.mxu0 0
        %3463 = vmatpush2.bf16.xpose.msra.mxu0 0
        %3464 = vmatprep.subr.bf16.mxu0 0
        %3465 = vmatpush2.bf16.xpose.msra.mxu0 0
        %3466 = vmatprep.subr.bf16.mxu0 0
        %3467 = vmatpush2.bf16.xpose.msra.mxu0 0
        %3468 = vmatprep.subr.bf16.mxu0 0
        %3469 = vmatpush2.bf16.xpose.msra.mxu0 0
        %3470 = vmatprep.subr.bf16.mxu0 0
        %3471 = vmatpush2.bf16.xpose.msra.mxu0 0
        %3472 = vmatprep.subr.bf16.mxu0 0
        %3473 = vmatpush2.bf16.xpose.msra.mxu0 0
        %3474 = vmatprep.subr.bf16.mxu0 0
        %3475 = vmatpush2.bf16.xpose.msra.mxu0 0
        %3476 = vmatprep.subr.bf16.mxu0 0
        %3477 = vmatpush2.bf16.xpose.msra.mxu0 0
        %3478 = vmatprep.mubr.bf16.mxu0 0
        %3479 = vmatmul.mubr.bf16.gmra.mxu0 %v3441
        %v3480 = vpop.f32.mrf.mxu0
        %v3481 = vadd.f32 0.0, %v3480
        %v3482 = vpop.f32.mrf.mxu0
        %v3483 = vpop.f32.mrf.mxu0
        %v3484 = vpop.f32.mrf.mxu0
        %3485 = vdwg.mxu0
        %3486 = vrot.lane.b32.xlu0 %v2879, 64
        %v3487 = vpop.permute.xlu0 %3486
        %3488 = vrot.lane.b32.xlu0 %v2881, 64
        %v3489 = vpop.permute.xlu0 %3488
        %v3491 = vsel %vm1419, %v3487, 0
        %v3494 = vsel %vm1419, %v3489, 0
        %3496 = vmatprep.subr.bf16.mxu0 0
        %3497 = vmatpush1.bf16.xpose.msra.mxu0 0
        %3498 = vmatprep.subr.bf16.mxu0 0
        %3499 = vmatpush1.bf16.xpose.msra.mxu0 0
        %3500 = vmatprep.subr.bf16.mxu0 0
        %3501 = vmatpush1.bf16.xpose.msra.mxu0 0
        %3502 = vmatprep.subr.bf16.mxu0 0
        %3503 = vmatpush1.bf16.xpose.msra.mxu0 0
        %3504 = vmatprep.subr.bf16.mxu0 0
        %3505 = vmatpush1.bf16.xpose.msra.mxu0 0
        %3506 = vmatprep.subr.bf16.mxu0 0
        %3507 = vmatpush1.bf16.xpose.msra.mxu0 0
        %3508 = vmatprep.subr.bf16.mxu0 0
        %3509 = vmatpush1.bf16.xpose.msra.mxu0 0
        %3510 = vmatprep.subr.bf16.mxu0 0
        %3511 = vmatpush1.bf16.xpose.msra.mxu0 %v3494
        %3512 = vmatprep.subr.bf16.mxu0 0
        %3513 = vmatpush2.bf16.xpose.msra.mxu0 0
        %3514 = vmatprep.subr.bf16.mxu0 0
        %3515 = vmatpush2.bf16.xpose.msra.mxu0 0
        %3516 = vmatprep.subr.bf16.mxu0 0
        %3517 = vmatpush2.bf16.xpose.msra.mxu0 0
        %3518 = vmatprep.subr.bf16.mxu0 0
        %3519 = vmatpush2.bf16.xpose.msra.mxu0 0
        %3520 = vmatprep.subr.bf16.mxu0 0
        %3521 = vmatpush2.bf16.xpose.msra.mxu0 0
        %3522 = vmatprep.subr.bf16.mxu0 0
        %3523 = vmatpush2.bf16.xpose.msra.mxu0 0
        %3524 = vmatprep.subr.bf16.mxu0 0
        %3525 = vmatpush2.bf16.xpose.msra.mxu0 0
        %3526 = vmatprep.subr.bf16.mxu0 0
        %3527 = vmatpush2.bf16.xpose.msra.mxu0 0
        %3528 = vmatprep.mubr.bf16.mxu0 0
        %3529 = vmatmul.mubr.bf16.gmra.mxu0 %v3491
        %v3530 = vpop.f32.mrf.mxu0
        %v3531 = vadd.f32 0.0, %v3530
        %v3532 = vpop.f32.mrf.mxu0
        %v3533 = vpop.f32.mrf.mxu0
        %v3534 = vpop.f32.mrf.mxu0
        %3535 = vdwg.mxu0
        %v3536 = vmul.f32 %v3481, 0.17677669
        %v3537 = vmul.f32 %v3531, 0.17677669
        %v3538 = vsel %vm1516, %v3536, -inf
        %3539 = vmax.xlane.f32.xlu0 %v3538
        %v3540 = vpop.xlane.xlu0 %3539
        %v3541 = vsel %vm1516, %v3537, -inf
        %3542 = vmax.xlane.f32.xlu0 %v3541
        %v3543 = vpop.xlane.xlu0 %3542
        %v3544 = vsub.f32 %v3536, %v3540
        %v3545 = vsub.f32 %v3537, %v3543
        %v3546 = vmul.f32 %v3544, 1.442695
        %v3547 = vpow.pop %v3546
        %v3548 = vmul.f32 %v3545, 1.442695
        %v3549 = vpow.pop %v3548
        %v3550 = vsel %vm1516, %v3547, 0.0
        %3551 = vadd.xlane.f32.xlu0 %v3550
        %v3552 = vpop.xlane.xlu0 %3551
        %v3553 = vsel %vm1516, %v3549, 0.0
        %3554 = vadd.xlane.f32.xlu0 %v3553
        %v3555 = vpop.xlane.xlu0 %3554
        %v3556 = vrcp.pop %v3552
        %v3557 = vrcp.pop %v3555
        %v3558 = vmul.f32 %v3547, %v3556
        %v3559 = vmul.f32 %v3549, %v3557
        %v3560 = vpack.c.bf16 %v3558, %v3558
        %v3561 = vpack.c.bf16 %v3559, %v3559
        %3562 = vrot.lane.b32.xlu0 %v3000, 64
        %v3563 = vpop.permute.xlu0 %3562
        %v3565 = vsel %vm1516, %v3560, 0
        %v3568 = vsel %vm1546, %v3563, 0
        %3570 = vmatprep.subr.bf16.mxu0 0
        %3571 = vmatpush1.bf16.msra.mxu0 0
        %3572 = vmatprep.subr.bf16.mxu0 0
        %3573 = vmatpush1.bf16.msra.mxu0 0
        %3574 = vmatprep.subr.bf16.mxu0 0
        %3575 = vmatpush1.bf16.msra.mxu0 0
        %3576 = vmatprep.subr.bf16.mxu0 0
        %3577 = vmatpush1.bf16.msra.mxu0 0
        %3578 = vmatprep.subr.bf16.mxu0 0
        %3579 = vmatpush1.bf16.msra.mxu0 0
        %3580 = vmatprep.subr.bf16.mxu0 0
        %3581 = vmatpush1.bf16.msra.mxu0 0
        %3582 = vmatprep.subr.bf16.mxu0 0
        %3583 = vmatpush1.bf16.msra.mxu0 0
        %3584 = vmatprep.subr.bf16.mxu0 0
        %3585 = vmatpush1.bf16.msra.mxu0 %v3568
        %3586 = vmatprep.subr.bf16.mxu0 0
        %3587 = vmatpush2.bf16.msra.mxu0 0
        %3588 = vmatprep.subr.bf16.mxu0 0
        %3589 = vmatpush2.bf16.msra.mxu0 0
        %3590 = vmatprep.subr.bf16.mxu0 0
        %3591 = vmatpush2.bf16.msra.mxu0 0
        %3592 = vmatprep.subr.bf16.mxu0 0
        %3593 = vmatpush2.bf16.msra.mxu0 0
        %3594 = vmatprep.subr.bf16.mxu0 0
        %3595 = vmatpush2.bf16.msra.mxu0 0
        %3596 = vmatprep.subr.bf16.mxu0 0
        %3597 = vmatpush2.bf16.msra.mxu0 0
        %3598 = vmatprep.subr.bf16.mxu0 0
        %3599 = vmatpush2.bf16.msra.mxu0 0
        %3600 = vmatprep.subr.bf16.mxu0 0
        %3601 = vmatpush2.bf16.msra.mxu0 0
        %3602 = vmatprep.mubr.bf16.mxu0 0
        %3603 = vmatmul.mubr.bf16.gmra.mxu0 %v3565
        %v3604 = vpop.f32.mrf.mxu0
        %v3605 = vadd.f32 0.0, %v3604
        %v3606 = vpop.f32.mrf.mxu0
        %v3607 = vpop.f32.mrf.mxu0
        %v3608 = vpop.f32.mrf.mxu0
        %3609 = vdwg.mxu0
        %3610 = vrot.lane.b32.xlu0 %v3001, 64
        %v3611 = vpop.permute.xlu0 %3610
        %v3613 = vsel %vm1516, %v3561, 0
        %v3616 = vsel %vm1546, %v3611, 0
        %3618 = vmatprep.subr.bf16.mxu0 0
        %3619 = vmatpush1.bf16.msra.mxu0 0
        %3620 = vmatprep.subr.bf16.mxu0 0
        %3621 = vmatpush1.bf16.msra.mxu0 0
        %3622 = vmatprep.subr.bf16.mxu0 0
        %3623 = vmatpush1.bf16.msra.mxu0 0
        %3624 = vmatprep.subr.bf16.mxu0 0
        %3625 = vmatpush1.bf16.msra.mxu0 0
        %3626 = vmatprep.subr.bf16.mxu0 0
        %3627 = vmatpush1.bf16.msra.mxu0 0
        %3628 = vmatprep.subr.bf16.mxu0 0
        %3629 = vmatpush1.bf16.msra.mxu0 0
        %3630 = vmatprep.subr.bf16.mxu0 0
        %3631 = vmatpush1.bf16.msra.mxu0 0
        %3632 = vmatprep.subr.bf16.mxu0 0
        %3633 = vmatpush1.bf16.msra.mxu0 %v3616
        %3634 = vmatprep.subr.bf16.mxu0 0
        %3635 = vmatpush2.bf16.msra.mxu0 0
        %3636 = vmatprep.subr.bf16.mxu0 0
        %3637 = vmatpush2.bf16.msra.mxu0 0
        %3638 = vmatprep.subr.bf16.mxu0 0
        %3639 = vmatpush2.bf16.msra.mxu0 0
        %3640 = vmatprep.subr.bf16.mxu0 0
        %3641 = vmatpush2.bf16.msra.mxu0 0
        %3642 = vmatprep.subr.bf16.mxu0 0
        %3643 = vmatpush2.bf16.msra.mxu0 0
        %3644 = vmatprep.subr.bf16.mxu0 0
        %3645 = vmatpush2.bf16.msra.mxu0 0
        %3646 = vmatprep.subr.bf16.mxu0 0
        %3647 = vmatpush2.bf16.msra.mxu0 0
        %3648 = vmatprep.subr.bf16.mxu0 0
        %3649 = vmatpush2.bf16.msra.mxu0 0
        %3650 = vmatprep.mubr.bf16.mxu0 0
        %3651 = vmatmul.mubr.bf16.gmra.mxu0 %v3613
        %v3652 = vpop.f32.mrf.mxu0
        %v3653 = vadd.f32 0.0, %v3652
        %v3654 = vpop.f32.mrf.mxu0
        %v3655 = vpop.f32.mrf.mxu0
        %v3656 = vpop.f32.mrf.mxu0
        %3657 = vdwg.mxu0
        %v3658 = vpack.c.bf16 %v3653, %v3605
        %v3663 = vunpack.c.l.b16 %v2870
        %v3664 = vunpack.c.l.b16 %v2871
        %v3665 = vunpack.c.l.b16 %v2872
        %v3666 = vunpack.c.l.b16 %v2873
        %v3667 = vpack.c.b16 %v3664, %v3663
        %v3668 = vpack.c.b16 %v3666, %v3665
        %v3672 = vsel %vm1419, %v3658, 0
        %3674 = vmatprep.subr.bf16.mxu0 0
        %3675 = vmatpush1.bf16.msra.mxu0 0
        %3676 = vmatprep.subr.bf16.mxu0 0
        %3677 = vmatpush1.bf16.msra.mxu0 0
        %3678 = vmatprep.subr.bf16.mxu0 0
        %3679 = vmatpush1.bf16.msra.mxu0 0
        %3680 = vmatprep.subr.bf16.mxu0 0
        %3681 = vmatpush1.bf16.msra.mxu0 0
        %3682 = vmatprep.subr.bf16.mxu0 0
        %3683 = vmatpush1.bf16.msra.mxu0 0
        %3684 = vmatprep.subr.bf16.mxu0 0
        %3685 = vmatpush1.bf16.msra.mxu0 0
        %3686 = vmatprep.subr.bf16.mxu0 0
        %3687 = vmatpush1.bf16.msra.mxu0 %v3668
        %3688 = vmatprep.subr.bf16.mxu0 0
        %3689 = vmatpush1.bf16.msra.mxu0 %v3667
        %3690 = vmatprep.subr.bf16.mxu0 0
        %3691 = vmatpush2.bf16.msra.mxu0 0
        %3692 = vmatprep.subr.bf16.mxu0 0
        %3693 = vmatpush2.bf16.msra.mxu0 0
        %3694 = vmatprep.subr.bf16.mxu0 0
        %3695 = vmatpush2.bf16.msra.mxu0 0
        %3696 = vmatprep.subr.bf16.mxu0 0
        %3697 = vmatpush2.bf16.msra.mxu0 0
        %3698 = vmatprep.subr.bf16.mxu0 0
        %3699 = vmatpush2.bf16.msra.mxu0 0
        %3700 = vmatprep.subr.bf16.mxu0 0
        %3701 = vmatpush2.bf16.msra.mxu0 0
        %3702 = vmatprep.subr.bf16.mxu0 0
        %3703 = vmatpush2.bf16.msra.mxu0 0
        %3704 = vmatprep.subr.bf16.mxu0 0
        %3705 = vmatpush2.bf16.msra.mxu0 0
        %3706 = vmatprep.mubr.bf16.mxu0 0
        %3707 = vmatmul.mubr.bf16.gmra.mxu0 %v3672
        %v3708 = vpop.f32.mrf.mxu0
        %v3709 = vadd.f32 0.0, %v3708
        %v3710 = vpop.f32.mrf.mxu0
        %v3711 = vpop.f32.mrf.mxu0
        %v3712 = vadd.f32 0.0, %v3711
        %v3713 = vpop.f32.mrf.mxu0
        %3714 = vdwg.mxu0
        %v3715 = vadd.f32 %v3430, %v3709
        %v3716 = vadd.f32 %v3433, %v3712
        %3717 = vrot.lane.b32.xlu0 %v2878, 32
        %v3718 = vpop.permute.xlu0 %3717
        %3719 = vrot.lane.b32.xlu0 %v2880, 32
        %v3720 = vpop.permute.xlu0 %3719
        %v3722 = vsel %vm1419, %v3718, 0
        %v3725 = vsel %vm1419, %v3720, 0
        %3727 = vmatprep.subr.bf16.mxu0 0
        %3728 = vmatpush1.bf16.xpose.msra.mxu0 0
        %3729 = vmatprep.subr.bf16.mxu0 0
        %3730 = vmatpush1.bf16.xpose.msra.mxu0 0
        %3731 = vmatprep.subr.bf16.mxu0 0
        %3732 = vmatpush1.bf16.xpose.msra.mxu0 0
        %3733 = vmatprep.subr.bf16.mxu0 0
        %3734 = vmatpush1.bf16.xpose.msra.mxu0 0
        %3735 = vmatprep.subr.bf16.mxu0 0
        %3736 = vmatpush1.bf16.xpose.msra.mxu0 0
        %3737 = vmatprep.subr.bf16.mxu0 0
        %3738 = vmatpush1.bf16.xpose.msra.mxu0 0
        %3739 = vmatprep.subr.bf16.mxu0 0
        %3740 = vmatpush1.bf16.xpose.msra.mxu0 0
        %3741 = vmatprep.subr.bf16.mxu0 0
        %3742 = vmatpush1.bf16.xpose.msra.mxu0 %v3725
        %3743 = vmatprep.subr.bf16.mxu0 0
        %3744 = vmatpush2.bf16.xpose.msra.mxu0 0
        %3745 = vmatprep.subr.bf16.mxu0 0
        %3746 = vmatpush2.bf16.xpose.msra.mxu0 0
        %3747 = vmatprep.subr.bf16.mxu0 0
        %3748 = vmatpush2.bf16.xpose.msra.mxu0 0
        %3749 = vmatprep.subr.bf16.mxu0 0
        %3750 = vmatpush2.bf16.xpose.msra.mxu0 0
        %3751 = vmatprep.subr.bf16.mxu0 0
        %3752 = vmatpush2.bf16.xpose.msra.mxu0 0
        %3753 = vmatprep.subr.bf16.mxu0 0
        %3754 = vmatpush2.bf16.xpose.msra.mxu0 0
        %3755 = vmatprep.subr.bf16.mxu0 0
        %3756 = vmatpush2.bf16.xpose.msra.mxu0 0
        %3757 = vmatprep.subr.bf16.mxu0 0
        %3758 = vmatpush2.bf16.xpose.msra.mxu0 0
        %3759 = vmatprep.mubr.bf16.mxu0 0
        %3760 = vmatmul.mubr.bf16.gmra.mxu0 %v3722
        %v3761 = vpop.f32.mrf.mxu0
        %v3762 = vadd.f32 0.0, %v3761
        %v3763 = vpop.f32.mrf.mxu0
        %v3764 = vpop.f32.mrf.mxu0
        %v3765 = vpop.f32.mrf.mxu0
        %3766 = vdwg.mxu0
        %3767 = vrot.lane.b32.xlu0 %v2879, 32
        %v3768 = vpop.permute.xlu0 %3767
        %3769 = vrot.lane.b32.xlu0 %v2881, 32
        %v3770 = vpop.permute.xlu0 %3769
        %v3772 = vsel %vm1419, %v3768, 0
        %v3775 = vsel %vm1419, %v3770, 0
        %3777 = vmatprep.subr.bf16.mxu0 0
        %3778 = vmatpush1.bf16.xpose.msra.mxu0 0
        %3779 = vmatprep.subr.bf16.mxu0 0
        %3780 = vmatpush1.bf16.xpose.msra.mxu0 0
        %3781 = vmatprep.subr.bf16.mxu0 0
        %3782 = vmatpush1.bf16.xpose.msra.mxu0 0
        %3783 = vmatprep.subr.bf16.mxu0 0
        %3784 = vmatpush1.bf16.xpose.msra.mxu0 0
        %3785 = vmatprep.subr.bf16.mxu0 0
        %3786 = vmatpush1.bf16.xpose.msra.mxu0 0
        %3787 = vmatprep.subr.bf16.mxu0 0
        %3788 = vmatpush1.bf16.xpose.msra.mxu0 0
        %3789 = vmatprep.subr.bf16.mxu0 0
        %3790 = vmatpush1.bf16.xpose.msra.mxu0 0
        %3791 = vmatprep.subr.bf16.mxu0 0
        %3792 = vmatpush1.bf16.xpose.msra.mxu0 %v3775
        %3793 = vmatprep.subr.bf16.mxu0 0
        %3794 = vmatpush2.bf16.xpose.msra.mxu0 0
        %3795 = vmatprep.subr.bf16.mxu0 0
        %3796 = vmatpush2.bf16.xpose.msra.mxu0 0
        %3797 = vmatprep.subr.bf16.mxu0 0
        %3798 = vmatpush2.bf16.xpose.msra.mxu0 0
        %3799 = vmatprep.subr.bf16.mxu0 0
        %3800 = vmatpush2.bf16.xpose.msra.mxu0 0
        %3801 = vmatprep.subr.bf16.mxu0 0
        %3802 = vmatpush2.bf16.xpose.msra.mxu0 0
        %3803 = vmatprep.subr.bf16.mxu0 0
        %3804 = vmatpush2.bf16.xpose.msra.mxu0 0
        %3805 = vmatprep.subr.bf16.mxu0 0
        %3806 = vmatpush2.bf16.xpose.msra.mxu0 0
        %3807 = vmatprep.subr.bf16.mxu0 0
        %3808 = vmatpush2.bf16.xpose.msra.mxu0 0
        %3809 = vmatprep.mubr.bf16.mxu0 0
        %3810 = vmatmul.mubr.bf16.gmra.mxu0 %v3772
        %v3811 = vpop.f32.mrf.mxu0
        %v3812 = vadd.f32 0.0, %v3811
        %v3813 = vpop.f32.mrf.mxu0
        %v3814 = vpop.f32.mrf.mxu0
        %v3815 = vpop.f32.mrf.mxu0
        %3816 = vdwg.mxu0
        %v3817 = vmul.f32 %v3762, 0.17677669
        %v3818 = vmul.f32 %v3812, 0.17677669
        %v3819 = vsel %vm1516, %v3817, -inf
        %3820 = vmax.xlane.f32.xlu0 %v3819
        %v3821 = vpop.xlane.xlu0 %3820
        %v3822 = vsel %vm1516, %v3818, -inf
        %3823 = vmax.xlane.f32.xlu0 %v3822
        %v3824 = vpop.xlane.xlu0 %3823
        %v3825 = vsub.f32 %v3817, %v3821
        %v3826 = vsub.f32 %v3818, %v3824
        %v3827 = vmul.f32 %v3825, 1.442695
        %v3828 = vpow.pop %v3827
        %v3829 = vmul.f32 %v3826, 1.442695
        %v3830 = vpow.pop %v3829
        %v3831 = vsel %vm1516, %v3828, 0.0
        %3832 = vadd.xlane.f32.xlu0 %v3831
        %v3833 = vpop.xlane.xlu0 %3832
        %v3834 = vsel %vm1516, %v3830, 0.0
        %3835 = vadd.xlane.f32.xlu0 %v3834
        %v3836 = vpop.xlane.xlu0 %3835
        %v3837 = vrcp.pop %v3833
        %v3838 = vrcp.pop %v3836
        %v3839 = vmul.f32 %v3828, %v3837
        %v3840 = vmul.f32 %v3830, %v3838
        %v3841 = vpack.c.bf16 %v3839, %v3839
        %v3842 = vpack.c.bf16 %v3840, %v3840
        %3843 = vrot.lane.b32.xlu0 %v3000, 32
        %v3844 = vpop.permute.xlu0 %3843
        %v3846 = vsel %vm1516, %v3841, 0
        %v3849 = vsel %vm1546, %v3844, 0
        %3851 = vmatprep.subr.bf16.mxu0 0
        %3852 = vmatpush1.bf16.msra.mxu0 0
        %3853 = vmatprep.subr.bf16.mxu0 0
        %3854 = vmatpush1.bf16.msra.mxu0 0
        %3855 = vmatprep.subr.bf16.mxu0 0
        %3856 = vmatpush1.bf16.msra.mxu0 0
        %3857 = vmatprep.subr.bf16.mxu0 0
        %3858 = vmatpush1.bf16.msra.mxu0 0
        %3859 = vmatprep.subr.bf16.mxu0 0
        %3860 = vmatpush1.bf16.msra.mxu0 0
        %3861 = vmatprep.subr.bf16.mxu0 0
        %3862 = vmatpush1.bf16.msra.mxu0 0
        %3863 = vmatprep.subr.bf16.mxu0 0
        %3864 = vmatpush1.bf16.msra.mxu0 0
        %3865 = vmatprep.subr.bf16.mxu0 0
        %3866 = vmatpush1.bf16.msra.mxu0 %v3849
        %3867 = vmatprep.subr.bf16.mxu0 0
        %3868 = vmatpush2.bf16.msra.mxu0 0
        %3869 = vmatprep.subr.bf16.mxu0 0
        %3870 = vmatpush2.bf16.msra.mxu0 0
        %3871 = vmatprep.subr.bf16.mxu0 0
        %3872 = vmatpush2.bf16.msra.mxu0 0
        %3873 = vmatprep.subr.bf16.mxu0 0
        %3874 = vmatpush2.bf16.msra.mxu0 0
        %3875 = vmatprep.subr.bf16.mxu0 0
        %3876 = vmatpush2.bf16.msra.mxu0 0
        %3877 = vmatprep.subr.bf16.mxu0 0
        %3878 = vmatpush2.bf16.msra.mxu0 0
        %3879 = vmatprep.subr.bf16.mxu0 0
        %3880 = vmatpush2.bf16.msra.mxu0 0
        %3881 = vmatprep.subr.bf16.mxu0 0
        %3882 = vmatpush2.bf16.msra.mxu0 0
        %3883 = vmatprep.mubr.bf16.mxu0 0
        %3884 = vmatmul.mubr.bf16.gmra.mxu0 %v3846
        %v3885 = vpop.f32.mrf.mxu0
        %v3886 = vadd.f32 0.0, %v3885
        %v3887 = vpop.f32.mrf.mxu0
        %v3888 = vpop.f32.mrf.mxu0
        %v3889 = vpop.f32.mrf.mxu0
        %3890 = vdwg.mxu0
        %3891 = vrot.lane.b32.xlu0 %v3001, 32
        %v3892 = vpop.permute.xlu0 %3891
        %v3894 = vsel %vm1516, %v3842, 0
        %v3897 = vsel %vm1546, %v3892, 0
        %3899 = vmatprep.subr.bf16.mxu0 0
        %3900 = vmatpush1.bf16.msra.mxu0 0
        %3901 = vmatprep.subr.bf16.mxu0 0
        %3902 = vmatpush1.bf16.msra.mxu0 0
        %3903 = vmatprep.subr.bf16.mxu0 0
        %3904 = vmatpush1.bf16.msra.mxu0 0
        %3905 = vmatprep.subr.bf16.mxu0 0
        %3906 = vmatpush1.bf16.msra.mxu0 0
        %3907 = vmatprep.subr.bf16.mxu0 0
        %3908 = vmatpush1.bf16.msra.mxu0 0
        %3909 = vmatprep.subr.bf16.mxu0 0
        %3910 = vmatpush1.bf16.msra.mxu0 0
        %3911 = vmatprep.subr.bf16.mxu0 0
        %3912 = vmatpush1.bf16.msra.mxu0 0
        %3913 = vmatprep.subr.bf16.mxu0 0
        %3914 = vmatpush1.bf16.msra.mxu0 %v3897
        %3915 = vmatprep.subr.bf16.mxu0 0
        %3916 = vmatpush2.bf16.msra.mxu0 0
        %3917 = vmatprep.subr.bf16.mxu0 0
        %3918 = vmatpush2.bf16.msra.mxu0 0
        %3919 = vmatprep.subr.bf16.mxu0 0
        %3920 = vmatpush2.bf16.msra.mxu0 0
        %3921 = vmatprep.subr.bf16.mxu0 0
        %3922 = vmatpush2.bf16.msra.mxu0 0
        %3923 = vmatprep.subr.bf16.mxu0 0
        %3924 = vmatpush2.bf16.msra.mxu0 0
        %3925 = vmatprep.subr.bf16.mxu0 0
        %3926 = vmatpush2.bf16.msra.mxu0 0
        %3927 = vmatprep.subr.bf16.mxu0 0
        %3928 = vmatpush2.bf16.msra.mxu0 0
        %3929 = vmatprep.subr.bf16.mxu0 0
        %3930 = vmatpush2.bf16.msra.mxu0 0
        %3931 = vmatprep.mubr.bf16.mxu0 0
        %3932 = vmatmul.mubr.bf16.gmra.mxu0 %v3894
        %v3933 = vpop.f32.mrf.mxu0
        %v3934 = vadd.f32 0.0, %v3933
        %v3935 = vpop.f32.mrf.mxu0
        %v3936 = vpop.f32.mrf.mxu0
        %v3937 = vpop.f32.mrf.mxu0
        %3938 = vdwg.mxu0
        %v3939 = vpack.c.bf16 %v3934, %v3886
        %v3944 = vunpack.c.l.b16 %v2874
        %v3945 = vunpack.c.l.b16 %v2875
        %v3946 = vunpack.c.l.b16 %v2876
        %v3947 = vunpack.c.l.b16 %v2877
        %v3948 = vpack.c.b16 %v3945, %v3944
        %v3949 = vpack.c.b16 %v3947, %v3946
        %v3953 = vsel %vm1419, %v3939, 0
        %3955 = vmatprep.subr.bf16.mxu0 0
        %3956 = vmatpush1.bf16.msra.mxu0 0
        %3957 = vmatprep.subr.bf16.mxu0 0
        %3958 = vmatpush1.bf16.msra.mxu0 0
        %3959 = vmatprep.subr.bf16.mxu0 0
        %3960 = vmatpush1.bf16.msra.mxu0 0
        %3961 = vmatprep.subr.bf16.mxu0 0
        %3962 = vmatpush1.bf16.msra.mxu0 0
        %3963 = vmatprep.subr.bf16.mxu0 0
        %3964 = vmatpush1.bf16.msra.mxu0 0
        %3965 = vmatprep.subr.bf16.mxu0 0
        %3966 = vmatpush1.bf16.msra.mxu0 0
        %3967 = vmatprep.subr.bf16.mxu0 0
        %3968 = vmatpush1.bf16.msra.mxu0 %v3949
        %3969 = vmatprep.subr.bf16.mxu0 0
        %3970 = vmatpush1.bf16.msra.mxu0 %v3948
        %3971 = vmatprep.subr.bf16.mxu0 0
        %3972 = vmatpush2.bf16.msra.mxu0 0
        %3973 = vmatprep.subr.bf16.mxu0 0
        %3974 = vmatpush2.bf16.msra.mxu0 0
        %3975 = vmatprep.subr.bf16.mxu0 0
        %3976 = vmatpush2.bf16.msra.mxu0 0
        %3977 = vmatprep.subr.bf16.mxu0 0
        %3978 = vmatpush2.bf16.msra.mxu0 0
        %3979 = vmatprep.subr.bf16.mxu0 0
        %3980 = vmatpush2.bf16.msra.mxu0 0
        %3981 = vmatprep.subr.bf16.mxu0 0
        %3982 = vmatpush2.bf16.msra.mxu0 0
        %3983 = vmatprep.subr.bf16.mxu0 0
        %3984 = vmatpush2.bf16.msra.mxu0 0
        %3985 = vmatprep.subr.bf16.mxu0 0
        %3986 = vmatpush2.bf16.msra.mxu0 0
        %3987 = vmatprep.mubr.bf16.mxu0 0
        %3988 = vmatmul.mubr.bf16.gmra.mxu0 %v3953
        %v3989 = vpop.f32.mrf.mxu0
        %v3990 = vadd.f32 0.0, %v3989
        %v3991 = vpop.f32.mrf.mxu0
        %v3992 = vpop.f32.mrf.mxu0
        %v3993 = vadd.f32 0.0, %v3992
        %v3994 = vpop.f32.mrf.mxu0
        %3995 = vdwg.mxu0
        %v3996 = vadd.f32 %v3715, %v3990
        %v3997 = vadd.f32 %v3716, %v3993
        %v3998 = vadd.f32 %v2555, %v3996
        %v3999 = vadd.f32 %v2556, %v3997
        %v4000 = vld [vmem:[%s1071] sm:$0x1]
        %v4002 = vlaneseq
        %v4003 = vshrl.u32 %v4002, 7
        %v4004 = vsub.s32 0, %v4003
        %v4005 = vrot.slane %v4000, %v4004
        %v4007 = vadd.f32 %v3998, %v4005
        %v4008 = vadd.f32 %v3999, %v4005
        %v4009 = vld [vmem:[%s1074] sm:$0x1]
        %v4010 = vld [vmem:[%s1077] sm:$0x1]
        %4011 = vadd.xlane.f32.xlu0 %v4007
        %v4012 = vpop.xlane.xlu0 %4011
        %4013 = vadd.xlane.f32.xlu0 %v4008
        %v4014 = vpop.xlane.xlu0 %4013
        %v4015 = vmul.f32 %v4012, %v1102
        %v4016 = vmul.f32 %v4014, %v1102
        %v4017 = vsub.f32 %v4007, %v4015
        %v4018 = vsub.f32 %v4008, %v4016
        %v4019 = vmul.f32 %v4017, %v4017
        %v4020 = vmul.f32 %v4018, %v4018
        %4021 = vadd.xlane.f32.xlu0 %v4019
        %v4022 = vpop.xlane.xlu0 %4021
        %4023 = vadd.xlane.f32.xlu0 %v4020
        %v4024 = vpop.xlane.xlu0 %4023
        %v4025 = vmul.f32 %v4022, %v1102
        %v4026 = vmul.f32 %v4024, %v1102
        %v4027 = vadd.f32 %v4025, 1e-05
        %v4028 = vadd.f32 %v4026, 1e-05
        %v4029 = vrsqrt.pop %v4027
        %v4030 = vrsqrt.pop %v4028
        %v4031 = vmul.f32 %v4017, %v4029
        %v4032 = vmul.f32 %v4018, %v4030
        %v4034 = vlaneseq
        %v4035 = vshrl.u32 %v4034, 7
        %v4036 = vsub.s32 0, %v4035
        %v4037 = vrot.slane %v4009, %v4036
        %v4039 = vmul.f32 %v4031, %v4037
        %v4040 = vmul.f32 %v4032, %v4037
        %v4042 = vlaneseq
        %v4043 = vshrl.u32 %v4042, 7
        %v4044 = vsub.s32 0, %v4043
        %v4045 = vrot.slane %v4010, %v4044
        %v4047 = vadd.f32 %v4039, %v4045
        %v4048 = vadd.f32 %v4040, %v4045
        %v4049 = vld [vmem:[%s876] sm:$0xf]
        %v4050 = vld [vmem:[%s876 + $0x4] sm:$0xf]
        %v4051 = vld [vmem:[%s876 + $0x8] sm:$0xf]
        %v4052 = vld [vmem:[%s876 + $0xc] sm:$0xf]
        %v4053 = vld [vmem:[%s876 + $0x10] sm:$0xf]
        %v4054 = vld [vmem:[%s876 + $0x14] sm:$0xf]
        %v4055 = vld [vmem:[%s876 + $0x18] sm:$0xf]
        %v4056 = vld [vmem:[%s876 + $0x1c] sm:$0xf]
        %v4057 = vld [vmem:[%s876 + $0x20] sm:$0xf]
        %v4058 = vld [vmem:[%s876 + $0x24] sm:$0xf]
        %v4059 = vld [vmem:[%s876 + $0x28] sm:$0xf]
        %v4060 = vld [vmem:[%s876 + $0x2c] sm:$0xf]
        %v4061 = vld [vmem:[%s876 + $0x30] sm:$0xf]
        %v4062 = vld [vmem:[%s876 + $0x34] sm:$0xf]
        %v4063 = vld [vmem:[%s876 + $0x38] sm:$0xf]
        %v4064 = vld [vmem:[%s876 + $0x3c] sm:$0xf]
        %v4065 = vpack.c.bf16 %v4048, %v4047
        %v4066 = vld [vmem:[%s1080] sm:$0x1]
        %v4068 = vlaneseq
        %v4069 = vshrl.u32 %v4068, 7
        %v4070 = vsub.s32 0, %v4069
        %v4071 = vrot.slane %v4066, %v4070
        %v4089 = vunpack.c.l.b16 %v4049
        %v4090 = vunpack.c.l.b16 %v4050
        %v4091 = vunpack.c.l.b16 %v4051
        %v4092 = vunpack.c.l.b16 %v4052
        %v4093 = vunpack.c.l.b16 %v4053
        %v4094 = vunpack.c.l.b16 %v4054
        %v4095 = vunpack.c.l.b16 %v4055
        %v4096 = vunpack.c.l.b16 %v4056
        %v4097 = vunpack.c.l.b16 %v4057
        %v4098 = vunpack.c.l.b16 %v4058
        %v4099 = vunpack.c.l.b16 %v4059
        %v4100 = vunpack.c.l.b16 %v4060
        %v4101 = vunpack.c.l.b16 %v4061
        %v4102 = vunpack.c.l.b16 %v4062
        %v4103 = vunpack.c.l.b16 %v4063
        %v4104 = vunpack.c.l.b16 %v4064
        %v4105 = vpack.c.b16 %v4090, %v4089
        %v4106 = vpack.c.b16 %v4092, %v4091
        %v4107 = vpack.c.b16 %v4094, %v4093
        %v4108 = vpack.c.b16 %v4096, %v4095
        %v4109 = vpack.c.b16 %v4098, %v4097
        %v4110 = vpack.c.b16 %v4100, %v4099
        %v4111 = vpack.c.b16 %v4102, %v4101
        %v4112 = vpack.c.b16 %v4104, %v4103
        %4121 = vmatprep.subr.bf16.mxu0 0
        %4122 = vmatpush1.bf16.msra.mxu0 %v4112
        %4123 = vmatprep.subr.bf16.mxu0 0
        %4124 = vmatpush1.bf16.msra.mxu0 %v4111
        %4125 = vmatprep.subr.bf16.mxu0 0
        %4126 = vmatpush1.bf16.msra.mxu0 %v4110
        %4127 = vmatprep.subr.bf16.mxu0 0
        %4128 = vmatpush1.bf16.msra.mxu0 %v4109
        %4129 = vmatprep.subr.bf16.mxu0 0
        %4130 = vmatpush1.bf16.msra.mxu0 %v4108
        %4131 = vmatprep.subr.bf16.mxu0 0
        %4132 = vmatpush1.bf16.msra.mxu0 %v4107
        %4133 = vmatprep.subr.bf16.mxu0 0
        %4134 = vmatpush1.bf16.msra.mxu0 %v4106
        %4135 = vmatprep.subr.bf16.mxu0 0
        %4136 = vmatpush1.bf16.msra.mxu0 %v4105
        %4137 = vmatprep.subr.bf16.mxu0 0
        %4138 = vmatpush2.bf16.msra.mxu0 0
        %4139 = vmatprep.subr.bf16.mxu0 0
        %4140 = vmatpush2.bf16.msra.mxu0 0
        %4141 = vmatprep.subr.bf16.mxu0 0
        %4142 = vmatpush2.bf16.msra.mxu0 0
        %4143 = vmatprep.subr.bf16.mxu0 0
        %4144 = vmatpush2.bf16.msra.mxu0 0
        %4145 = vmatprep.subr.bf16.mxu0 0
        %4146 = vmatpush2.bf16.msra.mxu0 0
        %4147 = vmatprep.subr.bf16.mxu0 0
        %4148 = vmatpush2.bf16.msra.mxu0 0
        %4149 = vmatprep.subr.bf16.mxu0 0
        %4150 = vmatpush2.bf16.msra.mxu0 0
        %4151 = vmatprep.subr.bf16.mxu0 0
        %4152 = vmatpush2.bf16.msra.mxu0 0
        %4153 = vmatprep.mubr.bf16.mxu0 0
        %4154 = vmatmul.mubr.bf16.gmra.mxu0 %v4065
        %v4155 = vpop.f32.mrf.mxu0
        %v4156 = vadd.f32 %v4071, %v4155
        %v4157 = vpop.f32.mrf.mxu0
        %v4158 = vpop.f32.mrf.mxu0
        %v4159 = vadd.f32 %v4071, %v4158
        %v4160 = vpop.f32.mrf.mxu0
        %4161 = vdwg.mxu0
        %v4162 = vmul.f32 %v4156, 0.5
        %v4163 = vmul.f32 %v4159, 0.5
        %v4164 = vmul.f32 %v4156, 0.044715
        %v4165 = vmul.f32 %v4159, 0.044715
        %v4166 = vmul.f32 %v4164, %v4156
        %v4167 = vmul.f32 %v4165, %v4159
        %v4168 = vmul.f32 %v4166, %v4156
        %v4169 = vmul.f32 %v4167, %v4159
        %v4170 = vadd.f32 %v4156, %v4168
        %v4171 = vadd.f32 %v4159, %v4169
        %v4172 = vmul.f32 %v4170, 0.7978846
        %v4173 = vmul.f32 %v4171, 0.7978846
        %v4174 = vtanh.pop %v4172
        %v4175 = vtanh.pop %v4173
        %v4176 = vadd.f32 %v4174, 1.0
        %v4177 = vadd.f32 %v4175, 1.0
        %v4178 = vmul.f32 %v4162, %v4176
        %v4179 = vmul.f32 %v4163, %v4177
        %v4180 = vld [vmem:[%s885] sm:$0xf]
        %v4181 = vld [vmem:[%s885 + $0x4] sm:$0xf]
        %v4182 = vld [vmem:[%s885 + $0x8] sm:$0xf]
        %v4183 = vld [vmem:[%s885 + $0xc] sm:$0xf]
        %v4184 = vld [vmem:[%s885 + $0x10] sm:$0xf]
        %v4185 = vld [vmem:[%s885 + $0x14] sm:$0xf]
        %v4186 = vld [vmem:[%s885 + $0x18] sm:$0xf]
        %v4187 = vld [vmem:[%s885 + $0x1c] sm:$0xf]
        %v4188 = vld [vmem:[%s885 + $0x20] sm:$0xf]
        %v4189 = vld [vmem:[%s885 + $0x24] sm:$0xf]
        %v4190 = vld [vmem:[%s885 + $0x28] sm:$0xf]
        %v4191 = vld [vmem:[%s885 + $0x2c] sm:$0xf]
        %v4192 = vld [vmem:[%s885 + $0x30] sm:$0xf]
        %v4193 = vld [vmem:[%s885 + $0x34] sm:$0xf]
        %v4194 = vld [vmem:[%s885 + $0x38] sm:$0xf]
        %v4195 = vld [vmem:[%s885 + $0x3c] sm:$0xf]
        %v4196 = vpack.c.bf16 %v4179, %v4178
        %v4213 = vunpack.c.l.b16 %v4180
        %v4214 = vunpack.c.l.b16 %v4181
        %v4215 = vunpack.c.l.b16 %v4182
        %v4216 = vunpack.c.l.b16 %v4183
        %v4217 = vunpack.c.l.b16 %v4184
        %v4218 = vunpack.c.l.b16 %v4185
        %v4219 = vunpack.c.l.b16 %v4186
        %v4220 = vunpack.c.l.b16 %v4187
        %v4221 = vunpack.c.l.b16 %v4188
        %v4222 = vunpack.c.l.b16 %v4189
        %v4223 = vunpack.c.l.b16 %v4190
        %v4224 = vunpack.c.l.b16 %v4191
        %v4225 = vunpack.c.l.b16 %v4192
        %v4226 = vunpack.c.l.b16 %v4193
        %v4227 = vunpack.c.l.b16 %v4194
        %v4228 = vunpack.c.l.b16 %v4195
        %v4229 = vpack.c.b16 %v4214, %v4213
        %v4230 = vpack.c.b16 %v4216, %v4215
        %v4231 = vpack.c.b16 %v4218, %v4217
        %v4232 = vpack.c.b16 %v4220, %v4219
        %v4233 = vpack.c.b16 %v4222, %v4221
        %v4234 = vpack.c.b16 %v4224, %v4223
        %v4235 = vpack.c.b16 %v4226, %v4225
        %v4236 = vpack.c.b16 %v4228, %v4227
        %4245 = vmatprep.subr.bf16.mxu0 0
        %4246 = vmatpush1.bf16.msra.mxu0 %v4236
        %4247 = vmatprep.subr.bf16.mxu0 0
        %4248 = vmatpush1.bf16.msra.mxu0 %v4235
        %4249 = vmatprep.subr.bf16.mxu0 0
        %4250 = vmatpush1.bf16.msra.mxu0 %v4234
        %4251 = vmatprep.subr.bf16.mxu0 0
        %4252 = vmatpush1.bf16.msra.mxu0 %v4233
        %4253 = vmatprep.subr.bf16.mxu0 0
        %4254 = vmatpush1.bf16.msra.mxu0 %v4232
        %4255 = vmatprep.subr.bf16.mxu0 0
        %4256 = vmatpush1.bf16.msra.mxu0 %v4231
        %4257 = vmatprep.subr.bf16.mxu0 0
        %4258 = vmatpush1.bf16.msra.mxu0 %v4230
        %4259 = vmatprep.subr.bf16.mxu0 0
        %4260 = vmatpush1.bf16.msra.mxu0 %v4229
        %4261 = vmatprep.subr.bf16.mxu0 0
        %4262 = vmatpush2.bf16.msra.mxu0 0
        %4263 = vmatprep.subr.bf16.mxu0 0
        %4264 = vmatpush2.bf16.msra.mxu0 0
        %4265 = vmatprep.subr.bf16.mxu0 0
        %4266 = vmatpush2.bf16.msra.mxu0 0
        %4267 = vmatprep.subr.bf16.mxu0 0
        %4268 = vmatpush2.bf16.msra.mxu0 0
        %4269 = vmatprep.subr.bf16.mxu0 0
        %4270 = vmatpush2.bf16.msra.mxu0 0
        %4271 = vmatprep.subr.bf16.mxu0 0
        %4272 = vmatpush2.bf16.msra.mxu0 0
        %4273 = vmatprep.subr.bf16.mxu0 0
        %4274 = vmatpush2.bf16.msra.mxu0 0
        %4275 = vmatprep.subr.bf16.mxu0 0
        %4276 = vmatpush2.bf16.msra.mxu0 0
        %4277 = vmatprep.mubr.bf16.mxu0 0
        %4278 = vmatmul.mubr.bf16.gmra.mxu0 %v4196
        %v4279 = vpop.f32.mrf.mxu0
        %v4280 = vadd.f32 0.0, %v4279
        %v4281 = vpop.f32.mrf.mxu0
        %v4282 = vpop.f32.mrf.mxu0
        %v4283 = vadd.f32 0.0, %v4282
        %v4284 = vpop.f32.mrf.mxu0
        %4285 = vdwg.mxu0
        %v4286 = vadd.f32 %v4007, %v4280
        %v4287 = vadd.f32 %v4008, %v4283
        %v4288 = vld [vmem:[%s893] sm:$0x1]
        %v4290 = vlaneseq
        %v4291 = vshrl.u32 %v4290, 7
        %v4292 = vsub.s32 0, %v4291
        %v4293 = vrot.slane %v4288, %v4292
        %v4295 = vadd.f32 %v4286, %v4293
        %v4296 = vadd.f32 %v4287, %v4293
        %4297 = vst [vmem:[#allocation2] sm:$0xff] %v4295
        %4298 = vst [vmem:[#allocation2 + $0x8] sm:$0xff] %v4296
        %p4299 = scmp.eq.s32.totalorder %s43, 11
        // Predicated region
        $region133: #{forward.4} parent=111 // pred_check
          %p4300 = pneg %p4299
        $region134: #{forward.4} parent=111 // pred_check_branch
          %4302 = sbr.rel (%p4300) target = $region136
        $region135: #{forward.4} parent=111 // pred_region
          %4303 = vst [vmem:[%s23] sm:$0xff] %v4295
          %4304 = vst [vmem:[%s23 + $0x8] sm:$0xff] %v4296
        $region136: #{forward.4} parent=111 // pred_fallthru
          _
        // Predicated region
        $region137: #{forward.4} parent=111 // pred_check
          %p4305 = pneg %p639
        $region138: #{forward.4} parent=111 // pred_check_branch
          %4307 = sbr.rel (%p4305) target = $region140
        $region139: #{forward.4} parent=111 // pred_region
          _
        $region140: #{forward.4} parent=111 // pred_fallthru
          _
        // Predicated region
        $region141: #{forward.4} parent=111 // pred_check
          %p4308 = pneg %p639
        $region142: #{forward.4} parent=111 // pred_check_branch
          %4310 = sbr.rel (%p4308) target = $region144
        $region143: #{forward.4} parent=111 // pred_region
          _
        $region144: #{forward.4} parent=111 // pred_fallthru
          _
      $region112: #{forward.4} parent=5 // pred_fallthru
        _
      %p4311 = scmp.le.s32.totalorder 2, %s38
      // Predicated region
      $region145: #{forward.4} parent=5 // pred_check
        %p4312 = pneg %p4311
      $region146: #{forward.4} parent=5 // pred_check_branch
        %4314 = sbr.rel (%p4312) target = $region148
      $region147: #{forward.4} parent=5 // pred_region
        %s4315 = ssub.s32 %s38, 2
      $region148: #{forward.4} parent=5 // pred_fallthru
        _
    $region6: #{forward.4} parent=1 // loop_footer
      %s42 = sadd.s32 1, %s38
    $region7: #{forward.4} parent=1 // loop_footer_branch
      %37 = sbr.rel target = $region3
    $region8: #{forward.4} parent=1 // loop_exit
      _
    %4316 = vsyncpa [#allocation4], 1
    %s4317 = scalar_lea.sflag [#allocation4], 1
    %4318 = vsyncpa %s4317, 1
    %4319 = vsyncpa [#allocation6], 1
    %s4320 = scalar_lea.sflag [#allocation6], 1
    %4321 = vsyncpa %s4320, 1
    %4322 = vsyncpa [#allocation9], 1
    %s4323 = scalar_lea.sflag [#allocation9], 1
    %4324 = vsyncpa %s4323, 1

</llo_original>
